<compile_context>
chip_gen: v6e
topology: v6e:2x2x1
jax: 0.10.0
libtpu: 0.0.40
codegen_flags: <defaults>
</compile_context>

<pallas_src>
import functools
import math

import jax
import jax.numpy as jnp
import numpy as np
from jax.experimental import pallas as pl
from jax.experimental.pallas import tpu as pltpu

VMEM_SPEC = pl.BlockSpec(memory_space=pltpu.MemorySpace.VMEM)


# ----------------------------- Fused Pallas kernel -------------------------- #

def _encoder_kernel(x_ref, len_ref, ew_ref, eb_ref, *refs, T, B, H, num_layer):
    # ---- unpack refs: per-layer weights, fc weights, outputs, scratch ----
    layer_w = [refs[4 * l: 4 * l + 4] for l in range(num_layer)]  # wih, b, whh_f, whh_r
    k = 4 * num_layer
    fcw_ref, fcb_ref = refs[k], refs[k + 1]
    enc_ref, hc_ref = refs[k + 2], refs[k + 3]
    pre_ref, seqf_ref, seqr_ref = refs[k + 4], refs[k + 5], refs[k + 6]

    G4 = 4 * H
    lens = len_ref[...]                       # (B, 1) int32 sequence lengths

    h0_f = c0_f = h0_r = c0_r = None

    for layer in range(num_layer):
        wih_ref, b_ref, whhf_ref, whhr_ref = layer_w[layer]
        wih = wih_ref[...]                    # (in_l, 8H) packed [fwd 4H | rev 4H]
        bias = b_ref[...]                     # (1, 8H)  (b_ih + b_hh, both dirs)

        # ---- hoisted input projection: pre-gates for every timestep, both dirs
        if layer == 0:
            ew = ew_ref[...]
            eb = eb_ref[...]
            for t in range(T):
                # embed_fc -> (dropout: identity at inference) -> ReLU
                emb_t = jnp.maximum(
                    jnp.dot(x_ref[t], ew, preferred_element_type=jnp.float32) + eb,
                    0.0)
                pre_ref[t] = (jnp.dot(emb_t, wih,
                                      preferred_element_type=jnp.float32) + bias)
            # TODO(synk): training-mode dropout (RNG mask) not implemented.
        else:
            for t in range(T):
                x_t = jnp.concatenate([seqf_ref[t], seqr_ref[t]], axis=-1)  # (B,2H)
                pre_ref[t] = (jnp.dot(x_t, wih,
                                      preferred_element_type=jnp.float32) + bias)

        whh_f = whhf_ref[...]                 # (H, 4H)
        whh_r = whhr_ref[...]

        hf = jnp.zeros((B, H), jnp.float32)
        cf = jnp.zeros((B, H), jnp.float32)
        hr = jnp.zeros((B, H), jnp.float32)
        cr = jnp.zeros((B, H), jnp.float32)

        # ---- fused fwd+rev recurrent loop, fully unrolled (T is small/static)
        for s in range(T):
            tf = s
            tr = T - 1 - s
            # per step only the recurrent h @ Whh matmuls remain on the serial chain
            gf = pre_ref[tf][:, :G4] + jnp.dot(
                hf, whh_f, preferred_element_type=jnp.float32)
            gr = pre_ref[tr][:, G4:] + jnp.dot(
                hr, whh_r, preferred_element_type=jnp.float32)

            def lstm_update(g, h, c, t):
                i_g = jax.nn.sigmoid(g[:, 0:H])
                f_g = jax.nn.sigmoid(g[:, H:2 * H])
                g_g = jnp.tanh(g[:, 2 * H:3 * H])
                o_g = jax.nn.sigmoid(g[:, 3 * H:4 * H])
                c_new = f_g * c + i_g * g_g
                h_new = o_g * jnp.tanh(c_new)
                m = t < lens                              # packed-sequence mask
                return (jnp.where(m, h_new, h),
                        jnp.where(m, c_new, c),
                        jnp.where(m, h_new, 0.0))

            hf, cf, outf = lstm_update(gf, hf, cf, tf)
            hr, cr, outr = lstm_update(gr, hr, cr, tr)
            seqf_ref[tf] = outf
            seqr_ref[tr] = outr

        if layer == 0:                        # PyTorch hidden[0:1] / hidden[1:2]
            h0_f, c0_f, h0_r, c0_r = hf, cf, hr, cr

    # ---- encoder_states = concat(fwd, rev), zero-padded past each length ----
    for t in range(T):
        enc_ref[t] = jnp.concatenate([seqf_ref[t], seqr_ref[t]], axis=-1)

    # ---- fused tail: fc_hidden/tanh applied once to stacked [h_cat; c_cat] ---
    # Reference module applies fc_hidden (not fc_cell) to the cell state too —
    # reproduced intentionally.
    h_cat = jnp.concatenate([h0_f, h0_r], axis=-1)        # (B, 2H)
    c_cat = jnp.concatenate([c0_f, c0_r], axis=-1)        # (B, 2H)
    stack = jnp.concatenate([h_cat, c_cat], axis=0)       # (2B, 2H)
    hc_ref[...] = jnp.tanh(
        jnp.dot(stack, fcw_ref[...], preferred_element_type=jnp.float32)
        + fcb_ref[...])


def encoder_rnn_forward(params, x, input_len, num_layer):
    T, B, _F = x.shape
    H = params["fc_hidden_w"].shape[1]
    lens_col = input_len.astype(jnp.int32).reshape(B, 1)

    inputs = [x, lens_col, params["embed_w"], params["embed_b"]]
    for layer in range(num_layer):
        (wih_f, whh_f, b_f), (wih_r, whh_r, b_r) = params["lstm"][layer]
        inputs.append(jnp.concatenate([wih_f, wih_r], axis=1))   # (in_l, 8H)
        inputs.append(jnp.concatenate([b_f, b_r], axis=1))       # (1, 8H)
        inputs.append(whh_f)
        inputs.append(whh_r)
    inputs += [params["fc_hidden_w"], params["fc_hidden_b"]]

    enc, hc = pl.pallas_call(
        functools.partial(_encoder_kernel, T=T, B=B, H=H, num_layer=num_layer),
        out_shape=(jax.ShapeDtypeStruct((T, B, 2 * H), jnp.float32),
                   jax.ShapeDtypeStruct((2 * B, H), jnp.float32)),
        in_specs=[VMEM_SPEC] * len(inputs),
        out_specs=(VMEM_SPEC, VMEM_SPEC),
        scratch_shapes=[
            pltpu.VMEM((T, B, 8 * H), jnp.float32),   # packed fwd|rev pre-gates
            pltpu.VMEM((T, B, H), jnp.float32),       # fwd per-step hidden
            pltpu.VMEM((T, B, H), jnp.float32),       # rev per-step hidden
        ],
    )(*inputs)

    hidden = hc[:B][None]                    # (1, B, H)
    cell = hc[B:][None]                      # (1, B, H)
    return enc, hidden, cell


# ------------------------------ Parameters ---------------------------------- #

def init_params(key, F, E, H, num_layer):
    keys = iter(jax.random.split(key, 8 + 6 * num_layer))

    def u(shape, bound):
        return jax.random.uniform(next(keys), shape, jnp.float32, -bound, bound)

    p = {}
    be = 1.0 / math.sqrt(F)
    p["embed_w"] = u((F, E), be)            # embed_fc.weight^T
    p["embed_b"] = u((1, E), be)            # embed_fc.bias
    bh = 1.0 / math.sqrt(H)
    lstm = []
    for layer in range(num_layer):
        in_l = E if layer == 0 else 2 * H
        dirs = []
        for _d in range(2):                 # forward, backward
            wih = u((in_l, 4 * H), bh)      # weight_ih^T
            whh = u((H, 4 * H), bh)         # weight_hh^T
            bias = u((1, 4 * H), bh)        # b_ih + b_hh combined
            dirs.append((wih, whh, bias))
        lstm.append(dirs)
    p["lstm"] = lstm
    bf = 1.0 / math.sqrt(2 * H)
    p["fc_hidden_w"] = u((2 * H, H), bf)
    p["fc_hidden_b"] = u((1, H), bf)
    # nn.Embedding and fc_cell are defined in __init__ but never used in
    # forward() (the reference applies fc_hidden to both hidden and cell), so
    # they are intentionally not instantiated here.
    return p


# --------------------------- Pure-JAX reference ----------------------------- #

def ref_forward(params, x, input_len, num_layer):
    T, B, _ = x.shape
    H = params["fc_hidden_w"].shape[1]
    emb = jnp.maximum(x @ params["embed_w"] + params["embed_b"], 0.0)
    lens = input_len.astype(jnp.int32)
    layer_in = emb
    hcat = ccat = None
    for layer in range(num_layer):
        outs, states = [], []
        for _d, rev in enumerate((False, True)):
            wih, whh, b = params["lstm"][layer][_d]
            h = jnp.zeros((B, H), jnp.float32)
            c = jnp.zeros((B, H), jnp.float32)
            out = jnp.zeros((T, B, H), jnp.float32)
            order = range(T - 1, -1, -1) if rev else range(T)
            for t in order:
                gates = layer_in[t] @ wih + h @ whh + b
                i_g = jax.nn.sigmoid(gates[:, :H])
                f_g = jax.nn.sigmoid(gates[:, H:2 * H])
                g_g = jnp.tanh(gates[:, 2 * H:3 * H])
                o_g = jax.nn.sigmoid(gates[:, 3 * H:])
                cn = f_g * c + i_g * g_g
                hn = o_g * jnp.tanh(cn)
                m = (t < lens)[:, None]
                h = jnp.where(m, hn, h)
                c = jnp.where(m, cn, c)
                out = out.at[t].set(jnp.where(m, h, 0.0))
            outs.append(out)
            states.append((h, c))
        layer_in = jnp.concatenate(outs, axis=-1)
        if layer == 0:
            hcat = jnp.concatenate([states[0][0], states[1][0]], -1)
            ccat = jnp.concatenate([states[0][1], states[1][1]], -1)
    hidden = jnp.tanh(hcat @ params["fc_hidden_w"] + params["fc_hidden_b"])[None]
    cell = jnp.tanh(ccat @ params["fc_hidden_w"] + params["fc_hidden_b"])[None]
    return layer_in, hidden, cell


# ---------------------------------- Main ------------------------------------ #

if __name__ == "__main__":
    in_feature, embedding_size, hidden_size, num_layer = 16, 32, 32, 2
    T, B = 8, 2

    key = jax.random.PRNGKey(0)
    kp, kx = jax.random.split(key)
    params = init_params(kp, in_feature, embedding_size, hidden_size, num_layer)

    x = jax.random.normal(kx, (T, B, in_feature), jnp.float32)
    # lengths sorted descending, as required by pack_padded_sequence(enforce_sorted=True)
    input_len = jnp.array([8, 6], dtype=jnp.int32)

    fwd = jax.jit(functools.partial(encoder_rnn_forward, num_layer=num_layer))
    enc, hid, cell = fwd(params, x, input_len)
    jax.block_until_ready((enc, hid, cell))

    assert enc.shape == (T, B, 2 * hidden_size)
    assert hid.shape == (1, B, hidden_size)
    assert cell.shape == (1, B, hidden_size)

    r_enc, r_hid, r_cell = ref_forward(params, x, input_len, num_layer)
    np.testing.assert_allclose(np.asarray(enc), np.asarray(r_enc), rtol=2e-5, atol=2e-5)
    np.testing.assert_allclose(np.asarray(hid), np.asarray(r_hid), rtol=2e-5, atol=2e-5)
    np.testing.assert_allclose(np.asarray(cell), np.asarray(r_cell), rtol=2e-5, atol=2e-5)

    print("KERNEL_OK")
</pallas_src>

<mosaic_0001>
module attributes {stable_mosaic.version = 11 : i64} {
  func.func @_encoder_kernel(%arg0: memref<8x2x16xf32, #tpu.memory_space<vmem>>, %arg1: memref<2x1xi32, #tpu.memory_space<vmem>>, %arg2: memref<16x32xf32, #tpu.memory_space<vmem>>, %arg3: memref<1x32xf32, #tpu.memory_space<vmem>>, %arg4: memref<32x256xf32, #tpu.memory_space<vmem>>, %arg5: memref<1x256xf32, #tpu.memory_space<vmem>>, %arg6: memref<32x128xf32, #tpu.memory_space<vmem>>, %arg7: memref<32x128xf32, #tpu.memory_space<vmem>>, %arg8: memref<64x256xf32, #tpu.memory_space<vmem>>, %arg9: memref<1x256xf32, #tpu.memory_space<vmem>>, %arg10: memref<32x128xf32, #tpu.memory_space<vmem>>, %arg11: memref<32x128xf32, #tpu.memory_space<vmem>>, %arg12: memref<64x32xf32, #tpu.memory_space<vmem>>, %arg13: memref<1x32xf32, #tpu.memory_space<vmem>>, %arg14: memref<8x2x64xf32, #tpu.memory_space<vmem>>, %arg15: memref<4x32xf32, #tpu.memory_space<vmem>>, %arg16: memref<8x2x256xf32, #tpu.memory_space<vmem>>, %arg17: memref<8x2x32xf32, #tpu.memory_space<vmem>>, %arg18: memref<8x2x32xf32, #tpu.memory_space<vmem>>) attributes {dimension_semantics = [], scalar_prefetch = 0 : i64, scratch_operands = 3 : i64, tpu.core_type = #tpu.core_type<tc>} {
    %c0 = arith.constant 0 : index
    %c0_0 = arith.constant 0 : index
    %0 = vector.load %arg1[%c0, %c0_0] : memref<2x1xi32, #tpu.memory_space<vmem>>, vector<2x1xi32>
    %c0_1 = arith.constant 0 : index
    %c0_2 = arith.constant 0 : index
    %1 = vector.load %arg4[%c0_1, %c0_2] : memref<32x256xf32, #tpu.memory_space<vmem>>, vector<32x256xf32>
    %c0_3 = arith.constant 0 : index
    %c0_4 = arith.constant 0 : index
    %2 = vector.load %arg5[%c0_3, %c0_4] : memref<1x256xf32, #tpu.memory_space<vmem>>, vector<1x256xf32>
    %c0_5 = arith.constant 0 : index
    %c0_6 = arith.constant 0 : index
    %3 = vector.load %arg2[%c0_5, %c0_6] : memref<16x32xf32, #tpu.memory_space<vmem>>, vector<16x32xf32>
    %c0_7 = arith.constant 0 : index
    %c0_8 = arith.constant 0 : index
    %4 = vector.load %arg3[%c0_7, %c0_8] : memref<1x32xf32, #tpu.memory_space<vmem>>, vector<1x32xf32>
    %c0_9 = arith.constant 0 : index
    %c0_10 = arith.constant 0 : index
    %c0_11 = arith.constant 0 : index
    %5 = vector.load %arg0[%c0_9, %c0_10, %c0_11] : memref<8x2x16xf32, #tpu.memory_space<vmem>>, vector<1x2x16xf32>
    %6 = vector.shape_cast %5 : vector<1x2x16xf32> to vector<2x16xf32>
    %cst = arith.constant dense<0.000000e+00> : vector<2x32xf32>
    %7 = tpu.matmul %6, %3, %cst {dimension_numbers = #tpu.dot_dimension_numbers<[1], [0], [0], [1], [0, 0, 1, 1], [], []>} : vector<2x16xf32>, vector<16x32xf32>, vector<2x32xf32> -> vector<2x32xf32>
    %8 = vector.broadcast %4 : vector<1x32xf32> to vector<2x32xf32>
    %9 = arith.addf %7, %8 : vector<2x32xf32>
    %cst_12 = arith.constant 0.000000e+00 : f32
    %10 = vector.broadcast %cst_12 : f32 to vector<2x32xf32>
    %11 = arith.maximumf %9, %10 : vector<2x32xf32>
    %cst_13 = arith.constant dense<0.000000e+00> : vector<2x256xf32>
    %12 = tpu.matmul %11, %1, %cst_13 {dimension_numbers = #tpu.dot_dimension_numbers<[1], [0], [0], [1], [0, 0, 1, 1], [], []>} : vector<2x32xf32>, vector<32x256xf32>, vector<2x256xf32> -> vector<2x256xf32>
    %13 = vector.broadcast %2 : vector<1x256xf32> to vector<2x256xf32>
    %14 = arith.addf %12, %13 : vector<2x256xf32>
    %c0_14 = arith.constant 0 : index
    %c0_15 = arith.constant 0 : index
    %c0_16 = arith.constant 0 : index
    %15 = vector.load %arg16[%c0_14, %c0_15, %c0_16] : memref<8x2x256xf32, #tpu.memory_space<vmem>>, vector<1x2x256xf32>
    %16 = vector.shape_cast %15 : vector<1x2x256xf32> to vector<2x256xf32>
    %17 = vector.shape_cast %14 : vector<2x256xf32> to vector<1x2x256xf32>
    tpu.vector_store %arg16[%c0_14, %c0_15, %c0_16], %17 {strides = array<i32>} : memref<8x2x256xf32, #tpu.memory_space<vmem>>, vector<1x2x256xf32>,
    %c1 = arith.constant 1 : index
    %c0_17 = arith.constant 0 : index
    %c0_18 = arith.constant 0 : index
    %18 = vector.load %arg0[%c1, %c0_17, %c0_18] : memref<8x2x16xf32, #tpu.memory_space<vmem>>, vector<1x2x16xf32>
    %19 = vector.shape_cast %18 : vector<1x2x16xf32> to vector<2x16xf32>
    %cst_19 = arith.constant dense<0.000000e+00> : vector<2x32xf32>
    %20 = tpu.matmul %19, %3, %cst_19 {dimension_numbers = #tpu.dot_dimension_numbers<[1], [0], [0], [1], [0, 0, 1, 1], [], []>} : vector<2x16xf32>, vector<16x32xf32>, vector<2x32xf32> -> vector<2x32xf32>
    %21 = vector.broadcast %4 : vector<1x32xf32> to vector<2x32xf32>
    %22 = arith.addf %20, %21 : vector<2x32xf32>
    %cst_20 = arith.constant 0.000000e+00 : f32
    %23 = vector.broadcast %cst_20 : f32 to vector<2x32xf32>
    %24 = arith.maximumf %22, %23 : vector<2x32xf32>
    %cst_21 = arith.constant dense<0.000000e+00> : vector<2x256xf32>
    %25 = tpu.matmul %24, %1, %cst_21 {dimension_numbers = #tpu.dot_dimension_numbers<[1], [0], [0], [1], [0, 0, 1, 1], [], []>} : vector<2x32xf32>, vector<32x256xf32>, vector<2x256xf32> -> vector<2x256xf32>
    %26 = vector.broadcast %2 : vector<1x256xf32> to vector<2x256xf32>
    %27 = arith.addf %25, %26 : vector<2x256xf32>
    %c1_22 = arith.constant 1 : index
    %c0_23 = arith.constant 0 : index
    %c0_24 = arith.constant 0 : index
    %28 = vector.load %arg16[%c1_22, %c0_23, %c0_24] : memref<8x2x256xf32, #tpu.memory_space<vmem>>, vector<1x2x256xf32>
    %29 = vector.shape_cast %28 : vector<1x2x256xf32> to vector<2x256xf32>
    %30 = vector.shape_cast %27 : vector<2x256xf32> to vector<1x2x256xf32>
    tpu.vector_store %arg16[%c1_22, %c0_23, %c0_24], %30 {strides = array<i32>} : memref<8x2x256xf32, #tpu.memory_space<vmem>>, vector<1x2x256xf32>,
    %c2 = arith.constant 2 : index
    %c0_25 = arith.constant 0 : index
    %c0_26 = arith.constant 0 : index
    %31 = vector.load %arg0[%c2, %c0_25, %c0_26] : memref<8x2x16xf32, #tpu.memory_space<vmem>>, vector<1x2x16xf32>
    %32 = vector.shape_cast %31 : vector<1x2x16xf32> to vector<2x16xf32>
    %cst_27 = arith.constant dense<0.000000e+00> : vector<2x32xf32>
    %33 = tpu.matmul %32, %3, %cst_27 {dimension_numbers = #tpu.dot_dimension_numbers<[1], [0], [0], [1], [0, 0, 1, 1], [], []>} : vector<2x16xf32>, vector<16x32xf32>, vector<2x32xf32> -> vector<2x32xf32>
    %34 = vector.broadcast %4 : vector<1x32xf32> to vector<2x32xf32>
    %35 = arith.addf %33, %34 : vector<2x32xf32>
    %cst_28 = arith.constant 0.000000e+00 : f32
    %36 = vector.broadcast %cst_28 : f32 to vector<2x32xf32>
    %37 = arith.maximumf %35, %36 : vector<2x32xf32>
    %cst_29 = arith.constant dense<0.000000e+00> : vector<2x256xf32>
    %38 = tpu.matmul %37, %1, %cst_29 {dimension_numbers = #tpu.dot_dimension_numbers<[1], [0], [0], [1], [0, 0, 1, 1], [], []>} : vector<2x32xf32>, vector<32x256xf32>, vector<2x256xf32> -> vector<2x256xf32>
    %39 = vector.broadcast %2 : vector<1x256xf32> to vector<2x256xf32>
    %40 = arith.addf %38, %39 : vector<2x256xf32>
    %c2_30 = arith.constant 2 : index
    %c0_31 = arith.constant 0 : index
    %c0_32 = arith.constant 0 : index
    %41 = vector.load %arg16[%c2_30, %c0_31, %c0_32] : memref<8x2x256xf32, #tpu.memory_space<vmem>>, vector<1x2x256xf32>
    %42 = vector.shape_cast %41 : vector<1x2x256xf32> to vector<2x256xf32>
    %43 = vector.shape_cast %40 : vector<2x256xf32> to vector<1x2x256xf32>
    tpu.vector_store %arg16[%c2_30, %c0_31, %c0_32], %43 {strides = array<i32>} : memref<8x2x256xf32, #tpu.memory_space<vmem>>, vector<1x2x256xf32>,
    %c3 = arith.constant 3 : index
    %c0_33 = arith.constant 0 : index
    %c0_34 = arith.constant 0 : index
    %44 = vector.load %arg0[%c3, %c0_33, %c0_34] : memref<8x2x16xf32, #tpu.memory_space<vmem>>, vector<1x2x16xf32>
    %45 = vector.shape_cast %44 : vector<1x2x16xf32> to vector<2x16xf32>
    %cst_35 = arith.constant dense<0.000000e+00> : vector<2x32xf32>
    %46 = tpu.matmul %45, %3, %cst_35 {dimension_numbers = #tpu.dot_dimension_numbers<[1], [0], [0], [1], [0, 0, 1, 1], [], []>} : vector<2x16xf32>, vector<16x32xf32>, vector<2x32xf32> -> vector<2x32xf32>
    %47 = vector.broadcast %4 : vector<1x32xf32> to vector<2x32xf32>
    %48 = arith.addf %46, %47 : vector<2x32xf32>
    %cst_36 = arith.constant 0.000000e+00 : f32
    %49 = vector.broadcast %cst_36 : f32 to vector<2x32xf32>
    %50 = arith.maximumf %48, %49 : vector<2x32xf32>
    %cst_37 = arith.constant dense<0.000000e+00> : vector<2x256xf32>
    %51 = tpu.matmul %50, %1, %cst_37 {dimension_numbers = #tpu.dot_dimension_numbers<[1], [0], [0], [1], [0, 0, 1, 1], [], []>} : vector<2x32xf32>, vector<32x256xf32>, vector<2x256xf32> -> vector<2x256xf32>
    %52 = vector.broadcast %2 : vector<1x256xf32> to vector<2x256xf32>
    %53 = arith.addf %51, %52 : vector<2x256xf32>
    %c3_38 = arith.constant 3 : index
    %c0_39 = arith.constant 0 : index
    %c0_40 = arith.constant 0 : index
    %54 = vector.load %arg16[%c3_38, %c0_39, %c0_40] : memref<8x2x256xf32, #tpu.memory_space<vmem>>, vector<1x2x256xf32>
    %55 = vector.shape_cast %54 : vector<1x2x256xf32> to vector<2x256xf32>
    %56 = vector.shape_cast %53 : vector<2x256xf32> to vector<1x2x256xf32>
    tpu.vector_store %arg16[%c3_38, %c0_39, %c0_40], %56 {strides = array<i32>} : memref<8x2x256xf32, #tpu.memory_space<vmem>>, vector<1x2x256xf32>,
    %c4 = arith.constant 4 : index
    %c0_41 = arith.constant 0 : index
    %c0_42 = arith.constant 0 : index
    %57 = vector.load %arg0[%c4, %c0_41, %c0_42] : memref<8x2x16xf32, #tpu.memory_space<vmem>>, vector<1x2x16xf32>
    %58 = vector.shape_cast %57 : vector<1x2x16xf32> to vector<2x16xf32>
    %cst_43 = arith.constant dense<0.000000e+00> : vector<2x32xf32>
    %59 = tpu.matmul %58, %3, %cst_43 {dimension_numbers = #tpu.dot_dimension_numbers<[1], [0], [0], [1], [0, 0, 1, 1], [], []>} : vector<2x16xf32>, vector<16x32xf32>, vector<2x32xf32> -> vector<2x32xf32>
    %60 = vector.broadcast %4 : vector<1x32xf32> to vector<2x32xf32>
    %61 = arith.addf %59, %60 : vector<2x32xf32>
    %cst_44 = arith.constant 0.000000e+00 : f32
    %62 = vector.broadcast %cst_44 : f32 to vector<2x32xf32>
    %63 = arith.maximumf %61, %62 : vector<2x32xf32>
    %cst_45 = arith.constant dense<0.000000e+00> : vector<2x256xf32>
    %64 = tpu.matmul %63, %1, %cst_45 {dimension_numbers = #tpu.dot_dimension_numbers<[1], [0], [0], [1], [0, 0, 1, 1], [], []>} : vector<2x32xf32>, vector<32x256xf32>, vector<2x256xf32> -> vector<2x256xf32>
    %65 = vector.broadcast %2 : vector<1x256xf32> to vector<2x256xf32>
    %66 = arith.addf %64, %65 : vector<2x256xf32>
    %c4_46 = arith.constant 4 : index
    %c0_47 = arith.constant 0 : index
    %c0_48 = arith.constant 0 : index
    %67 = vector.load %arg16[%c4_46, %c0_47, %c0_48] : memref<8x2x256xf32, #tpu.memory_space<vmem>>, vector<1x2x256xf32>
    %68 = vector.shape_cast %67 : vector<1x2x256xf32> to vector<2x256xf32>
    %69 = vector.shape_cast %66 : vector<2x256xf32> to vector<1x2x256xf32>
    tpu.vector_store %arg16[%c4_46, %c0_47, %c0_48], %69 {strides = array<i32>} : memref<8x2x256xf32, #tpu.memory_space<vmem>>, vector<1x2x256xf32>,
    %c5 = arith.constant 5 : index
    %c0_49 = arith.constant 0 : index
    %c0_50 = arith.constant 0 : index
    %70 = vector.load %arg0[%c5, %c0_49, %c0_50] : memref<8x2x16xf32, #tpu.memory_space<vmem>>, vector<1x2x16xf32>
    %71 = vector.shape_cast %70 : vector<1x2x16xf32> to vector<2x16xf32>
    %cst_51 = arith.constant dense<0.000000e+00> : vector<2x32xf32>
    %72 = tpu.matmul %71, %3, %cst_51 {dimension_numbers = #tpu.dot_dimension_numbers<[1], [0], [0], [1], [0, 0, 1, 1], [], []>} : vector<2x16xf32>, vector<16x32xf32>, vector<2x32xf32> -> vector<2x32xf32>
    %73 = vector.broadcast %4 : vector<1x32xf32> to vector<2x32xf32>
    %74 = arith.addf %72, %73 : vector<2x32xf32>
    %cst_52 = arith.constant 0.000000e+00 : f32
    %75 = vector.broadcast %cst_52 : f32 to vector<2x32xf32>
    %76 = arith.maximumf %74, %75 : vector<2x32xf32>
    %cst_53 = arith.constant dense<0.000000e+00> : vector<2x256xf32>
    %77 = tpu.matmul %76, %1, %cst_53 {dimension_numbers = #tpu.dot_dimension_numbers<[1], [0], [0], [1], [0, 0, 1, 1], [], []>} : vector<2x32xf32>, vector<32x256xf32>, vector<2x256xf32> -> vector<2x256xf32>
    %78 = vector.broadcast %2 : vector<1x256xf32> to vector<2x256xf32>
    %79 = arith.addf %77, %78 : vector<2x256xf32>
    %c5_54 = arith.constant 5 : index
    %c0_55 = arith.constant 0 : index
    %c0_56 = arith.constant 0 : index
    %80 = vector.load %arg16[%c5_54, %c0_55, %c0_56] : memref<8x2x256xf32, #tpu.memory_space<vmem>>, vector<1x2x256xf32>
    %81 = vector.shape_cast %80 : vector<1x2x256xf32> to vector<2x256xf32>
    %82 = vector.shape_cast %79 : vector<2x256xf32> to vector<1x2x256xf32>
    tpu.vector_store %arg16[%c5_54, %c0_55, %c0_56], %82 {strides = array<i32>} : memref<8x2x256xf32, #tpu.memory_space<vmem>>, vector<1x2x256xf32>,
    %c6 = arith.constant 6 : index
    %c0_57 = arith.constant 0 : index
    %c0_58 = arith.constant 0 : index
    %83 = vector.load %arg0[%c6, %c0_57, %c0_58] : memref<8x2x16xf32, #tpu.memory_space<vmem>>, vector<1x2x16xf32>
    %84 = vector.shape_cast %83 : vector<1x2x16xf32> to vector<2x16xf32>
    %cst_59 = arith.constant dense<0.000000e+00> : vector<2x32xf32>
    %85 = tpu.matmul %84, %3, %cst_59 {dimension_numbers = #tpu.dot_dimension_numbers<[1], [0], [0], [1], [0, 0, 1, 1], [], []>} : vector<2x16xf32>, vector<16x32xf32>, vector<2x32xf32> -> vector<2x32xf32>
    %86 = vector.broadcast %4 : vector<1x32xf32> to vector<2x32xf32>
    %87 = arith.addf %85, %86 : vector<2x32xf32>
    %cst_60 = arith.constant 0.000000e+00 : f32
    %88 = vector.broadcast %cst_60 : f32 to vector<2x32xf32>
    %89 = arith.maximumf %87, %88 : vector<2x32xf32>
    %cst_61 = arith.constant dense<0.000000e+00> : vector<2x256xf32>
    %90 = tpu.matmul %89, %1, %cst_61 {dimension_numbers = #tpu.dot_dimension_numbers<[1], [0], [0], [1], [0, 0, 1, 1], [], []>} : vector<2x32xf32>, vector<32x256xf32>, vector<2x256xf32> -> vector<2x256xf32>
    %91 = vector.broadcast %2 : vector<1x256xf32> to vector<2x256xf32>
    %92 = arith.addf %90, %91 : vector<2x256xf32>
    %c6_62 = arith.constant 6 : index
    %c0_63 = arith.constant 0 : index
    %c0_64 = arith.constant 0 : index
    %93 = vector.load %arg16[%c6_62, %c0_63, %c0_64] : memref<8x2x256xf32, #tpu.memory_space<vmem>>, vector<1x2x256xf32>
    %94 = vector.shape_cast %93 : vector<1x2x256xf32> to vector<2x256xf32>
    %95 = vector.shape_cast %92 : vector<2x256xf32> to vector<1x2x256xf32>
    tpu.vector_store %arg16[%c6_62, %c0_63, %c0_64], %95 {strides = array<i32>} : memref<8x2x256xf32, #tpu.memory_space<vmem>>, vector<1x2x256xf32>,
    %c7 = arith.constant 7 : index
    %c0_65 = arith.constant 0 : index
    %c0_66 = arith.constant 0 : index
    %96 = vector.load %arg0[%c7, %c0_65, %c0_66] : memref<8x2x16xf32, #tpu.memory_space<vmem>>, vector<1x2x16xf32>
    %97 = vector.shape_cast %96 : vector<1x2x16xf32> to vector<2x16xf32>
    %cst_67 = arith.constant dense<0.000000e+00> : vector<2x32xf32>
    %98 = tpu.matmul %97, %3, %cst_67 {dimension_numbers = #tpu.dot_dimension_numbers<[1], [0], [0], [1], [0, 0, 1, 1], [], []>} : vector<2x16xf32>, vector<16x32xf32>, vector<2x32xf32> -> vector<2x32xf32>
    %99 = vector.broadcast %4 : vector<1x32xf32> to vector<2x32xf32>
    %100 = arith.addf %98, %99 : vector<2x32xf32>
    %cst_68 = arith.constant 0.000000e+00 : f32
    %101 = vector.broadcast %cst_68 : f32 to vector<2x32xf32>
    %102 = arith.maximumf %100, %101 : vector<2x32xf32>
    %cst_69 = arith.constant dense<0.000000e+00> : vector<2x256xf32>
    %103 = tpu.matmul %102, %1, %cst_69 {dimension_numbers = #tpu.dot_dimension_numbers<[1], [0], [0], [1], [0, 0, 1, 1], [], []>} : vector<2x32xf32>, vector<32x256xf32>, vector<2x256xf32> -> vector<2x256xf32>
    %104 = vector.broadcast %2 : vector<1x256xf32> to vector<2x256xf32>
    %105 = arith.addf %103, %104 : vector<2x256xf32>
    %c7_70 = arith.constant 7 : index
    %c0_71 = arith.constant 0 : index
    %c0_72 = arith.constant 0 : index
    %106 = vector.load %arg16[%c7_70, %c0_71, %c0_72] : memref<8x2x256xf32, #tpu.memory_space<vmem>>, vector<1x2x256xf32>
    %107 = vector.shape_cast %106 : vector<1x2x256xf32> to vector<2x256xf32>
    %108 = vector.shape_cast %105 : vector<2x256xf32> to vector<1x2x256xf32>
    tpu.vector_store %arg16[%c7_70, %c0_71, %c0_72], %108 {strides = array<i32>} : memref<8x2x256xf32, #tpu.memory_space<vmem>>, vector<1x2x256xf32>,
    %c0_73 = arith.constant 0 : index
    %c0_74 = arith.constant 0 : index
    %109 = vector.load %arg6[%c0_73, %c0_74] : memref<32x128xf32, #tpu.memory_space<vmem>>, vector<32x128xf32>
    %c0_75 = arith.constant 0 : index
    %c0_76 = arith.constant 0 : index
    %110 = vector.load %arg7[%c0_75, %c0_76] : memref<32x128xf32, #tpu.memory_space<vmem>>, vector<32x128xf32>
    %cst_77 = arith.constant 0.000000e+00 : f32
    %111 = vector.broadcast %cst_77 : f32 to vector<2x32xf32>
    %cst_78 = arith.constant 0.000000e+00 : f32
    %112 = vector.broadcast %cst_78 : f32 to vector<2x32xf32>
    %cst_79 = arith.constant 0.000000e+00 : f32
    %113 = vector.broadcast %cst_79 : f32 to vector<2x32xf32>
    %cst_80 = arith.constant 0.000000e+00 : f32
    %114 = vector.broadcast %cst_80 : f32 to vector<2x32xf32>
    %c0_81 = arith.constant 0 : index
    %c0_82 = arith.constant 0 : index
    %c0_83 = arith.constant 0 : index
    %115 = vector.load %arg16[%c0_81, %c0_82, %c0_83] : memref<8x2x256xf32, #tpu.memory_space<vmem>>, vector<1x2x256xf32>
    %116 = vector.shape_cast %115 : vector<1x2x256xf32> to vector<2x256xf32>
    %117 = vector.extract_strided_slice %116 {offsets = [0, 0], sizes = [2, 128], strides = [1, 1]} : vector<2x256xf32> to vector<2x128xf32>
    %cst_84 = arith.constant dense<0.000000e+00> : vector<2x128xf32>
    %118 = tpu.matmul %111, %109, %cst_84 {dimension_numbers = #tpu.dot_dimension_numbers<[1], [0], [0], [1], [0, 0, 1, 1], [], []>} : vector<2x32xf32>, vector<32x128xf32>, vector<2x128xf32> -> vector<2x128xf32>
    %119 = arith.addf %117, %118 : vector<2x128xf32>
    %c7_85 = arith.constant 7 : index
    %c0_86 = arith.constant 0 : index
    %c0_87 = arith.constant 0 : index
    %120 = vector.load %arg16[%c7_85, %c0_86, %c0_87] : memref<8x2x256xf32, #tpu.memory_space<vmem>>, vector<1x2x256xf32>
    %121 = vector.shape_cast %120 : vector<1x2x256xf32> to vector<2x256xf32>
    %122 = vector.extract_strided_slice %121 {offsets = [0, 128], sizes = [2, 128], strides = [1, 1]} : vector<2x256xf32> to vector<2x128xf32>
    %cst_88 = arith.constant dense<0.000000e+00> : vector<2x128xf32>
    %123 = tpu.matmul %113, %110, %cst_88 {dimension_numbers = #tpu.dot_dimension_numbers<[1], [0], [0], [1], [0, 0, 1, 1], [], []>} : vector<2x32xf32>, vector<32x128xf32>, vector<2x128xf32> -> vector<2x128xf32>
    %124 = arith.addf %122, %123 : vector<2x128xf32>
    %125 = vector.extract_strided_slice %119 {offsets = [0, 0], sizes = [2, 32], strides = [1, 1]} : vector<2x128xf32> to vector<2x32xf32>
    %126 = arith.negf %125 : vector<2x32xf32>
    %127 = math.exp %126 : vector<2x32xf32>
    %cst_89 = arith.constant 1.000000e+00 : f32
    %128 = vector.broadcast %cst_89 : f32 to vector<2x32xf32>
    %129 = arith.addf %128, %127 : vector<2x32xf32>
    %130 = arith.divf %128, %129 : vector<2x32xf32>
    %131 = vector.extract_strided_slice %119 {offsets = [0, 32], sizes = [2, 32], strides = [1, 1]} : vector<2x128xf32> to vector<2x32xf32>
    %132 = arith.negf %131 : vector<2x32xf32>
    %133 = math.exp %132 : vector<2x32xf32>
    %cst_90 = arith.constant 1.000000e+00 : f32
    %134 = vector.broadcast %cst_90 : f32 to vector<2x32xf32>
    %135 = arith.addf %134, %133 : vector<2x32xf32>
    %136 = arith.divf %134, %135 : vector<2x32xf32>
    %137 = vector.extract_strided_slice %119 {offsets = [0, 64], sizes = [2, 32], strides = [1, 1]} : vector<2x128xf32> to vector<2x32xf32>
    %138 = math.tanh %137 : vector<2x32xf32>
    %139 = vector.extract_strided_slice %119 {offsets = [0, 96], sizes = [2, 32], strides = [1, 1]} : vector<2x128xf32> to vector<2x32xf32>
    %140 = arith.negf %139 : vector<2x32xf32>
    %141 = math.exp %140 : vector<2x32xf32>
    %cst_91 = arith.constant 1.000000e+00 : f32
    %142 = vector.broadcast %cst_91 : f32 to vector<2x32xf32>
    %143 = arith.addf %142, %141 : vector<2x32xf32>
    %144 = arith.divf %142, %143 : vector<2x32xf32>
    %145 = arith.mulf %136, %112 : vector<2x32xf32>
    %146 = arith.mulf %130, %138 : vector<2x32xf32>
    %147 = arith.addf %145, %146 : vector<2x32xf32>
    %148 = math.tanh %147 : vector<2x32xf32>
    %149 = arith.mulf %144, %148 : vector<2x32xf32>
    %c0_i32 = arith.constant 0 : i32
    %150 = vector.broadcast %c0_i32 : i32 to vector<2x1xi32>
    %151 = arith.cmpi sgt, %0, %150 : vector<2x1xi32>
    %152 = vector.shape_cast %151 : vector<2x1xi1> to vector<2x1xi1>
    %153 = vector.broadcast %152 : vector<2x1xi1> to vector<2x32xi1>
    %154 = arith.select %153, %149, %111 : vector<2x32xi1>, vector<2x32xf32>
    %155 = vector.shape_cast %151 : vector<2x1xi1> to vector<2x1xi1>
    %156 = vector.broadcast %155 : vector<2x1xi1> to vector<2x32xi1>
    %157 = arith.select %156, %147, %112 : vector<2x32xi1>, vector<2x32xf32>
    %cst_92 = arith.constant 0.000000e+00 : f32
    %158 = vector.shape_cast %151 : vector<2x1xi1> to vector<2x1xi1>
    %159 = vector.broadcast %158 : vector<2x1xi1> to vector<2x32xi1>
    %160 = vector.broadcast %cst_92 : f32 to vector<2x32xf32>
    %161 = arith.select %159, %149, %160 : vector<2x32xi1>, vector<2x32xf32>
    %162 = vector.extract_strided_slice %124 {offsets = [0, 0], sizes = [2, 32], strides = [1, 1]} : vector<2x128xf32> to vector<2x32xf32>
    %163 = arith.negf %162 : vector<2x32xf32>
    %164 = math.exp %163 : vector<2x32xf32>
    %cst_93 = arith.constant 1.000000e+00 : f32
    %165 = vector.broadcast %cst_93 : f32 to vector<2x32xf32>
    %166 = arith.addf %165, %164 : vector<2x32xf32>
    %167 = arith.divf %165, %166 : vector<2x32xf32>
    %168 = vector.extract_strided_slice %124 {offsets = [0, 32], sizes = [2, 32], strides = [1, 1]} : vector<2x128xf32> to vector<2x32xf32>
    %169 = arith.negf %168 : vector<2x32xf32>
    %170 = math.exp %169 : vector<2x32xf32>
    %cst_94 = arith.constant 1.000000e+00 : f32
    %171 = vector.broadcast %cst_94 : f32 to vector<2x32xf32>
    %172 = arith.addf %171, %170 : vector<2x32xf32>
    %173 = arith.divf %171, %172 : vector<2x32xf32>
    %174 = vector.extract_strided_slice %124 {offsets = [0, 64], sizes = [2, 32], strides = [1, 1]} : vector<2x128xf32> to vector<2x32xf32>
    %175 = math.tanh %174 : vector<2x32xf32>
    %176 = vector.extract_strided_slice %124 {offsets = [0, 96], sizes = [2, 32], strides = [1, 1]} : vector<2x128xf32> to vector<2x32xf32>
    %177 = arith.negf %176 : vector<2x32xf32>
    %178 = math.exp %177 : vector<2x32xf32>
    %cst_95 = arith.constant 1.000000e+00 : f32
    %179 = vector.broadcast %cst_95 : f32 to vector<2x32xf32>
    %180 = arith.addf %179, %178 : vector<2x32xf32>
    %181 = arith.divf %179, %180 : vector<2x32xf32>
    %182 = arith.mulf %173, %114 : vector<2x32xf32>
    %183 = arith.mulf %167, %175 : vector<2x32xf32>
    %184 = arith.addf %182, %183 : vector<2x32xf32>
    %185 = math.tanh %184 : vector<2x32xf32>
    %186 = arith.mulf %181, %185 : vector<2x32xf32>
    %c7_i32 = arith.constant 7 : i32
    %187 = vector.broadcast %c7_i32 : i32 to vector<2x1xi32>
    %188 = arith.cmpi sgt, %0, %187 : vector<2x1xi32>
    %189 = vector.shape_cast %188 : vector<2x1xi1> to vector<2x1xi1>
    %190 = vector.broadcast %189 : vector<2x1xi1> to vector<2x32xi1>
    %191 = arith.select %190, %186, %113 : vector<2x32xi1>, vector<2x32xf32>
    %192 = vector.shape_cast %188 : vector<2x1xi1> to vector<2x1xi1>
    %193 = vector.broadcast %192 : vector<2x1xi1> to vector<2x32xi1>
    %194 = arith.select %193, %184, %114 : vector<2x32xi1>, vector<2x32xf32>
    %cst_96 = arith.constant 0.000000e+00 : f32
    %195 = vector.shape_cast %188 : vector<2x1xi1> to vector<2x1xi1>
    %196 = vector.broadcast %195 : vector<2x1xi1> to vector<2x32xi1>
    %197 = vector.broadcast %cst_96 : f32 to vector<2x32xf32>
    %198 = arith.select %196, %186, %197 : vector<2x32xi1>, vector<2x32xf32>
    %c0_97 = arith.constant 0 : index
    %c0_98 = arith.constant 0 : index
    %c0_99 = arith.constant 0 : index
    %199 = vector.load %arg17[%c0_97, %c0_98, %c0_99] : memref<8x2x32xf32, #tpu.memory_space<vmem>>, vector<1x2x32xf32>
    %200 = vector.shape_cast %199 : vector<1x2x32xf32> to vector<2x32xf32>
    %201 = vector.shape_cast %161 : vector<2x32xf32> to vector<1x2x32xf32>
    tpu.vector_store %arg17[%c0_97, %c0_98, %c0_99], %201 {strides = array<i32>} : memref<8x2x32xf32, #tpu.memory_space<vmem>>, vector<1x2x32xf32>,
    %c7_100 = arith.constant 7 : index
    %c0_101 = arith.constant 0 : index
    %c0_102 = arith.constant 0 : index
    %202 = vector.load %arg18[%c7_100, %c0_101, %c0_102] : memref<8x2x32xf32, #tpu.memory_space<vmem>>, vector<1x2x32xf32>
    %203 = vector.shape_cast %202 : vector<1x2x32xf32> to vector<2x32xf32>
    %204 = vector.shape_cast %198 : vector<2x32xf32> to vector<1x2x32xf32>
    tpu.vector_store %arg18[%c7_100, %c0_101, %c0_102], %204 {strides = array<i32>} : memref<8x2x32xf32, #tpu.memory_space<vmem>>, vector<1x2x32xf32>,
    %c1_103 = arith.constant 1 : index
    %c0_104 = arith.constant 0 : index
    %c0_105 = arith.constant 0 : index
    %205 = vector.load %arg16[%c1_103, %c0_104, %c0_105] : memref<8x2x256xf32, #tpu.memory_space<vmem>>, vector<1x2x256xf32>
    %206 = vector.shape_cast %205 : vector<1x2x256xf32> to vector<2x256xf32>
    %207 = vector.extract_strided_slice %206 {offsets = [0, 0], sizes = [2, 128], strides = [1, 1]} : vector<2x256xf32> to vector<2x128xf32>
    %cst_106 = arith.constant dense<0.000000e+00> : vector<2x128xf32>
    %208 = tpu.matmul %154, %109, %cst_106 {dimension_numbers = #tpu.dot_dimension_numbers<[1], [0], [0], [1], [0, 0, 1, 1], [], []>} : vector<2x32xf32>, vector<32x128xf32>, vector<2x128xf32> -> vector<2x128xf32>
    %209 = arith.addf %207, %208 : vector<2x128xf32>
    %c6_107 = arith.constant 6 : index
    %c0_108 = arith.constant 0 : index
    %c0_109 = arith.constant 0 : index
    %210 = vector.load %arg16[%c6_107, %c0_108, %c0_109] : memref<8x2x256xf32, #tpu.memory_space<vmem>>, vector<1x2x256xf32>
    %211 = vector.shape_cast %210 : vector<1x2x256xf32> to vector<2x256xf32>
    %212 = vector.extract_strided_slice %211 {offsets = [0, 128], sizes = [2, 128], strides = [1, 1]} : vector<2x256xf32> to vector<2x128xf32>
    %cst_110 = arith.constant dense<0.000000e+00> : vector<2x128xf32>
    %213 = tpu.matmul %191, %110, %cst_110 {dimension_numbers = #tpu.dot_dimension_numbers<[1], [0], [0], [1], [0, 0, 1, 1], [], []>} : vector<2x32xf32>, vector<32x128xf32>, vector<2x128xf32> -> vector<2x128xf32>
    %214 = arith.addf %212, %213 : vector<2x128xf32>
    %215 = vector.extract_strided_slice %209 {offsets = [0, 0], sizes = [2, 32], strides = [1, 1]} : vector<2x128xf32> to vector<2x32xf32>
    %216 = arith.negf %215 : vector<2x32xf32>
    %217 = math.exp %216 : vector<2x32xf32>
    %cst_111 = arith.constant 1.000000e+00 : f32
    %218 = vector.broadcast %cst_111 : f32 to vector<2x32xf32>
    %219 = arith.addf %218, %217 : vector<2x32xf32>
    %220 = arith.divf %218, %219 : vector<2x32xf32>
    %221 = vector.extract_strided_slice %209 {offsets = [0, 32], sizes = [2, 32], strides = [1, 1]} : vector<2x128xf32> to vector<2x32xf32>
    %222 = arith.negf %221 : vector<2x32xf32>
    %223 = math.exp %222 : vector<2x32xf32>
    %cst_112 = arith.constant 1.000000e+00 : f32
    %224 = vector.broadcast %cst_112 : f32 to vector<2x32xf32>
    %225 = arith.addf %224, %223 : vector<2x32xf32>
    %226 = arith.divf %224, %225 : vector<2x32xf32>
    %227 = vector.extract_strided_slice %209 {offsets = [0, 64], sizes = [2, 32], strides = [1, 1]} : vector<2x128xf32> to vector<2x32xf32>
    %228 = math.tanh %227 : vector<2x32xf32>
    %229 = vector.extract_strided_slice %209 {offsets = [0, 96], sizes = [2, 32], strides = [1, 1]} : vector<2x128xf32> to vector<2x32xf32>
    %230 = arith.negf %229 : vector<2x32xf32>
    %231 = math.exp %230 : vector<2x32xf32>
    %cst_113 = arith.constant 1.000000e+00 : f32
    %232 = vector.broadcast %cst_113 : f32 to vector<2x32xf32>
    %233 = arith.addf %232, %231 : vector<2x32xf32>
    %234 = arith.divf %232, %233 : vector<2x32xf32>
    %235 = arith.mulf %226, %157 : vector<2x32xf32>
    %236 = arith.mulf %220, %228 : vector<2x32xf32>
    %237 = arith.addf %235, %236 : vector<2x32xf32>
    %238 = math.tanh %237 : vector<2x32xf32>
    %239 = arith.mulf %234, %238 : vector<2x32xf32>
    %c1_i32 = arith.constant 1 : i32
    %240 = vector.broadcast %c1_i32 : i32 to vector<2x1xi32>
    %241 = arith.cmpi sgt, %0, %240 : vector<2x1xi32>
    %242 = vector.shape_cast %241 : vector<2x1xi1> to vector<2x1xi1>
    %243 = vector.broadcast %242 : vector<2x1xi1> to vector<2x32xi1>
    %244 = arith.select %243, %239, %154 : vector<2x32xi1>, vector<2x32xf32>
    %245 = vector.shape_cast %241 : vector<2x1xi1> to vector<2x1xi1>
    %246 = vector.broadcast %245 : vector<2x1xi1> to vector<2x32xi1>
    %247 = arith.select %246, %237, %157 : vector<2x32xi1>, vector<2x32xf32>
    %cst_114 = arith.constant 0.000000e+00 : f32
    %248 = vector.shape_cast %241 : vector<2x1xi1> to vector<2x1xi1>
    %249 = vector.broadcast %248 : vector<2x1xi1> to vector<2x32xi1>
    %250 = vector.broadcast %cst_114 : f32 to vector<2x32xf32>
    %251 = arith.select %249, %239, %250 : vector<2x32xi1>, vector<2x32xf32>
    %252 = vector.extract_strided_slice %214 {offsets = [0, 0], sizes = [2, 32], strides = [1, 1]} : vector<2x128xf32> to vector<2x32xf32>
    %253 = arith.negf %252 : vector<2x32xf32>
    %254 = math.exp %253 : vector<2x32xf32>
    %cst_115 = arith.constant 1.000000e+00 : f32
    %255 = vector.broadcast %cst_115 : f32 to vector<2x32xf32>
    %256 = arith.addf %255, %254 : vector<2x32xf32>
    %257 = arith.divf %255, %256 : vector<2x32xf32>
    %258 = vector.extract_strided_slice %214 {offsets = [0, 32], sizes = [2, 32], strides = [1, 1]} : vector<2x128xf32> to vector<2x32xf32>
    %259 = arith.negf %258 : vector<2x32xf32>
    %260 = math.exp %259 : vector<2x32xf32>
    %cst_116 = arith.constant 1.000000e+00 : f32
    %261 = vector.broadcast %cst_116 : f32 to vector<2x32xf32>
    %262 = arith.addf %261, %260 : vector<2x32xf32>
    %263 = arith.divf %261, %262 : vector<2x32xf32>
    %264 = vector.extract_strided_slice %214 {offsets = [0, 64], sizes = [2, 32], strides = [1, 1]} : vector<2x128xf32> to vector<2x32xf32>
    %265 = math.tanh %264 : vector<2x32xf32>
    %266 = vector.extract_strided_slice %214 {offsets = [0, 96], sizes = [2, 32], strides = [1, 1]} : vector<2x128xf32> to vector<2x32xf32>
    %267 = arith.negf %266 : vector<2x32xf32>
    %268 = math.exp %267 : vector<2x32xf32>
    %cst_117 = arith.constant 1.000000e+00 : f32
    %269 = vector.broadcast %cst_117 : f32 to vector<2x32xf32>
    %270 = arith.addf %269, %268 : vector<2x32xf32>
    %271 = arith.divf %269, %270 : vector<2x32xf32>
    %272 = arith.mulf %263, %194 : vector<2x32xf32>
    %273 = arith.mulf %257, %265 : vector<2x32xf32>
    %274 = arith.addf %272, %273 : vector<2x32xf32>
    %275 = math.tanh %274 : vector<2x32xf32>
    %276 = arith.mulf %271, %275 : vector<2x32xf32>
    %c6_i32 = arith.constant 6 : i32
    %277 = vector.broadcast %c6_i32 : i32 to vector<2x1xi32>
    %278 = arith.cmpi sgt, %0, %277 : vector<2x1xi32>
    %279 = vector.shape_cast %278 : vector<2x1xi1> to vector<2x1xi1>
    %280 = vector.broadcast %279 : vector<2x1xi1> to vector<2x32xi1>
    %281 = arith.select %280, %276, %191 : vector<2x32xi1>, vector<2x32xf32>
    %282 = vector.shape_cast %278 : vector<2x1xi1> to vector<2x1xi1>
    %283 = vector.broadcast %282 : vector<2x1xi1> to vector<2x32xi1>
    %284 = arith.select %283, %274, %194 : vector<2x32xi1>, vector<2x32xf32>
    %cst_118 = arith.constant 0.000000e+00 : f32
    %285 = vector.shape_cast %278 : vector<2x1xi1> to vector<2x1xi1>
    %286 = vector.broadcast %285 : vector<2x1xi1> to vector<2x32xi1>
    %287 = vector.broadcast %cst_118 : f32 to vector<2x32xf32>
    %288 = arith.select %286, %276, %287 : vector<2x32xi1>, vector<2x32xf32>
    %c1_119 = arith.constant 1 : index
    %c0_120 = arith.constant 0 : index
    %c0_121 = arith.constant 0 : index
    %289 = vector.load %arg17[%c1_119, %c0_120, %c0_121] : memref<8x2x32xf32, #tpu.memory_space<vmem>>, vector<1x2x32xf32>
    %290 = vector.shape_cast %289 : vector<1x2x32xf32> to vector<2x32xf32>
    %291 = vector.shape_cast %251 : vector<2x32xf32> to vector<1x2x32xf32>
    tpu.vector_store %arg17[%c1_119, %c0_120, %c0_121], %291 {strides = array<i32>} : memref<8x2x32xf32, #tpu.memory_space<vmem>>, vector<1x2x32xf32>,
    %c6_122 = arith.constant 6 : index
    %c0_123 = arith.constant 0 : index
    %c0_124 = arith.constant 0 : index
    %292 = vector.load %arg18[%c6_122, %c0_123, %c0_124] : memref<8x2x32xf32, #tpu.memory_space<vmem>>, vector<1x2x32xf32>
    %293 = vector.shape_cast %292 : vector<1x2x32xf32> to vector<2x32xf32>
    %294 = vector.shape_cast %288 : vector<2x32xf32> to vector<1x2x32xf32>
    tpu.vector_store %arg18[%c6_122, %c0_123, %c0_124], %294 {strides = array<i32>} : memref<8x2x32xf32, #tpu.memory_space<vmem>>, vector<1x2x32xf32>,
    %c2_125 = arith.constant 2 : index
    %c0_126 = arith.constant 0 : index
    %c0_127 = arith.constant 0 : index
    %295 = vector.load %arg16[%c2_125, %c0_126, %c0_127] : memref<8x2x256xf32, #tpu.memory_space<vmem>>, vector<1x2x256xf32>
    %296 = vector.shape_cast %295 : vector<1x2x256xf32> to vector<2x256xf32>
    %297 = vector.extract_strided_slice %296 {offsets = [0, 0], sizes = [2, 128], strides = [1, 1]} : vector<2x256xf32> to vector<2x128xf32>
    %cst_128 = arith.constant dense<0.000000e+00> : vector<2x128xf32>
    %298 = tpu.matmul %244, %109, %cst_128 {dimension_numbers = #tpu.dot_dimension_numbers<[1], [0], [0], [1], [0, 0, 1, 1], [], []>} : vector<2x32xf32>, vector<32x128xf32>, vector<2x128xf32> -> vector<2x128xf32>
    %299 = arith.addf %297, %298 : vector<2x128xf32>
    %c5_129 = arith.constant 5 : index
    %c0_130 = arith.constant 0 : index
    %c0_131 = arith.constant 0 : index
    %300 = vector.load %arg16[%c5_129, %c0_130, %c0_131] : memref<8x2x256xf32, #tpu.memory_space<vmem>>, vector<1x2x256xf32>
    %301 = vector.shape_cast %300 : vector<1x2x256xf32> to vector<2x256xf32>
    %302 = vector.extract_strided_slice %301 {offsets = [0, 128], sizes = [2, 128], strides = [1, 1]} : vector<2x256xf32> to vector<2x128xf32>
    %cst_132 = arith.constant dense<0.000000e+00> : vector<2x128xf32>
    %303 = tpu.matmul %281, %110, %cst_132 {dimension_numbers = #tpu.dot_dimension_numbers<[1], [0], [0], [1], [0, 0, 1, 1], [], []>} : vector<2x32xf32>, vector<32x128xf32>, vector<2x128xf32> -> vector<2x128xf32>
    %304 = arith.addf %302, %303 : vector<2x128xf32>
    %305 = vector.extract_strided_slice %299 {offsets = [0, 0], sizes = [2, 32], strides = [1, 1]} : vector<2x128xf32> to vector<2x32xf32>
    %306 = arith.negf %305 : vector<2x32xf32>
    %307 = math.exp %306 : vector<2x32xf32>
    %cst_133 = arith.constant 1.000000e+00 : f32
    %308 = vector.broadcast %cst_133 : f32 to vector<2x32xf32>
    %309 = arith.addf %308, %307 : vector<2x32xf32>
    %310 = arith.divf %308, %309 : vector<2x32xf32>
    %311 = vector.extract_strided_slice %299 {offsets = [0, 32], sizes = [2, 32], strides = [1, 1]} : vector<2x128xf32> to vector<2x32xf32>
    %312 = arith.negf %311 : vector<2x32xf32>
    %313 = math.exp %312 : vector<2x32xf32>
    %cst_134 = arith.constant 1.000000e+00 : f32
    %314 = vector.broadcast %cst_134 : f32 to vector<2x32xf32>
    %315 = arith.addf %314, %313 : vector<2x32xf32>
    %316 = arith.divf %314, %315 : vector<2x32xf32>
    %317 = vector.extract_strided_slice %299 {offsets = [0, 64], sizes = [2, 32], strides = [1, 1]} : vector<2x128xf32> to vector<2x32xf32>
    %318 = math.tanh %317 : vector<2x32xf32>
    %319 = vector.extract_strided_slice %299 {offsets = [0, 96], sizes = [2, 32], strides = [1, 1]} : vector<2x128xf32> to vector<2x32xf32>
    %320 = arith.negf %319 : vector<2x32xf32>
    %321 = math.exp %320 : vector<2x32xf32>
    %cst_135 = arith.constant 1.000000e+00 : f32
    %322 = vector.broadcast %cst_135 : f32 to vector<2x32xf32>
    %323 = arith.addf %322, %321 : vector<2x32xf32>
    %324 = arith.divf %322, %323 : vector<2x32xf32>
    %325 = arith.mulf %316, %247 : vector<2x32xf32>
    %326 = arith.mulf %310, %318 : vector<2x32xf32>
    %327 = arith.addf %325, %326 : vector<2x32xf32>
    %328 = math.tanh %327 : vector<2x32xf32>
    %329 = arith.mulf %324, %328 : vector<2x32xf32>
    %c2_i32 = arith.constant 2 : i32
    %330 = vector.broadcast %c2_i32 : i32 to vector<2x1xi32>
    %331 = arith.cmpi sgt, %0, %330 : vector<2x1xi32>
    %332 = vector.shape_cast %331 : vector<2x1xi1> to vector<2x1xi1>
    %333 = vector.broadcast %332 : vector<2x1xi1> to vector<2x32xi1>
    %334 = arith.select %333, %329, %244 : vector<2x32xi1>, vector<2x32xf32>
    %335 = vector.shape_cast %331 : vector<2x1xi1> to vector<2x1xi1>
    %336 = vector.broadcast %335 : vector<2x1xi1> to vector<2x32xi1>
    %337 = arith.select %336, %327, %247 : vector<2x32xi1>, vector<2x32xf32>
    %cst_136 = arith.constant 0.000000e+00 : f32
    %338 = vector.shape_cast %331 : vector<2x1xi1> to vector<2x1xi1>
    %339 = vector.broadcast %338 : vector<2x1xi1> to vector<2x32xi1>
    %340 = vector.broadcast %cst_136 : f32 to vector<2x32xf32>
    %341 = arith.select %339, %329, %340 : vector<2x32xi1>, vector<2x32xf32>
    %342 = vector.extract_strided_slice %304 {offsets = [0, 0], sizes = [2, 32], strides = [1, 1]} : vector<2x128xf32> to vector<2x32xf32>
    %343 = arith.negf %342 : vector<2x32xf32>
    %344 = math.exp %343 : vector<2x32xf32>
    %cst_137 = arith.constant 1.000000e+00 : f32
    %345 = vector.broadcast %cst_137 : f32 to vector<2x32xf32>
    %346 = arith.addf %345, %344 : vector<2x32xf32>
    %347 = arith.divf %345, %346 : vector<2x32xf32>
    %348 = vector.extract_strided_slice %304 {offsets = [0, 32], sizes = [2, 32], strides = [1, 1]} : vector<2x128xf32> to vector<2x32xf32>
    %349 = arith.negf %348 : vector<2x32xf32>
    %350 = math.exp %349 : vector<2x32xf32>
    %cst_138 = arith.constant 1.000000e+00 : f32
    %351 = vector.broadcast %cst_138 : f32 to vector<2x32xf32>
    %352 = arith.addf %351, %350 : vector<2x32xf32>
    %353 = arith.divf %351, %352 : vector<2x32xf32>
    %354 = vector.extract_strided_slice %304 {offsets = [0, 64], sizes = [2, 32], strides = [1, 1]} : vector<2x128xf32> to vector<2x32xf32>
    %355 = math.tanh %354 : vector<2x32xf32>
    %356 = vector.extract_strided_slice %304 {offsets = [0, 96], sizes = [2, 32], strides = [1, 1]} : vector<2x128xf32> to vector<2x32xf32>
    %357 = arith.negf %356 : vector<2x32xf32>
    %358 = math.exp %357 : vector<2x32xf32>
    %cst_139 = arith.constant 1.000000e+00 : f32
    %359 = vector.broadcast %cst_139 : f32 to vector<2x32xf32>
    %360 = arith.addf %359, %358 : vector<2x32xf32>
    %361 = arith.divf %359, %360 : vector<2x32xf32>
    %362 = arith.mulf %353, %284 : vector<2x32xf32>
    %363 = arith.mulf %347, %355 : vector<2x32xf32>
    %364 = arith.addf %362, %363 : vector<2x32xf32>
    %365 = math.tanh %364 : vector<2x32xf32>
    %366 = arith.mulf %361, %365 : vector<2x32xf32>
    %c5_i32 = arith.constant 5 : i32
    %367 = vector.broadcast %c5_i32 : i32 to vector<2x1xi32>
    %368 = arith.cmpi sgt, %0, %367 : vector<2x1xi32>
    %369 = vector.shape_cast %368 : vector<2x1xi1> to vector<2x1xi1>
    %370 = vector.broadcast %369 : vector<2x1xi1> to vector<2x32xi1>
    %371 = arith.select %370, %366, %281 : vector<2x32xi1>, vector<2x32xf32>
    %372 = vector.shape_cast %368 : vector<2x1xi1> to vector<2x1xi1>
    %373 = vector.broadcast %372 : vector<2x1xi1> to vector<2x32xi1>
    %374 = arith.select %373, %364, %284 : vector<2x32xi1>, vector<2x32xf32>
    %cst_140 = arith.constant 0.000000e+00 : f32
    %375 = vector.shape_cast %368 : vector<2x1xi1> to vector<2x1xi1>
    %376 = vector.broadcast %375 : vector<2x1xi1> to vector<2x32xi1>
    %377 = vector.broadcast %cst_140 : f32 to vector<2x32xf32>
    %378 = arith.select %376, %366, %377 : vector<2x32xi1>, vector<2x32xf32>
    %c2_141 = arith.constant 2 : index
    %c0_142 = arith.constant 0 : index
    %c0_143 = arith.constant 0 : index
    %379 = vector.load %arg17[%c2_141, %c0_142, %c0_143] : memref<8x2x32xf32, #tpu.memory_space<vmem>>, vector<1x2x32xf32>
    %380 = vector.shape_cast %379 : vector<1x2x32xf32> to vector<2x32xf32>
    %381 = vector.shape_cast %341 : vector<2x32xf32> to vector<1x2x32xf32>
    tpu.vector_store %arg17[%c2_141, %c0_142, %c0_143], %381 {strides = array<i32>} : memref<8x2x32xf32, #tpu.memory_space<vmem>>, vector<1x2x32xf32>,
    %c5_144 = arith.constant 5 : index
    %c0_145 = arith.constant 0 : index
    %c0_146 = arith.constant 0 : index
    %382 = vector.load %arg18[%c5_144, %c0_145, %c0_146] : memref<8x2x32xf32, #tpu.memory_space<vmem>>, vector<1x2x32xf32>
    %383 = vector.shape_cast %382 : vector<1x2x32xf32> to vector<2x32xf32>
    %384 = vector.shape_cast %378 : vector<2x32xf32> to vector<1x2x32xf32>
    tpu.vector_store %arg18[%c5_144, %c0_145, %c0_146], %384 {strides = array<i32>} : memref<8x2x32xf32, #tpu.memory_space<vmem>>, vector<1x2x32xf32>,
    %c3_147 = arith.constant 3 : index
    %c0_148 = arith.constant 0 : index
    %c0_149 = arith.constant 0 : index
    %385 = vector.load %arg16[%c3_147, %c0_148, %c0_149] : memref<8x2x256xf32, #tpu.memory_space<vmem>>, vector<1x2x256xf32>
    %386 = vector.shape_cast %385 : vector<1x2x256xf32> to vector<2x256xf32>
    %387 = vector.extract_strided_slice %386 {offsets = [0, 0], sizes = [2, 128], strides = [1, 1]} : vector<2x256xf32> to vector<2x128xf32>
    %cst_150 = arith.constant dense<0.000000e+00> : vector<2x128xf32>
    %388 = tpu.matmul %334, %109, %cst_150 {dimension_numbers = #tpu.dot_dimension_numbers<[1], [0], [0], [1], [0, 0, 1, 1], [], []>} : vector<2x32xf32>, vector<32x128xf32>, vector<2x128xf32> -> vector<2x128xf32>
    %389 = arith.addf %387, %388 : vector<2x128xf32>
    %c4_151 = arith.constant 4 : index
    %c0_152 = arith.constant 0 : index
    %c0_153 = arith.constant 0 : index
    %390 = vector.load %arg16[%c4_151, %c0_152, %c0_153] : memref<8x2x256xf32, #tpu.memory_space<vmem>>, vector<1x2x256xf32>
    %391 = vector.shape_cast %390 : vector<1x2x256xf32> to vector<2x256xf32>
    %392 = vector.extract_strided_slice %391 {offsets = [0, 128], sizes = [2, 128], strides = [1, 1]} : vector<2x256xf32> to vector<2x128xf32>
    %cst_154 = arith.constant dense<0.000000e+00> : vector<2x128xf32>
    %393 = tpu.matmul %371, %110, %cst_154 {dimension_numbers = #tpu.dot_dimension_numbers<[1], [0], [0], [1], [0, 0, 1, 1], [], []>} : vector<2x32xf32>, vector<32x128xf32>, vector<2x128xf32> -> vector<2x128xf32>
    %394 = arith.addf %392, %393 : vector<2x128xf32>
    %395 = vector.extract_strided_slice %389 {offsets = [0, 0], sizes = [2, 32], strides = [1, 1]} : vector<2x128xf32> to vector<2x32xf32>
    %396 = arith.negf %395 : vector<2x32xf32>
    %397 = math.exp %396 : vector<2x32xf32>
    %cst_155 = arith.constant 1.000000e+00 : f32
    %398 = vector.broadcast %cst_155 : f32 to vector<2x32xf32>
    %399 = arith.addf %398, %397 : vector<2x32xf32>
    %400 = arith.divf %398, %399 : vector<2x32xf32>
    %401 = vector.extract_strided_slice %389 {offsets = [0, 32], sizes = [2, 32], strides = [1, 1]} : vector<2x128xf32> to vector<2x32xf32>
    %402 = arith.negf %401 : vector<2x32xf32>
    %403 = math.exp %402 : vector<2x32xf32>
    %cst_156 = arith.constant 1.000000e+00 : f32
    %404 = vector.broadcast %cst_156 : f32 to vector<2x32xf32>
    %405 = arith.addf %404, %403 : vector<2x32xf32>
    %406 = arith.divf %404, %405 : vector<2x32xf32>
    %407 = vector.extract_strided_slice %389 {offsets = [0, 64], sizes = [2, 32], strides = [1, 1]} : vector<2x128xf32> to vector<2x32xf32>
    %408 = math.tanh %407 : vector<2x32xf32>
    %409 = vector.extract_strided_slice %389 {offsets = [0, 96], sizes = [2, 32], strides = [1, 1]} : vector<2x128xf32> to vector<2x32xf32>
    %410 = arith.negf %409 : vector<2x32xf32>
    %411 = math.exp %410 : vector<2x32xf32>
    %cst_157 = arith.constant 1.000000e+00 : f32
    %412 = vector.broadcast %cst_157 : f32 to vector<2x32xf32>
    %413 = arith.addf %412, %411 : vector<2x32xf32>
    %414 = arith.divf %412, %413 : vector<2x32xf32>
    %415 = arith.mulf %406, %337 : vector<2x32xf32>
    %416 = arith.mulf %400, %408 : vector<2x32xf32>
    %417 = arith.addf %415, %416 : vector<2x32xf32>
    %418 = math.tanh %417 : vector<2x32xf32>
    %419 = arith.mulf %414, %418 : vector<2x32xf32>
    %c3_i32 = arith.constant 3 : i32
    %420 = vector.broadcast %c3_i32 : i32 to vector<2x1xi32>
    %421 = arith.cmpi sgt, %0, %420 : vector<2x1xi32>
    %422 = vector.shape_cast %421 : vector<2x1xi1> to vector<2x1xi1>
    %423 = vector.broadcast %422 : vector<2x1xi1> to vector<2x32xi1>
    %424 = arith.select %423, %419, %334 : vector<2x32xi1>, vector<2x32xf32>
    %425 = vector.shape_cast %421 : vector<2x1xi1> to vector<2x1xi1>
    %426 = vector.broadcast %425 : vector<2x1xi1> to vector<2x32xi1>
    %427 = arith.select %426, %417, %337 : vector<2x32xi1>, vector<2x32xf32>
    %cst_158 = arith.constant 0.000000e+00 : f32
    %428 = vector.shape_cast %421 : vector<2x1xi1> to vector<2x1xi1>
    %429 = vector.broadcast %428 : vector<2x1xi1> to vector<2x32xi1>
    %430 = vector.broadcast %cst_158 : f32 to vector<2x32xf32>
    %431 = arith.select %429, %419, %430 : vector<2x32xi1>, vector<2x32xf32>
    %432 = vector.extract_strided_slice %394 {offsets = [0, 0], sizes = [2, 32], strides = [1, 1]} : vector<2x128xf32> to vector<2x32xf32>
    %433 = arith.negf %432 : vector<2x32xf32>
    %434 = math.exp %433 : vector<2x32xf32>
    %cst_159 = arith.constant 1.000000e+00 : f32
    %435 = vector.broadcast %cst_159 : f32 to vector<2x32xf32>
    %436 = arith.addf %435, %434 : vector<2x32xf32>
    %437 = arith.divf %435, %436 : vector<2x32xf32>
    %438 = vector.extract_strided_slice %394 {offsets = [0, 32], sizes = [2, 32], strides = [1, 1]} : vector<2x128xf32> to vector<2x32xf32>
    %439 = arith.negf %438 : vector<2x32xf32>
    %440 = math.exp %439 : vector<2x32xf32>
    %cst_160 = arith.constant 1.000000e+00 : f32
    %441 = vector.broadcast %cst_160 : f32 to vector<2x32xf32>
    %442 = arith.addf %441, %440 : vector<2x32xf32>
    %443 = arith.divf %441, %442 : vector<2x32xf32>
    %444 = vector.extract_strided_slice %394 {offsets = [0, 64], sizes = [2, 32], strides = [1, 1]} : vector<2x128xf32> to vector<2x32xf32>
    %445 = math.tanh %444 : vector<2x32xf32>
    %446 = vector.extract_strided_slice %394 {offsets = [0, 96], sizes = [2, 32], strides = [1, 1]} : vector<2x128xf32> to vector<2x32xf32>
    %447 = arith.negf %446 : vector<2x32xf32>
    %448 = math.exp %447 : vector<2x32xf32>
    %cst_161 = arith.constant 1.000000e+00 : f32
    %449 = vector.broadcast %cst_161 : f32 to vector<2x32xf32>
    %450 = arith.addf %449, %448 : vector<2x32xf32>
    %451 = arith.divf %449, %450 : vector<2x32xf32>
    %452 = arith.mulf %443, %374 : vector<2x32xf32>
    %453 = arith.mulf %437, %445 : vector<2x32xf32>
    %454 = arith.addf %452, %453 : vector<2x32xf32>
    %455 = math.tanh %454 : vector<2x32xf32>
    %456 = arith.mulf %451, %455 : vector<2x32xf32>
    %c4_i32 = arith.constant 4 : i32
    %457 = vector.broadcast %c4_i32 : i32 to vector<2x1xi32>
    %458 = arith.cmpi sgt, %0, %457 : vector<2x1xi32>
    %459 = vector.shape_cast %458 : vector<2x1xi1> to vector<2x1xi1>
    %460 = vector.broadcast %459 : vector<2x1xi1> to vector<2x32xi1>
    %461 = arith.select %460, %456, %371 : vector<2x32xi1>, vector<2x32xf32>
    %462 = vector.shape_cast %458 : vector<2x1xi1> to vector<2x1xi1>
    %463 = vector.broadcast %462 : vector<2x1xi1> to vector<2x32xi1>
    %464 = arith.select %463, %454, %374 : vector<2x32xi1>, vector<2x32xf32>
    %cst_162 = arith.constant 0.000000e+00 : f32
    %465 = vector.shape_cast %458 : vector<2x1xi1> to vector<2x1xi1>
    %466 = vector.broadcast %465 : vector<2x1xi1> to vector<2x32xi1>
    %467 = vector.broadcast %cst_162 : f32 to vector<2x32xf32>
    %468 = arith.select %466, %456, %467 : vector<2x32xi1>, vector<2x32xf32>
    %c3_163 = arith.constant 3 : index
    %c0_164 = arith.constant 0 : index
    %c0_165 = arith.constant 0 : index
    %469 = vector.load %arg17[%c3_163, %c0_164, %c0_165] : memref<8x2x32xf32, #tpu.memory_space<vmem>>, vector<1x2x32xf32>
    %470 = vector.shape_cast %469 : vector<1x2x32xf32> to vector<2x32xf32>
    %471 = vector.shape_cast %431 : vector<2x32xf32> to vector<1x2x32xf32>
    tpu.vector_store %arg17[%c3_163, %c0_164, %c0_165], %471 {strides = array<i32>} : memref<8x2x32xf32, #tpu.memory_space<vmem>>, vector<1x2x32xf32>,
    %c4_166 = arith.constant 4 : index
    %c0_167 = arith.constant 0 : index
    %c0_168 = arith.constant 0 : index
    %472 = vector.load %arg18[%c4_166, %c0_167, %c0_168] : memref<8x2x32xf32, #tpu.memory_space<vmem>>, vector<1x2x32xf32>
    %473 = vector.shape_cast %472 : vector<1x2x32xf32> to vector<2x32xf32>
    %474 = vector.shape_cast %468 : vector<2x32xf32> to vector<1x2x32xf32>
    tpu.vector_store %arg18[%c4_166, %c0_167, %c0_168], %474 {strides = array<i32>} : memref<8x2x32xf32, #tpu.memory_space<vmem>>, vector<1x2x32xf32>,
    %c4_169 = arith.constant 4 : index
    %c0_170 = arith.constant 0 : index
    %c0_171 = arith.constant 0 : index
    %475 = vector.load %arg16[%c4_169, %c0_170, %c0_171] : memref<8x2x256xf32, #tpu.memory_space<vmem>>, vector<1x2x256xf32>
    %476 = vector.shape_cast %475 : vector<1x2x256xf32> to vector<2x256xf32>
    %477 = vector.extract_strided_slice %476 {offsets = [0, 0], sizes = [2, 128], strides = [1, 1]} : vector<2x256xf32> to vector<2x128xf32>
    %cst_172 = arith.constant dense<0.000000e+00> : vector<2x128xf32>
    %478 = tpu.matmul %424, %109, %cst_172 {dimension_numbers = #tpu.dot_dimension_numbers<[1], [0], [0], [1], [0, 0, 1, 1], [], []>} : vector<2x32xf32>, vector<32x128xf32>, vector<2x128xf32> -> vector<2x128xf32>
    %479 = arith.addf %477, %478 : vector<2x128xf32>
    %c3_173 = arith.constant 3 : index
    %c0_174 = arith.constant 0 : index
    %c0_175 = arith.constant 0 : index
    %480 = vector.load %arg16[%c3_173, %c0_174, %c0_175] : memref<8x2x256xf32, #tpu.memory_space<vmem>>, vector<1x2x256xf32>
    %481 = vector.shape_cast %480 : vector<1x2x256xf32> to vector<2x256xf32>
    %482 = vector.extract_strided_slice %481 {offsets = [0, 128], sizes = [2, 128], strides = [1, 1]} : vector<2x256xf32> to vector<2x128xf32>
    %cst_176 = arith.constant dense<0.000000e+00> : vector<2x128xf32>
    %483 = tpu.matmul %461, %110, %cst_176 {dimension_numbers = #tpu.dot_dimension_numbers<[1], [0], [0], [1], [0, 0, 1, 1], [], []>} : vector<2x32xf32>, vector<32x128xf32>, vector<2x128xf32> -> vector<2x128xf32>
    %484 = arith.addf %482, %483 : vector<2x128xf32>
    %485 = vector.extract_strided_slice %479 {offsets = [0, 0], sizes = [2, 32], strides = [1, 1]} : vector<2x128xf32> to vector<2x32xf32>
    %486 = arith.negf %485 : vector<2x32xf32>
    %487 = math.exp %486 : vector<2x32xf32>
    %cst_177 = arith.constant 1.000000e+00 : f32
    %488 = vector.broadcast %cst_177 : f32 to vector<2x32xf32>
    %489 = arith.addf %488, %487 : vector<2x32xf32>
    %490 = arith.divf %488, %489 : vector<2x32xf32>
    %491 = vector.extract_strided_slice %479 {offsets = [0, 32], sizes = [2, 32], strides = [1, 1]} : vector<2x128xf32> to vector<2x32xf32>
    %492 = arith.negf %491 : vector<2x32xf32>
    %493 = math.exp %492 : vector<2x32xf32>
    %cst_178 = arith.constant 1.000000e+00 : f32
    %494 = vector.broadcast %cst_178 : f32 to vector<2x32xf32>
    %495 = arith.addf %494, %493 : vector<2x32xf32>
    %496 = arith.divf %494, %495 : vector<2x32xf32>
    %497 = vector.extract_strided_slice %479 {offsets = [0, 64], sizes = [2, 32], strides = [1, 1]} : vector<2x128xf32> to vector<2x32xf32>
    %498 = math.tanh %497 : vector<2x32xf32>
    %499 = vector.extract_strided_slice %479 {offsets = [0, 96], sizes = [2, 32], strides = [1, 1]} : vector<2x128xf32> to vector<2x32xf32>
    %500 = arith.negf %499 : vector<2x32xf32>
    %501 = math.exp %500 : vector<2x32xf32>
    %cst_179 = arith.constant 1.000000e+00 : f32
    %502 = vector.broadcast %cst_179 : f32 to vector<2x32xf32>
    %503 = arith.addf %502, %501 : vector<2x32xf32>
    %504 = arith.divf %502, %503 : vector<2x32xf32>
    %505 = arith.mulf %496, %427 : vector<2x32xf32>
    %506 = arith.mulf %490, %498 : vector<2x32xf32>
    %507 = arith.addf %505, %506 : vector<2x32xf32>
    %508 = math.tanh %507 : vector<2x32xf32>
    %509 = arith.mulf %504, %508 : vector<2x32xf32>
    %c4_i32_180 = arith.constant 4 : i32
    %510 = vector.broadcast %c4_i32_180 : i32 to vector<2x1xi32>
    %511 = arith.cmpi sgt, %0, %510 : vector<2x1xi32>
    %512 = vector.shape_cast %511 : vector<2x1xi1> to vector<2x1xi1>
    %513 = vector.broadcast %512 : vector<2x1xi1> to vector<2x32xi1>
    %514 = arith.select %513, %509, %424 : vector<2x32xi1>, vector<2x32xf32>
    %515 = vector.shape_cast %511 : vector<2x1xi1> to vector<2x1xi1>
    %516 = vector.broadcast %515 : vector<2x1xi1> to vector<2x32xi1>
    %517 = arith.select %516, %507, %427 : vector<2x32xi1>, vector<2x32xf32>
    %cst_181 = arith.constant 0.000000e+00 : f32
    %518 = vector.shape_cast %511 : vector<2x1xi1> to vector<2x1xi1>
    %519 = vector.broadcast %518 : vector<2x1xi1> to vector<2x32xi1>
    %520 = vector.broadcast %cst_181 : f32 to vector<2x32xf32>
    %521 = arith.select %519, %509, %520 : vector<2x32xi1>, vector<2x32xf32>
    %522 = vector.extract_strided_slice %484 {offsets = [0, 0], sizes = [2, 32], strides = [1, 1]} : vector<2x128xf32> to vector<2x32xf32>
    %523 = arith.negf %522 : vector<2x32xf32>
    %524 = math.exp %523 : vector<2x32xf32>
    %cst_182 = arith.constant 1.000000e+00 : f32
    %525 = vector.broadcast %cst_182 : f32 to vector<2x32xf32>
    %526 = arith.addf %525, %524 : vector<2x32xf32>
    %527 = arith.divf %525, %526 : vector<2x32xf32>
    %528 = vector.extract_strided_slice %484 {offsets = [0, 32], sizes = [2, 32], strides = [1, 1]} : vector<2x128xf32> to vector<2x32xf32>
    %529 = arith.negf %528 : vector<2x32xf32>
    %530 = math.exp %529 : vector<2x32xf32>
    %cst_183 = arith.constant 1.000000e+00 : f32
    %531 = vector.broadcast %cst_183 : f32 to vector<2x32xf32>
    %532 = arith.addf %531, %530 : vector<2x32xf32>
    %533 = arith.divf %531, %532 : vector<2x32xf32>
    %534 = vector.extract_strided_slice %484 {offsets = [0, 64], sizes = [2, 32], strides = [1, 1]} : vector<2x128xf32> to vector<2x32xf32>
    %535 = math.tanh %534 : vector<2x32xf32>
    %536 = vector.extract_strided_slice %484 {offsets = [0, 96], sizes = [2, 32], strides = [1, 1]} : vector<2x128xf32> to vector<2x32xf32>
    %537 = arith.negf %536 : vector<2x32xf32>
    %538 = math.exp %537 : vector<2x32xf32>
    %cst_184 = arith.constant 1.000000e+00 : f32
    %539 = vector.broadcast %cst_184 : f32 to vector<2x32xf32>
    %540 = arith.addf %539, %538 : vector<2x32xf32>
    %541 = arith.divf %539, %540 : vector<2x32xf32>
    %542 = arith.mulf %533, %464 : vector<2x32xf32>
    %543 = arith.mulf %527, %535 : vector<2x32xf32>
    %544 = arith.addf %542, %543 : vector<2x32xf32>
    %545 = math.tanh %544 : vector<2x32xf32>
    %546 = arith.mulf %541, %545 : vector<2x32xf32>
    %c3_i32_185 = arith.constant 3 : i32
    %547 = vector.broadcast %c3_i32_185 : i32 to vector<2x1xi32>
    %548 = arith.cmpi sgt, %0, %547 : vector<2x1xi32>
    %549 = vector.shape_cast %548 : vector<2x1xi1> to vector<2x1xi1>
    %550 = vector.broadcast %549 : vector<2x1xi1> to vector<2x32xi1>
    %551 = arith.select %550, %546, %461 : vector<2x32xi1>, vector<2x32xf32>
    %552 = vector.shape_cast %548 : vector<2x1xi1> to vector<2x1xi1>
    %553 = vector.broadcast %552 : vector<2x1xi1> to vector<2x32xi1>
    %554 = arith.select %553, %544, %464 : vector<2x32xi1>, vector<2x32xf32>
    %cst_186 = arith.constant 0.000000e+00 : f32
    %555 = vector.shape_cast %548 : vector<2x1xi1> to vector<2x1xi1>
    %556 = vector.broadcast %555 : vector<2x1xi1> to vector<2x32xi1>
    %557 = vector.broadcast %cst_186 : f32 to vector<2x32xf32>
    %558 = arith.select %556, %546, %557 : vector<2x32xi1>, vector<2x32xf32>
    %c4_187 = arith.constant 4 : index
    %c0_188 = arith.constant 0 : index
    %c0_189 = arith.constant 0 : index
    %559 = vector.load %arg17[%c4_187, %c0_188, %c0_189] : memref<8x2x32xf32, #tpu.memory_space<vmem>>, vector<1x2x32xf32>
    %560 = vector.shape_cast %559 : vector<1x2x32xf32> to vector<2x32xf32>
    %561 = vector.shape_cast %521 : vector<2x32xf32> to vector<1x2x32xf32>
    tpu.vector_store %arg17[%c4_187, %c0_188, %c0_189], %561 {strides = array<i32>} : memref<8x2x32xf32, #tpu.memory_space<vmem>>, vector<1x2x32xf32>,
    %c3_190 = arith.constant 3 : index
    %c0_191 = arith.constant 0 : index
    %c0_192 = arith.constant 0 : index
    %562 = vector.load %arg18[%c3_190, %c0_191, %c0_192] : memref<8x2x32xf32, #tpu.memory_space<vmem>>, vector<1x2x32xf32>
    %563 = vector.shape_cast %562 : vector<1x2x32xf32> to vector<2x32xf32>
    %564 = vector.shape_cast %558 : vector<2x32xf32> to vector<1x2x32xf32>
    tpu.vector_store %arg18[%c3_190, %c0_191, %c0_192], %564 {strides = array<i32>} : memref<8x2x32xf32, #tpu.memory_space<vmem>>, vector<1x2x32xf32>,
    %c5_193 = arith.constant 5 : index
    %c0_194 = arith.constant 0 : index
    %c0_195 = arith.constant 0 : index
    %565 = vector.load %arg16[%c5_193, %c0_194, %c0_195] : memref<8x2x256xf32, #tpu.memory_space<vmem>>, vector<1x2x256xf32>
    %566 = vector.shape_cast %565 : vector<1x2x256xf32> to vector<2x256xf32>
    %567 = vector.extract_strided_slice %566 {offsets = [0, 0], sizes = [2, 128], strides = [1, 1]} : vector<2x256xf32> to vector<2x128xf32>
    %cst_196 = arith.constant dense<0.000000e+00> : vector<2x128xf32>
    %568 = tpu.matmul %514, %109, %cst_196 {dimension_numbers = #tpu.dot_dimension_numbers<[1], [0], [0], [1], [0, 0, 1, 1], [], []>} : vector<2x32xf32>, vector<32x128xf32>, vector<2x128xf32> -> vector<2x128xf32>
    %569 = arith.addf %567, %568 : vector<2x128xf32>
    %c2_197 = arith.constant 2 : index
    %c0_198 = arith.constant 0 : index
    %c0_199 = arith.constant 0 : index
    %570 = vector.load %arg16[%c2_197, %c0_198, %c0_199] : memref<8x2x256xf32, #tpu.memory_space<vmem>>, vector<1x2x256xf32>
    %571 = vector.shape_cast %570 : vector<1x2x256xf32> to vector<2x256xf32>
    %572 = vector.extract_strided_slice %571 {offsets = [0, 128], sizes = [2, 128], strides = [1, 1]} : vector<2x256xf32> to vector<2x128xf32>
    %cst_200 = arith.constant dense<0.000000e+00> : vector<2x128xf32>
    %573 = tpu.matmul %551, %110, %cst_200 {dimension_numbers = #tpu.dot_dimension_numbers<[1], [0], [0], [1], [0, 0, 1, 1], [], []>} : vector<2x32xf32>, vector<32x128xf32>, vector<2x128xf32> -> vector<2x128xf32>
    %574 = arith.addf %572, %573 : vector<2x128xf32>
    %575 = vector.extract_strided_slice %569 {offsets = [0, 0], sizes = [2, 32], strides = [1, 1]} : vector<2x128xf32> to vector<2x32xf32>
    %576 = arith.negf %575 : vector<2x32xf32>
    %577 = math.exp %576 : vector<2x32xf32>
    %cst_201 = arith.constant 1.000000e+00 : f32
    %578 = vector.broadcast %cst_201 : f32 to vector<2x32xf32>
    %579 = arith.addf %578, %577 : vector<2x32xf32>
    %580 = arith.divf %578, %579 : vector<2x32xf32>
    %581 = vector.extract_strided_slice %569 {offsets = [0, 32], sizes = [2, 32], strides = [1, 1]} : vector<2x128xf32> to vector<2x32xf32>
    %582 = arith.negf %581 : vector<2x32xf32>
    %583 = math.exp %582 : vector<2x32xf32>
    %cst_202 = arith.constant 1.000000e+00 : f32
    %584 = vector.broadcast %cst_202 : f32 to vector<2x32xf32>
    %585 = arith.addf %584, %583 : vector<2x32xf32>
    %586 = arith.divf %584, %585 : vector<2x32xf32>
    %587 = vector.extract_strided_slice %569 {offsets = [0, 64], sizes = [2, 32], strides = [1, 1]} : vector<2x128xf32> to vector<2x32xf32>
    %588 = math.tanh %587 : vector<2x32xf32>
    %589 = vector.extract_strided_slice %569 {offsets = [0, 96], sizes = [2, 32], strides = [1, 1]} : vector<2x128xf32> to vector<2x32xf32>
    %590 = arith.negf %589 : vector<2x32xf32>
    %591 = math.exp %590 : vector<2x32xf32>
    %cst_203 = arith.constant 1.000000e+00 : f32
    %592 = vector.broadcast %cst_203 : f32 to vector<2x32xf32>
    %593 = arith.addf %592, %591 : vector<2x32xf32>
    %594 = arith.divf %592, %593 : vector<2x32xf32>
    %595 = arith.mulf %586, %517 : vector<2x32xf32>
    %596 = arith.mulf %580, %588 : vector<2x32xf32>
    %597 = arith.addf %595, %596 : vector<2x32xf32>
    %598 = math.tanh %597 : vector<2x32xf32>
    %599 = arith.mulf %594, %598 : vector<2x32xf32>
    %c5_i32_204 = arith.constant 5 : i32
    %600 = vector.broadcast %c5_i32_204 : i32 to vector<2x1xi32>
    %601 = arith.cmpi sgt, %0, %600 : vector<2x1xi32>
    %602 = vector.shape_cast %601 : vector<2x1xi1> to vector<2x1xi1>
    %603 = vector.broadcast %602 : vector<2x1xi1> to vector<2x32xi1>
    %604 = arith.select %603, %599, %514 : vector<2x32xi1>, vector<2x32xf32>
    %605 = vector.shape_cast %601 : vector<2x1xi1> to vector<2x1xi1>
    %606 = vector.broadcast %605 : vector<2x1xi1> to vector<2x32xi1>
    %607 = arith.select %606, %597, %517 : vector<2x32xi1>, vector<2x32xf32>
    %cst_205 = arith.constant 0.000000e+00 : f32
    %608 = vector.shape_cast %601 : vector<2x1xi1> to vector<2x1xi1>
    %609 = vector.broadcast %608 : vector<2x1xi1> to vector<2x32xi1>
    %610 = vector.broadcast %cst_205 : f32 to vector<2x32xf32>
    %611 = arith.select %609, %599, %610 : vector<2x32xi1>, vector<2x32xf32>
    %612 = vector.extract_strided_slice %574 {offsets = [0, 0], sizes = [2, 32], strides = [1, 1]} : vector<2x128xf32> to vector<2x32xf32>
    %613 = arith.negf %612 : vector<2x32xf32>
    %614 = math.exp %613 : vector<2x32xf32>
    %cst_206 = arith.constant 1.000000e+00 : f32
    %615 = vector.broadcast %cst_206 : f32 to vector<2x32xf32>
    %616 = arith.addf %615, %614 : vector<2x32xf32>
    %617 = arith.divf %615, %616 : vector<2x32xf32>
    %618 = vector.extract_strided_slice %574 {offsets = [0, 32], sizes = [2, 32], strides = [1, 1]} : vector<2x128xf32> to vector<2x32xf32>
    %619 = arith.negf %618 : vector<2x32xf32>
    %620 = math.exp %619 : vector<2x32xf32>
    %cst_207 = arith.constant 1.000000e+00 : f32
    %621 = vector.broadcast %cst_207 : f32 to vector<2x32xf32>
    %622 = arith.addf %621, %620 : vector<2x32xf32>
    %623 = arith.divf %621, %622 : vector<2x32xf32>
    %624 = vector.extract_strided_slice %574 {offsets = [0, 64], sizes = [2, 32], strides = [1, 1]} : vector<2x128xf32> to vector<2x32xf32>
    %625 = math.tanh %624 : vector<2x32xf32>
    %626 = vector.extract_strided_slice %574 {offsets = [0, 96], sizes = [2, 32], strides = [1, 1]} : vector<2x128xf32> to vector<2x32xf32>
    %627 = arith.negf %626 : vector<2x32xf32>
    %628 = math.exp %627 : vector<2x32xf32>
    %cst_208 = arith.constant 1.000000e+00 : f32
    %629 = vector.broadcast %cst_208 : f32 to vector<2x32xf32>
    %630 = arith.addf %629, %628 : vector<2x32xf32>
    %631 = arith.divf %629, %630 : vector<2x32xf32>
    %632 = arith.mulf %623, %554 : vector<2x32xf32>
    %633 = arith.mulf %617, %625 : vector<2x32xf32>
    %634 = arith.addf %632, %633 : vector<2x32xf32>
    %635 = math.tanh %634 : vector<2x32xf32>
    %636 = arith.mulf %631, %635 : vector<2x32xf32>
    %c2_i32_209 = arith.constant 2 : i32
    %637 = vector.broadcast %c2_i32_209 : i32 to vector<2x1xi32>
    %638 = arith.cmpi sgt, %0, %637 : vector<2x1xi32>
    %639 = vector.shape_cast %638 : vector<2x1xi1> to vector<2x1xi1>
    %640 = vector.broadcast %639 : vector<2x1xi1> to vector<2x32xi1>
    %641 = arith.select %640, %636, %551 : vector<2x32xi1>, vector<2x32xf32>
    %642 = vector.shape_cast %638 : vector<2x1xi1> to vector<2x1xi1>
    %643 = vector.broadcast %642 : vector<2x1xi1> to vector<2x32xi1>
    %644 = arith.select %643, %634, %554 : vector<2x32xi1>, vector<2x32xf32>
    %cst_210 = arith.constant 0.000000e+00 : f32
    %645 = vector.shape_cast %638 : vector<2x1xi1> to vector<2x1xi1>
    %646 = vector.broadcast %645 : vector<2x1xi1> to vector<2x32xi1>
    %647 = vector.broadcast %cst_210 : f32 to vector<2x32xf32>
    %648 = arith.select %646, %636, %647 : vector<2x32xi1>, vector<2x32xf32>
    %c5_211 = arith.constant 5 : index
    %c0_212 = arith.constant 0 : index
    %c0_213 = arith.constant 0 : index
    %649 = vector.load %arg17[%c5_211, %c0_212, %c0_213] : memref<8x2x32xf32, #tpu.memory_space<vmem>>, vector<1x2x32xf32>
    %650 = vector.shape_cast %649 : vector<1x2x32xf32> to vector<2x32xf32>
    %651 = vector.shape_cast %611 : vector<2x32xf32> to vector<1x2x32xf32>
    tpu.vector_store %arg17[%c5_211, %c0_212, %c0_213], %651 {strides = array<i32>} : memref<8x2x32xf32, #tpu.memory_space<vmem>>, vector<1x2x32xf32>,
    %c2_214 = arith.constant 2 : index
    %c0_215 = arith.constant 0 : index
    %c0_216 = arith.constant 0 : index
    %652 = vector.load %arg18[%c2_214, %c0_215, %c0_216] : memref<8x2x32xf32, #tpu.memory_space<vmem>>, vector<1x2x32xf32>
    %653 = vector.shape_cast %652 : vector<1x2x32xf32> to vector<2x32xf32>
    %654 = vector.shape_cast %648 : vector<2x32xf32> to vector<1x2x32xf32>
    tpu.vector_store %arg18[%c2_214, %c0_215, %c0_216], %654 {strides = array<i32>} : memref<8x2x32xf32, #tpu.memory_space<vmem>>, vector<1x2x32xf32>,
    %c6_217 = arith.constant 6 : index
    %c0_218 = arith.constant 0 : index
    %c0_219 = arith.constant 0 : index
    %655 = vector.load %arg16[%c6_217, %c0_218, %c0_219] : memref<8x2x256xf32, #tpu.memory_space<vmem>>, vector<1x2x256xf32>
    %656 = vector.shape_cast %655 : vector<1x2x256xf32> to vector<2x256xf32>
    %657 = vector.extract_strided_slice %656 {offsets = [0, 0], sizes = [2, 128], strides = [1, 1]} : vector<2x256xf32> to vector<2x128xf32>
    %cst_220 = arith.constant dense<0.000000e+00> : vector<2x128xf32>
    %658 = tpu.matmul %604, %109, %cst_220 {dimension_numbers = #tpu.dot_dimension_numbers<[1], [0], [0], [1], [0, 0, 1, 1], [], []>} : vector<2x32xf32>, vector<32x128xf32>, vector<2x128xf32> -> vector<2x128xf32>
    %659 = arith.addf %657, %658 : vector<2x128xf32>
    %c1_221 = arith.constant 1 : index
    %c0_222 = arith.constant 0 : index
    %c0_223 = arith.constant 0 : index
    %660 = vector.load %arg16[%c1_221, %c0_222, %c0_223] : memref<8x2x256xf32, #tpu.memory_space<vmem>>, vector<1x2x256xf32>
    %661 = vector.shape_cast %660 : vector<1x2x256xf32> to vector<2x256xf32>
    %662 = vector.extract_strided_slice %661 {offsets = [0, 128], sizes = [2, 128], strides = [1, 1]} : vector<2x256xf32> to vector<2x128xf32>
    %cst_224 = arith.constant dense<0.000000e+00> : vector<2x128xf32>
    %663 = tpu.matmul %641, %110, %cst_224 {dimension_numbers = #tpu.dot_dimension_numbers<[1], [0], [0], [1], [0, 0, 1, 1], [], []>} : vector<2x32xf32>, vector<32x128xf32>, vector<2x128xf32> -> vector<2x128xf32>
    %664 = arith.addf %662, %663 : vector<2x128xf32>
    %665 = vector.extract_strided_slice %659 {offsets = [0, 0], sizes = [2, 32], strides = [1, 1]} : vector<2x128xf32> to vector<2x32xf32>
    %666 = arith.negf %665 : vector<2x32xf32>
    %667 = math.exp %666 : vector<2x32xf32>
    %cst_225 = arith.constant 1.000000e+00 : f32
    %668 = vector.broadcast %cst_225 : f32 to vector<2x32xf32>
    %669 = arith.addf %668, %667 : vector<2x32xf32>
    %670 = arith.divf %668, %669 : vector<2x32xf32>
    %671 = vector.extract_strided_slice %659 {offsets = [0, 32], sizes = [2, 32], strides = [1, 1]} : vector<2x128xf32> to vector<2x32xf32>
    %672 = arith.negf %671 : vector<2x32xf32>
    %673 = math.exp %672 : vector<2x32xf32>
    %cst_226 = arith.constant 1.000000e+00 : f32
    %674 = vector.broadcast %cst_226 : f32 to vector<2x32xf32>
    %675 = arith.addf %674, %673 : vector<2x32xf32>
    %676 = arith.divf %674, %675 : vector<2x32xf32>
    %677 = vector.extract_strided_slice %659 {offsets = [0, 64], sizes = [2, 32], strides = [1, 1]} : vector<2x128xf32> to vector<2x32xf32>
    %678 = math.tanh %677 : vector<2x32xf32>
    %679 = vector.extract_strided_slice %659 {offsets = [0, 96], sizes = [2, 32], strides = [1, 1]} : vector<2x128xf32> to vector<2x32xf32>
    %680 = arith.negf %679 : vector<2x32xf32>
    %681 = math.exp %680 : vector<2x32xf32>
    %cst_227 = arith.constant 1.000000e+00 : f32
    %682 = vector.broadcast %cst_227 : f32 to vector<2x32xf32>
    %683 = arith.addf %682, %681 : vector<2x32xf32>
    %684 = arith.divf %682, %683 : vector<2x32xf32>
    %685 = arith.mulf %676, %607 : vector<2x32xf32>
    %686 = arith.mulf %670, %678 : vector<2x32xf32>
    %687 = arith.addf %685, %686 : vector<2x32xf32>
    %688 = math.tanh %687 : vector<2x32xf32>
    %689 = arith.mulf %684, %688 : vector<2x32xf32>
    %c6_i32_228 = arith.constant 6 : i32
    %690 = vector.broadcast %c6_i32_228 : i32 to vector<2x1xi32>
    %691 = arith.cmpi sgt, %0, %690 : vector<2x1xi32>
    %692 = vector.shape_cast %691 : vector<2x1xi1> to vector<2x1xi1>
    %693 = vector.broadcast %692 : vector<2x1xi1> to vector<2x32xi1>
    %694 = arith.select %693, %689, %604 : vector<2x32xi1>, vector<2x32xf32>
    %695 = vector.shape_cast %691 : vector<2x1xi1> to vector<2x1xi1>
    %696 = vector.broadcast %695 : vector<2x1xi1> to vector<2x32xi1>
    %697 = arith.select %696, %687, %607 : vector<2x32xi1>, vector<2x32xf32>
    %cst_229 = arith.constant 0.000000e+00 : f32
    %698 = vector.shape_cast %691 : vector<2x1xi1> to vector<2x1xi1>
    %699 = vector.broadcast %698 : vector<2x1xi1> to vector<2x32xi1>
    %700 = vector.broadcast %cst_229 : f32 to vector<2x32xf32>
    %701 = arith.select %699, %689, %700 : vector<2x32xi1>, vector<2x32xf32>
    %702 = vector.extract_strided_slice %664 {offsets = [0, 0], sizes = [2, 32], strides = [1, 1]} : vector<2x128xf32> to vector<2x32xf32>
    %703 = arith.negf %702 : vector<2x32xf32>
    %704 = math.exp %703 : vector<2x32xf32>
    %cst_230 = arith.constant 1.000000e+00 : f32
    %705 = vector.broadcast %cst_230 : f32 to vector<2x32xf32>
    %706 = arith.addf %705, %704 : vector<2x32xf32>
    %707 = arith.divf %705, %706 : vector<2x32xf32>
    %708 = vector.extract_strided_slice %664 {offsets = [0, 32], sizes = [2, 32], strides = [1, 1]} : vector<2x128xf32> to vector<2x32xf32>
    %709 = arith.negf %708 : vector<2x32xf32>
    %710 = math.exp %709 : vector<2x32xf32>
    %cst_231 = arith.constant 1.000000e+00 : f32
    %711 = vector.broadcast %cst_231 : f32 to vector<2x32xf32>
    %712 = arith.addf %711, %710 : vector<2x32xf32>
    %713 = arith.divf %711, %712 : vector<2x32xf32>
    %714 = vector.extract_strided_slice %664 {offsets = [0, 64], sizes = [2, 32], strides = [1, 1]} : vector<2x128xf32> to vector<2x32xf32>
    %715 = math.tanh %714 : vector<2x32xf32>
    %716 = vector.extract_strided_slice %664 {offsets = [0, 96], sizes = [2, 32], strides = [1, 1]} : vector<2x128xf32> to vector<2x32xf32>
    %717 = arith.negf %716 : vector<2x32xf32>
    %718 = math.exp %717 : vector<2x32xf32>
    %cst_232 = arith.constant 1.000000e+00 : f32
    %719 = vector.broadcast %cst_232 : f32 to vector<2x32xf32>
    %720 = arith.addf %719, %718 : vector<2x32xf32>
    %721 = arith.divf %719, %720 : vector<2x32xf32>
    %722 = arith.mulf %713, %644 : vector<2x32xf32>
    %723 = arith.mulf %707, %715 : vector<2x32xf32>
    %724 = arith.addf %722, %723 : vector<2x32xf32>
    %725 = math.tanh %724 : vector<2x32xf32>
    %726 = arith.mulf %721, %725 : vector<2x32xf32>
    %c1_i32_233 = arith.constant 1 : i32
    %727 = vector.broadcast %c1_i32_233 : i32 to vector<2x1xi32>
    %728 = arith.cmpi sgt, %0, %727 : vector<2x1xi32>
    %729 = vector.shape_cast %728 : vector<2x1xi1> to vector<2x1xi1>
    %730 = vector.broadcast %729 : vector<2x1xi1> to vector<2x32xi1>
    %731 = arith.select %730, %726, %641 : vector<2x32xi1>, vector<2x32xf32>
    %732 = vector.shape_cast %728 : vector<2x1xi1> to vector<2x1xi1>
    %733 = vector.broadcast %732 : vector<2x1xi1> to vector<2x32xi1>
    %734 = arith.select %733, %724, %644 : vector<2x32xi1>, vector<2x32xf32>
    %cst_234 = arith.constant 0.000000e+00 : f32
    %735 = vector.shape_cast %728 : vector<2x1xi1> to vector<2x1xi1>
    %736 = vector.broadcast %735 : vector<2x1xi1> to vector<2x32xi1>
    %737 = vector.broadcast %cst_234 : f32 to vector<2x32xf32>
    %738 = arith.select %736, %726, %737 : vector<2x32xi1>, vector<2x32xf32>
    %c6_235 = arith.constant 6 : index
    %c0_236 = arith.constant 0 : index
    %c0_237 = arith.constant 0 : index
    %739 = vector.load %arg17[%c6_235, %c0_236, %c0_237] : memref<8x2x32xf32, #tpu.memory_space<vmem>>, vector<1x2x32xf32>
    %740 = vector.shape_cast %739 : vector<1x2x32xf32> to vector<2x32xf32>
    %741 = vector.shape_cast %701 : vector<2x32xf32> to vector<1x2x32xf32>
    tpu.vector_store %arg17[%c6_235, %c0_236, %c0_237], %741 {strides = array<i32>} : memref<8x2x32xf32, #tpu.memory_space<vmem>>, vector<1x2x32xf32>,
    %c1_238 = arith.constant 1 : index
    %c0_239 = arith.constant 0 : index
    %c0_240 = arith.constant 0 : index
    %742 = vector.load %arg18[%c1_238, %c0_239, %c0_240] : memref<8x2x32xf32, #tpu.memory_space<vmem>>, vector<1x2x32xf32>
    %743 = vector.shape_cast %742 : vector<1x2x32xf32> to vector<2x32xf32>
    %744 = vector.shape_cast %738 : vector<2x32xf32> to vector<1x2x32xf32>
    tpu.vector_store %arg18[%c1_238, %c0_239, %c0_240], %744 {strides = array<i32>} : memref<8x2x32xf32, #tpu.memory_space<vmem>>, vector<1x2x32xf32>,
    %c7_241 = arith.constant 7 : index
    %c0_242 = arith.constant 0 : index
    %c0_243 = arith.constant 0 : index
    %745 = vector.load %arg16[%c7_241, %c0_242, %c0_243] : memref<8x2x256xf32, #tpu.memory_space<vmem>>, vector<1x2x256xf32>
    %746 = vector.shape_cast %745 : vector<1x2x256xf32> to vector<2x256xf32>
    %747 = vector.extract_strided_slice %746 {offsets = [0, 0], sizes = [2, 128], strides = [1, 1]} : vector<2x256xf32> to vector<2x128xf32>
    %cst_244 = arith.constant dense<0.000000e+00> : vector<2x128xf32>
    %748 = tpu.matmul %694, %109, %cst_244 {dimension_numbers = #tpu.dot_dimension_numbers<[1], [0], [0], [1], [0, 0, 1, 1], [], []>} : vector<2x32xf32>, vector<32x128xf32>, vector<2x128xf32> -> vector<2x128xf32>
    %749 = arith.addf %747, %748 : vector<2x128xf32>
    %c0_245 = arith.constant 0 : index
    %c0_246 = arith.constant 0 : index
    %c0_247 = arith.constant 0 : index
    %750 = vector.load %arg16[%c0_245, %c0_246, %c0_247] : memref<8x2x256xf32, #tpu.memory_space<vmem>>, vector<1x2x256xf32>
    %751 = vector.shape_cast %750 : vector<1x2x256xf32> to vector<2x256xf32>
    %752 = vector.extract_strided_slice %751 {offsets = [0, 128], sizes = [2, 128], strides = [1, 1]} : vector<2x256xf32> to vector<2x128xf32>
    %cst_248 = arith.constant dense<0.000000e+00> : vector<2x128xf32>
    %753 = tpu.matmul %731, %110, %cst_248 {dimension_numbers = #tpu.dot_dimension_numbers<[1], [0], [0], [1], [0, 0, 1, 1], [], []>} : vector<2x32xf32>, vector<32x128xf32>, vector<2x128xf32> -> vector<2x128xf32>
    %754 = arith.addf %752, %753 : vector<2x128xf32>
    %755 = vector.extract_strided_slice %749 {offsets = [0, 0], sizes = [2, 32], strides = [1, 1]} : vector<2x128xf32> to vector<2x32xf32>
    %756 = arith.negf %755 : vector<2x32xf32>
    %757 = math.exp %756 : vector<2x32xf32>
    %cst_249 = arith.constant 1.000000e+00 : f32
    %758 = vector.broadcast %cst_249 : f32 to vector<2x32xf32>
    %759 = arith.addf %758, %757 : vector<2x32xf32>
    %760 = arith.divf %758, %759 : vector<2x32xf32>
    %761 = vector.extract_strided_slice %749 {offsets = [0, 32], sizes = [2, 32], strides = [1, 1]} : vector<2x128xf32> to vector<2x32xf32>
    %762 = arith.negf %761 : vector<2x32xf32>
    %763 = math.exp %762 : vector<2x32xf32>
    %cst_250 = arith.constant 1.000000e+00 : f32
    %764 = vector.broadcast %cst_250 : f32 to vector<2x32xf32>
    %765 = arith.addf %764, %763 : vector<2x32xf32>
    %766 = arith.divf %764, %765 : vector<2x32xf32>
    %767 = vector.extract_strided_slice %749 {offsets = [0, 64], sizes = [2, 32], strides = [1, 1]} : vector<2x128xf32> to vector<2x32xf32>
    %768 = math.tanh %767 : vector<2x32xf32>
    %769 = vector.extract_strided_slice %749 {offsets = [0, 96], sizes = [2, 32], strides = [1, 1]} : vector<2x128xf32> to vector<2x32xf32>
    %770 = arith.negf %769 : vector<2x32xf32>
    %771 = math.exp %770 : vector<2x32xf32>
    %cst_251 = arith.constant 1.000000e+00 : f32
    %772 = vector.broadcast %cst_251 : f32 to vector<2x32xf32>
    %773 = arith.addf %772, %771 : vector<2x32xf32>
    %774 = arith.divf %772, %773 : vector<2x32xf32>
    %775 = arith.mulf %766, %697 : vector<2x32xf32>
    %776 = arith.mulf %760, %768 : vector<2x32xf32>
    %777 = arith.addf %775, %776 : vector<2x32xf32>
    %778 = math.tanh %777 : vector<2x32xf32>
    %779 = arith.mulf %774, %778 : vector<2x32xf32>
    %c7_i32_252 = arith.constant 7 : i32
    %780 = vector.broadcast %c7_i32_252 : i32 to vector<2x1xi32>
    %781 = arith.cmpi sgt, %0, %780 : vector<2x1xi32>
    %782 = vector.shape_cast %781 : vector<2x1xi1> to vector<2x1xi1>
    %783 = vector.broadcast %782 : vector<2x1xi1> to vector<2x32xi1>
    %784 = arith.select %783, %779, %694 : vector<2x32xi1>, vector<2x32xf32>
    %785 = vector.shape_cast %781 : vector<2x1xi1> to vector<2x1xi1>
    %786 = vector.broadcast %785 : vector<2x1xi1> to vector<2x32xi1>
    %787 = arith.select %786, %777, %697 : vector<2x32xi1>, vector<2x32xf32>
    %cst_253 = arith.constant 0.000000e+00 : f32
    %788 = vector.shape_cast %781 : vector<2x1xi1> to vector<2x1xi1>
    %789 = vector.broadcast %788 : vector<2x1xi1> to vector<2x32xi1>
    %790 = vector.broadcast %cst_253 : f32 to vector<2x32xf32>
    %791 = arith.select %789, %779, %790 : vector<2x32xi1>, vector<2x32xf32>
    %792 = vector.extract_strided_slice %754 {offsets = [0, 0], sizes = [2, 32], strides = [1, 1]} : vector<2x128xf32> to vector<2x32xf32>
    %793 = arith.negf %792 : vector<2x32xf32>
    %794 = math.exp %793 : vector<2x32xf32>
    %cst_254 = arith.constant 1.000000e+00 : f32
    %795 = vector.broadcast %cst_254 : f32 to vector<2x32xf32>
    %796 = arith.addf %795, %794 : vector<2x32xf32>
    %797 = arith.divf %795, %796 : vector<2x32xf32>
    %798 = vector.extract_strided_slice %754 {offsets = [0, 32], sizes = [2, 32], strides = [1, 1]} : vector<2x128xf32> to vector<2x32xf32>
    %799 = arith.negf %798 : vector<2x32xf32>
    %800 = math.exp %799 : vector<2x32xf32>
    %cst_255 = arith.constant 1.000000e+00 : f32
    %801 = vector.broadcast %cst_255 : f32 to vector<2x32xf32>
    %802 = arith.addf %801, %800 : vector<2x32xf32>
    %803 = arith.divf %801, %802 : vector<2x32xf32>
    %804 = vector.extract_strided_slice %754 {offsets = [0, 64], sizes = [2, 32], strides = [1, 1]} : vector<2x128xf32> to vector<2x32xf32>
    %805 = math.tanh %804 : vector<2x32xf32>
    %806 = vector.extract_strided_slice %754 {offsets = [0, 96], sizes = [2, 32], strides = [1, 1]} : vector<2x128xf32> to vector<2x32xf32>
    %807 = arith.negf %806 : vector<2x32xf32>
    %808 = math.exp %807 : vector<2x32xf32>
    %cst_256 = arith.constant 1.000000e+00 : f32
    %809 = vector.broadcast %cst_256 : f32 to vector<2x32xf32>
    %810 = arith.addf %809, %808 : vector<2x32xf32>
    %811 = arith.divf %809, %810 : vector<2x32xf32>
    %812 = arith.mulf %803, %734 : vector<2x32xf32>
    %813 = arith.mulf %797, %805 : vector<2x32xf32>
    %814 = arith.addf %812, %813 : vector<2x32xf32>
    %815 = math.tanh %814 : vector<2x32xf32>
    %816 = arith.mulf %811, %815 : vector<2x32xf32>
    %c0_i32_257 = arith.constant 0 : i32
    %817 = vector.broadcast %c0_i32_257 : i32 to vector<2x1xi32>
    %818 = arith.cmpi sgt, %0, %817 : vector<2x1xi32>
    %819 = vector.shape_cast %818 : vector<2x1xi1> to vector<2x1xi1>
    %820 = vector.broadcast %819 : vector<2x1xi1> to vector<2x32xi1>
    %821 = arith.select %820, %816, %731 : vector<2x32xi1>, vector<2x32xf32>
    %822 = vector.shape_cast %818 : vector<2x1xi1> to vector<2x1xi1>
    %823 = vector.broadcast %822 : vector<2x1xi1> to vector<2x32xi1>
    %824 = arith.select %823, %814, %734 : vector<2x32xi1>, vector<2x32xf32>
    %cst_258 = arith.constant 0.000000e+00 : f32
    %825 = vector.shape_cast %818 : vector<2x1xi1> to vector<2x1xi1>
    %826 = vector.broadcast %825 : vector<2x1xi1> to vector<2x32xi1>
    %827 = vector.broadcast %cst_258 : f32 to vector<2x32xf32>
    %828 = arith.select %826, %816, %827 : vector<2x32xi1>, vector<2x32xf32>
    %c7_259 = arith.constant 7 : index
    %c0_260 = arith.constant 0 : index
    %c0_261 = arith.constant 0 : index
    %829 = vector.load %arg17[%c7_259, %c0_260, %c0_261] : memref<8x2x32xf32, #tpu.memory_space<vmem>>, vector<1x2x32xf32>
    %830 = vector.shape_cast %829 : vector<1x2x32xf32> to vector<2x32xf32>
    %831 = vector.shape_cast %791 : vector<2x32xf32> to vector<1x2x32xf32>
    tpu.vector_store %arg17[%c7_259, %c0_260, %c0_261], %831 {strides = array<i32>} : memref<8x2x32xf32, #tpu.memory_space<vmem>>, vector<1x2x32xf32>,
    %c0_262 = arith.constant 0 : index
    %c0_263 = arith.constant 0 : index
    %c0_264 = arith.constant 0 : index
    %832 = vector.load %arg18[%c0_262, %c0_263, %c0_264] : memref<8x2x32xf32, #tpu.memory_space<vmem>>, vector<1x2x32xf32>
    %833 = vector.shape_cast %832 : vector<1x2x32xf32> to vector<2x32xf32>
    %834 = vector.shape_cast %828 : vector<2x32xf32> to vector<1x2x32xf32>
    tpu.vector_store %arg18[%c0_262, %c0_263, %c0_264], %834 {strides = array<i32>} : memref<8x2x32xf32, #tpu.memory_space<vmem>>, vector<1x2x32xf32>,
    %c0_265 = arith.constant 0 : index
    %c0_266 = arith.constant 0 : index
    %835 = vector.load %arg8[%c0_265, %c0_266] : memref<64x256xf32, #tpu.memory_space<vmem>>, vector<64x256xf32>
    %c0_267 = arith.constant 0 : index
    %c0_268 = arith.constant 0 : index
    %836 = vector.load %arg9[%c0_267, %c0_268] : memref<1x256xf32, #tpu.memory_space<vmem>>, vector<1x256xf32>
    %c0_269 = arith.constant 0 : index
    %c0_270 = arith.constant 0 : index
    %c0_271 = arith.constant 0 : index
    %837 = vector.load %arg17[%c0_269, %c0_270, %c0_271] : memref<8x2x32xf32, #tpu.memory_space<vmem>>, vector<1x2x32xf32>
    %838 = vector.shape_cast %837 : vector<1x2x32xf32> to vector<2x32xf32>
    %c0_272 = arith.constant 0 : index
    %c0_273 = arith.constant 0 : index
    %c0_274 = arith.constant 0 : index
    %839 = vector.load %arg18[%c0_272, %c0_273, %c0_274] : memref<8x2x32xf32, #tpu.memory_space<vmem>>, vector<1x2x32xf32>
    %840 = vector.shape_cast %839 : vector<1x2x32xf32> to vector<2x32xf32>
    %841 = tpu.concatenate %838, %840 in 1 : vector<2x32xf32>, vector<2x32xf32> -> vector<2x64xf32>
    %cst_275 = arith.constant dense<0.000000e+00> : vector<2x256xf32>
    %842 = tpu.matmul %841, %835, %cst_275 {dimension_numbers = #tpu.dot_dimension_numbers<[1], [0], [0], [1], [0, 0, 1, 1], [], []>} : vector<2x64xf32>, vector<64x256xf32>, vector<2x256xf32> -> vector<2x256xf32>
    %843 = vector.broadcast %836 : vector<1x256xf32> to vector<2x256xf32>
    %844 = arith.addf %842, %843 : vector<2x256xf32>
    %c0_276 = arith.constant 0 : index
    %c0_277 = arith.constant 0 : index
    %c0_278 = arith.constant 0 : index
    %845 = vector.load %arg16[%c0_276, %c0_277, %c0_278] : memref<8x2x256xf32, #tpu.memory_space<vmem>>, vector<1x2x256xf32>
    %846 = vector.shape_cast %845 : vector<1x2x256xf32> to vector<2x256xf32>
    %847 = vector.shape_cast %844 : vector<2x256xf32> to vector<1x2x256xf32>
    tpu.vector_store %arg16[%c0_276, %c0_277, %c0_278], %847 {strides = array<i32>} : memref<8x2x256xf32, #tpu.memory_space<vmem>>, vector<1x2x256xf32>,
    %c1_279 = arith.constant 1 : index
    %c0_280 = arith.constant 0 : index
    %c0_281 = arith.constant 0 : index
    %848 = vector.load %arg17[%c1_279, %c0_280, %c0_281] : memref<8x2x32xf32, #tpu.memory_space<vmem>>, vector<1x2x32xf32>
    %849 = vector.shape_cast %848 : vector<1x2x32xf32> to vector<2x32xf32>
    %c1_282 = arith.constant 1 : index
    %c0_283 = arith.constant 0 : index
    %c0_284 = arith.constant 0 : index
    %850 = vector.load %arg18[%c1_282, %c0_283, %c0_284] : memref<8x2x32xf32, #tpu.memory_space<vmem>>, vector<1x2x32xf32>
    %851 = vector.shape_cast %850 : vector<1x2x32xf32> to vector<2x32xf32>
    %852 = tpu.concatenate %849, %851 in 1 : vector<2x32xf32>, vector<2x32xf32> -> vector<2x64xf32>
    %cst_285 = arith.constant dense<0.000000e+00> : vector<2x256xf32>
    %853 = tpu.matmul %852, %835, %cst_285 {dimension_numbers = #tpu.dot_dimension_numbers<[1], [0], [0], [1], [0, 0, 1, 1], [], []>} : vector<2x64xf32>, vector<64x256xf32>, vector<2x256xf32> -> vector<2x256xf32>
    %854 = vector.broadcast %836 : vector<1x256xf32> to vector<2x256xf32>
    %855 = arith.addf %853, %854 : vector<2x256xf32>
    %c1_286 = arith.constant 1 : index
    %c0_287 = arith.constant 0 : index
    %c0_288 = arith.constant 0 : index
    %856 = vector.load %arg16[%c1_286, %c0_287, %c0_288] : memref<8x2x256xf32, #tpu.memory_space<vmem>>, vector<1x2x256xf32>
    %857 = vector.shape_cast %856 : vector<1x2x256xf32> to vector<2x256xf32>
    %858 = vector.shape_cast %855 : vector<2x256xf32> to vector<1x2x256xf32>
    tpu.vector_store %arg16[%c1_286, %c0_287, %c0_288], %858 {strides = array<i32>} : memref<8x2x256xf32, #tpu.memory_space<vmem>>, vector<1x2x256xf32>,
    %c2_289 = arith.constant 2 : index
    %c0_290 = arith.constant 0 : index
    %c0_291 = arith.constant 0 : index
    %859 = vector.load %arg17[%c2_289, %c0_290, %c0_291] : memref<8x2x32xf32, #tpu.memory_space<vmem>>, vector<1x2x32xf32>
    %860 = vector.shape_cast %859 : vector<1x2x32xf32> to vector<2x32xf32>
    %c2_292 = arith.constant 2 : index
    %c0_293 = arith.constant 0 : index
    %c0_294 = arith.constant 0 : index
    %861 = vector.load %arg18[%c2_292, %c0_293, %c0_294] : memref<8x2x32xf32, #tpu.memory_space<vmem>>, vector<1x2x32xf32>
    %862 = vector.shape_cast %861 : vector<1x2x32xf32> to vector<2x32xf32>
    %863 = tpu.concatenate %860, %862 in 1 : vector<2x32xf32>, vector<2x32xf32> -> vector<2x64xf32>
    %cst_295 = arith.constant dense<0.000000e+00> : vector<2x256xf32>
    %864 = tpu.matmul %863, %835, %cst_295 {dimension_numbers = #tpu.dot_dimension_numbers<[1], [0], [0], [1], [0, 0, 1, 1], [], []>} : vector<2x64xf32>, vector<64x256xf32>, vector<2x256xf32> -> vector<2x256xf32>
    %865 = vector.broadcast %836 : vector<1x256xf32> to vector<2x256xf32>
    %866 = arith.addf %864, %865 : vector<2x256xf32>
    %c2_296 = arith.constant 2 : index
    %c0_297 = arith.constant 0 : index
    %c0_298 = arith.constant 0 : index
    %867 = vector.load %arg16[%c2_296, %c0_297, %c0_298] : memref<8x2x256xf32, #tpu.memory_space<vmem>>, vector<1x2x256xf32>
    %868 = vector.shape_cast %867 : vector<1x2x256xf32> to vector<2x256xf32>
    %869 = vector.shape_cast %866 : vector<2x256xf32> to vector<1x2x256xf32>
    tpu.vector_store %arg16[%c2_296, %c0_297, %c0_298], %869 {strides = array<i32>} : memref<8x2x256xf32, #tpu.memory_space<vmem>>, vector<1x2x256xf32>,
    %c3_299 = arith.constant 3 : index
    %c0_300 = arith.constant 0 : index
    %c0_301 = arith.constant 0 : index
    %870 = vector.load %arg17[%c3_299, %c0_300, %c0_301] : memref<8x2x32xf32, #tpu.memory_space<vmem>>, vector<1x2x32xf32>
    %871 = vector.shape_cast %870 : vector<1x2x32xf32> to vector<2x32xf32>
    %c3_302 = arith.constant 3 : index
    %c0_303 = arith.constant 0 : index
    %c0_304 = arith.constant 0 : index
    %872 = vector.load %arg18[%c3_302, %c0_303, %c0_304] : memref<8x2x32xf32, #tpu.memory_space<vmem>>, vector<1x2x32xf32>
    %873 = vector.shape_cast %872 : vector<1x2x32xf32> to vector<2x32xf32>
    %874 = tpu.concatenate %871, %873 in 1 : vector<2x32xf32>, vector<2x32xf32> -> vector<2x64xf32>
    %cst_305 = arith.constant dense<0.000000e+00> : vector<2x256xf32>
    %875 = tpu.matmul %874, %835, %cst_305 {dimension_numbers = #tpu.dot_dimension_numbers<[1], [0], [0], [1], [0, 0, 1, 1], [], []>} : vector<2x64xf32>, vector<64x256xf32>, vector<2x256xf32> -> vector<2x256xf32>
    %876 = vector.broadcast %836 : vector<1x256xf32> to vector<2x256xf32>
    %877 = arith.addf %875, %876 : vector<2x256xf32>
    %c3_306 = arith.constant 3 : index
    %c0_307 = arith.constant 0 : index
    %c0_308 = arith.constant 0 : index
    %878 = vector.load %arg16[%c3_306, %c0_307, %c0_308] : memref<8x2x256xf32, #tpu.memory_space<vmem>>, vector<1x2x256xf32>
    %879 = vector.shape_cast %878 : vector<1x2x256xf32> to vector<2x256xf32>
    %880 = vector.shape_cast %877 : vector<2x256xf32> to vector<1x2x256xf32>
    tpu.vector_store %arg16[%c3_306, %c0_307, %c0_308], %880 {strides = array<i32>} : memref<8x2x256xf32, #tpu.memory_space<vmem>>, vector<1x2x256xf32>,
    %c4_309 = arith.constant 4 : index
    %c0_310 = arith.constant 0 : index
    %c0_311 = arith.constant 0 : index
    %881 = vector.load %arg17[%c4_309, %c0_310, %c0_311] : memref<8x2x32xf32, #tpu.memory_space<vmem>>, vector<1x2x32xf32>
    %882 = vector.shape_cast %881 : vector<1x2x32xf32> to vector<2x32xf32>
    %c4_312 = arith.constant 4 : index
    %c0_313 = arith.constant 0 : index
    %c0_314 = arith.constant 0 : index
    %883 = vector.load %arg18[%c4_312, %c0_313, %c0_314] : memref<8x2x32xf32, #tpu.memory_space<vmem>>, vector<1x2x32xf32>
    %884 = vector.shape_cast %883 : vector<1x2x32xf32> to vector<2x32xf32>
    %885 = tpu.concatenate %882, %884 in 1 : vector<2x32xf32>, vector<2x32xf32> -> vector<2x64xf32>
    %cst_315 = arith.constant dense<0.000000e+00> : vector<2x256xf32>
    %886 = tpu.matmul %885, %835, %cst_315 {dimension_numbers = #tpu.dot_dimension_numbers<[1], [0], [0], [1], [0, 0, 1, 1], [], []>} : vector<2x64xf32>, vector<64x256xf32>, vector<2x256xf32> -> vector<2x256xf32>
    %887 = vector.broadcast %836 : vector<1x256xf32> to vector<2x256xf32>
    %888 = arith.addf %886, %887 : vector<2x256xf32>
    %c4_316 = arith.constant 4 : index
    %c0_317 = arith.constant 0 : index
    %c0_318 = arith.constant 0 : index
    %889 = vector.load %arg16[%c4_316, %c0_317, %c0_318] : memref<8x2x256xf32, #tpu.memory_space<vmem>>, vector<1x2x256xf32>
    %890 = vector.shape_cast %889 : vector<1x2x256xf32> to vector<2x256xf32>
    %891 = vector.shape_cast %888 : vector<2x256xf32> to vector<1x2x256xf32>
    tpu.vector_store %arg16[%c4_316, %c0_317, %c0_318], %891 {strides = array<i32>} : memref<8x2x256xf32, #tpu.memory_space<vmem>>, vector<1x2x256xf32>,
    %c5_319 = arith.constant 5 : index
    %c0_320 = arith.constant 0 : index
    %c0_321 = arith.constant 0 : index
    %892 = vector.load %arg17[%c5_319, %c0_320, %c0_321] : memref<8x2x32xf32, #tpu.memory_space<vmem>>, vector<1x2x32xf32>
    %893 = vector.shape_cast %892 : vector<1x2x32xf32> to vector<2x32xf32>
    %c5_322 = arith.constant 5 : index
    %c0_323 = arith.constant 0 : index
    %c0_324 = arith.constant 0 : index
    %894 = vector.load %arg18[%c5_322, %c0_323, %c0_324] : memref<8x2x32xf32, #tpu.memory_space<vmem>>, vector<1x2x32xf32>
    %895 = vector.shape_cast %894 : vector<1x2x32xf32> to vector<2x32xf32>
    %896 = tpu.concatenate %893, %895 in 1 : vector<2x32xf32>, vector<2x32xf32> -> vector<2x64xf32>
    %cst_325 = arith.constant dense<0.000000e+00> : vector<2x256xf32>
    %897 = tpu.matmul %896, %835, %cst_325 {dimension_numbers = #tpu.dot_dimension_numbers<[1], [0], [0], [1], [0, 0, 1, 1], [], []>} : vector<2x64xf32>, vector<64x256xf32>, vector<2x256xf32> -> vector<2x256xf32>
    %898 = vector.broadcast %836 : vector<1x256xf32> to vector<2x256xf32>
    %899 = arith.addf %897, %898 : vector<2x256xf32>
    %c5_326 = arith.constant 5 : index
    %c0_327 = arith.constant 0 : index
    %c0_328 = arith.constant 0 : index
    %900 = vector.load %arg16[%c5_326, %c0_327, %c0_328] : memref<8x2x256xf32, #tpu.memory_space<vmem>>, vector<1x2x256xf32>
    %901 = vector.shape_cast %900 : vector<1x2x256xf32> to vector<2x256xf32>
    %902 = vector.shape_cast %899 : vector<2x256xf32> to vector<1x2x256xf32>
    tpu.vector_store %arg16[%c5_326, %c0_327, %c0_328], %902 {strides = array<i32>} : memref<8x2x256xf32, #tpu.memory_space<vmem>>, vector<1x2x256xf32>,
    %c6_329 = arith.constant 6 : index
    %c0_330 = arith.constant 0 : index
    %c0_331 = arith.constant 0 : index
    %903 = vector.load %arg17[%c6_329, %c0_330, %c0_331] : memref<8x2x32xf32, #tpu.memory_space<vmem>>, vector<1x2x32xf32>
    %904 = vector.shape_cast %903 : vector<1x2x32xf32> to vector<2x32xf32>
    %c6_332 = arith.constant 6 : index
    %c0_333 = arith.constant 0 : index
    %c0_334 = arith.constant 0 : index
    %905 = vector.load %arg18[%c6_332, %c0_333, %c0_334] : memref<8x2x32xf32, #tpu.memory_space<vmem>>, vector<1x2x32xf32>
    %906 = vector.shape_cast %905 : vector<1x2x32xf32> to vector<2x32xf32>
    %907 = tpu.concatenate %904, %906 in 1 : vector<2x32xf32>, vector<2x32xf32> -> vector<2x64xf32>
    %cst_335 = arith.constant dense<0.000000e+00> : vector<2x256xf32>
    %908 = tpu.matmul %907, %835, %cst_335 {dimension_numbers = #tpu.dot_dimension_numbers<[1], [0], [0], [1], [0, 0, 1, 1], [], []>} : vector<2x64xf32>, vector<64x256xf32>, vector<2x256xf32> -> vector<2x256xf32>
    %909 = vector.broadcast %836 : vector<1x256xf32> to vector<2x256xf32>
    %910 = arith.addf %908, %909 : vector<2x256xf32>
    %c6_336 = arith.constant 6 : index
    %c0_337 = arith.constant 0 : index
    %c0_338 = arith.constant 0 : index
    %911 = vector.load %arg16[%c6_336, %c0_337, %c0_338] : memref<8x2x256xf32, #tpu.memory_space<vmem>>, vector<1x2x256xf32>
    %912 = vector.shape_cast %911 : vector<1x2x256xf32> to vector<2x256xf32>
    %913 = vector.shape_cast %910 : vector<2x256xf32> to vector<1x2x256xf32>
    tpu.vector_store %arg16[%c6_336, %c0_337, %c0_338], %913 {strides = array<i32>} : memref<8x2x256xf32, #tpu.memory_space<vmem>>, vector<1x2x256xf32>,
    %c7_339 = arith.constant 7 : index
    %c0_340 = arith.constant 0 : index
    %c0_341 = arith.constant 0 : index
    %914 = vector.load %arg17[%c7_339, %c0_340, %c0_341] : memref<8x2x32xf32, #tpu.memory_space<vmem>>, vector<1x2x32xf32>
    %915 = vector.shape_cast %914 : vector<1x2x32xf32> to vector<2x32xf32>
    %c7_342 = arith.constant 7 : index
    %c0_343 = arith.constant 0 : index
    %c0_344 = arith.constant 0 : index
    %916 = vector.load %arg18[%c7_342, %c0_343, %c0_344] : memref<8x2x32xf32, #tpu.memory_space<vmem>>, vector<1x2x32xf32>
    %917 = vector.shape_cast %916 : vector<1x2x32xf32> to vector<2x32xf32>
    %918 = tpu.concatenate %915, %917 in 1 : vector<2x32xf32>, vector<2x32xf32> -> vector<2x64xf32>
    %cst_345 = arith.constant dense<0.000000e+00> : vector<2x256xf32>
    %919 = tpu.matmul %918, %835, %cst_345 {dimension_numbers = #tpu.dot_dimension_numbers<[1], [0], [0], [1], [0, 0, 1, 1], [], []>} : vector<2x64xf32>, vector<64x256xf32>, vector<2x256xf32> -> vector<2x256xf32>
    %920 = vector.broadcast %836 : vector<1x256xf32> to vector<2x256xf32>
    %921 = arith.addf %919, %920 : vector<2x256xf32>
    %c7_346 = arith.constant 7 : index
    %c0_347 = arith.constant 0 : index
    %c0_348 = arith.constant 0 : index
    %922 = vector.load %arg16[%c7_346, %c0_347, %c0_348] : memref<8x2x256xf32, #tpu.memory_space<vmem>>, vector<1x2x256xf32>
    %923 = vector.shape_cast %922 : vector<1x2x256xf32> to vector<2x256xf32>
    %924 = vector.shape_cast %921 : vector<2x256xf32> to vector<1x2x256xf32>
    tpu.vector_store %arg16[%c7_346, %c0_347, %c0_348], %924 {strides = array<i32>} : memref<8x2x256xf32, #tpu.memory_space<vmem>>, vector<1x2x256xf32>,
    %c0_349 = arith.constant 0 : index
    %c0_350 = arith.constant 0 : index
    %925 = vector.load %arg10[%c0_349, %c0_350] : memref<32x128xf32, #tpu.memory_space<vmem>>, vector<32x128xf32>
    %c0_351 = arith.constant 0 : index
    %c0_352 = arith.constant 0 : index
    %926 = vector.load %arg11[%c0_351, %c0_352] : memref<32x128xf32, #tpu.memory_space<vmem>>, vector<32x128xf32>
    %cst_353 = arith.constant 0.000000e+00 : f32
    %927 = vector.broadcast %cst_353 : f32 to vector<2x32xf32>
    %cst_354 = arith.constant 0.000000e+00 : f32
    %928 = vector.broadcast %cst_354 : f32 to vector<2x32xf32>
    %cst_355 = arith.constant 0.000000e+00 : f32
    %929 = vector.broadcast %cst_355 : f32 to vector<2x32xf32>
    %cst_356 = arith.constant 0.000000e+00 : f32
    %930 = vector.broadcast %cst_356 : f32 to vector<2x32xf32>
    %c0_357 = arith.constant 0 : index
    %c0_358 = arith.constant 0 : index
    %c0_359 = arith.constant 0 : index
    %931 = vector.load %arg16[%c0_357, %c0_358, %c0_359] : memref<8x2x256xf32, #tpu.memory_space<vmem>>, vector<1x2x256xf32>
    %932 = vector.shape_cast %931 : vector<1x2x256xf32> to vector<2x256xf32>
    %933 = vector.extract_strided_slice %932 {offsets = [0, 0], sizes = [2, 128], strides = [1, 1]} : vector<2x256xf32> to vector<2x128xf32>
    %cst_360 = arith.constant dense<0.000000e+00> : vector<2x128xf32>
    %934 = tpu.matmul %927, %925, %cst_360 {dimension_numbers = #tpu.dot_dimension_numbers<[1], [0], [0], [1], [0, 0, 1, 1], [], []>} : vector<2x32xf32>, vector<32x128xf32>, vector<2x128xf32> -> vector<2x128xf32>
    %935 = arith.addf %933, %934 : vector<2x128xf32>
    %c7_361 = arith.constant 7 : index
    %c0_362 = arith.constant 0 : index
    %c0_363 = arith.constant 0 : index
    %936 = vector.load %arg16[%c7_361, %c0_362, %c0_363] : memref<8x2x256xf32, #tpu.memory_space<vmem>>, vector<1x2x256xf32>
    %937 = vector.shape_cast %936 : vector<1x2x256xf32> to vector<2x256xf32>
    %938 = vector.extract_strided_slice %937 {offsets = [0, 128], sizes = [2, 128], strides = [1, 1]} : vector<2x256xf32> to vector<2x128xf32>
    %cst_364 = arith.constant dense<0.000000e+00> : vector<2x128xf32>
    %939 = tpu.matmul %929, %926, %cst_364 {dimension_numbers = #tpu.dot_dimension_numbers<[1], [0], [0], [1], [0, 0, 1, 1], [], []>} : vector<2x32xf32>, vector<32x128xf32>, vector<2x128xf32> -> vector<2x128xf32>
    %940 = arith.addf %938, %939 : vector<2x128xf32>
    %941 = vector.extract_strided_slice %935 {offsets = [0, 0], sizes = [2, 32], strides = [1, 1]} : vector<2x128xf32> to vector<2x32xf32>
    %942 = arith.negf %941 : vector<2x32xf32>
    %943 = math.exp %942 : vector<2x32xf32>
    %cst_365 = arith.constant 1.000000e+00 : f32
    %944 = vector.broadcast %cst_365 : f32 to vector<2x32xf32>
    %945 = arith.addf %944, %943 : vector<2x32xf32>
    %946 = arith.divf %944, %945 : vector<2x32xf32>
    %947 = vector.extract_strided_slice %935 {offsets = [0, 32], sizes = [2, 32], strides = [1, 1]} : vector<2x128xf32> to vector<2x32xf32>
    %948 = arith.negf %947 : vector<2x32xf32>
    %949 = math.exp %948 : vector<2x32xf32>
    %cst_366 = arith.constant 1.000000e+00 : f32
    %950 = vector.broadcast %cst_366 : f32 to vector<2x32xf32>
    %951 = arith.addf %950, %949 : vector<2x32xf32>
    %952 = arith.divf %950, %951 : vector<2x32xf32>
    %953 = vector.extract_strided_slice %935 {offsets = [0, 64], sizes = [2, 32], strides = [1, 1]} : vector<2x128xf32> to vector<2x32xf32>
    %954 = math.tanh %953 : vector<2x32xf32>
    %955 = vector.extract_strided_slice %935 {offsets = [0, 96], sizes = [2, 32], strides = [1, 1]} : vector<2x128xf32> to vector<2x32xf32>
    %956 = arith.negf %955 : vector<2x32xf32>
    %957 = math.exp %956 : vector<2x32xf32>
    %cst_367 = arith.constant 1.000000e+00 : f32
    %958 = vector.broadcast %cst_367 : f32 to vector<2x32xf32>
    %959 = arith.addf %958, %957 : vector<2x32xf32>
    %960 = arith.divf %958, %959 : vector<2x32xf32>
    %961 = arith.mulf %952, %928 : vector<2x32xf32>
    %962 = arith.mulf %946, %954 : vector<2x32xf32>
    %963 = arith.addf %961, %962 : vector<2x32xf32>
    %964 = math.tanh %963 : vector<2x32xf32>
    %965 = arith.mulf %960, %964 : vector<2x32xf32>
    %c0_i32_368 = arith.constant 0 : i32
    %966 = vector.broadcast %c0_i32_368 : i32 to vector<2x1xi32>
    %967 = arith.cmpi sgt, %0, %966 : vector<2x1xi32>
    %968 = vector.shape_cast %967 : vector<2x1xi1> to vector<2x1xi1>
    %969 = vector.broadcast %968 : vector<2x1xi1> to vector<2x32xi1>
    %970 = arith.select %969, %965, %927 : vector<2x32xi1>, vector<2x32xf32>
    %971 = vector.shape_cast %967 : vector<2x1xi1> to vector<2x1xi1>
    %972 = vector.broadcast %971 : vector<2x1xi1> to vector<2x32xi1>
    %973 = arith.select %972, %963, %928 : vector<2x32xi1>, vector<2x32xf32>
    %cst_369 = arith.constant 0.000000e+00 : f32
    %974 = vector.shape_cast %967 : vector<2x1xi1> to vector<2x1xi1>
    %975 = vector.broadcast %974 : vector<2x1xi1> to vector<2x32xi1>
    %976 = vector.broadcast %cst_369 : f32 to vector<2x32xf32>
    %977 = arith.select %975, %965, %976 : vector<2x32xi1>, vector<2x32xf32>
    %978 = vector.extract_strided_slice %940 {offsets = [0, 0], sizes = [2, 32], strides = [1, 1]} : vector<2x128xf32> to vector<2x32xf32>
    %979 = arith.negf %978 : vector<2x32xf32>
    %980 = math.exp %979 : vector<2x32xf32>
    %cst_370 = arith.constant 1.000000e+00 : f32
    %981 = vector.broadcast %cst_370 : f32 to vector<2x32xf32>
    %982 = arith.addf %981, %980 : vector<2x32xf32>
    %983 = arith.divf %981, %982 : vector<2x32xf32>
    %984 = vector.extract_strided_slice %940 {offsets = [0, 32], sizes = [2, 32], strides = [1, 1]} : vector<2x128xf32> to vector<2x32xf32>
    %985 = arith.negf %984 : vector<2x32xf32>
    %986 = math.exp %985 : vector<2x32xf32>
    %cst_371 = arith.constant 1.000000e+00 : f32
    %987 = vector.broadcast %cst_371 : f32 to vector<2x32xf32>
    %988 = arith.addf %987, %986 : vector<2x32xf32>
    %989 = arith.divf %987, %988 : vector<2x32xf32>
    %990 = vector.extract_strided_slice %940 {offsets = [0, 64], sizes = [2, 32], strides = [1, 1]} : vector<2x128xf32> to vector<2x32xf32>
    %991 = math.tanh %990 : vector<2x32xf32>
    %992 = vector.extract_strided_slice %940 {offsets = [0, 96], sizes = [2, 32], strides = [1, 1]} : vector<2x128xf32> to vector<2x32xf32>
    %993 = arith.negf %992 : vector<2x32xf32>
    %994 = math.exp %993 : vector<2x32xf32>
    %cst_372 = arith.constant 1.000000e+00 : f32
    %995 = vector.broadcast %cst_372 : f32 to vector<2x32xf32>
    %996 = arith.addf %995, %994 : vector<2x32xf32>
    %997 = arith.divf %995, %996 : vector<2x32xf32>
    %998 = arith.mulf %989, %930 : vector<2x32xf32>
    %999 = arith.mulf %983, %991 : vector<2x32xf32>
    %1000 = arith.addf %998, %999 : vector<2x32xf32>
    %1001 = math.tanh %1000 : vector<2x32xf32>
    %1002 = arith.mulf %997, %1001 : vector<2x32xf32>
    %c7_i32_373 = arith.constant 7 : i32
    %1003 = vector.broadcast %c7_i32_373 : i32 to vector<2x1xi32>
    %1004 = arith.cmpi sgt, %0, %1003 : vector<2x1xi32>
    %1005 = vector.shape_cast %1004 : vector<2x1xi1> to vector<2x1xi1>
    %1006 = vector.broadcast %1005 : vector<2x1xi1> to vector<2x32xi1>
    %1007 = arith.select %1006, %1002, %929 : vector<2x32xi1>, vector<2x32xf32>
    %1008 = vector.shape_cast %1004 : vector<2x1xi1> to vector<2x1xi1>
    %1009 = vector.broadcast %1008 : vector<2x1xi1> to vector<2x32xi1>
    %1010 = arith.select %1009, %1000, %930 : vector<2x32xi1>, vector<2x32xf32>
    %cst_374 = arith.constant 0.000000e+00 : f32
    %1011 = vector.shape_cast %1004 : vector<2x1xi1> to vector<2x1xi1>
    %1012 = vector.broadcast %1011 : vector<2x1xi1> to vector<2x32xi1>
    %1013 = vector.broadcast %cst_374 : f32 to vector<2x32xf32>
    %1014 = arith.select %1012, %1002, %1013 : vector<2x32xi1>, vector<2x32xf32>
    %c0_375 = arith.constant 0 : index
    %c0_376 = arith.constant 0 : index
    %c0_377 = arith.constant 0 : index
    %1015 = vector.load %arg17[%c0_375, %c0_376, %c0_377] : memref<8x2x32xf32, #tpu.memory_space<vmem>>, vector<1x2x32xf32>
    %1016 = vector.shape_cast %1015 : vector<1x2x32xf32> to vector<2x32xf32>
    %1017 = vector.shape_cast %977 : vector<2x32xf32> to vector<1x2x32xf32>
    tpu.vector_store %arg17[%c0_375, %c0_376, %c0_377], %1017 {strides = array<i32>} : memref<8x2x32xf32, #tpu.memory_space<vmem>>, vector<1x2x32xf32>,
    %c7_378 = arith.constant 7 : index
    %c0_379 = arith.constant 0 : index
    %c0_380 = arith.constant 0 : index
    %1018 = vector.load %arg18[%c7_378, %c0_379, %c0_380] : memref<8x2x32xf32, #tpu.memory_space<vmem>>, vector<1x2x32xf32>
    %1019 = vector.shape_cast %1018 : vector<1x2x32xf32> to vector<2x32xf32>
    %1020 = vector.shape_cast %1014 : vector<2x32xf32> to vector<1x2x32xf32>
    tpu.vector_store %arg18[%c7_378, %c0_379, %c0_380], %1020 {strides = array<i32>} : memref<8x2x32xf32, #tpu.memory_space<vmem>>, vector<1x2x32xf32>,
    %c1_381 = arith.constant 1 : index
    %c0_382 = arith.constant 0 : index
    %c0_383 = arith.constant 0 : index
    %1021 = vector.load %arg16[%c1_381, %c0_382, %c0_383] : memref<8x2x256xf32, #tpu.memory_space<vmem>>, vector<1x2x256xf32>
    %1022 = vector.shape_cast %1021 : vector<1x2x256xf32> to vector<2x256xf32>
    %1023 = vector.extract_strided_slice %1022 {offsets = [0, 0], sizes = [2, 128], strides = [1, 1]} : vector<2x256xf32> to vector<2x128xf32>
    %cst_384 = arith.constant dense<0.000000e+00> : vector<2x128xf32>
    %1024 = tpu.matmul %970, %925, %cst_384 {dimension_numbers = #tpu.dot_dimension_numbers<[1], [0], [0], [1], [0, 0, 1, 1], [], []>} : vector<2x32xf32>, vector<32x128xf32>, vector<2x128xf32> -> vector<2x128xf32>
    %1025 = arith.addf %1023, %1024 : vector<2x128xf32>
    %c6_385 = arith.constant 6 : index
    %c0_386 = arith.constant 0 : index
    %c0_387 = arith.constant 0 : index
    %1026 = vector.load %arg16[%c6_385, %c0_386, %c0_387] : memref<8x2x256xf32, #tpu.memory_space<vmem>>, vector<1x2x256xf32>
    %1027 = vector.shape_cast %1026 : vector<1x2x256xf32> to vector<2x256xf32>
    %1028 = vector.extract_strided_slice %1027 {offsets = [0, 128], sizes = [2, 128], strides = [1, 1]} : vector<2x256xf32> to vector<2x128xf32>
    %cst_388 = arith.constant dense<0.000000e+00> : vector<2x128xf32>
    %1029 = tpu.matmul %1007, %926, %cst_388 {dimension_numbers = #tpu.dot_dimension_numbers<[1], [0], [0], [1], [0, 0, 1, 1], [], []>} : vector<2x32xf32>, vector<32x128xf32>, vector<2x128xf32> -> vector<2x128xf32>
    %1030 = arith.addf %1028, %1029 : vector<2x128xf32>
    %1031 = vector.extract_strided_slice %1025 {offsets = [0, 0], sizes = [2, 32], strides = [1, 1]} : vector<2x128xf32> to vector<2x32xf32>
    %1032 = arith.negf %1031 : vector<2x32xf32>
    %1033 = math.exp %1032 : vector<2x32xf32>
    %cst_389 = arith.constant 1.000000e+00 : f32
    %1034 = vector.broadcast %cst_389 : f32 to vector<2x32xf32>
    %1035 = arith.addf %1034, %1033 : vector<2x32xf32>
    %1036 = arith.divf %1034, %1035 : vector<2x32xf32>
    %1037 = vector.extract_strided_slice %1025 {offsets = [0, 32], sizes = [2, 32], strides = [1, 1]} : vector<2x128xf32> to vector<2x32xf32>
    %1038 = arith.negf %1037 : vector<2x32xf32>
    %1039 = math.exp %1038 : vector<2x32xf32>
    %cst_390 = arith.constant 1.000000e+00 : f32
    %1040 = vector.broadcast %cst_390 : f32 to vector<2x32xf32>
    %1041 = arith.addf %1040, %1039 : vector<2x32xf32>
    %1042 = arith.divf %1040, %1041 : vector<2x32xf32>
    %1043 = vector.extract_strided_slice %1025 {offsets = [0, 64], sizes = [2, 32], strides = [1, 1]} : vector<2x128xf32> to vector<2x32xf32>
    %1044 = math.tanh %1043 : vector<2x32xf32>
    %1045 = vector.extract_strided_slice %1025 {offsets = [0, 96], sizes = [2, 32], strides = [1, 1]} : vector<2x128xf32> to vector<2x32xf32>
    %1046 = arith.negf %1045 : vector<2x32xf32>
    %1047 = math.exp %1046 : vector<2x32xf32>
    %cst_391 = arith.constant 1.000000e+00 : f32
    %1048 = vector.broadcast %cst_391 : f32 to vector<2x32xf32>
    %1049 = arith.addf %1048, %1047 : vector<2x32xf32>
    %1050 = arith.divf %1048, %1049 : vector<2x32xf32>
    %1051 = arith.mulf %1042, %973 : vector<2x32xf32>
    %1052 = arith.mulf %1036, %1044 : vector<2x32xf32>
    %1053 = arith.addf %1051, %1052 : vector<2x32xf32>
    %1054 = math.tanh %1053 : vector<2x32xf32>
    %1055 = arith.mulf %1050, %1054 : vector<2x32xf32>
    %c1_i32_392 = arith.constant 1 : i32
    %1056 = vector.broadcast %c1_i32_392 : i32 to vector<2x1xi32>
    %1057 = arith.cmpi sgt, %0, %1056 : vector<2x1xi32>
    %1058 = vector.shape_cast %1057 : vector<2x1xi1> to vector<2x1xi1>
    %1059 = vector.broadcast %1058 : vector<2x1xi1> to vector<2x32xi1>
    %1060 = arith.select %1059, %1055, %970 : vector<2x32xi1>, vector<2x32xf32>
    %1061 = vector.shape_cast %1057 : vector<2x1xi1> to vector<2x1xi1>
    %1062 = vector.broadcast %1061 : vector<2x1xi1> to vector<2x32xi1>
    %1063 = arith.select %1062, %1053, %973 : vector<2x32xi1>, vector<2x32xf32>
    %cst_393 = arith.constant 0.000000e+00 : f32
    %1064 = vector.shape_cast %1057 : vector<2x1xi1> to vector<2x1xi1>
    %1065 = vector.broadcast %1064 : vector<2x1xi1> to vector<2x32xi1>
    %1066 = vector.broadcast %cst_393 : f32 to vector<2x32xf32>
    %1067 = arith.select %1065, %1055, %1066 : vector<2x32xi1>, vector<2x32xf32>
    %1068 = vector.extract_strided_slice %1030 {offsets = [0, 0], sizes = [2, 32], strides = [1, 1]} : vector<2x128xf32> to vector<2x32xf32>
    %1069 = arith.negf %1068 : vector<2x32xf32>
    %1070 = math.exp %1069 : vector<2x32xf32>
    %cst_394 = arith.constant 1.000000e+00 : f32
    %1071 = vector.broadcast %cst_394 : f32 to vector<2x32xf32>
    %1072 = arith.addf %1071, %1070 : vector<2x32xf32>
    %1073 = arith.divf %1071, %1072 : vector<2x32xf32>
    %1074 = vector.extract_strided_slice %1030 {offsets = [0, 32], sizes = [2, 32], strides = [1, 1]} : vector<2x128xf32> to vector<2x32xf32>
    %1075 = arith.negf %1074 : vector<2x32xf32>
    %1076 = math.exp %1075 : vector<2x32xf32>
    %cst_395 = arith.constant 1.000000e+00 : f32
    %1077 = vector.broadcast %cst_395 : f32 to vector<2x32xf32>
    %1078 = arith.addf %1077, %1076 : vector<2x32xf32>
    %1079 = arith.divf %1077, %1078 : vector<2x32xf32>
    %1080 = vector.extract_strided_slice %1030 {offsets = [0, 64], sizes = [2, 32], strides = [1, 1]} : vector<2x128xf32> to vector<2x32xf32>
    %1081 = math.tanh %1080 : vector<2x32xf32>
    %1082 = vector.extract_strided_slice %1030 {offsets = [0, 96], sizes = [2, 32], strides = [1, 1]} : vector<2x128xf32> to vector<2x32xf32>
    %1083 = arith.negf %1082 : vector<2x32xf32>
    %1084 = math.exp %1083 : vector<2x32xf32>
    %cst_396 = arith.constant 1.000000e+00 : f32
    %1085 = vector.broadcast %cst_396 : f32 to vector<2x32xf32>
    %1086 = arith.addf %1085, %1084 : vector<2x32xf32>
    %1087 = arith.divf %1085, %1086 : vector<2x32xf32>
    %1088 = arith.mulf %1079, %1010 : vector<2x32xf32>
    %1089 = arith.mulf %1073, %1081 : vector<2x32xf32>
    %1090 = arith.addf %1088, %1089 : vector<2x32xf32>
    %1091 = math.tanh %1090 : vector<2x32xf32>
    %1092 = arith.mulf %1087, %1091 : vector<2x32xf32>
    %c6_i32_397 = arith.constant 6 : i32
    %1093 = vector.broadcast %c6_i32_397 : i32 to vector<2x1xi32>
    %1094 = arith.cmpi sgt, %0, %1093 : vector<2x1xi32>
    %1095 = vector.shape_cast %1094 : vector<2x1xi1> to vector<2x1xi1>
    %1096 = vector.broadcast %1095 : vector<2x1xi1> to vector<2x32xi1>
    %1097 = arith.select %1096, %1092, %1007 : vector<2x32xi1>, vector<2x32xf32>
    %1098 = vector.shape_cast %1094 : vector<2x1xi1> to vector<2x1xi1>
    %1099 = vector.broadcast %1098 : vector<2x1xi1> to vector<2x32xi1>
    %1100 = arith.select %1099, %1090, %1010 : vector<2x32xi1>, vector<2x32xf32>
    %cst_398 = arith.constant 0.000000e+00 : f32
    %1101 = vector.shape_cast %1094 : vector<2x1xi1> to vector<2x1xi1>
    %1102 = vector.broadcast %1101 : vector<2x1xi1> to vector<2x32xi1>
    %1103 = vector.broadcast %cst_398 : f32 to vector<2x32xf32>
    %1104 = arith.select %1102, %1092, %1103 : vector<2x32xi1>, vector<2x32xf32>
    %c1_399 = arith.constant 1 : index
    %c0_400 = arith.constant 0 : index
    %c0_401 = arith.constant 0 : index
    %1105 = vector.load %arg17[%c1_399, %c0_400, %c0_401] : memref<8x2x32xf32, #tpu.memory_space<vmem>>, vector<1x2x32xf32>
    %1106 = vector.shape_cast %1105 : vector<1x2x32xf32> to vector<2x32xf32>
    %1107 = vector.shape_cast %1067 : vector<2x32xf32> to vector<1x2x32xf32>
    tpu.vector_store %arg17[%c1_399, %c0_400, %c0_401], %1107 {strides = array<i32>} : memref<8x2x32xf32, #tpu.memory_space<vmem>>, vector<1x2x32xf32>,
    %c6_402 = arith.constant 6 : index
    %c0_403 = arith.constant 0 : index
    %c0_404 = arith.constant 0 : index
    %1108 = vector.load %arg18[%c6_402, %c0_403, %c0_404] : memref<8x2x32xf32, #tpu.memory_space<vmem>>, vector<1x2x32xf32>
    %1109 = vector.shape_cast %1108 : vector<1x2x32xf32> to vector<2x32xf32>
    %1110 = vector.shape_cast %1104 : vector<2x32xf32> to vector<1x2x32xf32>
    tpu.vector_store %arg18[%c6_402, %c0_403, %c0_404], %1110 {strides = array<i32>} : memref<8x2x32xf32, #tpu.memory_space<vmem>>, vector<1x2x32xf32>,
    %c2_405 = arith.constant 2 : index
    %c0_406 = arith.constant 0 : index
    %c0_407 = arith.constant 0 : index
    %1111 = vector.load %arg16[%c2_405, %c0_406, %c0_407] : memref<8x2x256xf32, #tpu.memory_space<vmem>>, vector<1x2x256xf32>
    %1112 = vector.shape_cast %1111 : vector<1x2x256xf32> to vector<2x256xf32>
    %1113 = vector.extract_strided_slice %1112 {offsets = [0, 0], sizes = [2, 128], strides = [1, 1]} : vector<2x256xf32> to vector<2x128xf32>
    %cst_408 = arith.constant dense<0.000000e+00> : vector<2x128xf32>
    %1114 = tpu.matmul %1060, %925, %cst_408 {dimension_numbers = #tpu.dot_dimension_numbers<[1], [0], [0], [1], [0, 0, 1, 1], [], []>} : vector<2x32xf32>, vector<32x128xf32>, vector<2x128xf32> -> vector<2x128xf32>
    %1115 = arith.addf %1113, %1114 : vector<2x128xf32>
    %c5_409 = arith.constant 5 : index
    %c0_410 = arith.constant 0 : index
    %c0_411 = arith.constant 0 : index
    %1116 = vector.load %arg16[%c5_409, %c0_410, %c0_411] : memref<8x2x256xf32, #tpu.memory_space<vmem>>, vector<1x2x256xf32>
    %1117 = vector.shape_cast %1116 : vector<1x2x256xf32> to vector<2x256xf32>
    %1118 = vector.extract_strided_slice %1117 {offsets = [0, 128], sizes = [2, 128], strides = [1, 1]} : vector<2x256xf32> to vector<2x128xf32>
    %cst_412 = arith.constant dense<0.000000e+00> : vector<2x128xf32>
    %1119 = tpu.matmul %1097, %926, %cst_412 {dimension_numbers = #tpu.dot_dimension_numbers<[1], [0], [0], [1], [0, 0, 1, 1], [], []>} : vector<2x32xf32>, vector<32x128xf32>, vector<2x128xf32> -> vector<2x128xf32>
    %1120 = arith.addf %1118, %1119 : vector<2x128xf32>
    %1121 = vector.extract_strided_slice %1115 {offsets = [0, 0], sizes = [2, 32], strides = [1, 1]} : vector<2x128xf32> to vector<2x32xf32>
    %1122 = arith.negf %1121 : vector<2x32xf32>
    %1123 = math.exp %1122 : vector<2x32xf32>
    %cst_413 = arith.constant 1.000000e+00 : f32
    %1124 = vector.broadcast %cst_413 : f32 to vector<2x32xf32>
    %1125 = arith.addf %1124, %1123 : vector<2x32xf32>
    %1126 = arith.divf %1124, %1125 : vector<2x32xf32>
    %1127 = vector.extract_strided_slice %1115 {offsets = [0, 32], sizes = [2, 32], strides = [1, 1]} : vector<2x128xf32> to vector<2x32xf32>
    %1128 = arith.negf %1127 : vector<2x32xf32>
    %1129 = math.exp %1128 : vector<2x32xf32>
    %cst_414 = arith.constant 1.000000e+00 : f32
    %1130 = vector.broadcast %cst_414 : f32 to vector<2x32xf32>
    %1131 = arith.addf %1130, %1129 : vector<2x32xf32>
    %1132 = arith.divf %1130, %1131 : vector<2x32xf32>
    %1133 = vector.extract_strided_slice %1115 {offsets = [0, 64], sizes = [2, 32], strides = [1, 1]} : vector<2x128xf32> to vector<2x32xf32>
    %1134 = math.tanh %1133 : vector<2x32xf32>
    %1135 = vector.extract_strided_slice %1115 {offsets = [0, 96], sizes = [2, 32], strides = [1, 1]} : vector<2x128xf32> to vector<2x32xf32>
    %1136 = arith.negf %1135 : vector<2x32xf32>
    %1137 = math.exp %1136 : vector<2x32xf32>
    %cst_415 = arith.constant 1.000000e+00 : f32
    %1138 = vector.broadcast %cst_415 : f32 to vector<2x32xf32>
    %1139 = arith.addf %1138, %1137 : vector<2x32xf32>
    %1140 = arith.divf %1138, %1139 : vector<2x32xf32>
    %1141 = arith.mulf %1132, %1063 : vector<2x32xf32>
    %1142 = arith.mulf %1126, %1134 : vector<2x32xf32>
    %1143 = arith.addf %1141, %1142 : vector<2x32xf32>
    %1144 = math.tanh %1143 : vector<2x32xf32>
    %1145 = arith.mulf %1140, %1144 : vector<2x32xf32>
    %c2_i32_416 = arith.constant 2 : i32
    %1146 = vector.broadcast %c2_i32_416 : i32 to vector<2x1xi32>
    %1147 = arith.cmpi sgt, %0, %1146 : vector<2x1xi32>
    %1148 = vector.shape_cast %1147 : vector<2x1xi1> to vector<2x1xi1>
    %1149 = vector.broadcast %1148 : vector<2x1xi1> to vector<2x32xi1>
    %1150 = arith.select %1149, %1145, %1060 : vector<2x32xi1>, vector<2x32xf32>
    %1151 = vector.shape_cast %1147 : vector<2x1xi1> to vector<2x1xi1>
    %1152 = vector.broadcast %1151 : vector<2x1xi1> to vector<2x32xi1>
    %1153 = arith.select %1152, %1143, %1063 : vector<2x32xi1>, vector<2x32xf32>
    %cst_417 = arith.constant 0.000000e+00 : f32
    %1154 = vector.shape_cast %1147 : vector<2x1xi1> to vector<2x1xi1>
    %1155 = vector.broadcast %1154 : vector<2x1xi1> to vector<2x32xi1>
    %1156 = vector.broadcast %cst_417 : f32 to vector<2x32xf32>
    %1157 = arith.select %1155, %1145, %1156 : vector<2x32xi1>, vector<2x32xf32>
    %1158 = vector.extract_strided_slice %1120 {offsets = [0, 0], sizes = [2, 32], strides = [1, 1]} : vector<2x128xf32> to vector<2x32xf32>
    %1159 = arith.negf %1158 : vector<2x32xf32>
    %1160 = math.exp %1159 : vector<2x32xf32>
    %cst_418 = arith.constant 1.000000e+00 : f32
    %1161 = vector.broadcast %cst_418 : f32 to vector<2x32xf32>
    %1162 = arith.addf %1161, %1160 : vector<2x32xf32>
    %1163 = arith.divf %1161, %1162 : vector<2x32xf32>
    %1164 = vector.extract_strided_slice %1120 {offsets = [0, 32], sizes = [2, 32], strides = [1, 1]} : vector<2x128xf32> to vector<2x32xf32>
    %1165 = arith.negf %1164 : vector<2x32xf32>
    %1166 = math.exp %1165 : vector<2x32xf32>
    %cst_419 = arith.constant 1.000000e+00 : f32
    %1167 = vector.broadcast %cst_419 : f32 to vector<2x32xf32>
    %1168 = arith.addf %1167, %1166 : vector<2x32xf32>
    %1169 = arith.divf %1167, %1168 : vector<2x32xf32>
    %1170 = vector.extract_strided_slice %1120 {offsets = [0, 64], sizes = [2, 32], strides = [1, 1]} : vector<2x128xf32> to vector<2x32xf32>
    %1171 = math.tanh %1170 : vector<2x32xf32>
    %1172 = vector.extract_strided_slice %1120 {offsets = [0, 96], sizes = [2, 32], strides = [1, 1]} : vector<2x128xf32> to vector<2x32xf32>
    %1173 = arith.negf %1172 : vector<2x32xf32>
    %1174 = math.exp %1173 : vector<2x32xf32>
    %cst_420 = arith.constant 1.000000e+00 : f32
    %1175 = vector.broadcast %cst_420 : f32 to vector<2x32xf32>
    %1176 = arith.addf %1175, %1174 : vector<2x32xf32>
    %1177 = arith.divf %1175, %1176 : vector<2x32xf32>
    %1178 = arith.mulf %1169, %1100 : vector<2x32xf32>
    %1179 = arith.mulf %1163, %1171 : vector<2x32xf32>
    %1180 = arith.addf %1178, %1179 : vector<2x32xf32>
    %1181 = math.tanh %1180 : vector<2x32xf32>
    %1182 = arith.mulf %1177, %1181 : vector<2x32xf32>
    %c5_i32_421 = arith.constant 5 : i32
    %1183 = vector.broadcast %c5_i32_421 : i32 to vector<2x1xi32>
    %1184 = arith.cmpi sgt, %0, %1183 : vector<2x1xi32>
    %1185 = vector.shape_cast %1184 : vector<2x1xi1> to vector<2x1xi1>
    %1186 = vector.broadcast %1185 : vector<2x1xi1> to vector<2x32xi1>
    %1187 = arith.select %1186, %1182, %1097 : vector<2x32xi1>, vector<2x32xf32>
    %1188 = vector.shape_cast %1184 : vector<2x1xi1> to vector<2x1xi1>
    %1189 = vector.broadcast %1188 : vector<2x1xi1> to vector<2x32xi1>
    %1190 = arith.select %1189, %1180, %1100 : vector<2x32xi1>, vector<2x32xf32>
    %cst_422 = arith.constant 0.000000e+00 : f32
    %1191 = vector.shape_cast %1184 : vector<2x1xi1> to vector<2x1xi1>
    %1192 = vector.broadcast %1191 : vector<2x1xi1> to vector<2x32xi1>
    %1193 = vector.broadcast %cst_422 : f32 to vector<2x32xf32>
    %1194 = arith.select %1192, %1182, %1193 : vector<2x32xi1>, vector<2x32xf32>
    %c2_423 = arith.constant 2 : index
    %c0_424 = arith.constant 0 : index
    %c0_425 = arith.constant 0 : index
    %1195 = vector.load %arg17[%c2_423, %c0_424, %c0_425] : memref<8x2x32xf32, #tpu.memory_space<vmem>>, vector<1x2x32xf32>
    %1196 = vector.shape_cast %1195 : vector<1x2x32xf32> to vector<2x32xf32>
    %1197 = vector.shape_cast %1157 : vector<2x32xf32> to vector<1x2x32xf32>
    tpu.vector_store %arg17[%c2_423, %c0_424, %c0_425], %1197 {strides = array<i32>} : memref<8x2x32xf32, #tpu.memory_space<vmem>>, vector<1x2x32xf32>,
    %c5_426 = arith.constant 5 : index
    %c0_427 = arith.constant 0 : index
    %c0_428 = arith.constant 0 : index
    %1198 = vector.load %arg18[%c5_426, %c0_427, %c0_428] : memref<8x2x32xf32, #tpu.memory_space<vmem>>, vector<1x2x32xf32>
    %1199 = vector.shape_cast %1198 : vector<1x2x32xf32> to vector<2x32xf32>
    %1200 = vector.shape_cast %1194 : vector<2x32xf32> to vector<1x2x32xf32>
    tpu.vector_store %arg18[%c5_426, %c0_427, %c0_428], %1200 {strides = array<i32>} : memref<8x2x32xf32, #tpu.memory_space<vmem>>, vector<1x2x32xf32>,
    %c3_429 = arith.constant 3 : index
    %c0_430 = arith.constant 0 : index
    %c0_431 = arith.constant 0 : index
    %1201 = vector.load %arg16[%c3_429, %c0_430, %c0_431] : memref<8x2x256xf32, #tpu.memory_space<vmem>>, vector<1x2x256xf32>
    %1202 = vector.shape_cast %1201 : vector<1x2x256xf32> to vector<2x256xf32>
    %1203 = vector.extract_strided_slice %1202 {offsets = [0, 0], sizes = [2, 128], strides = [1, 1]} : vector<2x256xf32> to vector<2x128xf32>
    %cst_432 = arith.constant dense<0.000000e+00> : vector<2x128xf32>
    %1204 = tpu.matmul %1150, %925, %cst_432 {dimension_numbers = #tpu.dot_dimension_numbers<[1], [0], [0], [1], [0, 0, 1, 1], [], []>} : vector<2x32xf32>, vector<32x128xf32>, vector<2x128xf32> -> vector<2x128xf32>
    %1205 = arith.addf %1203, %1204 : vector<2x128xf32>
    %c4_433 = arith.constant 4 : index
    %c0_434 = arith.constant 0 : index
    %c0_435 = arith.constant 0 : index
    %1206 = vector.load %arg16[%c4_433, %c0_434, %c0_435] : memref<8x2x256xf32, #tpu.memory_space<vmem>>, vector<1x2x256xf32>
    %1207 = vector.shape_cast %1206 : vector<1x2x256xf32> to vector<2x256xf32>
    %1208 = vector.extract_strided_slice %1207 {offsets = [0, 128], sizes = [2, 128], strides = [1, 1]} : vector<2x256xf32> to vector<2x128xf32>
    %cst_436 = arith.constant dense<0.000000e+00> : vector<2x128xf32>
    %1209 = tpu.matmul %1187, %926, %cst_436 {dimension_numbers = #tpu.dot_dimension_numbers<[1], [0], [0], [1], [0, 0, 1, 1], [], []>} : vector<2x32xf32>, vector<32x128xf32>, vector<2x128xf32> -> vector<2x128xf32>
    %1210 = arith.addf %1208, %1209 : vector<2x128xf32>
    %1211 = vector.extract_strided_slice %1205 {offsets = [0, 0], sizes = [2, 32], strides = [1, 1]} : vector<2x128xf32> to vector<2x32xf32>
    %1212 = arith.negf %1211 : vector<2x32xf32>
    %1213 = math.exp %1212 : vector<2x32xf32>
    %cst_437 = arith.constant 1.000000e+00 : f32
    %1214 = vector.broadcast %cst_437 : f32 to vector<2x32xf32>
    %1215 = arith.addf %1214, %1213 : vector<2x32xf32>
    %1216 = arith.divf %1214, %1215 : vector<2x32xf32>
    %1217 = vector.extract_strided_slice %1205 {offsets = [0, 32], sizes = [2, 32], strides = [1, 1]} : vector<2x128xf32> to vector<2x32xf32>
    %1218 = arith.negf %1217 : vector<2x32xf32>
    %1219 = math.exp %1218 : vector<2x32xf32>
    %cst_438 = arith.constant 1.000000e+00 : f32
    %1220 = vector.broadcast %cst_438 : f32 to vector<2x32xf32>
    %1221 = arith.addf %1220, %1219 : vector<2x32xf32>
    %1222 = arith.divf %1220, %1221 : vector<2x32xf32>
    %1223 = vector.extract_strided_slice %1205 {offsets = [0, 64], sizes = [2, 32], strides = [1, 1]} : vector<2x128xf32> to vector<2x32xf32>
    %1224 = math.tanh %1223 : vector<2x32xf32>
    %1225 = vector.extract_strided_slice %1205 {offsets = [0, 96], sizes = [2, 32], strides = [1, 1]} : vector<2x128xf32> to vector<2x32xf32>
    %1226 = arith.negf %1225 : vector<2x32xf32>
    %1227 = math.exp %1226 : vector<2x32xf32>
    %cst_439 = arith.constant 1.000000e+00 : f32
    %1228 = vector.broadcast %cst_439 : f32 to vector<2x32xf32>
    %1229 = arith.addf %1228, %1227 : vector<2x32xf32>
    %1230 = arith.divf %1228, %1229 : vector<2x32xf32>
    %1231 = arith.mulf %1222, %1153 : vector<2x32xf32>
    %1232 = arith.mulf %1216, %1224 : vector<2x32xf32>
    %1233 = arith.addf %1231, %1232 : vector<2x32xf32>
    %1234 = math.tanh %1233 : vector<2x32xf32>
    %1235 = arith.mulf %1230, %1234 : vector<2x32xf32>
    %c3_i32_440 = arith.constant 3 : i32
    %1236 = vector.broadcast %c3_i32_440 : i32 to vector<2x1xi32>
    %1237 = arith.cmpi sgt, %0, %1236 : vector<2x1xi32>
    %1238 = vector.shape_cast %1237 : vector<2x1xi1> to vector<2x1xi1>
    %1239 = vector.broadcast %1238 : vector<2x1xi1> to vector<2x32xi1>
    %1240 = arith.select %1239, %1235, %1150 : vector<2x32xi1>, vector<2x32xf32>
    %1241 = vector.shape_cast %1237 : vector<2x1xi1> to vector<2x1xi1>
    %1242 = vector.broadcast %1241 : vector<2x1xi1> to vector<2x32xi1>
    %1243 = arith.select %1242, %1233, %1153 : vector<2x32xi1>, vector<2x32xf32>
    %cst_441 = arith.constant 0.000000e+00 : f32
    %1244 = vector.shape_cast %1237 : vector<2x1xi1> to vector<2x1xi1>
    %1245 = vector.broadcast %1244 : vector<2x1xi1> to vector<2x32xi1>
    %1246 = vector.broadcast %cst_441 : f32 to vector<2x32xf32>
    %1247 = arith.select %1245, %1235, %1246 : vector<2x32xi1>, vector<2x32xf32>
    %1248 = vector.extract_strided_slice %1210 {offsets = [0, 0], sizes = [2, 32], strides = [1, 1]} : vector<2x128xf32> to vector<2x32xf32>
    %1249 = arith.negf %1248 : vector<2x32xf32>
    %1250 = math.exp %1249 : vector<2x32xf32>
    %cst_442 = arith.constant 1.000000e+00 : f32
    %1251 = vector.broadcast %cst_442 : f32 to vector<2x32xf32>
    %1252 = arith.addf %1251, %1250 : vector<2x32xf32>
    %1253 = arith.divf %1251, %1252 : vector<2x32xf32>
    %1254 = vector.extract_strided_slice %1210 {offsets = [0, 32], sizes = [2, 32], strides = [1, 1]} : vector<2x128xf32> to vector<2x32xf32>
    %1255 = arith.negf %1254 : vector<2x32xf32>
    %1256 = math.exp %1255 : vector<2x32xf32>
    %cst_443 = arith.constant 1.000000e+00 : f32
    %1257 = vector.broadcast %cst_443 : f32 to vector<2x32xf32>
    %1258 = arith.addf %1257, %1256 : vector<2x32xf32>
    %1259 = arith.divf %1257, %1258 : vector<2x32xf32>
    %1260 = vector.extract_strided_slice %1210 {offsets = [0, 64], sizes = [2, 32], strides = [1, 1]} : vector<2x128xf32> to vector<2x32xf32>
    %1261 = math.tanh %1260 : vector<2x32xf32>
    %1262 = vector.extract_strided_slice %1210 {offsets = [0, 96], sizes = [2, 32], strides = [1, 1]} : vector<2x128xf32> to vector<2x32xf32>
    %1263 = arith.negf %1262 : vector<2x32xf32>
    %1264 = math.exp %1263 : vector<2x32xf32>
    %cst_444 = arith.constant 1.000000e+00 : f32
    %1265 = vector.broadcast %cst_444 : f32 to vector<2x32xf32>
    %1266 = arith.addf %1265, %1264 : vector<2x32xf32>
    %1267 = arith.divf %1265, %1266 : vector<2x32xf32>
    %1268 = arith.mulf %1259, %1190 : vector<2x32xf32>
    %1269 = arith.mulf %1253, %1261 : vector<2x32xf32>
    %1270 = arith.addf %1268, %1269 : vector<2x32xf32>
    %1271 = math.tanh %1270 : vector<2x32xf32>
    %1272 = arith.mulf %1267, %1271 : vector<2x32xf32>
    %c4_i32_445 = arith.constant 4 : i32
    %1273 = vector.broadcast %c4_i32_445 : i32 to vector<2x1xi32>
    %1274 = arith.cmpi sgt, %0, %1273 : vector<2x1xi32>
    %1275 = vector.shape_cast %1274 : vector<2x1xi1> to vector<2x1xi1>
    %1276 = vector.broadcast %1275 : vector<2x1xi1> to vector<2x32xi1>
    %1277 = arith.select %1276, %1272, %1187 : vector<2x32xi1>, vector<2x32xf32>
    %1278 = vector.shape_cast %1274 : vector<2x1xi1> to vector<2x1xi1>
    %1279 = vector.broadcast %1278 : vector<2x1xi1> to vector<2x32xi1>
    %1280 = arith.select %1279, %1270, %1190 : vector<2x32xi1>, vector<2x32xf32>
    %cst_446 = arith.constant 0.000000e+00 : f32
    %1281 = vector.shape_cast %1274 : vector<2x1xi1> to vector<2x1xi1>
    %1282 = vector.broadcast %1281 : vector<2x1xi1> to vector<2x32xi1>
    %1283 = vector.broadcast %cst_446 : f32 to vector<2x32xf32>
    %1284 = arith.select %1282, %1272, %1283 : vector<2x32xi1>, vector<2x32xf32>
    %c3_447 = arith.constant 3 : index
    %c0_448 = arith.constant 0 : index
    %c0_449 = arith.constant 0 : index
    %1285 = vector.load %arg17[%c3_447, %c0_448, %c0_449] : memref<8x2x32xf32, #tpu.memory_space<vmem>>, vector<1x2x32xf32>
    %1286 = vector.shape_cast %1285 : vector<1x2x32xf32> to vector<2x32xf32>
    %1287 = vector.shape_cast %1247 : vector<2x32xf32> to vector<1x2x32xf32>
    tpu.vector_store %arg17[%c3_447, %c0_448, %c0_449], %1287 {strides = array<i32>} : memref<8x2x32xf32, #tpu.memory_space<vmem>>, vector<1x2x32xf32>,
    %c4_450 = arith.constant 4 : index
    %c0_451 = arith.constant 0 : index
    %c0_452 = arith.constant 0 : index
    %1288 = vector.load %arg18[%c4_450, %c0_451, %c0_452] : memref<8x2x32xf32, #tpu.memory_space<vmem>>, vector<1x2x32xf32>
    %1289 = vector.shape_cast %1288 : vector<1x2x32xf32> to vector<2x32xf32>
    %1290 = vector.shape_cast %1284 : vector<2x32xf32> to vector<1x2x32xf32>
    tpu.vector_store %arg18[%c4_450, %c0_451, %c0_452], %1290 {strides = array<i32>} : memref<8x2x32xf32, #tpu.memory_space<vmem>>, vector<1x2x32xf32>,
    %c4_453 = arith.constant 4 : index
    %c0_454 = arith.constant 0 : index
    %c0_455 = arith.constant 0 : index
    %1291 = vector.load %arg16[%c4_453, %c0_454, %c0_455] : memref<8x2x256xf32, #tpu.memory_space<vmem>>, vector<1x2x256xf32>
    %1292 = vector.shape_cast %1291 : vector<1x2x256xf32> to vector<2x256xf32>
    %1293 = vector.extract_strided_slice %1292 {offsets = [0, 0], sizes = [2, 128], strides = [1, 1]} : vector<2x256xf32> to vector<2x128xf32>
    %cst_456 = arith.constant dense<0.000000e+00> : vector<2x128xf32>
    %1294 = tpu.matmul %1240, %925, %cst_456 {dimension_numbers = #tpu.dot_dimension_numbers<[1], [0], [0], [1], [0, 0, 1, 1], [], []>} : vector<2x32xf32>, vector<32x128xf32>, vector<2x128xf32> -> vector<2x128xf32>
    %1295 = arith.addf %1293, %1294 : vector<2x128xf32>
    %c3_457 = arith.constant 3 : index
    %c0_458 = arith.constant 0 : index
    %c0_459 = arith.constant 0 : index
    %1296 = vector.load %arg16[%c3_457, %c0_458, %c0_459] : memref<8x2x256xf32, #tpu.memory_space<vmem>>, vector<1x2x256xf32>
    %1297 = vector.shape_cast %1296 : vector<1x2x256xf32> to vector<2x256xf32>
    %1298 = vector.extract_strided_slice %1297 {offsets = [0, 128], sizes = [2, 128], strides = [1, 1]} : vector<2x256xf32> to vector<2x128xf32>
    %cst_460 = arith.constant dense<0.000000e+00> : vector<2x128xf32>
    %1299 = tpu.matmul %1277, %926, %cst_460 {dimension_numbers = #tpu.dot_dimension_numbers<[1], [0], [0], [1], [0, 0, 1, 1], [], []>} : vector<2x32xf32>, vector<32x128xf32>, vector<2x128xf32> -> vector<2x128xf32>
    %1300 = arith.addf %1298, %1299 : vector<2x128xf32>
    %1301 = vector.extract_strided_slice %1295 {offsets = [0, 0], sizes = [2, 32], strides = [1, 1]} : vector<2x128xf32> to vector<2x32xf32>
    %1302 = arith.negf %1301 : vector<2x32xf32>
    %1303 = math.exp %1302 : vector<2x32xf32>
    %cst_461 = arith.constant 1.000000e+00 : f32
    %1304 = vector.broadcast %cst_461 : f32 to vector<2x32xf32>
    %1305 = arith.addf %1304, %1303 : vector<2x32xf32>
    %1306 = arith.divf %1304, %1305 : vector<2x32xf32>
    %1307 = vector.extract_strided_slice %1295 {offsets = [0, 32], sizes = [2, 32], strides = [1, 1]} : vector<2x128xf32> to vector<2x32xf32>
    %1308 = arith.negf %1307 : vector<2x32xf32>
    %1309 = math.exp %1308 : vector<2x32xf32>
    %cst_462 = arith.constant 1.000000e+00 : f32
    %1310 = vector.broadcast %cst_462 : f32 to vector<2x32xf32>
    %1311 = arith.addf %1310, %1309 : vector<2x32xf32>
    %1312 = arith.divf %1310, %1311 : vector<2x32xf32>
    %1313 = vector.extract_strided_slice %1295 {offsets = [0, 64], sizes = [2, 32], strides = [1, 1]} : vector<2x128xf32> to vector<2x32xf32>
    %1314 = math.tanh %1313 : vector<2x32xf32>
    %1315 = vector.extract_strided_slice %1295 {offsets = [0, 96], sizes = [2, 32], strides = [1, 1]} : vector<2x128xf32> to vector<2x32xf32>
    %1316 = arith.negf %1315 : vector<2x32xf32>
    %1317 = math.exp %1316 : vector<2x32xf32>
    %cst_463 = arith.constant 1.000000e+00 : f32
    %1318 = vector.broadcast %cst_463 : f32 to vector<2x32xf32>
    %1319 = arith.addf %1318, %1317 : vector<2x32xf32>
    %1320 = arith.divf %1318, %1319 : vector<2x32xf32>
    %1321 = arith.mulf %1312, %1243 : vector<2x32xf32>
    %1322 = arith.mulf %1306, %1314 : vector<2x32xf32>
    %1323 = arith.addf %1321, %1322 : vector<2x32xf32>
    %1324 = math.tanh %1323 : vector<2x32xf32>
    %1325 = arith.mulf %1320, %1324 : vector<2x32xf32>
    %c4_i32_464 = arith.constant 4 : i32
    %1326 = vector.broadcast %c4_i32_464 : i32 to vector<2x1xi32>
    %1327 = arith.cmpi sgt, %0, %1326 : vector<2x1xi32>
    %1328 = vector.shape_cast %1327 : vector<2x1xi1> to vector<2x1xi1>
    %1329 = vector.broadcast %1328 : vector<2x1xi1> to vector<2x32xi1>
    %1330 = arith.select %1329, %1325, %1240 : vector<2x32xi1>, vector<2x32xf32>
    %1331 = vector.shape_cast %1327 : vector<2x1xi1> to vector<2x1xi1>
    %1332 = vector.broadcast %1331 : vector<2x1xi1> to vector<2x32xi1>
    %1333 = arith.select %1332, %1323, %1243 : vector<2x32xi1>, vector<2x32xf32>
    %cst_465 = arith.constant 0.000000e+00 : f32
    %1334 = vector.shape_cast %1327 : vector<2x1xi1> to vector<2x1xi1>
    %1335 = vector.broadcast %1334 : vector<2x1xi1> to vector<2x32xi1>
    %1336 = vector.broadcast %cst_465 : f32 to vector<2x32xf32>
    %1337 = arith.select %1335, %1325, %1336 : vector<2x32xi1>, vector<2x32xf32>
    %1338 = vector.extract_strided_slice %1300 {offsets = [0, 0], sizes = [2, 32], strides = [1, 1]} : vector<2x128xf32> to vector<2x32xf32>
    %1339 = arith.negf %1338 : vector<2x32xf32>
    %1340 = math.exp %1339 : vector<2x32xf32>
    %cst_466 = arith.constant 1.000000e+00 : f32
    %1341 = vector.broadcast %cst_466 : f32 to vector<2x32xf32>
    %1342 = arith.addf %1341, %1340 : vector<2x32xf32>
    %1343 = arith.divf %1341, %1342 : vector<2x32xf32>
    %1344 = vector.extract_strided_slice %1300 {offsets = [0, 32], sizes = [2, 32], strides = [1, 1]} : vector<2x128xf32> to vector<2x32xf32>
    %1345 = arith.negf %1344 : vector<2x32xf32>
    %1346 = math.exp %1345 : vector<2x32xf32>
    %cst_467 = arith.constant 1.000000e+00 : f32
    %1347 = vector.broadcast %cst_467 : f32 to vector<2x32xf32>
    %1348 = arith.addf %1347, %1346 : vector<2x32xf32>
    %1349 = arith.divf %1347, %1348 : vector<2x32xf32>
    %1350 = vector.extract_strided_slice %1300 {offsets = [0, 64], sizes = [2, 32], strides = [1, 1]} : vector<2x128xf32> to vector<2x32xf32>
    %1351 = math.tanh %1350 : vector<2x32xf32>
    %1352 = vector.extract_strided_slice %1300 {offsets = [0, 96], sizes = [2, 32], strides = [1, 1]} : vector<2x128xf32> to vector<2x32xf32>
    %1353 = arith.negf %1352 : vector<2x32xf32>
    %1354 = math.exp %1353 : vector<2x32xf32>
    %cst_468 = arith.constant 1.000000e+00 : f32
    %1355 = vector.broadcast %cst_468 : f32 to vector<2x32xf32>
    %1356 = arith.addf %1355, %1354 : vector<2x32xf32>
    %1357 = arith.divf %1355, %1356 : vector<2x32xf32>
    %1358 = arith.mulf %1349, %1280 : vector<2x32xf32>
    %1359 = arith.mulf %1343, %1351 : vector<2x32xf32>
    %1360 = arith.addf %1358, %1359 : vector<2x32xf32>
    %1361 = math.tanh %1360 : vector<2x32xf32>
    %1362 = arith.mulf %1357, %1361 : vector<2x32xf32>
    %c3_i32_469 = arith.constant 3 : i32
    %1363 = vector.broadcast %c3_i32_469 : i32 to vector<2x1xi32>
    %1364 = arith.cmpi sgt, %0, %1363 : vector<2x1xi32>
    %1365 = vector.shape_cast %1364 : vector<2x1xi1> to vector<2x1xi1>
    %1366 = vector.broadcast %1365 : vector<2x1xi1> to vector<2x32xi1>
    %1367 = arith.select %1366, %1362, %1277 : vector<2x32xi1>, vector<2x32xf32>
    %1368 = vector.shape_cast %1364 : vector<2x1xi1> to vector<2x1xi1>
    %1369 = vector.broadcast %1368 : vector<2x1xi1> to vector<2x32xi1>
    %1370 = arith.select %1369, %1360, %1280 : vector<2x32xi1>, vector<2x32xf32>
    %cst_470 = arith.constant 0.000000e+00 : f32
    %1371 = vector.shape_cast %1364 : vector<2x1xi1> to vector<2x1xi1>
    %1372 = vector.broadcast %1371 : vector<2x1xi1> to vector<2x32xi1>
    %1373 = vector.broadcast %cst_470 : f32 to vector<2x32xf32>
    %1374 = arith.select %1372, %1362, %1373 : vector<2x32xi1>, vector<2x32xf32>
    %c4_471 = arith.constant 4 : index
    %c0_472 = arith.constant 0 : index
    %c0_473 = arith.constant 0 : index
    %1375 = vector.load %arg17[%c4_471, %c0_472, %c0_473] : memref<8x2x32xf32, #tpu.memory_space<vmem>>, vector<1x2x32xf32>
    %1376 = vector.shape_cast %1375 : vector<1x2x32xf32> to vector<2x32xf32>
    %1377 = vector.shape_cast %1337 : vector<2x32xf32> to vector<1x2x32xf32>
    tpu.vector_store %arg17[%c4_471, %c0_472, %c0_473], %1377 {strides = array<i32>} : memref<8x2x32xf32, #tpu.memory_space<vmem>>, vector<1x2x32xf32>,
    %c3_474 = arith.constant 3 : index
    %c0_475 = arith.constant 0 : index
    %c0_476 = arith.constant 0 : index
    %1378 = vector.load %arg18[%c3_474, %c0_475, %c0_476] : memref<8x2x32xf32, #tpu.memory_space<vmem>>, vector<1x2x32xf32>
    %1379 = vector.shape_cast %1378 : vector<1x2x32xf32> to vector<2x32xf32>
    %1380 = vector.shape_cast %1374 : vector<2x32xf32> to vector<1x2x32xf32>
    tpu.vector_store %arg18[%c3_474, %c0_475, %c0_476], %1380 {strides = array<i32>} : memref<8x2x32xf32, #tpu.memory_space<vmem>>, vector<1x2x32xf32>,
    %c5_477 = arith.constant 5 : index
    %c0_478 = arith.constant 0 : index
    %c0_479 = arith.constant 0 : index
    %1381 = vector.load %arg16[%c5_477, %c0_478, %c0_479] : memref<8x2x256xf32, #tpu.memory_space<vmem>>, vector<1x2x256xf32>
    %1382 = vector.shape_cast %1381 : vector<1x2x256xf32> to vector<2x256xf32>
    %1383 = vector.extract_strided_slice %1382 {offsets = [0, 0], sizes = [2, 128], strides = [1, 1]} : vector<2x256xf32> to vector<2x128xf32>
    %cst_480 = arith.constant dense<0.000000e+00> : vector<2x128xf32>
    %1384 = tpu.matmul %1330, %925, %cst_480 {dimension_numbers = #tpu.dot_dimension_numbers<[1], [0], [0], [1], [0, 0, 1, 1], [], []>} : vector<2x32xf32>, vector<32x128xf32>, vector<2x128xf32> -> vector<2x128xf32>
    %1385 = arith.addf %1383, %1384 : vector<2x128xf32>
    %c2_481 = arith.constant 2 : index
    %c0_482 = arith.constant 0 : index
    %c0_483 = arith.constant 0 : index
    %1386 = vector.load %arg16[%c2_481, %c0_482, %c0_483] : memref<8x2x256xf32, #tpu.memory_space<vmem>>, vector<1x2x256xf32>
    %1387 = vector.shape_cast %1386 : vector<1x2x256xf32> to vector<2x256xf32>
    %1388 = vector.extract_strided_slice %1387 {offsets = [0, 128], sizes = [2, 128], strides = [1, 1]} : vector<2x256xf32> to vector<2x128xf32>
    %cst_484 = arith.constant dense<0.000000e+00> : vector<2x128xf32>
    %1389 = tpu.matmul %1367, %926, %cst_484 {dimension_numbers = #tpu.dot_dimension_numbers<[1], [0], [0], [1], [0, 0, 1, 1], [], []>} : vector<2x32xf32>, vector<32x128xf32>, vector<2x128xf32> -> vector<2x128xf32>
    %1390 = arith.addf %1388, %1389 : vector<2x128xf32>
    %1391 = vector.extract_strided_slice %1385 {offsets = [0, 0], sizes = [2, 32], strides = [1, 1]} : vector<2x128xf32> to vector<2x32xf32>
    %1392 = arith.negf %1391 : vector<2x32xf32>
    %1393 = math.exp %1392 : vector<2x32xf32>
    %cst_485 = arith.constant 1.000000e+00 : f32
    %1394 = vector.broadcast %cst_485 : f32 to vector<2x32xf32>
    %1395 = arith.addf %1394, %1393 : vector<2x32xf32>
    %1396 = arith.divf %1394, %1395 : vector<2x32xf32>
    %1397 = vector.extract_strided_slice %1385 {offsets = [0, 32], sizes = [2, 32], strides = [1, 1]} : vector<2x128xf32> to vector<2x32xf32>
    %1398 = arith.negf %1397 : vector<2x32xf32>
    %1399 = math.exp %1398 : vector<2x32xf32>
    %cst_486 = arith.constant 1.000000e+00 : f32
    %1400 = vector.broadcast %cst_486 : f32 to vector<2x32xf32>
    %1401 = arith.addf %1400, %1399 : vector<2x32xf32>
    %1402 = arith.divf %1400, %1401 : vector<2x32xf32>
    %1403 = vector.extract_strided_slice %1385 {offsets = [0, 64], sizes = [2, 32], strides = [1, 1]} : vector<2x128xf32> to vector<2x32xf32>
    %1404 = math.tanh %1403 : vector<2x32xf32>
    %1405 = vector.extract_strided_slice %1385 {offsets = [0, 96], sizes = [2, 32], strides = [1, 1]} : vector<2x128xf32> to vector<2x32xf32>
    %1406 = arith.negf %1405 : vector<2x32xf32>
    %1407 = math.exp %1406 : vector<2x32xf32>
    %cst_487 = arith.constant 1.000000e+00 : f32
    %1408 = vector.broadcast %cst_487 : f32 to vector<2x32xf32>
    %1409 = arith.addf %1408, %1407 : vector<2x32xf32>
    %1410 = arith.divf %1408, %1409 : vector<2x32xf32>
    %1411 = arith.mulf %1402, %1333 : vector<2x32xf32>
    %1412 = arith.mulf %1396, %1404 : vector<2x32xf32>
    %1413 = arith.addf %1411, %1412 : vector<2x32xf32>
    %1414 = math.tanh %1413 : vector<2x32xf32>
    %1415 = arith.mulf %1410, %1414 : vector<2x32xf32>
    %c5_i32_488 = arith.constant 5 : i32
    %1416 = vector.broadcast %c5_i32_488 : i32 to vector<2x1xi32>
    %1417 = arith.cmpi sgt, %0, %1416 : vector<2x1xi32>
    %1418 = vector.shape_cast %1417 : vector<2x1xi1> to vector<2x1xi1>
    %1419 = vector.broadcast %1418 : vector<2x1xi1> to vector<2x32xi1>
    %1420 = arith.select %1419, %1415, %1330 : vector<2x32xi1>, vector<2x32xf32>
    %1421 = vector.shape_cast %1417 : vector<2x1xi1> to vector<2x1xi1>
    %1422 = vector.broadcast %1421 : vector<2x1xi1> to vector<2x32xi1>
    %1423 = arith.select %1422, %1413, %1333 : vector<2x32xi1>, vector<2x32xf32>
    %cst_489 = arith.constant 0.000000e+00 : f32
    %1424 = vector.shape_cast %1417 : vector<2x1xi1> to vector<2x1xi1>
    %1425 = vector.broadcast %1424 : vector<2x1xi1> to vector<2x32xi1>
    %1426 = vector.broadcast %cst_489 : f32 to vector<2x32xf32>
    %1427 = arith.select %1425, %1415, %1426 : vector<2x32xi1>, vector<2x32xf32>
    %1428 = vector.extract_strided_slice %1390 {offsets = [0, 0], sizes = [2, 32], strides = [1, 1]} : vector<2x128xf32> to vector<2x32xf32>
    %1429 = arith.negf %1428 : vector<2x32xf32>
    %1430 = math.exp %1429 : vector<2x32xf32>
    %cst_490 = arith.constant 1.000000e+00 : f32
    %1431 = vector.broadcast %cst_490 : f32 to vector<2x32xf32>
    %1432 = arith.addf %1431, %1430 : vector<2x32xf32>
    %1433 = arith.divf %1431, %1432 : vector<2x32xf32>
    %1434 = vector.extract_strided_slice %1390 {offsets = [0, 32], sizes = [2, 32], strides = [1, 1]} : vector<2x128xf32> to vector<2x32xf32>
    %1435 = arith.negf %1434 : vector<2x32xf32>
    %1436 = math.exp %1435 : vector<2x32xf32>
    %cst_491 = arith.constant 1.000000e+00 : f32
    %1437 = vector.broadcast %cst_491 : f32 to vector<2x32xf32>
    %1438 = arith.addf %1437, %1436 : vector<2x32xf32>
    %1439 = arith.divf %1437, %1438 : vector<2x32xf32>
    %1440 = vector.extract_strided_slice %1390 {offsets = [0, 64], sizes = [2, 32], strides = [1, 1]} : vector<2x128xf32> to vector<2x32xf32>
    %1441 = math.tanh %1440 : vector<2x32xf32>
    %1442 = vector.extract_strided_slice %1390 {offsets = [0, 96], sizes = [2, 32], strides = [1, 1]} : vector<2x128xf32> to vector<2x32xf32>
    %1443 = arith.negf %1442 : vector<2x32xf32>
    %1444 = math.exp %1443 : vector<2x32xf32>
    %cst_492 = arith.constant 1.000000e+00 : f32
    %1445 = vector.broadcast %cst_492 : f32 to vector<2x32xf32>
    %1446 = arith.addf %1445, %1444 : vector<2x32xf32>
    %1447 = arith.divf %1445, %1446 : vector<2x32xf32>
    %1448 = arith.mulf %1439, %1370 : vector<2x32xf32>
    %1449 = arith.mulf %1433, %1441 : vector<2x32xf32>
    %1450 = arith.addf %1448, %1449 : vector<2x32xf32>
    %1451 = math.tanh %1450 : vector<2x32xf32>
    %1452 = arith.mulf %1447, %1451 : vector<2x32xf32>
    %c2_i32_493 = arith.constant 2 : i32
    %1453 = vector.broadcast %c2_i32_493 : i32 to vector<2x1xi32>
    %1454 = arith.cmpi sgt, %0, %1453 : vector<2x1xi32>
    %1455 = vector.shape_cast %1454 : vector<2x1xi1> to vector<2x1xi1>
    %1456 = vector.broadcast %1455 : vector<2x1xi1> to vector<2x32xi1>
    %1457 = arith.select %1456, %1452, %1367 : vector<2x32xi1>, vector<2x32xf32>
    %1458 = vector.shape_cast %1454 : vector<2x1xi1> to vector<2x1xi1>
    %1459 = vector.broadcast %1458 : vector<2x1xi1> to vector<2x32xi1>
    %1460 = arith.select %1459, %1450, %1370 : vector<2x32xi1>, vector<2x32xf32>
    %cst_494 = arith.constant 0.000000e+00 : f32
    %1461 = vector.shape_cast %1454 : vector<2x1xi1> to vector<2x1xi1>
    %1462 = vector.broadcast %1461 : vector<2x1xi1> to vector<2x32xi1>
    %1463 = vector.broadcast %cst_494 : f32 to vector<2x32xf32>
    %1464 = arith.select %1462, %1452, %1463 : vector<2x32xi1>, vector<2x32xf32>
    %c5_495 = arith.constant 5 : index
    %c0_496 = arith.constant 0 : index
    %c0_497 = arith.constant 0 : index
    %1465 = vector.load %arg17[%c5_495, %c0_496, %c0_497] : memref<8x2x32xf32, #tpu.memory_space<vmem>>, vector<1x2x32xf32>
    %1466 = vector.shape_cast %1465 : vector<1x2x32xf32> to vector<2x32xf32>
    %1467 = vector.shape_cast %1427 : vector<2x32xf32> to vector<1x2x32xf32>
    tpu.vector_store %arg17[%c5_495, %c0_496, %c0_497], %1467 {strides = array<i32>} : memref<8x2x32xf32, #tpu.memory_space<vmem>>, vector<1x2x32xf32>,
    %c2_498 = arith.constant 2 : index
    %c0_499 = arith.constant 0 : index
    %c0_500 = arith.constant 0 : index
    %1468 = vector.load %arg18[%c2_498, %c0_499, %c0_500] : memref<8x2x32xf32, #tpu.memory_space<vmem>>, vector<1x2x32xf32>
    %1469 = vector.shape_cast %1468 : vector<1x2x32xf32> to vector<2x32xf32>
    %1470 = vector.shape_cast %1464 : vector<2x32xf32> to vector<1x2x32xf32>
    tpu.vector_store %arg18[%c2_498, %c0_499, %c0_500], %1470 {strides = array<i32>} : memref<8x2x32xf32, #tpu.memory_space<vmem>>, vector<1x2x32xf32>,
    %c6_501 = arith.constant 6 : index
    %c0_502 = arith.constant 0 : index
    %c0_503 = arith.constant 0 : index
    %1471 = vector.load %arg16[%c6_501, %c0_502, %c0_503] : memref<8x2x256xf32, #tpu.memory_space<vmem>>, vector<1x2x256xf32>
    %1472 = vector.shape_cast %1471 : vector<1x2x256xf32> to vector<2x256xf32>
    %1473 = vector.extract_strided_slice %1472 {offsets = [0, 0], sizes = [2, 128], strides = [1, 1]} : vector<2x256xf32> to vector<2x128xf32>
    %cst_504 = arith.constant dense<0.000000e+00> : vector<2x128xf32>
    %1474 = tpu.matmul %1420, %925, %cst_504 {dimension_numbers = #tpu.dot_dimension_numbers<[1], [0], [0], [1], [0, 0, 1, 1], [], []>} : vector<2x32xf32>, vector<32x128xf32>, vector<2x128xf32> -> vector<2x128xf32>
    %1475 = arith.addf %1473, %1474 : vector<2x128xf32>
    %c1_505 = arith.constant 1 : index
    %c0_506 = arith.constant 0 : index
    %c0_507 = arith.constant 0 : index
    %1476 = vector.load %arg16[%c1_505, %c0_506, %c0_507] : memref<8x2x256xf32, #tpu.memory_space<vmem>>, vector<1x2x256xf32>
    %1477 = vector.shape_cast %1476 : vector<1x2x256xf32> to vector<2x256xf32>
    %1478 = vector.extract_strided_slice %1477 {offsets = [0, 128], sizes = [2, 128], strides = [1, 1]} : vector<2x256xf32> to vector<2x128xf32>
    %cst_508 = arith.constant dense<0.000000e+00> : vector<2x128xf32>
    %1479 = tpu.matmul %1457, %926, %cst_508 {dimension_numbers = #tpu.dot_dimension_numbers<[1], [0], [0], [1], [0, 0, 1, 1], [], []>} : vector<2x32xf32>, vector<32x128xf32>, vector<2x128xf32> -> vector<2x128xf32>
    %1480 = arith.addf %1478, %1479 : vector<2x128xf32>
    %1481 = vector.extract_strided_slice %1475 {offsets = [0, 0], sizes = [2, 32], strides = [1, 1]} : vector<2x128xf32> to vector<2x32xf32>
    %1482 = arith.negf %1481 : vector<2x32xf32>
    %1483 = math.exp %1482 : vector<2x32xf32>
    %cst_509 = arith.constant 1.000000e+00 : f32
    %1484 = vector.broadcast %cst_509 : f32 to vector<2x32xf32>
    %1485 = arith.addf %1484, %1483 : vector<2x32xf32>
    %1486 = arith.divf %1484, %1485 : vector<2x32xf32>
    %1487 = vector.extract_strided_slice %1475 {offsets = [0, 32], sizes = [2, 32], strides = [1, 1]} : vector<2x128xf32> to vector<2x32xf32>
    %1488 = arith.negf %1487 : vector<2x32xf32>
    %1489 = math.exp %1488 : vector<2x32xf32>
    %cst_510 = arith.constant 1.000000e+00 : f32
    %1490 = vector.broadcast %cst_510 : f32 to vector<2x32xf32>
    %1491 = arith.addf %1490, %1489 : vector<2x32xf32>
    %1492 = arith.divf %1490, %1491 : vector<2x32xf32>
    %1493 = vector.extract_strided_slice %1475 {offsets = [0, 64], sizes = [2, 32], strides = [1, 1]} : vector<2x128xf32> to vector<2x32xf32>
    %1494 = math.tanh %1493 : vector<2x32xf32>
    %1495 = vector.extract_strided_slice %1475 {offsets = [0, 96], sizes = [2, 32], strides = [1, 1]} : vector<2x128xf32> to vector<2x32xf32>
    %1496 = arith.negf %1495 : vector<2x32xf32>
    %1497 = math.exp %1496 : vector<2x32xf32>
    %cst_511 = arith.constant 1.000000e+00 : f32
    %1498 = vector.broadcast %cst_511 : f32 to vector<2x32xf32>
    %1499 = arith.addf %1498, %1497 : vector<2x32xf32>
    %1500 = arith.divf %1498, %1499 : vector<2x32xf32>
    %1501 = arith.mulf %1492, %1423 : vector<2x32xf32>
    %1502 = arith.mulf %1486, %1494 : vector<2x32xf32>
    %1503 = arith.addf %1501, %1502 : vector<2x32xf32>
    %1504 = math.tanh %1503 : vector<2x32xf32>
    %1505 = arith.mulf %1500, %1504 : vector<2x32xf32>
    %c6_i32_512 = arith.constant 6 : i32
    %1506 = vector.broadcast %c6_i32_512 : i32 to vector<2x1xi32>
    %1507 = arith.cmpi sgt, %0, %1506 : vector<2x1xi32>
    %1508 = vector.shape_cast %1507 : vector<2x1xi1> to vector<2x1xi1>
    %1509 = vector.broadcast %1508 : vector<2x1xi1> to vector<2x32xi1>
    %1510 = arith.select %1509, %1505, %1420 : vector<2x32xi1>, vector<2x32xf32>
    %1511 = vector.shape_cast %1507 : vector<2x1xi1> to vector<2x1xi1>
    %1512 = vector.broadcast %1511 : vector<2x1xi1> to vector<2x32xi1>
    %1513 = arith.select %1512, %1503, %1423 : vector<2x32xi1>, vector<2x32xf32>
    %cst_513 = arith.constant 0.000000e+00 : f32
    %1514 = vector.shape_cast %1507 : vector<2x1xi1> to vector<2x1xi1>
    %1515 = vector.broadcast %1514 : vector<2x1xi1> to vector<2x32xi1>
    %1516 = vector.broadcast %cst_513 : f32 to vector<2x32xf32>
    %1517 = arith.select %1515, %1505, %1516 : vector<2x32xi1>, vector<2x32xf32>
    %1518 = vector.extract_strided_slice %1480 {offsets = [0, 0], sizes = [2, 32], strides = [1, 1]} : vector<2x128xf32> to vector<2x32xf32>
    %1519 = arith.negf %1518 : vector<2x32xf32>
    %1520 = math.exp %1519 : vector<2x32xf32>
    %cst_514 = arith.constant 1.000000e+00 : f32
    %1521 = vector.broadcast %cst_514 : f32 to vector<2x32xf32>
    %1522 = arith.addf %1521, %1520 : vector<2x32xf32>
    %1523 = arith.divf %1521, %1522 : vector<2x32xf32>
    %1524 = vector.extract_strided_slice %1480 {offsets = [0, 32], sizes = [2, 32], strides = [1, 1]} : vector<2x128xf32> to vector<2x32xf32>
    %1525 = arith.negf %1524 : vector<2x32xf32>
    %1526 = math.exp %1525 : vector<2x32xf32>
    %cst_515 = arith.constant 1.000000e+00 : f32
    %1527 = vector.broadcast %cst_515 : f32 to vector<2x32xf32>
    %1528 = arith.addf %1527, %1526 : vector<2x32xf32>
    %1529 = arith.divf %1527, %1528 : vector<2x32xf32>
    %1530 = vector.extract_strided_slice %1480 {offsets = [0, 64], sizes = [2, 32], strides = [1, 1]} : vector<2x128xf32> to vector<2x32xf32>
    %1531 = math.tanh %1530 : vector<2x32xf32>
    %1532 = vector.extract_strided_slice %1480 {offsets = [0, 96], sizes = [2, 32], strides = [1, 1]} : vector<2x128xf32> to vector<2x32xf32>
    %1533 = arith.negf %1532 : vector<2x32xf32>
    %1534 = math.exp %1533 : vector<2x32xf32>
    %cst_516 = arith.constant 1.000000e+00 : f32
    %1535 = vector.broadcast %cst_516 : f32 to vector<2x32xf32>
    %1536 = arith.addf %1535, %1534 : vector<2x32xf32>
    %1537 = arith.divf %1535, %1536 : vector<2x32xf32>
    %1538 = arith.mulf %1529, %1460 : vector<2x32xf32>
    %1539 = arith.mulf %1523, %1531 : vector<2x32xf32>
    %1540 = arith.addf %1538, %1539 : vector<2x32xf32>
    %1541 = math.tanh %1540 : vector<2x32xf32>
    %1542 = arith.mulf %1537, %1541 : vector<2x32xf32>
    %c1_i32_517 = arith.constant 1 : i32
    %1543 = vector.broadcast %c1_i32_517 : i32 to vector<2x1xi32>
    %1544 = arith.cmpi sgt, %0, %1543 : vector<2x1xi32>
    %1545 = vector.shape_cast %1544 : vector<2x1xi1> to vector<2x1xi1>
    %1546 = vector.broadcast %1545 : vector<2x1xi1> to vector<2x32xi1>
    %1547 = arith.select %1546, %1542, %1457 : vector<2x32xi1>, vector<2x32xf32>
    %1548 = vector.shape_cast %1544 : vector<2x1xi1> to vector<2x1xi1>
    %1549 = vector.broadcast %1548 : vector<2x1xi1> to vector<2x32xi1>
    %1550 = arith.select %1549, %1540, %1460 : vector<2x32xi1>, vector<2x32xf32>
    %cst_518 = arith.constant 0.000000e+00 : f32
    %1551 = vector.shape_cast %1544 : vector<2x1xi1> to vector<2x1xi1>
    %1552 = vector.broadcast %1551 : vector<2x1xi1> to vector<2x32xi1>
    %1553 = vector.broadcast %cst_518 : f32 to vector<2x32xf32>
    %1554 = arith.select %1552, %1542, %1553 : vector<2x32xi1>, vector<2x32xf32>
    %c6_519 = arith.constant 6 : index
    %c0_520 = arith.constant 0 : index
    %c0_521 = arith.constant 0 : index
    %1555 = vector.load %arg17[%c6_519, %c0_520, %c0_521] : memref<8x2x32xf32, #tpu.memory_space<vmem>>, vector<1x2x32xf32>
    %1556 = vector.shape_cast %1555 : vector<1x2x32xf32> to vector<2x32xf32>
    %1557 = vector.shape_cast %1517 : vector<2x32xf32> to vector<1x2x32xf32>
    tpu.vector_store %arg17[%c6_519, %c0_520, %c0_521], %1557 {strides = array<i32>} : memref<8x2x32xf32, #tpu.memory_space<vmem>>, vector<1x2x32xf32>,
    %c1_522 = arith.constant 1 : index
    %c0_523 = arith.constant 0 : index
    %c0_524 = arith.constant 0 : index
    %1558 = vector.load %arg18[%c1_522, %c0_523, %c0_524] : memref<8x2x32xf32, #tpu.memory_space<vmem>>, vector<1x2x32xf32>
    %1559 = vector.shape_cast %1558 : vector<1x2x32xf32> to vector<2x32xf32>
    %1560 = vector.shape_cast %1554 : vector<2x32xf32> to vector<1x2x32xf32>
    tpu.vector_store %arg18[%c1_522, %c0_523, %c0_524], %1560 {strides = array<i32>} : memref<8x2x32xf32, #tpu.memory_space<vmem>>, vector<1x2x32xf32>,
    %c7_525 = arith.constant 7 : index
    %c0_526 = arith.constant 0 : index
    %c0_527 = arith.constant 0 : index
    %1561 = vector.load %arg16[%c7_525, %c0_526, %c0_527] : memref<8x2x256xf32, #tpu.memory_space<vmem>>, vector<1x2x256xf32>
    %1562 = vector.shape_cast %1561 : vector<1x2x256xf32> to vector<2x256xf32>
    %1563 = vector.extract_strided_slice %1562 {offsets = [0, 0], sizes = [2, 128], strides = [1, 1]} : vector<2x256xf32> to vector<2x128xf32>
    %cst_528 = arith.constant dense<0.000000e+00> : vector<2x128xf32>
    %1564 = tpu.matmul %1510, %925, %cst_528 {dimension_numbers = #tpu.dot_dimension_numbers<[1], [0], [0], [1], [0, 0, 1, 1], [], []>} : vector<2x32xf32>, vector<32x128xf32>, vector<2x128xf32> -> vector<2x128xf32>
    %1565 = arith.addf %1563, %1564 : vector<2x128xf32>
    %c0_529 = arith.constant 0 : index
    %c0_530 = arith.constant 0 : index
    %c0_531 = arith.constant 0 : index
    %1566 = vector.load %arg16[%c0_529, %c0_530, %c0_531] : memref<8x2x256xf32, #tpu.memory_space<vmem>>, vector<1x2x256xf32>
    %1567 = vector.shape_cast %1566 : vector<1x2x256xf32> to vector<2x256xf32>
    %1568 = vector.extract_strided_slice %1567 {offsets = [0, 128], sizes = [2, 128], strides = [1, 1]} : vector<2x256xf32> to vector<2x128xf32>
    %cst_532 = arith.constant dense<0.000000e+00> : vector<2x128xf32>
    %1569 = tpu.matmul %1547, %926, %cst_532 {dimension_numbers = #tpu.dot_dimension_numbers<[1], [0], [0], [1], [0, 0, 1, 1], [], []>} : vector<2x32xf32>, vector<32x128xf32>, vector<2x128xf32> -> vector<2x128xf32>
    %1570 = arith.addf %1568, %1569 : vector<2x128xf32>
    %1571 = vector.extract_strided_slice %1565 {offsets = [0, 0], sizes = [2, 32], strides = [1, 1]} : vector<2x128xf32> to vector<2x32xf32>
    %1572 = arith.negf %1571 : vector<2x32xf32>
    %1573 = math.exp %1572 : vector<2x32xf32>
    %cst_533 = arith.constant 1.000000e+00 : f32
    %1574 = vector.broadcast %cst_533 : f32 to vector<2x32xf32>
    %1575 = arith.addf %1574, %1573 : vector<2x32xf32>
    %1576 = arith.divf %1574, %1575 : vector<2x32xf32>
    %1577 = vector.extract_strided_slice %1565 {offsets = [0, 32], sizes = [2, 32], strides = [1, 1]} : vector<2x128xf32> to vector<2x32xf32>
    %1578 = arith.negf %1577 : vector<2x32xf32>
    %1579 = math.exp %1578 : vector<2x32xf32>
    %cst_534 = arith.constant 1.000000e+00 : f32
    %1580 = vector.broadcast %cst_534 : f32 to vector<2x32xf32>
    %1581 = arith.addf %1580, %1579 : vector<2x32xf32>
    %1582 = arith.divf %1580, %1581 : vector<2x32xf32>
    %1583 = vector.extract_strided_slice %1565 {offsets = [0, 64], sizes = [2, 32], strides = [1, 1]} : vector<2x128xf32> to vector<2x32xf32>
    %1584 = math.tanh %1583 : vector<2x32xf32>
    %1585 = vector.extract_strided_slice %1565 {offsets = [0, 96], sizes = [2, 32], strides = [1, 1]} : vector<2x128xf32> to vector<2x32xf32>
    %1586 = arith.negf %1585 : vector<2x32xf32>
    %1587 = math.exp %1586 : vector<2x32xf32>
    %cst_535 = arith.constant 1.000000e+00 : f32
    %1588 = vector.broadcast %cst_535 : f32 to vector<2x32xf32>
    %1589 = arith.addf %1588, %1587 : vector<2x32xf32>
    %1590 = arith.divf %1588, %1589 : vector<2x32xf32>
    %1591 = arith.mulf %1582, %1513 : vector<2x32xf32>
    %1592 = arith.mulf %1576, %1584 : vector<2x32xf32>
    %1593 = arith.addf %1591, %1592 : vector<2x32xf32>
    %1594 = math.tanh %1593 : vector<2x32xf32>
    %1595 = arith.mulf %1590, %1594 : vector<2x32xf32>
    %c7_i32_536 = arith.constant 7 : i32
    %1596 = vector.broadcast %c7_i32_536 : i32 to vector<2x1xi32>
    %1597 = arith.cmpi sgt, %0, %1596 : vector<2x1xi32>
    %cst_537 = arith.constant 0.000000e+00 : f32
    %1598 = vector.shape_cast %1597 : vector<2x1xi1> to vector<2x1xi1>
    %1599 = vector.broadcast %1598 : vector<2x1xi1> to vector<2x32xi1>
    %1600 = vector.broadcast %cst_537 : f32 to vector<2x32xf32>
    %1601 = arith.select %1599, %1595, %1600 : vector<2x32xi1>, vector<2x32xf32>
    %1602 = vector.extract_strided_slice %1570 {offsets = [0, 0], sizes = [2, 32], strides = [1, 1]} : vector<2x128xf32> to vector<2x32xf32>
    %1603 = arith.negf %1602 : vector<2x32xf32>
    %1604 = math.exp %1603 : vector<2x32xf32>
    %cst_538 = arith.constant 1.000000e+00 : f32
    %1605 = vector.broadcast %cst_538 : f32 to vector<2x32xf32>
    %1606 = arith.addf %1605, %1604 : vector<2x32xf32>
    %1607 = arith.divf %1605, %1606 : vector<2x32xf32>
    %1608 = vector.extract_strided_slice %1570 {offsets = [0, 32], sizes = [2, 32], strides = [1, 1]} : vector<2x128xf32> to vector<2x32xf32>
    %1609 = arith.negf %1608 : vector<2x32xf32>
    %1610 = math.exp %1609 : vector<2x32xf32>
    %cst_539 = arith.constant 1.000000e+00 : f32
    %1611 = vector.broadcast %cst_539 : f32 to vector<2x32xf32>
    %1612 = arith.addf %1611, %1610 : vector<2x32xf32>
    %1613 = arith.divf %1611, %1612 : vector<2x32xf32>
    %1614 = vector.extract_strided_slice %1570 {offsets = [0, 64], sizes = [2, 32], strides = [1, 1]} : vector<2x128xf32> to vector<2x32xf32>
    %1615 = math.tanh %1614 : vector<2x32xf32>
    %1616 = vector.extract_strided_slice %1570 {offsets = [0, 96], sizes = [2, 32], strides = [1, 1]} : vector<2x128xf32> to vector<2x32xf32>
    %1617 = arith.negf %1616 : vector<2x32xf32>
    %1618 = math.exp %1617 : vector<2x32xf32>
    %cst_540 = arith.constant 1.000000e+00 : f32
    %1619 = vector.broadcast %cst_540 : f32 to vector<2x32xf32>
    %1620 = arith.addf %1619, %1618 : vector<2x32xf32>
    %1621 = arith.divf %1619, %1620 : vector<2x32xf32>
    %1622 = arith.mulf %1613, %1550 : vector<2x32xf32>
    %1623 = arith.mulf %1607, %1615 : vector<2x32xf32>
    %1624 = arith.addf %1622, %1623 : vector<2x32xf32>
    %1625 = math.tanh %1624 : vector<2x32xf32>
    %1626 = arith.mulf %1621, %1625 : vector<2x32xf32>
    %c0_i32_541 = arith.constant 0 : i32
    %1627 = vector.broadcast %c0_i32_541 : i32 to vector<2x1xi32>
    %1628 = arith.cmpi sgt, %0, %1627 : vector<2x1xi32>
    %cst_542 = arith.constant 0.000000e+00 : f32
    %1629 = vector.shape_cast %1628 : vector<2x1xi1> to vector<2x1xi1>
    %1630 = vector.broadcast %1629 : vector<2x1xi1> to vector<2x32xi1>
    %1631 = vector.broadcast %cst_542 : f32 to vector<2x32xf32>
    %1632 = arith.select %1630, %1626, %1631 : vector<2x32xi1>, vector<2x32xf32>
    %c7_543 = arith.constant 7 : index
    %c0_544 = arith.constant 0 : index
    %c0_545 = arith.constant 0 : index
    %1633 = vector.load %arg17[%c7_543, %c0_544, %c0_545] : memref<8x2x32xf32, #tpu.memory_space<vmem>>, vector<1x2x32xf32>
    %1634 = vector.shape_cast %1633 : vector<1x2x32xf32> to vector<2x32xf32>
    %1635 = vector.shape_cast %1601 : vector<2x32xf32> to vector<1x2x32xf32>
    tpu.vector_store %arg17[%c7_543, %c0_544, %c0_545], %1635 {strides = array<i32>} : memref<8x2x32xf32, #tpu.memory_space<vmem>>, vector<1x2x32xf32>,
    %c0_546 = arith.constant 0 : index
    %c0_547 = arith.constant 0 : index
    %c0_548 = arith.constant 0 : index
    %1636 = vector.load %arg18[%c0_546, %c0_547, %c0_548] : memref<8x2x32xf32, #tpu.memory_space<vmem>>, vector<1x2x32xf32>
    %1637 = vector.shape_cast %1636 : vector<1x2x32xf32> to vector<2x32xf32>
    %1638 = vector.shape_cast %1632 : vector<2x32xf32> to vector<1x2x32xf32>
    tpu.vector_store %arg18[%c0_546, %c0_547, %c0_548], %1638 {strides = array<i32>} : memref<8x2x32xf32, #tpu.memory_space<vmem>>, vector<1x2x32xf32>,
    %c0_549 = arith.constant 0 : index
    %c0_550 = arith.constant 0 : index
    %c0_551 = arith.constant 0 : index
    %1639 = vector.load %arg17[%c0_549, %c0_550, %c0_551] : memref<8x2x32xf32, #tpu.memory_space<vmem>>, vector<1x2x32xf32>
    %1640 = vector.shape_cast %1639 : vector<1x2x32xf32> to vector<2x32xf32>
    %c0_552 = arith.constant 0 : index
    %c0_553 = arith.constant 0 : index
    %c0_554 = arith.constant 0 : index
    %1641 = vector.load %arg18[%c0_552, %c0_553, %c0_554] : memref<8x2x32xf32, #tpu.memory_space<vmem>>, vector<1x2x32xf32>
    %1642 = vector.shape_cast %1641 : vector<1x2x32xf32> to vector<2x32xf32>
    %1643 = tpu.concatenate %1640, %1642 in 1 : vector<2x32xf32>, vector<2x32xf32> -> vector<2x64xf32>
    %c0_555 = arith.constant 0 : index
    %c0_556 = arith.constant 0 : index
    %c0_557 = arith.constant 0 : index
    %1644 = vector.load %arg14[%c0_555, %c0_556, %c0_557] : memref<8x2x64xf32, #tpu.memory_space<vmem>>, vector<1x2x64xf32>
    %1645 = vector.shape_cast %1644 : vector<1x2x64xf32> to vector<2x64xf32>
    %1646 = vector.shape_cast %1643 : vector<2x64xf32> to vector<1x2x64xf32>
    tpu.vector_store %arg14[%c0_555, %c0_556, %c0_557], %1646 {strides = array<i32>} : memref<8x2x64xf32, #tpu.memory_space<vmem>>, vector<1x2x64xf32>,
    %c1_558 = arith.constant 1 : index
    %c0_559 = arith.constant 0 : index
    %c0_560 = arith.constant 0 : index
    %1647 = vector.load %arg17[%c1_558, %c0_559, %c0_560] : memref<8x2x32xf32, #tpu.memory_space<vmem>>, vector<1x2x32xf32>
    %1648 = vector.shape_cast %1647 : vector<1x2x32xf32> to vector<2x32xf32>
    %c1_561 = arith.constant 1 : index
    %c0_562 = arith.constant 0 : index
    %c0_563 = arith.constant 0 : index
    %1649 = vector.load %arg18[%c1_561, %c0_562, %c0_563] : memref<8x2x32xf32, #tpu.memory_space<vmem>>, vector<1x2x32xf32>
    %1650 = vector.shape_cast %1649 : vector<1x2x32xf32> to vector<2x32xf32>
    %1651 = tpu.concatenate %1648, %1650 in 1 : vector<2x32xf32>, vector<2x32xf32> -> vector<2x64xf32>
    %c1_564 = arith.constant 1 : index
    %c0_565 = arith.constant 0 : index
    %c0_566 = arith.constant 0 : index
    %1652 = vector.load %arg14[%c1_564, %c0_565, %c0_566] : memref<8x2x64xf32, #tpu.memory_space<vmem>>, vector<1x2x64xf32>
    %1653 = vector.shape_cast %1652 : vector<1x2x64xf32> to vector<2x64xf32>
    %1654 = vector.shape_cast %1651 : vector<2x64xf32> to vector<1x2x64xf32>
    tpu.vector_store %arg14[%c1_564, %c0_565, %c0_566], %1654 {strides = array<i32>} : memref<8x2x64xf32, #tpu.memory_space<vmem>>, vector<1x2x64xf32>,
    %c2_567 = arith.constant 2 : index
    %c0_568 = arith.constant 0 : index
    %c0_569 = arith.constant 0 : index
    %1655 = vector.load %arg17[%c2_567, %c0_568, %c0_569] : memref<8x2x32xf32, #tpu.memory_space<vmem>>, vector<1x2x32xf32>
    %1656 = vector.shape_cast %1655 : vector<1x2x32xf32> to vector<2x32xf32>
    %c2_570 = arith.constant 2 : index
    %c0_571 = arith.constant 0 : index
    %c0_572 = arith.constant 0 : index
    %1657 = vector.load %arg18[%c2_570, %c0_571, %c0_572] : memref<8x2x32xf32, #tpu.memory_space<vmem>>, vector<1x2x32xf32>
    %1658 = vector.shape_cast %1657 : vector<1x2x32xf32> to vector<2x32xf32>
    %1659 = tpu.concatenate %1656, %1658 in 1 : vector<2x32xf32>, vector<2x32xf32> -> vector<2x64xf32>
    %c2_573 = arith.constant 2 : index
    %c0_574 = arith.constant 0 : index
    %c0_575 = arith.constant 0 : index
    %1660 = vector.load %arg14[%c2_573, %c0_574, %c0_575] : memref<8x2x64xf32, #tpu.memory_space<vmem>>, vector<1x2x64xf32>
    %1661 = vector.shape_cast %1660 : vector<1x2x64xf32> to vector<2x64xf32>
    %1662 = vector.shape_cast %1659 : vector<2x64xf32> to vector<1x2x64xf32>
    tpu.vector_store %arg14[%c2_573, %c0_574, %c0_575], %1662 {strides = array<i32>} : memref<8x2x64xf32, #tpu.memory_space<vmem>>, vector<1x2x64xf32>,
    %c3_576 = arith.constant 3 : index
    %c0_577 = arith.constant 0 : index
    %c0_578 = arith.constant 0 : index
    %1663 = vector.load %arg17[%c3_576, %c0_577, %c0_578] : memref<8x2x32xf32, #tpu.memory_space<vmem>>, vector<1x2x32xf32>
    %1664 = vector.shape_cast %1663 : vector<1x2x32xf32> to vector<2x32xf32>
    %c3_579 = arith.constant 3 : index
    %c0_580 = arith.constant 0 : index
    %c0_581 = arith.constant 0 : index
    %1665 = vector.load %arg18[%c3_579, %c0_580, %c0_581] : memref<8x2x32xf32, #tpu.memory_space<vmem>>, vector<1x2x32xf32>
    %1666 = vector.shape_cast %1665 : vector<1x2x32xf32> to vector<2x32xf32>
    %1667 = tpu.concatenate %1664, %1666 in 1 : vector<2x32xf32>, vector<2x32xf32> -> vector<2x64xf32>
    %c3_582 = arith.constant 3 : index
    %c0_583 = arith.constant 0 : index
    %c0_584 = arith.constant 0 : index
    %1668 = vector.load %arg14[%c3_582, %c0_583, %c0_584] : memref<8x2x64xf32, #tpu.memory_space<vmem>>, vector<1x2x64xf32>
    %1669 = vector.shape_cast %1668 : vector<1x2x64xf32> to vector<2x64xf32>
    %1670 = vector.shape_cast %1667 : vector<2x64xf32> to vector<1x2x64xf32>
    tpu.vector_store %arg14[%c3_582, %c0_583, %c0_584], %1670 {strides = array<i32>} : memref<8x2x64xf32, #tpu.memory_space<vmem>>, vector<1x2x64xf32>,
    %c4_585 = arith.constant 4 : index
    %c0_586 = arith.constant 0 : index
    %c0_587 = arith.constant 0 : index
    %1671 = vector.load %arg17[%c4_585, %c0_586, %c0_587] : memref<8x2x32xf32, #tpu.memory_space<vmem>>, vector<1x2x32xf32>
    %1672 = vector.shape_cast %1671 : vector<1x2x32xf32> to vector<2x32xf32>
    %c4_588 = arith.constant 4 : index
    %c0_589 = arith.constant 0 : index
    %c0_590 = arith.constant 0 : index
    %1673 = vector.load %arg18[%c4_588, %c0_589, %c0_590] : memref<8x2x32xf32, #tpu.memory_space<vmem>>, vector<1x2x32xf32>
    %1674 = vector.shape_cast %1673 : vector<1x2x32xf32> to vector<2x32xf32>
    %1675 = tpu.concatenate %1672, %1674 in 1 : vector<2x32xf32>, vector<2x32xf32> -> vector<2x64xf32>
    %c4_591 = arith.constant 4 : index
    %c0_592 = arith.constant 0 : index
    %c0_593 = arith.constant 0 : index
    %1676 = vector.load %arg14[%c4_591, %c0_592, %c0_593] : memref<8x2x64xf32, #tpu.memory_space<vmem>>, vector<1x2x64xf32>
    %1677 = vector.shape_cast %1676 : vector<1x2x64xf32> to vector<2x64xf32>
    %1678 = vector.shape_cast %1675 : vector<2x64xf32> to vector<1x2x64xf32>
    tpu.vector_store %arg14[%c4_591, %c0_592, %c0_593], %1678 {strides = array<i32>} : memref<8x2x64xf32, #tpu.memory_space<vmem>>, vector<1x2x64xf32>,
    %c5_594 = arith.constant 5 : index
    %c0_595 = arith.constant 0 : index
    %c0_596 = arith.constant 0 : index
    %1679 = vector.load %arg17[%c5_594, %c0_595, %c0_596] : memref<8x2x32xf32, #tpu.memory_space<vmem>>, vector<1x2x32xf32>
    %1680 = vector.shape_cast %1679 : vector<1x2x32xf32> to vector<2x32xf32>
    %c5_597 = arith.constant 5 : index
    %c0_598 = arith.constant 0 : index
    %c0_599 = arith.constant 0 : index
    %1681 = vector.load %arg18[%c5_597, %c0_598, %c0_599] : memref<8x2x32xf32, #tpu.memory_space<vmem>>, vector<1x2x32xf32>
    %1682 = vector.shape_cast %1681 : vector<1x2x32xf32> to vector<2x32xf32>
    %1683 = tpu.concatenate %1680, %1682 in 1 : vector<2x32xf32>, vector<2x32xf32> -> vector<2x64xf32>
    %c5_600 = arith.constant 5 : index
    %c0_601 = arith.constant 0 : index
    %c0_602 = arith.constant 0 : index
    %1684 = vector.load %arg14[%c5_600, %c0_601, %c0_602] : memref<8x2x64xf32, #tpu.memory_space<vmem>>, vector<1x2x64xf32>
    %1685 = vector.shape_cast %1684 : vector<1x2x64xf32> to vector<2x64xf32>
    %1686 = vector.shape_cast %1683 : vector<2x64xf32> to vector<1x2x64xf32>
    tpu.vector_store %arg14[%c5_600, %c0_601, %c0_602], %1686 {strides = array<i32>} : memref<8x2x64xf32, #tpu.memory_space<vmem>>, vector<1x2x64xf32>,
    %c6_603 = arith.constant 6 : index
    %c0_604 = arith.constant 0 : index
    %c0_605 = arith.constant 0 : index
    %1687 = vector.load %arg17[%c6_603, %c0_604, %c0_605] : memref<8x2x32xf32, #tpu.memory_space<vmem>>, vector<1x2x32xf32>
    %1688 = vector.shape_cast %1687 : vector<1x2x32xf32> to vector<2x32xf32>
    %c6_606 = arith.constant 6 : index
    %c0_607 = arith.constant 0 : index
    %c0_608 = arith.constant 0 : index
    %1689 = vector.load %arg18[%c6_606, %c0_607, %c0_608] : memref<8x2x32xf32, #tpu.memory_space<vmem>>, vector<1x2x32xf32>
    %1690 = vector.shape_cast %1689 : vector<1x2x32xf32> to vector<2x32xf32>
    %1691 = tpu.concatenate %1688, %1690 in 1 : vector<2x32xf32>, vector<2x32xf32> -> vector<2x64xf32>
    %c6_609 = arith.constant 6 : index
    %c0_610 = arith.constant 0 : index
    %c0_611 = arith.constant 0 : index
    %1692 = vector.load %arg14[%c6_609, %c0_610, %c0_611] : memref<8x2x64xf32, #tpu.memory_space<vmem>>, vector<1x2x64xf32>
    %1693 = vector.shape_cast %1692 : vector<1x2x64xf32> to vector<2x64xf32>
    %1694 = vector.shape_cast %1691 : vector<2x64xf32> to vector<1x2x64xf32>
    tpu.vector_store %arg14[%c6_609, %c0_610, %c0_611], %1694 {strides = array<i32>} : memref<8x2x64xf32, #tpu.memory_space<vmem>>, vector<1x2x64xf32>,
    %c7_612 = arith.constant 7 : index
    %c0_613 = arith.constant 0 : index
    %c0_614 = arith.constant 0 : index
    %1695 = vector.load %arg17[%c7_612, %c0_613, %c0_614] : memref<8x2x32xf32, #tpu.memory_space<vmem>>, vector<1x2x32xf32>
    %1696 = vector.shape_cast %1695 : vector<1x2x32xf32> to vector<2x32xf32>
    %c7_615 = arith.constant 7 : index
    %c0_616 = arith.constant 0 : index
    %c0_617 = arith.constant 0 : index
    %1697 = vector.load %arg18[%c7_615, %c0_616, %c0_617] : memref<8x2x32xf32, #tpu.memory_space<vmem>>, vector<1x2x32xf32>
    %1698 = vector.shape_cast %1697 : vector<1x2x32xf32> to vector<2x32xf32>
    %1699 = tpu.concatenate %1696, %1698 in 1 : vector<2x32xf32>, vector<2x32xf32> -> vector<2x64xf32>
    %c7_618 = arith.constant 7 : index
    %c0_619 = arith.constant 0 : index
    %c0_620 = arith.constant 0 : index
    %1700 = vector.load %arg14[%c7_618, %c0_619, %c0_620] : memref<8x2x64xf32, #tpu.memory_space<vmem>>, vector<1x2x64xf32>
    %1701 = vector.shape_cast %1700 : vector<1x2x64xf32> to vector<2x64xf32>
    %1702 = vector.shape_cast %1699 : vector<2x64xf32> to vector<1x2x64xf32>
    tpu.vector_store %arg14[%c7_618, %c0_619, %c0_620], %1702 {strides = array<i32>} : memref<8x2x64xf32, #tpu.memory_space<vmem>>, vector<1x2x64xf32>,
    %1703 = tpu.concatenate %784, %821 in 1 : vector<2x32xf32>, vector<2x32xf32> -> vector<2x64xf32>
    %1704 = tpu.concatenate %787, %824 in 1 : vector<2x32xf32>, vector<2x32xf32> -> vector<2x64xf32>
    %1705 = tpu.concatenate %1703, %1704 in 0 : vector<2x64xf32>, vector<2x64xf32> -> vector<4x64xf32>
    %c0_621 = arith.constant 0 : index
    %c0_622 = arith.constant 0 : index
    %1706 = vector.load %arg12[%c0_621, %c0_622] : memref<64x32xf32, #tpu.memory_space<vmem>>, vector<64x32xf32>
    %cst_623 = arith.constant dense<0.000000e+00> : vector<4x32xf32>
    %1707 = tpu.matmul %1705, %1706, %cst_623 {dimension_numbers = #tpu.dot_dimension_numbers<[1], [0], [0], [1], [0, 0, 1, 1], [], []>} : vector<4x64xf32>, vector<64x32xf32>, vector<4x32xf32> -> vector<4x32xf32>
    %c0_624 = arith.constant 0 : index
    %c0_625 = arith.constant 0 : index
    %1708 = vector.load %arg13[%c0_624, %c0_625] : memref<1x32xf32, #tpu.memory_space<vmem>>, vector<1x32xf32>
    %1709 = vector.broadcast %1708 : vector<1x32xf32> to vector<4x32xf32>
    %1710 = arith.addf %1707, %1709 : vector<4x32xf32>
    %1711 = math.tanh %1710 : vector<4x32xf32>
    %c0_626 = arith.constant 0 : index
    %c0_627 = arith.constant 0 : index
    %1712 = vector.load %arg15[%c0_626, %c0_627] : memref<4x32xf32, #tpu.memory_space<vmem>>, vector<4x32xf32>
    tpu.vector_store %arg15[%c0_626, %c0_627], %1711 {strides = array<i32>} : memref<4x32xf32, #tpu.memory_space<vmem>>, vector<4x32xf32>,
    return
  }
}

</mosaic_0001>

<llo_original>
// kernel: encoder_rnn_forward.1
$region0: #{encoder_rnn_forward.1}
  #allocation0 [shape = 'u32[]', space=smem, size = 0x4, offset = 0x4, fixed_abs, tag = 'smem constant byte address 0x4 - core index']
  #allocation1 [shape = 'u32[144,128]{1,0:T(1,128)}', space=vmem, size = 0x12000, scoped, tag = 'internal scratch']
  #allocation2 [shape = 'f32[8,2,256]{2,1,0:T(2,128)}', space=vmem, size = 0x4000, scoped, tag = 'scratch operand']
  #allocation3 [shape = 'f32[8,2,32]{2,1,0:T(2,128)}', space=vmem, size = 0x2000, scoped, tag = 'scratch operand']
  #allocation4 [shape = 'f32[8,2,32]{2,1,0:T(2,128)}', space=vmem, size = 0x2000, scoped, tag = 'scratch operand']
  %s0 = inlined_call_operand.vmem [shape: f32[8,2,16], index: 0, kind: input, shape index: {}]
  %s1 = inlined_call_operand.vmem [shape: s32[2,1], index: 1, kind: input, shape index: {}]
  %s2 = inlined_call_operand.vmem [shape: f32[16,32], index: 2, kind: input, shape index: {}]
  %s3 = inlined_call_operand.vmem [shape: f32[1,32], index: 3, kind: input, shape index: {}]
  %s4 = inlined_call_operand.vmem [shape: f32[32,256], index: 4, kind: input, shape index: {}]
  %s5 = inlined_call_operand.vmem [shape: f32[1,256], index: 5, kind: input, shape index: {}]
  %s6 = inlined_call_operand.vmem [shape: f32[32,128], index: 6, kind: input, shape index: {}]
  %s7 = inlined_call_operand.vmem [shape: f32[32,128], index: 7, kind: input, shape index: {}]
  %s8 = inlined_call_operand.vmem [shape: f32[64,256], index: 8, kind: input, shape index: {}]
  %s9 = inlined_call_operand.vmem [shape: f32[1,256], index: 9, kind: input, shape index: {}]
  %s10 = inlined_call_operand.vmem [shape: f32[32,128], index: 10, kind: input, shape index: {}]
  %s11 = inlined_call_operand.vmem [shape: f32[32,128], index: 11, kind: input, shape index: {}]
  %s12 = inlined_call_operand.vmem [shape: f32[64,32], index: 12, kind: input, shape index: {}]
  %s13 = inlined_call_operand.vmem [shape: f32[1,32], index: 13, kind: input, shape index: {}]
  %s14 = inlined_call_operand.hbm [shape: f32[8,2,64], index: 14, kind: output, shape index: {0}]
  %s15 = inlined_call_operand.vmem [shape: f32[4,32], index: 15, kind: output, shape index: {1}]
  %16 = xla_tuple %s14, %s15
  %s17 = sld [smem:[#allocation0]]
  $region74: #{encoder_rnn_forward.1} parent=0
    _
  %s19 = ssub.s32 1, %s17
  %s20 = scalar_select 0, %s19, %s17
  $region1: #{encoder_rnn_forward.1} parent=0
    #allocation5 [shape = 'u8[8192]{0}', space=vmem, size = 0x2000, scoped, tag = 'output window, operand 0, single buffered']
    #allocation6 [shape = 's32[1]{0}', space=sflag, size = 0x4, scoped, tag = 'scoped memory for encoder_rnn_forward.1']
    %21 = vsyncpa [#allocation6], 0
    // Predicated region
    $region2: #{encoder_rnn_forward.1} parent=1 // pred_check
      _
    $region3: #{encoder_rnn_forward.1} parent=1 // pred_check_branch
      %23 = sbr.rel (0) target = $region5
    $region4: #{encoder_rnn_forward.1} parent=1 // pred_region
      _
    $region5: #{encoder_rnn_forward.1} parent=1 // pred_fallthru
      _
    // Predicated region
    $region6: #{encoder_rnn_forward.1} parent=1 // pred_check
      _
    $region7: #{encoder_rnn_forward.1} parent=1 // pred_check_branch
      %25 = sbr.rel (0) target = $region9
    $region8: #{encoder_rnn_forward.1} parent=1 // pred_region
      _
    $region9: #{encoder_rnn_forward.1} parent=1 // pred_fallthru
      _
    // Predicated region
    $region10: #{encoder_rnn_forward.1} parent=1 // pred_check
      _
    $region11: #{encoder_rnn_forward.1} parent=1 // pred_check_branch
      %27 = sbr.rel (0) target = $region13
    $region12: #{encoder_rnn_forward.1} parent=1 // pred_region
      _
    $region13: #{encoder_rnn_forward.1} parent=1 // pred_fallthru
      _
    // Predicated region
    $region14: #{encoder_rnn_forward.1} parent=1 // pred_check
      _
    $region15: #{encoder_rnn_forward.1} parent=1 // pred_check_branch
      %29 = sbr.rel (0) target = $region17
    $region16: #{encoder_rnn_forward.1} parent=1 // pred_region
      _
    $region17: #{encoder_rnn_forward.1} parent=1 // pred_fallthru
      _
    // Predicated region
    $region18: #{encoder_rnn_forward.1} parent=1 // pred_check
      _
    $region19: #{encoder_rnn_forward.1} parent=1 // pred_check_branch
      %31 = sbr.rel (0) target = $region21
    $region20: #{encoder_rnn_forward.1} parent=1 // pred_region
      _
    $region21: #{encoder_rnn_forward.1} parent=1 // pred_fallthru
      _
    // Predicated region
    $region22: #{encoder_rnn_forward.1} parent=1 // pred_check
      _
    $region23: #{encoder_rnn_forward.1} parent=1 // pred_check_branch
      %33 = sbr.rel (0) target = $region25
    $region24: #{encoder_rnn_forward.1} parent=1 // pred_region
      _
    $region25: #{encoder_rnn_forward.1} parent=1 // pred_fallthru
      _
    // Predicated region
    $region26: #{encoder_rnn_forward.1} parent=1 // pred_check
      _
    $region27: #{encoder_rnn_forward.1} parent=1 // pred_check_branch
      %35 = sbr.rel (0) target = $region29
    $region28: #{encoder_rnn_forward.1} parent=1 // pred_region
      _
    $region29: #{encoder_rnn_forward.1} parent=1 // pred_fallthru
      _
    // Predicated region
    $region30: #{encoder_rnn_forward.1} parent=1 // pred_check
      _
    $region31: #{encoder_rnn_forward.1} parent=1 // pred_check_branch
      %37 = sbr.rel (0) target = $region33
    $region32: #{encoder_rnn_forward.1} parent=1 // pred_region
      _
    $region33: #{encoder_rnn_forward.1} parent=1 // pred_fallthru
      _
    // Predicated region
    $region34: #{encoder_rnn_forward.1} parent=1 // pred_check
      _
    $region35: #{encoder_rnn_forward.1} parent=1 // pred_check_branch
      %39 = sbr.rel (0) target = $region37
    $region36: #{encoder_rnn_forward.1} parent=1 // pred_region
      _
    $region37: #{encoder_rnn_forward.1} parent=1 // pred_fallthru
      _
    // Predicated region
    $region38: #{encoder_rnn_forward.1} parent=1 // pred_check
      _
    $region39: #{encoder_rnn_forward.1} parent=1 // pred_check_branch
      %41 = sbr.rel (0) target = $region41
    $region40: #{encoder_rnn_forward.1} parent=1 // pred_region
      _
    $region41: #{encoder_rnn_forward.1} parent=1 // pred_fallthru
      _
    // Predicated region
    $region42: #{encoder_rnn_forward.1} parent=1 // pred_check
      _
    $region43: #{encoder_rnn_forward.1} parent=1 // pred_check_branch
      %43 = sbr.rel (0) target = $region45
    $region44: #{encoder_rnn_forward.1} parent=1 // pred_region
      _
    $region45: #{encoder_rnn_forward.1} parent=1 // pred_fallthru
      _
    // Predicated region
    $region46: #{encoder_rnn_forward.1} parent=1 // pred_check
      _
    $region47: #{encoder_rnn_forward.1} parent=1 // pred_check_branch
      %45 = sbr.rel (0) target = $region49
    $region48: #{encoder_rnn_forward.1} parent=1 // pred_region
      _
    $region49: #{encoder_rnn_forward.1} parent=1 // pred_fallthru
      _
    // Predicated region
    $region50: #{encoder_rnn_forward.1} parent=1 // pred_check
      _
    $region51: #{encoder_rnn_forward.1} parent=1 // pred_check_branch
      %47 = sbr.rel (0) target = $region53
    $region52: #{encoder_rnn_forward.1} parent=1 // pred_region
      _
    $region53: #{encoder_rnn_forward.1} parent=1 // pred_fallthru
      _
    // Predicated region
    $region54: #{encoder_rnn_forward.1} parent=1 // pred_check
      _
    $region55: #{encoder_rnn_forward.1} parent=1 // pred_check_branch
      %49 = sbr.rel (0) target = $region57
    $region56: #{encoder_rnn_forward.1} parent=1 // pred_region
      _
    $region57: #{encoder_rnn_forward.1} parent=1 // pred_fallthru
      _
    %v50 = vld [vmem:[%s1] sm:$0x3]
    %v51 = vld [vmem:[%s4] sm:$0xff]
    %v52 = vld [vmem:[%s4 + $0x8] sm:$0xff]
    %v53 = vld [vmem:[%s4 + $0x10] sm:$0xff]
    %v54 = vld [vmem:[%s4 + $0x18] sm:$0xff]
    %v55 = vld [vmem:[%s4 + $0x20] sm:$0xff]
    %v56 = vld [vmem:[%s4 + $0x28] sm:$0xff]
    %v57 = vld [vmem:[%s4 + $0x30] sm:$0xff]
    %v58 = vld [vmem:[%s4 + $0x38] sm:$0xff]
    %v59 = vld [vmem:[%s5] sm:$0x3]
    %v60 = vld [vmem:[%s2] sm:$0xff]
    %v61 = vld [vmem:[%s2 + $0x8] sm:$0xff]
    %v62 = vld [vmem:[%s3] sm:$0x1]
    %v63 = vld [vmem:[%s0] sm:$0x3]
    %v65 = vlaneseq
    %v66 = vshrl.u32 %v65, 7
    %v67 = vsub.s32 0, %v66
    %v68 = vrot.slane %v62, %v67
    %vm70 = vcmask 130048
    %v72 = vsel %vm70, %v63, 0
    %74 = vmatprep.subr.mxu0 0.0
    %75 = vmatpush1.msra.mxu0 0.0
    %76 = vmatprep.subr.mxu0 0.0
    %77 = vmatpush1.msra.mxu0 0.0
    %78 = vmatprep.subr.mxu0 0.0
    %79 = vmatpush1.msra.mxu0 0.0
    %80 = vmatprep.subr.mxu0 0.0
    %81 = vmatpush1.msra.mxu0 0.0
    %82 = vmatprep.subr.mxu0 0.0
    %83 = vmatpush1.msra.mxu0 0.0
    %84 = vmatprep.subr.mxu0 0.0
    %85 = vmatpush1.msra.mxu0 0.0
    %86 = vmatprep.subr.mxu0 0.0
    %87 = vmatpush1.msra.mxu0 0.0
    %88 = vmatprep.subr.mxu0 0.0
    %89 = vmatpush1.msra.mxu0 0.0
    %90 = vmatprep.subr.mxu0 0.0
    %91 = vmatpush1.msra.mxu0 0.0
    %92 = vmatprep.subr.mxu0 0.0
    %93 = vmatpush1.msra.mxu0 0.0
    %94 = vmatprep.subr.mxu0 0.0
    %95 = vmatpush1.msra.mxu0 0.0
    %96 = vmatprep.subr.mxu0 0.0
    %97 = vmatpush1.msra.mxu0 0.0
    %98 = vmatprep.subr.mxu0 0.0
    %99 = vmatpush1.msra.mxu0 0.0
    %100 = vmatprep.subr.mxu0 0.0
    %101 = vmatpush1.msra.mxu0 0.0
    %102 = vmatprep.subr.mxu0 0.0
    %103 = vmatpush1.msra.mxu0 %v61
    %104 = vmatprep.subr.mxu0 0.0
    %105 = vmatpush1.msra.mxu0 %v60
    %106 = vmatprep.subr.mxu0 0.0
    %107 = vmatpush2.msra.mxu0 0.0
    %108 = vmatprep.subr.mxu0 0.0
    %109 = vmatpush2.msra.mxu0 0.0
    %110 = vmatprep.subr.mxu0 0.0
    %111 = vmatpush2.msra.mxu0 0.0
    %112 = vmatprep.subr.mxu0 0.0
    %113 = vmatpush2.msra.mxu0 0.0
    %114 = vmatprep.subr.mxu0 0.0
    %115 = vmatpush2.msra.mxu0 0.0
    %116 = vmatprep.subr.mxu0 0.0
    %117 = vmatpush2.msra.mxu0 0.0
    %118 = vmatprep.subr.mxu0 0.0
    %119 = vmatpush2.msra.mxu0 0.0
    %120 = vmatprep.subr.mxu0 0.0
    %121 = vmatpush2.msra.mxu0 0.0
    %122 = vmatprep.subr.mxu0 0.0
    %123 = vmatpush2.msra.mxu0 0.0
    %124 = vmatprep.subr.mxu0 0.0
    %125 = vmatpush2.msra.mxu0 0.0
    %126 = vmatprep.subr.mxu0 0.0
    %127 = vmatpush2.msra.mxu0 0.0
    %128 = vmatprep.subr.mxu0 0.0
    %129 = vmatpush2.msra.mxu0 0.0
    %130 = vmatprep.subr.mxu0 0.0
    %131 = vmatpush2.msra.mxu0 0.0
    %132 = vmatprep.subr.mxu0 0.0
    %133 = vmatpush2.msra.mxu0 0.0
    %134 = vmatprep.subr.mxu0 0.0
    %135 = vmatpush2.msra.mxu0 0.0
    %136 = vmatprep.subr.mxu0 0.0
    %137 = vmatpush2.msra.mxu0 0.0
    %138 = vmatprep.mubr.f32.mxu0 0.0
    %139 = vmatmul.mubr.f32.gmra.mxu0 %v72
    %v140 = vpop.f32.mrf.mxu0
    %v141 = vadd.f32 %v68, %v140
    %v142 = vpop.f32.mrf.mxu0
    %143 = vdwg.mxu0
    %v144 = vmax.f32 %v141, 0.0
    %v146 = vlaneseq
    %v147 = vshrl.u32 %v146, 7
    %v148 = vsub.s32 0, %v147
    %v149 = vrot.slane %v59, %v148
    %v150 = vlaneseq
    %v151 = vshrl.u32 %v150, 7
    %v152 = vsub.s32 1, %v151
    %v153 = vrot.slane %v59, %v152
    %vm156 = vcmask 261120
    %v158 = vsel %vm156, %v144, 0
    %160 = vmatprep.subr.mxu0 0.0
    %161 = vmatpush1.msra.mxu0 0.0
    %162 = vmatprep.subr.mxu0 0.0
    %163 = vmatpush1.msra.mxu0 0.0
    %164 = vmatprep.subr.mxu0 0.0
    %165 = vmatpush1.msra.mxu0 0.0
    %166 = vmatprep.subr.mxu0 0.0
    %167 = vmatpush1.msra.mxu0 0.0
    %168 = vmatprep.subr.mxu0 0.0
    %169 = vmatpush1.msra.mxu0 0.0
    %170 = vmatprep.subr.mxu0 0.0
    %171 = vmatpush1.msra.mxu0 0.0
    %172 = vmatprep.subr.mxu0 0.0
    %173 = vmatpush1.msra.mxu0 0.0
    %174 = vmatprep.subr.mxu0 0.0
    %175 = vmatpush1.msra.mxu0 0.0
    %176 = vmatprep.subr.mxu0 0.0
    %177 = vmatpush1.msra.mxu0 0.0
    %178 = vmatprep.subr.mxu0 0.0
    %179 = vmatpush1.msra.mxu0 0.0
    %180 = vmatprep.subr.mxu0 0.0
    %181 = vmatpush1.msra.mxu0 0.0
    %182 = vmatprep.subr.mxu0 0.0
    %183 = vmatpush1.msra.mxu0 0.0
    %184 = vmatprep.subr.mxu0 %v58
    %185 = vmatpush1.msra.mxu0 %v57
    %186 = vmatprep.subr.mxu0 %v56
    %187 = vmatpush1.msra.mxu0 %v55
    %188 = vmatprep.subr.mxu0 %v54
    %189 = vmatpush1.msra.mxu0 %v53
    %190 = vmatprep.subr.mxu0 %v52
    %191 = vmatpush1.msra.mxu0 %v51
    %192 = vmatprep.subr.mxu0 0.0
    %193 = vmatpush2.msra.mxu0 0.0
    %194 = vmatprep.subr.mxu0 0.0
    %195 = vmatpush2.msra.mxu0 0.0
    %196 = vmatprep.subr.mxu0 0.0
    %197 = vmatpush2.msra.mxu0 0.0
    %198 = vmatprep.subr.mxu0 0.0
    %199 = vmatpush2.msra.mxu0 0.0
    %200 = vmatprep.subr.mxu0 0.0
    %201 = vmatpush2.msra.mxu0 0.0
    %202 = vmatprep.subr.mxu0 0.0
    %203 = vmatpush2.msra.mxu0 0.0
    %204 = vmatprep.subr.mxu0 0.0
    %205 = vmatpush2.msra.mxu0 0.0
    %206 = vmatprep.subr.mxu0 0.0
    %207 = vmatpush2.msra.mxu0 0.0
    %208 = vmatprep.subr.mxu0 0.0
    %209 = vmatpush2.msra.mxu0 0.0
    %210 = vmatprep.subr.mxu0 0.0
    %211 = vmatpush2.msra.mxu0 0.0
    %212 = vmatprep.subr.mxu0 0.0
    %213 = vmatpush2.msra.mxu0 0.0
    %214 = vmatprep.subr.mxu0 0.0
    %215 = vmatpush2.msra.mxu0 0.0
    %216 = vmatprep.subr.mxu0 0.0
    %217 = vmatpush2.msra.mxu0 0.0
    %218 = vmatprep.subr.mxu0 0.0
    %219 = vmatpush2.msra.mxu0 0.0
    %220 = vmatprep.subr.mxu0 0.0
    %221 = vmatpush2.msra.mxu0 0.0
    %222 = vmatprep.subr.mxu0 0.0
    %223 = vmatpush2.msra.mxu0 0.0
    %224 = vmatprep.mubr.f32.mxu0 0.0
    %225 = vmatmul.mubr.f32.gmra.mxu0 %v158
    %v226 = vpop.f32.mrf.mxu0
    %v227 = vadd.f32 %v149, %v226
    %v228 = vpop.f32.mrf.mxu0
    %v229 = vadd.f32 %v153, %v228
    %230 = vdwg.mxu0
    %v233 = vcombine.low %v227, %v229
    %v235 = vunpack.c.l.s4 1983009808
    %v236 = vunpack.c.0.s8 %v235
    %v237 = vlaneseq
    %v238 = vshrl.u32 %v237, 7
    %v239 = vsub.s32 %v236, %v238
    %v240 = vrot.slane %v233, %v239
    %242 = vst [vmem:[#allocation2] sm:$0xf] %v240
    %s243 = scalar_lea.vmem %s0, 2
    %v244 = vld [vmem:[%s243] sm:$0x3]
    %v246 = vsel %vm70, %v244, 0
    %248 = vmatprep.subr.mxu0 0.0
    %249 = vmatpush1.msra.mxu0 0.0
    %250 = vmatprep.subr.mxu0 0.0
    %251 = vmatpush1.msra.mxu0 0.0
    %252 = vmatprep.subr.mxu0 0.0
    %253 = vmatpush1.msra.mxu0 0.0
    %254 = vmatprep.subr.mxu0 0.0
    %255 = vmatpush1.msra.mxu0 0.0
    %256 = vmatprep.subr.mxu0 0.0
    %257 = vmatpush1.msra.mxu0 0.0
    %258 = vmatprep.subr.mxu0 0.0
    %259 = vmatpush1.msra.mxu0 0.0
    %260 = vmatprep.subr.mxu0 0.0
    %261 = vmatpush1.msra.mxu0 0.0
    %262 = vmatprep.subr.mxu0 0.0
    %263 = vmatpush1.msra.mxu0 0.0
    %264 = vmatprep.subr.mxu0 0.0
    %265 = vmatpush1.msra.mxu0 0.0
    %266 = vmatprep.subr.mxu0 0.0
    %267 = vmatpush1.msra.mxu0 0.0
    %268 = vmatprep.subr.mxu0 0.0
    %269 = vmatpush1.msra.mxu0 0.0
    %270 = vmatprep.subr.mxu0 0.0
    %271 = vmatpush1.msra.mxu0 0.0
    %272 = vmatprep.subr.mxu0 0.0
    %273 = vmatpush1.msra.mxu0 0.0
    %274 = vmatprep.subr.mxu0 0.0
    %275 = vmatpush1.msra.mxu0 0.0
    %276 = vmatprep.subr.mxu0 0.0
    %277 = vmatpush1.msra.mxu0 %v61
    %278 = vmatprep.subr.mxu0 0.0
    %279 = vmatpush1.msra.mxu0 %v60
    %280 = vmatprep.subr.mxu0 0.0
    %281 = vmatpush2.msra.mxu0 0.0
    %282 = vmatprep.subr.mxu0 0.0
    %283 = vmatpush2.msra.mxu0 0.0
    %284 = vmatprep.subr.mxu0 0.0
    %285 = vmatpush2.msra.mxu0 0.0
    %286 = vmatprep.subr.mxu0 0.0
    %287 = vmatpush2.msra.mxu0 0.0
    %288 = vmatprep.subr.mxu0 0.0
    %289 = vmatpush2.msra.mxu0 0.0
    %290 = vmatprep.subr.mxu0 0.0
    %291 = vmatpush2.msra.mxu0 0.0
    %292 = vmatprep.subr.mxu0 0.0
    %293 = vmatpush2.msra.mxu0 0.0
    %294 = vmatprep.subr.mxu0 0.0
    %295 = vmatpush2.msra.mxu0 0.0
    %296 = vmatprep.subr.mxu0 0.0
    %297 = vmatpush2.msra.mxu0 0.0
    %298 = vmatprep.subr.mxu0 0.0
    %299 = vmatpush2.msra.mxu0 0.0
    %300 = vmatprep.subr.mxu0 0.0
    %301 = vmatpush2.msra.mxu0 0.0
    %302 = vmatprep.subr.mxu0 0.0
    %303 = vmatpush2.msra.mxu0 0.0
    %304 = vmatprep.subr.mxu0 0.0
    %305 = vmatpush2.msra.mxu0 0.0
    %306 = vmatprep.subr.mxu0 0.0
    %307 = vmatpush2.msra.mxu0 0.0
    %308 = vmatprep.subr.mxu0 0.0
    %309 = vmatpush2.msra.mxu0 0.0
    %310 = vmatprep.subr.mxu0 0.0
    %311 = vmatpush2.msra.mxu0 0.0
    %312 = vmatprep.mubr.f32.mxu0 0.0
    %313 = vmatmul.mubr.f32.gmra.mxu0 %v246
    %v314 = vpop.f32.mrf.mxu0
    %v315 = vadd.f32 %v68, %v314
    %v316 = vpop.f32.mrf.mxu0
    %317 = vdwg.mxu0
    %v318 = vmax.f32 %v315, 0.0
    %v320 = vsel %vm156, %v318, 0
    %322 = vmatprep.subr.mxu0 0.0
    %323 = vmatpush1.msra.mxu0 0.0
    %324 = vmatprep.subr.mxu0 0.0
    %325 = vmatpush1.msra.mxu0 0.0
    %326 = vmatprep.subr.mxu0 0.0
    %327 = vmatpush1.msra.mxu0 0.0
    %328 = vmatprep.subr.mxu0 0.0
    %329 = vmatpush1.msra.mxu0 0.0
    %330 = vmatprep.subr.mxu0 0.0
    %331 = vmatpush1.msra.mxu0 0.0
    %332 = vmatprep.subr.mxu0 0.0
    %333 = vmatpush1.msra.mxu0 0.0
    %334 = vmatprep.subr.mxu0 0.0
    %335 = vmatpush1.msra.mxu0 0.0
    %336 = vmatprep.subr.mxu0 0.0
    %337 = vmatpush1.msra.mxu0 0.0
    %338 = vmatprep.subr.mxu0 0.0
    %339 = vmatpush1.msra.mxu0 0.0
    %340 = vmatprep.subr.mxu0 0.0
    %341 = vmatpush1.msra.mxu0 0.0
    %342 = vmatprep.subr.mxu0 0.0
    %343 = vmatpush1.msra.mxu0 0.0
    %344 = vmatprep.subr.mxu0 0.0
    %345 = vmatpush1.msra.mxu0 0.0
    %346 = vmatprep.subr.mxu0 %v58
    %347 = vmatpush1.msra.mxu0 %v57
    %348 = vmatprep.subr.mxu0 %v56
    %349 = vmatpush1.msra.mxu0 %v55
    %350 = vmatprep.subr.mxu0 %v54
    %351 = vmatpush1.msra.mxu0 %v53
    %352 = vmatprep.subr.mxu0 %v52
    %353 = vmatpush1.msra.mxu0 %v51
    %354 = vmatprep.subr.mxu0 0.0
    %355 = vmatpush2.msra.mxu0 0.0
    %356 = vmatprep.subr.mxu0 0.0
    %357 = vmatpush2.msra.mxu0 0.0
    %358 = vmatprep.subr.mxu0 0.0
    %359 = vmatpush2.msra.mxu0 0.0
    %360 = vmatprep.subr.mxu0 0.0
    %361 = vmatpush2.msra.mxu0 0.0
    %362 = vmatprep.subr.mxu0 0.0
    %363 = vmatpush2.msra.mxu0 0.0
    %364 = vmatprep.subr.mxu0 0.0
    %365 = vmatpush2.msra.mxu0 0.0
    %366 = vmatprep.subr.mxu0 0.0
    %367 = vmatpush2.msra.mxu0 0.0
    %368 = vmatprep.subr.mxu0 0.0
    %369 = vmatpush2.msra.mxu0 0.0
    %370 = vmatprep.subr.mxu0 0.0
    %371 = vmatpush2.msra.mxu0 0.0
    %372 = vmatprep.subr.mxu0 0.0
    %373 = vmatpush2.msra.mxu0 0.0
    %374 = vmatprep.subr.mxu0 0.0
    %375 = vmatpush2.msra.mxu0 0.0
    %376 = vmatprep.subr.mxu0 0.0
    %377 = vmatpush2.msra.mxu0 0.0
    %378 = vmatprep.subr.mxu0 0.0
    %379 = vmatpush2.msra.mxu0 0.0
    %380 = vmatprep.subr.mxu0 0.0
    %381 = vmatpush2.msra.mxu0 0.0
    %382 = vmatprep.subr.mxu0 0.0
    %383 = vmatpush2.msra.mxu0 0.0
    %384 = vmatprep.subr.mxu0 0.0
    %385 = vmatpush2.msra.mxu0 0.0
    %386 = vmatprep.mubr.f32.mxu0 0.0
    %387 = vmatmul.mubr.f32.gmra.mxu0 %v320
    %v388 = vpop.f32.mrf.mxu0
    %v389 = vadd.f32 %v149, %v388
    %v390 = vpop.f32.mrf.mxu0
    %v391 = vadd.f32 %v153, %v390
    %392 = vdwg.mxu0
    %v395 = vcombine.low %v389, %v391
    %v397 = vunpack.c.l.s4 1983009808
    %v398 = vunpack.c.0.s8 %v397
    %v399 = vlaneseq
    %v400 = vshrl.u32 %v399, 7
    %v401 = vsub.s32 %v398, %v400
    %v402 = vrot.slane %v395, %v401
    %s404 = scalar_lea.vmem [#allocation2], 4
    %405 = vst [vmem:[%s404] sm:$0xf] %v402
    %s406 = scalar_lea.vmem %s0, 4
    %v407 = vld [vmem:[%s406] sm:$0x3]
    %v409 = vsel %vm70, %v407, 0
    %411 = vmatprep.subr.mxu0 0.0
    %412 = vmatpush1.msra.mxu0 0.0
    %413 = vmatprep.subr.mxu0 0.0
    %414 = vmatpush1.msra.mxu0 0.0
    %415 = vmatprep.subr.mxu0 0.0
    %416 = vmatpush1.msra.mxu0 0.0
    %417 = vmatprep.subr.mxu0 0.0
    %418 = vmatpush1.msra.mxu0 0.0
    %419 = vmatprep.subr.mxu0 0.0
    %420 = vmatpush1.msra.mxu0 0.0
    %421 = vmatprep.subr.mxu0 0.0
    %422 = vmatpush1.msra.mxu0 0.0
    %423 = vmatprep.subr.mxu0 0.0
    %424 = vmatpush1.msra.mxu0 0.0
    %425 = vmatprep.subr.mxu0 0.0
    %426 = vmatpush1.msra.mxu0 0.0
    %427 = vmatprep.subr.mxu0 0.0
    %428 = vmatpush1.msra.mxu0 0.0
    %429 = vmatprep.subr.mxu0 0.0
    %430 = vmatpush1.msra.mxu0 0.0
    %431 = vmatprep.subr.mxu0 0.0
    %432 = vmatpush1.msra.mxu0 0.0
    %433 = vmatprep.subr.mxu0 0.0
    %434 = vmatpush1.msra.mxu0 0.0
    %435 = vmatprep.subr.mxu0 0.0
    %436 = vmatpush1.msra.mxu0 0.0
    %437 = vmatprep.subr.mxu0 0.0
    %438 = vmatpush1.msra.mxu0 0.0
    %439 = vmatprep.subr.mxu0 0.0
    %440 = vmatpush1.msra.mxu0 %v61
    %441 = vmatprep.subr.mxu0 0.0
    %442 = vmatpush1.msra.mxu0 %v60
    %443 = vmatprep.subr.mxu0 0.0
    %444 = vmatpush2.msra.mxu0 0.0
    %445 = vmatprep.subr.mxu0 0.0
    %446 = vmatpush2.msra.mxu0 0.0
    %447 = vmatprep.subr.mxu0 0.0
    %448 = vmatpush2.msra.mxu0 0.0
    %449 = vmatprep.subr.mxu0 0.0
    %450 = vmatpush2.msra.mxu0 0.0
    %451 = vmatprep.subr.mxu0 0.0
    %452 = vmatpush2.msra.mxu0 0.0
    %453 = vmatprep.subr.mxu0 0.0
    %454 = vmatpush2.msra.mxu0 0.0
    %455 = vmatprep.subr.mxu0 0.0
    %456 = vmatpush2.msra.mxu0 0.0
    %457 = vmatprep.subr.mxu0 0.0
    %458 = vmatpush2.msra.mxu0 0.0
    %459 = vmatprep.subr.mxu0 0.0
    %460 = vmatpush2.msra.mxu0 0.0
    %461 = vmatprep.subr.mxu0 0.0
    %462 = vmatpush2.msra.mxu0 0.0
    %463 = vmatprep.subr.mxu0 0.0
    %464 = vmatpush2.msra.mxu0 0.0
    %465 = vmatprep.subr.mxu0 0.0
    %466 = vmatpush2.msra.mxu0 0.0
    %467 = vmatprep.subr.mxu0 0.0
    %468 = vmatpush2.msra.mxu0 0.0
    %469 = vmatprep.subr.mxu0 0.0
    %470 = vmatpush2.msra.mxu0 0.0
    %471 = vmatprep.subr.mxu0 0.0
    %472 = vmatpush2.msra.mxu0 0.0
    %473 = vmatprep.subr.mxu0 0.0
    %474 = vmatpush2.msra.mxu0 0.0
    %475 = vmatprep.mubr.f32.mxu0 0.0
    %476 = vmatmul.mubr.f32.gmra.mxu0 %v409
    %v477 = vpop.f32.mrf.mxu0
    %v478 = vadd.f32 %v68, %v477
    %v479 = vpop.f32.mrf.mxu0
    %480 = vdwg.mxu0
    %v481 = vmax.f32 %v478, 0.0
    %v483 = vsel %vm156, %v481, 0
    %485 = vmatprep.subr.mxu0 0.0
    %486 = vmatpush1.msra.mxu0 0.0
    %487 = vmatprep.subr.mxu0 0.0
    %488 = vmatpush1.msra.mxu0 0.0
    %489 = vmatprep.subr.mxu0 0.0
    %490 = vmatpush1.msra.mxu0 0.0
    %491 = vmatprep.subr.mxu0 0.0
    %492 = vmatpush1.msra.mxu0 0.0
    %493 = vmatprep.subr.mxu0 0.0
    %494 = vmatpush1.msra.mxu0 0.0
    %495 = vmatprep.subr.mxu0 0.0
    %496 = vmatpush1.msra.mxu0 0.0
    %497 = vmatprep.subr.mxu0 0.0
    %498 = vmatpush1.msra.mxu0 0.0
    %499 = vmatprep.subr.mxu0 0.0
    %500 = vmatpush1.msra.mxu0 0.0
    %501 = vmatprep.subr.mxu0 0.0
    %502 = vmatpush1.msra.mxu0 0.0
    %503 = vmatprep.subr.mxu0 0.0
    %504 = vmatpush1.msra.mxu0 0.0
    %505 = vmatprep.subr.mxu0 0.0
    %506 = vmatpush1.msra.mxu0 0.0
    %507 = vmatprep.subr.mxu0 0.0
    %508 = vmatpush1.msra.mxu0 0.0
    %509 = vmatprep.subr.mxu0 %v58
    %510 = vmatpush1.msra.mxu0 %v57
    %511 = vmatprep.subr.mxu0 %v56
    %512 = vmatpush1.msra.mxu0 %v55
    %513 = vmatprep.subr.mxu0 %v54
    %514 = vmatpush1.msra.mxu0 %v53
    %515 = vmatprep.subr.mxu0 %v52
    %516 = vmatpush1.msra.mxu0 %v51
    %517 = vmatprep.subr.mxu0 0.0
    %518 = vmatpush2.msra.mxu0 0.0
    %519 = vmatprep.subr.mxu0 0.0
    %520 = vmatpush2.msra.mxu0 0.0
    %521 = vmatprep.subr.mxu0 0.0
    %522 = vmatpush2.msra.mxu0 0.0
    %523 = vmatprep.subr.mxu0 0.0
    %524 = vmatpush2.msra.mxu0 0.0
    %525 = vmatprep.subr.mxu0 0.0
    %526 = vmatpush2.msra.mxu0 0.0
    %527 = vmatprep.subr.mxu0 0.0
    %528 = vmatpush2.msra.mxu0 0.0
    %529 = vmatprep.subr.mxu0 0.0
    %530 = vmatpush2.msra.mxu0 0.0
    %531 = vmatprep.subr.mxu0 0.0
    %532 = vmatpush2.msra.mxu0 0.0
    %533 = vmatprep.subr.mxu0 0.0
    %534 = vmatpush2.msra.mxu0 0.0
    %535 = vmatprep.subr.mxu0 0.0
    %536 = vmatpush2.msra.mxu0 0.0
    %537 = vmatprep.subr.mxu0 0.0
    %538 = vmatpush2.msra.mxu0 0.0
    %539 = vmatprep.subr.mxu0 0.0
    %540 = vmatpush2.msra.mxu0 0.0
    %541 = vmatprep.subr.mxu0 0.0
    %542 = vmatpush2.msra.mxu0 0.0
    %543 = vmatprep.subr.mxu0 0.0
    %544 = vmatpush2.msra.mxu0 0.0
    %545 = vmatprep.subr.mxu0 0.0
    %546 = vmatpush2.msra.mxu0 0.0
    %547 = vmatprep.subr.mxu0 0.0
    %548 = vmatpush2.msra.mxu0 0.0
    %549 = vmatprep.mubr.f32.mxu0 0.0
    %550 = vmatmul.mubr.f32.gmra.mxu0 %v483
    %v551 = vpop.f32.mrf.mxu0
    %v552 = vadd.f32 %v149, %v551
    %v553 = vpop.f32.mrf.mxu0
    %v554 = vadd.f32 %v153, %v553
    %555 = vdwg.mxu0
    %v558 = vcombine.low %v552, %v554
    %v560 = vunpack.c.l.s4 1983009808
    %v561 = vunpack.c.0.s8 %v560
    %v562 = vlaneseq
    %v563 = vshrl.u32 %v562, 7
    %v564 = vsub.s32 %v561, %v563
    %v565 = vrot.slane %v558, %v564
    %s567 = scalar_lea.vmem [#allocation2], 8
    %568 = vst [vmem:[%s567] sm:$0xf] %v565
    %s569 = scalar_lea.vmem %s0, 6
    %v570 = vld [vmem:[%s569] sm:$0x3]
    %v572 = vsel %vm70, %v570, 0
    %574 = vmatprep.subr.mxu0 0.0
    %575 = vmatpush1.msra.mxu0 0.0
    %576 = vmatprep.subr.mxu0 0.0
    %577 = vmatpush1.msra.mxu0 0.0
    %578 = vmatprep.subr.mxu0 0.0
    %579 = vmatpush1.msra.mxu0 0.0
    %580 = vmatprep.subr.mxu0 0.0
    %581 = vmatpush1.msra.mxu0 0.0
    %582 = vmatprep.subr.mxu0 0.0
    %583 = vmatpush1.msra.mxu0 0.0
    %584 = vmatprep.subr.mxu0 0.0
    %585 = vmatpush1.msra.mxu0 0.0
    %586 = vmatprep.subr.mxu0 0.0
    %587 = vmatpush1.msra.mxu0 0.0
    %588 = vmatprep.subr.mxu0 0.0
    %589 = vmatpush1.msra.mxu0 0.0
    %590 = vmatprep.subr.mxu0 0.0
    %591 = vmatpush1.msra.mxu0 0.0
    %592 = vmatprep.subr.mxu0 0.0
    %593 = vmatpush1.msra.mxu0 0.0
    %594 = vmatprep.subr.mxu0 0.0
    %595 = vmatpush1.msra.mxu0 0.0
    %596 = vmatprep.subr.mxu0 0.0
    %597 = vmatpush1.msra.mxu0 0.0
    %598 = vmatprep.subr.mxu0 0.0
    %599 = vmatpush1.msra.mxu0 0.0
    %600 = vmatprep.subr.mxu0 0.0
    %601 = vmatpush1.msra.mxu0 0.0
    %602 = vmatprep.subr.mxu0 0.0
    %603 = vmatpush1.msra.mxu0 %v61
    %604 = vmatprep.subr.mxu0 0.0
    %605 = vmatpush1.msra.mxu0 %v60
    %606 = vmatprep.subr.mxu0 0.0
    %607 = vmatpush2.msra.mxu0 0.0
    %608 = vmatprep.subr.mxu0 0.0
    %609 = vmatpush2.msra.mxu0 0.0
    %610 = vmatprep.subr.mxu0 0.0
    %611 = vmatpush2.msra.mxu0 0.0
    %612 = vmatprep.subr.mxu0 0.0
    %613 = vmatpush2.msra.mxu0 0.0
    %614 = vmatprep.subr.mxu0 0.0
    %615 = vmatpush2.msra.mxu0 0.0
    %616 = vmatprep.subr.mxu0 0.0
    %617 = vmatpush2.msra.mxu0 0.0
    %618 = vmatprep.subr.mxu0 0.0
    %619 = vmatpush2.msra.mxu0 0.0
    %620 = vmatprep.subr.mxu0 0.0
    %621 = vmatpush2.msra.mxu0 0.0
    %622 = vmatprep.subr.mxu0 0.0
    %623 = vmatpush2.msra.mxu0 0.0
    %624 = vmatprep.subr.mxu0 0.0
    %625 = vmatpush2.msra.mxu0 0.0
    %626 = vmatprep.subr.mxu0 0.0
    %627 = vmatpush2.msra.mxu0 0.0
    %628 = vmatprep.subr.mxu0 0.0
    %629 = vmatpush2.msra.mxu0 0.0
    %630 = vmatprep.subr.mxu0 0.0
    %631 = vmatpush2.msra.mxu0 0.0
    %632 = vmatprep.subr.mxu0 0.0
    %633 = vmatpush2.msra.mxu0 0.0
    %634 = vmatprep.subr.mxu0 0.0
    %635 = vmatpush2.msra.mxu0 0.0
    %636 = vmatprep.subr.mxu0 0.0
    %637 = vmatpush2.msra.mxu0 0.0
    %638 = vmatprep.mubr.f32.mxu0 0.0
    %639 = vmatmul.mubr.f32.gmra.mxu0 %v572
    %v640 = vpop.f32.mrf.mxu0
    %v641 = vadd.f32 %v68, %v640
    %v642 = vpop.f32.mrf.mxu0
    %643 = vdwg.mxu0
    %v644 = vmax.f32 %v641, 0.0
    %v646 = vsel %vm156, %v644, 0
    %648 = vmatprep.subr.mxu0 0.0
    %649 = vmatpush1.msra.mxu0 0.0
    %650 = vmatprep.subr.mxu0 0.0
    %651 = vmatpush1.msra.mxu0 0.0
    %652 = vmatprep.subr.mxu0 0.0
    %653 = vmatpush1.msra.mxu0 0.0
    %654 = vmatprep.subr.mxu0 0.0
    %655 = vmatpush1.msra.mxu0 0.0
    %656 = vmatprep.subr.mxu0 0.0
    %657 = vmatpush1.msra.mxu0 0.0
    %658 = vmatprep.subr.mxu0 0.0
    %659 = vmatpush1.msra.mxu0 0.0
    %660 = vmatprep.subr.mxu0 0.0
    %661 = vmatpush1.msra.mxu0 0.0
    %662 = vmatprep.subr.mxu0 0.0
    %663 = vmatpush1.msra.mxu0 0.0
    %664 = vmatprep.subr.mxu0 0.0
    %665 = vmatpush1.msra.mxu0 0.0
    %666 = vmatprep.subr.mxu0 0.0
    %667 = vmatpush1.msra.mxu0 0.0
    %668 = vmatprep.subr.mxu0 0.0
    %669 = vmatpush1.msra.mxu0 0.0
    %670 = vmatprep.subr.mxu0 0.0
    %671 = vmatpush1.msra.mxu0 0.0
    %672 = vmatprep.subr.mxu0 %v58
    %673 = vmatpush1.msra.mxu0 %v57
    %674 = vmatprep.subr.mxu0 %v56
    %675 = vmatpush1.msra.mxu0 %v55
    %676 = vmatprep.subr.mxu0 %v54
    %677 = vmatpush1.msra.mxu0 %v53
    %678 = vmatprep.subr.mxu0 %v52
    %679 = vmatpush1.msra.mxu0 %v51
    %680 = vmatprep.subr.mxu0 0.0
    %681 = vmatpush2.msra.mxu0 0.0
    %682 = vmatprep.subr.mxu0 0.0
    %683 = vmatpush2.msra.mxu0 0.0
    %684 = vmatprep.subr.mxu0 0.0
    %685 = vmatpush2.msra.mxu0 0.0
    %686 = vmatprep.subr.mxu0 0.0
    %687 = vmatpush2.msra.mxu0 0.0
    %688 = vmatprep.subr.mxu0 0.0
    %689 = vmatpush2.msra.mxu0 0.0
    %690 = vmatprep.subr.mxu0 0.0
    %691 = vmatpush2.msra.mxu0 0.0
    %692 = vmatprep.subr.mxu0 0.0
    %693 = vmatpush2.msra.mxu0 0.0
    %694 = vmatprep.subr.mxu0 0.0
    %695 = vmatpush2.msra.mxu0 0.0
    %696 = vmatprep.subr.mxu0 0.0
    %697 = vmatpush2.msra.mxu0 0.0
    %698 = vmatprep.subr.mxu0 0.0
    %699 = vmatpush2.msra.mxu0 0.0
    %700 = vmatprep.subr.mxu0 0.0
    %701 = vmatpush2.msra.mxu0 0.0
    %702 = vmatprep.subr.mxu0 0.0
    %703 = vmatpush2.msra.mxu0 0.0
    %704 = vmatprep.subr.mxu0 0.0
    %705 = vmatpush2.msra.mxu0 0.0
    %706 = vmatprep.subr.mxu0 0.0
    %707 = vmatpush2.msra.mxu0 0.0
    %708 = vmatprep.subr.mxu0 0.0
    %709 = vmatpush2.msra.mxu0 0.0
    %710 = vmatprep.subr.mxu0 0.0
    %711 = vmatpush2.msra.mxu0 0.0
    %712 = vmatprep.mubr.f32.mxu0 0.0
    %713 = vmatmul.mubr.f32.gmra.mxu0 %v646
    %v714 = vpop.f32.mrf.mxu0
    %v715 = vadd.f32 %v149, %v714
    %v716 = vpop.f32.mrf.mxu0
    %v717 = vadd.f32 %v153, %v716
    %718 = vdwg.mxu0
    %v721 = vcombine.low %v715, %v717
    %v723 = vunpack.c.l.s4 1983009808
    %v724 = vunpack.c.0.s8 %v723
    %v725 = vlaneseq
    %v726 = vshrl.u32 %v725, 7
    %v727 = vsub.s32 %v724, %v726
    %v728 = vrot.slane %v721, %v727
    %s730 = scalar_lea.vmem [#allocation2], 12
    %731 = vst [vmem:[%s730] sm:$0xf] %v728
    %s732 = scalar_lea.vmem %s0, 8
    %v733 = vld [vmem:[%s732] sm:$0x3]
    %v735 = vsel %vm70, %v733, 0
    %737 = vmatprep.subr.mxu0 0.0
    %738 = vmatpush1.msra.mxu0 0.0
    %739 = vmatprep.subr.mxu0 0.0
    %740 = vmatpush1.msra.mxu0 0.0
    %741 = vmatprep.subr.mxu0 0.0
    %742 = vmatpush1.msra.mxu0 0.0
    %743 = vmatprep.subr.mxu0 0.0
    %744 = vmatpush1.msra.mxu0 0.0
    %745 = vmatprep.subr.mxu0 0.0
    %746 = vmatpush1.msra.mxu0 0.0
    %747 = vmatprep.subr.mxu0 0.0
    %748 = vmatpush1.msra.mxu0 0.0
    %749 = vmatprep.subr.mxu0 0.0
    %750 = vmatpush1.msra.mxu0 0.0
    %751 = vmatprep.subr.mxu0 0.0
    %752 = vmatpush1.msra.mxu0 0.0
    %753 = vmatprep.subr.mxu0 0.0
    %754 = vmatpush1.msra.mxu0 0.0
    %755 = vmatprep.subr.mxu0 0.0
    %756 = vmatpush1.msra.mxu0 0.0
    %757 = vmatprep.subr.mxu0 0.0
    %758 = vmatpush1.msra.mxu0 0.0
    %759 = vmatprep.subr.mxu0 0.0
    %760 = vmatpush1.msra.mxu0 0.0
    %761 = vmatprep.subr.mxu0 0.0
    %762 = vmatpush1.msra.mxu0 0.0
    %763 = vmatprep.subr.mxu0 0.0
    %764 = vmatpush1.msra.mxu0 0.0
    %765 = vmatprep.subr.mxu0 0.0
    %766 = vmatpush1.msra.mxu0 %v61
    %767 = vmatprep.subr.mxu0 0.0
    %768 = vmatpush1.msra.mxu0 %v60
    %769 = vmatprep.subr.mxu0 0.0
    %770 = vmatpush2.msra.mxu0 0.0
    %771 = vmatprep.subr.mxu0 0.0
    %772 = vmatpush2.msra.mxu0 0.0
    %773 = vmatprep.subr.mxu0 0.0
    %774 = vmatpush2.msra.mxu0 0.0
    %775 = vmatprep.subr.mxu0 0.0
    %776 = vmatpush2.msra.mxu0 0.0
    %777 = vmatprep.subr.mxu0 0.0
    %778 = vmatpush2.msra.mxu0 0.0
    %779 = vmatprep.subr.mxu0 0.0
    %780 = vmatpush2.msra.mxu0 0.0
    %781 = vmatprep.subr.mxu0 0.0
    %782 = vmatpush2.msra.mxu0 0.0
    %783 = vmatprep.subr.mxu0 0.0
    %784 = vmatpush2.msra.mxu0 0.0
    %785 = vmatprep.subr.mxu0 0.0
    %786 = vmatpush2.msra.mxu0 0.0
    %787 = vmatprep.subr.mxu0 0.0
    %788 = vmatpush2.msra.mxu0 0.0
    %789 = vmatprep.subr.mxu0 0.0
    %790 = vmatpush2.msra.mxu0 0.0
    %791 = vmatprep.subr.mxu0 0.0
    %792 = vmatpush2.msra.mxu0 0.0
    %793 = vmatprep.subr.mxu0 0.0
    %794 = vmatpush2.msra.mxu0 0.0
    %795 = vmatprep.subr.mxu0 0.0
    %796 = vmatpush2.msra.mxu0 0.0
    %797 = vmatprep.subr.mxu0 0.0
    %798 = vmatpush2.msra.mxu0 0.0
    %799 = vmatprep.subr.mxu0 0.0
    %800 = vmatpush2.msra.mxu0 0.0
    %801 = vmatprep.mubr.f32.mxu0 0.0
    %802 = vmatmul.mubr.f32.gmra.mxu0 %v735
    %v803 = vpop.f32.mrf.mxu0
    %v804 = vadd.f32 %v68, %v803
    %v805 = vpop.f32.mrf.mxu0
    %806 = vdwg.mxu0
    %v807 = vmax.f32 %v804, 0.0
    %v809 = vsel %vm156, %v807, 0
    %811 = vmatprep.subr.mxu0 0.0
    %812 = vmatpush1.msra.mxu0 0.0
    %813 = vmatprep.subr.mxu0 0.0
    %814 = vmatpush1.msra.mxu0 0.0
    %815 = vmatprep.subr.mxu0 0.0
    %816 = vmatpush1.msra.mxu0 0.0
    %817 = vmatprep.subr.mxu0 0.0
    %818 = vmatpush1.msra.mxu0 0.0
    %819 = vmatprep.subr.mxu0 0.0
    %820 = vmatpush1.msra.mxu0 0.0
    %821 = vmatprep.subr.mxu0 0.0
    %822 = vmatpush1.msra.mxu0 0.0
    %823 = vmatprep.subr.mxu0 0.0
    %824 = vmatpush1.msra.mxu0 0.0
    %825 = vmatprep.subr.mxu0 0.0
    %826 = vmatpush1.msra.mxu0 0.0
    %827 = vmatprep.subr.mxu0 0.0
    %828 = vmatpush1.msra.mxu0 0.0
    %829 = vmatprep.subr.mxu0 0.0
    %830 = vmatpush1.msra.mxu0 0.0
    %831 = vmatprep.subr.mxu0 0.0
    %832 = vmatpush1.msra.mxu0 0.0
    %833 = vmatprep.subr.mxu0 0.0
    %834 = vmatpush1.msra.mxu0 0.0
    %835 = vmatprep.subr.mxu0 %v58
    %836 = vmatpush1.msra.mxu0 %v57
    %837 = vmatprep.subr.mxu0 %v56
    %838 = vmatpush1.msra.mxu0 %v55
    %839 = vmatprep.subr.mxu0 %v54
    %840 = vmatpush1.msra.mxu0 %v53
    %841 = vmatprep.subr.mxu0 %v52
    %842 = vmatpush1.msra.mxu0 %v51
    %843 = vmatprep.subr.mxu0 0.0
    %844 = vmatpush2.msra.mxu0 0.0
    %845 = vmatprep.subr.mxu0 0.0
    %846 = vmatpush2.msra.mxu0 0.0
    %847 = vmatprep.subr.mxu0 0.0
    %848 = vmatpush2.msra.mxu0 0.0
    %849 = vmatprep.subr.mxu0 0.0
    %850 = vmatpush2.msra.mxu0 0.0
    %851 = vmatprep.subr.mxu0 0.0
    %852 = vmatpush2.msra.mxu0 0.0
    %853 = vmatprep.subr.mxu0 0.0
    %854 = vmatpush2.msra.mxu0 0.0
    %855 = vmatprep.subr.mxu0 0.0
    %856 = vmatpush2.msra.mxu0 0.0
    %857 = vmatprep.subr.mxu0 0.0
    %858 = vmatpush2.msra.mxu0 0.0
    %859 = vmatprep.subr.mxu0 0.0
    %860 = vmatpush2.msra.mxu0 0.0
    %861 = vmatprep.subr.mxu0 0.0
    %862 = vmatpush2.msra.mxu0 0.0
    %863 = vmatprep.subr.mxu0 0.0
    %864 = vmatpush2.msra.mxu0 0.0
    %865 = vmatprep.subr.mxu0 0.0
    %866 = vmatpush2.msra.mxu0 0.0
    %867 = vmatprep.subr.mxu0 0.0
    %868 = vmatpush2.msra.mxu0 0.0
    %869 = vmatprep.subr.mxu0 0.0
    %870 = vmatpush2.msra.mxu0 0.0
    %871 = vmatprep.subr.mxu0 0.0
    %872 = vmatpush2.msra.mxu0 0.0
    %873 = vmatprep.subr.mxu0 0.0
    %874 = vmatpush2.msra.mxu0 0.0
    %875 = vmatprep.mubr.f32.mxu0 0.0
    %876 = vmatmul.mubr.f32.gmra.mxu0 %v809
    %v877 = vpop.f32.mrf.mxu0
    %v878 = vadd.f32 %v149, %v877
    %v879 = vpop.f32.mrf.mxu0
    %v880 = vadd.f32 %v153, %v879
    %881 = vdwg.mxu0
    %v884 = vcombine.low %v878, %v880
    %v886 = vunpack.c.l.s4 1983009808
    %v887 = vunpack.c.0.s8 %v886
    %v888 = vlaneseq
    %v889 = vshrl.u32 %v888, 7
    %v890 = vsub.s32 %v887, %v889
    %v891 = vrot.slane %v884, %v890
    %s893 = scalar_lea.vmem [#allocation2], 16
    %894 = vst [vmem:[%s893] sm:$0xf] %v891
    %s895 = scalar_lea.vmem %s0, 10
    %v896 = vld [vmem:[%s895] sm:$0x3]
    %v898 = vsel %vm70, %v896, 0
    %900 = vmatprep.subr.mxu0 0.0
    %901 = vmatpush1.msra.mxu0 0.0
    %902 = vmatprep.subr.mxu0 0.0
    %903 = vmatpush1.msra.mxu0 0.0
    %904 = vmatprep.subr.mxu0 0.0
    %905 = vmatpush1.msra.mxu0 0.0
    %906 = vmatprep.subr.mxu0 0.0
    %907 = vmatpush1.msra.mxu0 0.0
    %908 = vmatprep.subr.mxu0 0.0
    %909 = vmatpush1.msra.mxu0 0.0
    %910 = vmatprep.subr.mxu0 0.0
    %911 = vmatpush1.msra.mxu0 0.0
    %912 = vmatprep.subr.mxu0 0.0
    %913 = vmatpush1.msra.mxu0 0.0
    %914 = vmatprep.subr.mxu0 0.0
    %915 = vmatpush1.msra.mxu0 0.0
    %916 = vmatprep.subr.mxu0 0.0
    %917 = vmatpush1.msra.mxu0 0.0
    %918 = vmatprep.subr.mxu0 0.0
    %919 = vmatpush1.msra.mxu0 0.0
    %920 = vmatprep.subr.mxu0 0.0
    %921 = vmatpush1.msra.mxu0 0.0
    %922 = vmatprep.subr.mxu0 0.0
    %923 = vmatpush1.msra.mxu0 0.0
    %924 = vmatprep.subr.mxu0 0.0
    %925 = vmatpush1.msra.mxu0 0.0
    %926 = vmatprep.subr.mxu0 0.0
    %927 = vmatpush1.msra.mxu0 0.0
    %928 = vmatprep.subr.mxu0 0.0
    %929 = vmatpush1.msra.mxu0 %v61
    %930 = vmatprep.subr.mxu0 0.0
    %931 = vmatpush1.msra.mxu0 %v60
    %932 = vmatprep.subr.mxu0 0.0
    %933 = vmatpush2.msra.mxu0 0.0
    %934 = vmatprep.subr.mxu0 0.0
    %935 = vmatpush2.msra.mxu0 0.0
    %936 = vmatprep.subr.mxu0 0.0
    %937 = vmatpush2.msra.mxu0 0.0
    %938 = vmatprep.subr.mxu0 0.0
    %939 = vmatpush2.msra.mxu0 0.0
    %940 = vmatprep.subr.mxu0 0.0
    %941 = vmatpush2.msra.mxu0 0.0
    %942 = vmatprep.subr.mxu0 0.0
    %943 = vmatpush2.msra.mxu0 0.0
    %944 = vmatprep.subr.mxu0 0.0
    %945 = vmatpush2.msra.mxu0 0.0
    %946 = vmatprep.subr.mxu0 0.0
    %947 = vmatpush2.msra.mxu0 0.0
    %948 = vmatprep.subr.mxu0 0.0
    %949 = vmatpush2.msra.mxu0 0.0
    %950 = vmatprep.subr.mxu0 0.0
    %951 = vmatpush2.msra.mxu0 0.0
    %952 = vmatprep.subr.mxu0 0.0
    %953 = vmatpush2.msra.mxu0 0.0
    %954 = vmatprep.subr.mxu0 0.0
    %955 = vmatpush2.msra.mxu0 0.0
    %956 = vmatprep.subr.mxu0 0.0
    %957 = vmatpush2.msra.mxu0 0.0
    %958 = vmatprep.subr.mxu0 0.0
    %959 = vmatpush2.msra.mxu0 0.0
    %960 = vmatprep.subr.mxu0 0.0
    %961 = vmatpush2.msra.mxu0 0.0
    %962 = vmatprep.subr.mxu0 0.0
    %963 = vmatpush2.msra.mxu0 0.0
    %964 = vmatprep.mubr.f32.mxu0 0.0
    %965 = vmatmul.mubr.f32.gmra.mxu0 %v898
    %v966 = vpop.f32.mrf.mxu0
    %v967 = vadd.f32 %v68, %v966
    %v968 = vpop.f32.mrf.mxu0
    %969 = vdwg.mxu0
    %v970 = vmax.f32 %v967, 0.0
    %v972 = vsel %vm156, %v970, 0
    %974 = vmatprep.subr.mxu0 0.0
    %975 = vmatpush1.msra.mxu0 0.0
    %976 = vmatprep.subr.mxu0 0.0
    %977 = vmatpush1.msra.mxu0 0.0
    %978 = vmatprep.subr.mxu0 0.0
    %979 = vmatpush1.msra.mxu0 0.0
    %980 = vmatprep.subr.mxu0 0.0
    %981 = vmatpush1.msra.mxu0 0.0
    %982 = vmatprep.subr.mxu0 0.0
    %983 = vmatpush1.msra.mxu0 0.0
    %984 = vmatprep.subr.mxu0 0.0
    %985 = vmatpush1.msra.mxu0 0.0
    %986 = vmatprep.subr.mxu0 0.0
    %987 = vmatpush1.msra.mxu0 0.0
    %988 = vmatprep.subr.mxu0 0.0
    %989 = vmatpush1.msra.mxu0 0.0
    %990 = vmatprep.subr.mxu0 0.0
    %991 = vmatpush1.msra.mxu0 0.0
    %992 = vmatprep.subr.mxu0 0.0
    %993 = vmatpush1.msra.mxu0 0.0
    %994 = vmatprep.subr.mxu0 0.0
    %995 = vmatpush1.msra.mxu0 0.0
    %996 = vmatprep.subr.mxu0 0.0
    %997 = vmatpush1.msra.mxu0 0.0
    %998 = vmatprep.subr.mxu0 %v58
    %999 = vmatpush1.msra.mxu0 %v57
    %1000 = vmatprep.subr.mxu0 %v56
    %1001 = vmatpush1.msra.mxu0 %v55
    %1002 = vmatprep.subr.mxu0 %v54
    %1003 = vmatpush1.msra.mxu0 %v53
    %1004 = vmatprep.subr.mxu0 %v52
    %1005 = vmatpush1.msra.mxu0 %v51
    %1006 = vmatprep.subr.mxu0 0.0
    %1007 = vmatpush2.msra.mxu0 0.0
    %1008 = vmatprep.subr.mxu0 0.0
    %1009 = vmatpush2.msra.mxu0 0.0
    %1010 = vmatprep.subr.mxu0 0.0
    %1011 = vmatpush2.msra.mxu0 0.0
    %1012 = vmatprep.subr.mxu0 0.0
    %1013 = vmatpush2.msra.mxu0 0.0
    %1014 = vmatprep.subr.mxu0 0.0
    %1015 = vmatpush2.msra.mxu0 0.0
    %1016 = vmatprep.subr.mxu0 0.0
    %1017 = vmatpush2.msra.mxu0 0.0
    %1018 = vmatprep.subr.mxu0 0.0
    %1019 = vmatpush2.msra.mxu0 0.0
    %1020 = vmatprep.subr.mxu0 0.0
    %1021 = vmatpush2.msra.mxu0 0.0
    %1022 = vmatprep.subr.mxu0 0.0
    %1023 = vmatpush2.msra.mxu0 0.0
    %1024 = vmatprep.subr.mxu0 0.0
    %1025 = vmatpush2.msra.mxu0 0.0
    %1026 = vmatprep.subr.mxu0 0.0
    %1027 = vmatpush2.msra.mxu0 0.0
    %1028 = vmatprep.subr.mxu0 0.0
    %1029 = vmatpush2.msra.mxu0 0.0
    %1030 = vmatprep.subr.mxu0 0.0
    %1031 = vmatpush2.msra.mxu0 0.0
    %1032 = vmatprep.subr.mxu0 0.0
    %1033 = vmatpush2.msra.mxu0 0.0
    %1034 = vmatprep.subr.mxu0 0.0
    %1035 = vmatpush2.msra.mxu0 0.0
    %1036 = vmatprep.subr.mxu0 0.0
    %1037 = vmatpush2.msra.mxu0 0.0
    %1038 = vmatprep.mubr.f32.mxu0 0.0
    %1039 = vmatmul.mubr.f32.gmra.mxu0 %v972
    %v1040 = vpop.f32.mrf.mxu0
    %v1041 = vadd.f32 %v149, %v1040
    %v1042 = vpop.f32.mrf.mxu0
    %v1043 = vadd.f32 %v153, %v1042
    %1044 = vdwg.mxu0
    %v1047 = vcombine.low %v1041, %v1043
    %v1049 = vunpack.c.l.s4 1983009808
    %v1050 = vunpack.c.0.s8 %v1049
    %v1051 = vlaneseq
    %v1052 = vshrl.u32 %v1051, 7
    %v1053 = vsub.s32 %v1050, %v1052
    %v1054 = vrot.slane %v1047, %v1053
    %s1056 = scalar_lea.vmem [#allocation2], 20
    %1057 = vst [vmem:[%s1056] sm:$0xf] %v1054
    %s1058 = scalar_lea.vmem %s0, 12
    %v1059 = vld [vmem:[%s1058] sm:$0x3]
    %v1061 = vsel %vm70, %v1059, 0
    %1063 = vmatprep.subr.mxu0 0.0
    %1064 = vmatpush1.msra.mxu0 0.0
    %1065 = vmatprep.subr.mxu0 0.0
    %1066 = vmatpush1.msra.mxu0 0.0
    %1067 = vmatprep.subr.mxu0 0.0
    %1068 = vmatpush1.msra.mxu0 0.0
    %1069 = vmatprep.subr.mxu0 0.0
    %1070 = vmatpush1.msra.mxu0 0.0
    %1071 = vmatprep.subr.mxu0 0.0
    %1072 = vmatpush1.msra.mxu0 0.0
    %1073 = vmatprep.subr.mxu0 0.0
    %1074 = vmatpush1.msra.mxu0 0.0
    %1075 = vmatprep.subr.mxu0 0.0
    %1076 = vmatpush1.msra.mxu0 0.0
    %1077 = vmatprep.subr.mxu0 0.0
    %1078 = vmatpush1.msra.mxu0 0.0
    %1079 = vmatprep.subr.mxu0 0.0
    %1080 = vmatpush1.msra.mxu0 0.0
    %1081 = vmatprep.subr.mxu0 0.0
    %1082 = vmatpush1.msra.mxu0 0.0
    %1083 = vmatprep.subr.mxu0 0.0
    %1084 = vmatpush1.msra.mxu0 0.0
    %1085 = vmatprep.subr.mxu0 0.0
    %1086 = vmatpush1.msra.mxu0 0.0
    %1087 = vmatprep.subr.mxu0 0.0
    %1088 = vmatpush1.msra.mxu0 0.0
    %1089 = vmatprep.subr.mxu0 0.0
    %1090 = vmatpush1.msra.mxu0 0.0
    %1091 = vmatprep.subr.mxu0 0.0
    %1092 = vmatpush1.msra.mxu0 %v61
    %1093 = vmatprep.subr.mxu0 0.0
    %1094 = vmatpush1.msra.mxu0 %v60
    %1095 = vmatprep.subr.mxu0 0.0
    %1096 = vmatpush2.msra.mxu0 0.0
    %1097 = vmatprep.subr.mxu0 0.0
    %1098 = vmatpush2.msra.mxu0 0.0
    %1099 = vmatprep.subr.mxu0 0.0
    %1100 = vmatpush2.msra.mxu0 0.0
    %1101 = vmatprep.subr.mxu0 0.0
    %1102 = vmatpush2.msra.mxu0 0.0
    %1103 = vmatprep.subr.mxu0 0.0
    %1104 = vmatpush2.msra.mxu0 0.0
    %1105 = vmatprep.subr.mxu0 0.0
    %1106 = vmatpush2.msra.mxu0 0.0
    %1107 = vmatprep.subr.mxu0 0.0
    %1108 = vmatpush2.msra.mxu0 0.0
    %1109 = vmatprep.subr.mxu0 0.0
    %1110 = vmatpush2.msra.mxu0 0.0
    %1111 = vmatprep.subr.mxu0 0.0
    %1112 = vmatpush2.msra.mxu0 0.0
    %1113 = vmatprep.subr.mxu0 0.0
    %1114 = vmatpush2.msra.mxu0 0.0
    %1115 = vmatprep.subr.mxu0 0.0
    %1116 = vmatpush2.msra.mxu0 0.0
    %1117 = vmatprep.subr.mxu0 0.0
    %1118 = vmatpush2.msra.mxu0 0.0
    %1119 = vmatprep.subr.mxu0 0.0
    %1120 = vmatpush2.msra.mxu0 0.0
    %1121 = vmatprep.subr.mxu0 0.0
    %1122 = vmatpush2.msra.mxu0 0.0
    %1123 = vmatprep.subr.mxu0 0.0
    %1124 = vmatpush2.msra.mxu0 0.0
    %1125 = vmatprep.subr.mxu0 0.0
    %1126 = vmatpush2.msra.mxu0 0.0
    %1127 = vmatprep.mubr.f32.mxu0 0.0
    %1128 = vmatmul.mubr.f32.gmra.mxu0 %v1061
    %v1129 = vpop.f32.mrf.mxu0
    %v1130 = vadd.f32 %v68, %v1129
    %v1131 = vpop.f32.mrf.mxu0
    %1132 = vdwg.mxu0
    %v1133 = vmax.f32 %v1130, 0.0
    %v1135 = vsel %vm156, %v1133, 0
    %1137 = vmatprep.subr.mxu0 0.0
    %1138 = vmatpush1.msra.mxu0 0.0
    %1139 = vmatprep.subr.mxu0 0.0
    %1140 = vmatpush1.msra.mxu0 0.0
    %1141 = vmatprep.subr.mxu0 0.0
    %1142 = vmatpush1.msra.mxu0 0.0
    %1143 = vmatprep.subr.mxu0 0.0
    %1144 = vmatpush1.msra.mxu0 0.0
    %1145 = vmatprep.subr.mxu0 0.0
    %1146 = vmatpush1.msra.mxu0 0.0
    %1147 = vmatprep.subr.mxu0 0.0
    %1148 = vmatpush1.msra.mxu0 0.0
    %1149 = vmatprep.subr.mxu0 0.0
    %1150 = vmatpush1.msra.mxu0 0.0
    %1151 = vmatprep.subr.mxu0 0.0
    %1152 = vmatpush1.msra.mxu0 0.0
    %1153 = vmatprep.subr.mxu0 0.0
    %1154 = vmatpush1.msra.mxu0 0.0
    %1155 = vmatprep.subr.mxu0 0.0
    %1156 = vmatpush1.msra.mxu0 0.0
    %1157 = vmatprep.subr.mxu0 0.0
    %1158 = vmatpush1.msra.mxu0 0.0
    %1159 = vmatprep.subr.mxu0 0.0
    %1160 = vmatpush1.msra.mxu0 0.0
    %1161 = vmatprep.subr.mxu0 %v58
    %1162 = vmatpush1.msra.mxu0 %v57
    %1163 = vmatprep.subr.mxu0 %v56
    %1164 = vmatpush1.msra.mxu0 %v55
    %1165 = vmatprep.subr.mxu0 %v54
    %1166 = vmatpush1.msra.mxu0 %v53
    %1167 = vmatprep.subr.mxu0 %v52
    %1168 = vmatpush1.msra.mxu0 %v51
    %1169 = vmatprep.subr.mxu0 0.0
    %1170 = vmatpush2.msra.mxu0 0.0
    %1171 = vmatprep.subr.mxu0 0.0
    %1172 = vmatpush2.msra.mxu0 0.0
    %1173 = vmatprep.subr.mxu0 0.0
    %1174 = vmatpush2.msra.mxu0 0.0
    %1175 = vmatprep.subr.mxu0 0.0
    %1176 = vmatpush2.msra.mxu0 0.0
    %1177 = vmatprep.subr.mxu0 0.0
    %1178 = vmatpush2.msra.mxu0 0.0
    %1179 = vmatprep.subr.mxu0 0.0
    %1180 = vmatpush2.msra.mxu0 0.0
    %1181 = vmatprep.subr.mxu0 0.0
    %1182 = vmatpush2.msra.mxu0 0.0
    %1183 = vmatprep.subr.mxu0 0.0
    %1184 = vmatpush2.msra.mxu0 0.0
    %1185 = vmatprep.subr.mxu0 0.0
    %1186 = vmatpush2.msra.mxu0 0.0
    %1187 = vmatprep.subr.mxu0 0.0
    %1188 = vmatpush2.msra.mxu0 0.0
    %1189 = vmatprep.subr.mxu0 0.0
    %1190 = vmatpush2.msra.mxu0 0.0
    %1191 = vmatprep.subr.mxu0 0.0
    %1192 = vmatpush2.msra.mxu0 0.0
    %1193 = vmatprep.subr.mxu0 0.0
    %1194 = vmatpush2.msra.mxu0 0.0
    %1195 = vmatprep.subr.mxu0 0.0
    %1196 = vmatpush2.msra.mxu0 0.0
    %1197 = vmatprep.subr.mxu0 0.0
    %1198 = vmatpush2.msra.mxu0 0.0
    %1199 = vmatprep.subr.mxu0 0.0
    %1200 = vmatpush2.msra.mxu0 0.0
    %1201 = vmatprep.mubr.f32.mxu0 0.0
    %1202 = vmatmul.mubr.f32.gmra.mxu0 %v1135
    %v1203 = vpop.f32.mrf.mxu0
    %v1204 = vadd.f32 %v149, %v1203
    %v1205 = vpop.f32.mrf.mxu0
    %v1206 = vadd.f32 %v153, %v1205
    %1207 = vdwg.mxu0
    %v1210 = vcombine.low %v1204, %v1206
    %v1212 = vunpack.c.l.s4 1983009808
    %v1213 = vunpack.c.0.s8 %v1212
    %v1214 = vlaneseq
    %v1215 = vshrl.u32 %v1214, 7
    %v1216 = vsub.s32 %v1213, %v1215
    %v1217 = vrot.slane %v1210, %v1216
    %s1219 = scalar_lea.vmem [#allocation2], 24
    %1220 = vst [vmem:[%s1219] sm:$0xf] %v1217
    %s1221 = scalar_lea.vmem %s0, 14
    %v1222 = vld [vmem:[%s1221] sm:$0x3]
    %v1224 = vsel %vm70, %v1222, 0
    %1226 = vmatprep.subr.mxu0 0.0
    %1227 = vmatpush1.msra.mxu0 0.0
    %1228 = vmatprep.subr.mxu0 0.0
    %1229 = vmatpush1.msra.mxu0 0.0
    %1230 = vmatprep.subr.mxu0 0.0
    %1231 = vmatpush1.msra.mxu0 0.0
    %1232 = vmatprep.subr.mxu0 0.0
    %1233 = vmatpush1.msra.mxu0 0.0
    %1234 = vmatprep.subr.mxu0 0.0
    %1235 = vmatpush1.msra.mxu0 0.0
    %1236 = vmatprep.subr.mxu0 0.0
    %1237 = vmatpush1.msra.mxu0 0.0
    %1238 = vmatprep.subr.mxu0 0.0
    %1239 = vmatpush1.msra.mxu0 0.0
    %1240 = vmatprep.subr.mxu0 0.0
    %1241 = vmatpush1.msra.mxu0 0.0
    %1242 = vmatprep.subr.mxu0 0.0
    %1243 = vmatpush1.msra.mxu0 0.0
    %1244 = vmatprep.subr.mxu0 0.0
    %1245 = vmatpush1.msra.mxu0 0.0
    %1246 = vmatprep.subr.mxu0 0.0
    %1247 = vmatpush1.msra.mxu0 0.0
    %1248 = vmatprep.subr.mxu0 0.0
    %1249 = vmatpush1.msra.mxu0 0.0
    %1250 = vmatprep.subr.mxu0 0.0
    %1251 = vmatpush1.msra.mxu0 0.0
    %1252 = vmatprep.subr.mxu0 0.0
    %1253 = vmatpush1.msra.mxu0 0.0
    %1254 = vmatprep.subr.mxu0 0.0
    %1255 = vmatpush1.msra.mxu0 %v61
    %1256 = vmatprep.subr.mxu0 0.0
    %1257 = vmatpush1.msra.mxu0 %v60
    %1258 = vmatprep.subr.mxu0 0.0
    %1259 = vmatpush2.msra.mxu0 0.0
    %1260 = vmatprep.subr.mxu0 0.0
    %1261 = vmatpush2.msra.mxu0 0.0
    %1262 = vmatprep.subr.mxu0 0.0
    %1263 = vmatpush2.msra.mxu0 0.0
    %1264 = vmatprep.subr.mxu0 0.0
    %1265 = vmatpush2.msra.mxu0 0.0
    %1266 = vmatprep.subr.mxu0 0.0
    %1267 = vmatpush2.msra.mxu0 0.0
    %1268 = vmatprep.subr.mxu0 0.0
    %1269 = vmatpush2.msra.mxu0 0.0
    %1270 = vmatprep.subr.mxu0 0.0
    %1271 = vmatpush2.msra.mxu0 0.0
    %1272 = vmatprep.subr.mxu0 0.0
    %1273 = vmatpush2.msra.mxu0 0.0
    %1274 = vmatprep.subr.mxu0 0.0
    %1275 = vmatpush2.msra.mxu0 0.0
    %1276 = vmatprep.subr.mxu0 0.0
    %1277 = vmatpush2.msra.mxu0 0.0
    %1278 = vmatprep.subr.mxu0 0.0
    %1279 = vmatpush2.msra.mxu0 0.0
    %1280 = vmatprep.subr.mxu0 0.0
    %1281 = vmatpush2.msra.mxu0 0.0
    %1282 = vmatprep.subr.mxu0 0.0
    %1283 = vmatpush2.msra.mxu0 0.0
    %1284 = vmatprep.subr.mxu0 0.0
    %1285 = vmatpush2.msra.mxu0 0.0
    %1286 = vmatprep.subr.mxu0 0.0
    %1287 = vmatpush2.msra.mxu0 0.0
    %1288 = vmatprep.subr.mxu0 0.0
    %1289 = vmatpush2.msra.mxu0 0.0
    %1290 = vmatprep.mubr.f32.mxu0 0.0
    %1291 = vmatmul.mubr.f32.gmra.mxu0 %v1224
    %v1292 = vpop.f32.mrf.mxu0
    %v1293 = vadd.f32 %v68, %v1292
    %v1294 = vpop.f32.mrf.mxu0
    %1295 = vdwg.mxu0
    %v1296 = vmax.f32 %v1293, 0.0
    %v1298 = vsel %vm156, %v1296, 0
    %1300 = vmatprep.subr.mxu0 0.0
    %1301 = vmatpush1.msra.mxu0 0.0
    %1302 = vmatprep.subr.mxu0 0.0
    %1303 = vmatpush1.msra.mxu0 0.0
    %1304 = vmatprep.subr.mxu0 0.0
    %1305 = vmatpush1.msra.mxu0 0.0
    %1306 = vmatprep.subr.mxu0 0.0
    %1307 = vmatpush1.msra.mxu0 0.0
    %1308 = vmatprep.subr.mxu0 0.0
    %1309 = vmatpush1.msra.mxu0 0.0
    %1310 = vmatprep.subr.mxu0 0.0
    %1311 = vmatpush1.msra.mxu0 0.0
    %1312 = vmatprep.subr.mxu0 0.0
    %1313 = vmatpush1.msra.mxu0 0.0
    %1314 = vmatprep.subr.mxu0 0.0
    %1315 = vmatpush1.msra.mxu0 0.0
    %1316 = vmatprep.subr.mxu0 0.0
    %1317 = vmatpush1.msra.mxu0 0.0
    %1318 = vmatprep.subr.mxu0 0.0
    %1319 = vmatpush1.msra.mxu0 0.0
    %1320 = vmatprep.subr.mxu0 0.0
    %1321 = vmatpush1.msra.mxu0 0.0
    %1322 = vmatprep.subr.mxu0 0.0
    %1323 = vmatpush1.msra.mxu0 0.0
    %1324 = vmatprep.subr.mxu0 %v58
    %1325 = vmatpush1.msra.mxu0 %v57
    %1326 = vmatprep.subr.mxu0 %v56
    %1327 = vmatpush1.msra.mxu0 %v55
    %1328 = vmatprep.subr.mxu0 %v54
    %1329 = vmatpush1.msra.mxu0 %v53
    %1330 = vmatprep.subr.mxu0 %v52
    %1331 = vmatpush1.msra.mxu0 %v51
    %1332 = vmatprep.subr.mxu0 0.0
    %1333 = vmatpush2.msra.mxu0 0.0
    %1334 = vmatprep.subr.mxu0 0.0
    %1335 = vmatpush2.msra.mxu0 0.0
    %1336 = vmatprep.subr.mxu0 0.0
    %1337 = vmatpush2.msra.mxu0 0.0
    %1338 = vmatprep.subr.mxu0 0.0
    %1339 = vmatpush2.msra.mxu0 0.0
    %1340 = vmatprep.subr.mxu0 0.0
    %1341 = vmatpush2.msra.mxu0 0.0
    %1342 = vmatprep.subr.mxu0 0.0
    %1343 = vmatpush2.msra.mxu0 0.0
    %1344 = vmatprep.subr.mxu0 0.0
    %1345 = vmatpush2.msra.mxu0 0.0
    %1346 = vmatprep.subr.mxu0 0.0
    %1347 = vmatpush2.msra.mxu0 0.0
    %1348 = vmatprep.subr.mxu0 0.0
    %1349 = vmatpush2.msra.mxu0 0.0
    %1350 = vmatprep.subr.mxu0 0.0
    %1351 = vmatpush2.msra.mxu0 0.0
    %1352 = vmatprep.subr.mxu0 0.0
    %1353 = vmatpush2.msra.mxu0 0.0
    %1354 = vmatprep.subr.mxu0 0.0
    %1355 = vmatpush2.msra.mxu0 0.0
    %1356 = vmatprep.subr.mxu0 0.0
    %1357 = vmatpush2.msra.mxu0 0.0
    %1358 = vmatprep.subr.mxu0 0.0
    %1359 = vmatpush2.msra.mxu0 0.0
    %1360 = vmatprep.subr.mxu0 0.0
    %1361 = vmatpush2.msra.mxu0 0.0
    %1362 = vmatprep.subr.mxu0 0.0
    %1363 = vmatpush2.msra.mxu0 0.0
    %1364 = vmatprep.mubr.f32.mxu0 0.0
    %1365 = vmatmul.mubr.f32.gmra.mxu0 %v1298
    %v1366 = vpop.f32.mrf.mxu0
    %v1367 = vadd.f32 %v149, %v1366
    %v1368 = vpop.f32.mrf.mxu0
    %v1369 = vadd.f32 %v153, %v1368
    %1370 = vdwg.mxu0
    %v1373 = vcombine.low %v1367, %v1369
    %v1375 = vunpack.c.l.s4 1983009808
    %v1376 = vunpack.c.0.s8 %v1375
    %v1377 = vlaneseq
    %v1378 = vshrl.u32 %v1377, 7
    %v1379 = vsub.s32 %v1376, %v1378
    %v1380 = vrot.slane %v1373, %v1379
    %s1382 = scalar_lea.vmem [#allocation2], 28
    %1383 = vst [vmem:[%s1382] sm:$0xf] %v1380
    %v1384 = vld [vmem:[%s6] sm:$0xff]
    %v1385 = vld [vmem:[%s6 + $0x8] sm:$0xff]
    %v1386 = vld [vmem:[%s6 + $0x10] sm:$0xff]
    %v1387 = vld [vmem:[%s6 + $0x18] sm:$0xff]
    %v1388 = vld [vmem:[%s7] sm:$0xff]
    %v1389 = vld [vmem:[%s7 + $0x8] sm:$0xff]
    %v1390 = vld [vmem:[%s7 + $0x10] sm:$0xff]
    %v1391 = vld [vmem:[%s7 + $0x18] sm:$0xff]
    %v1392 = vld [vmem:[#allocation2] sm:$0xf]
    %v1394 = vsel %vm156, 0.0, 0
    %1396 = vmatprep.subr.mxu0 0.0
    %1397 = vmatpush1.msra.mxu0 0.0
    %1398 = vmatprep.subr.mxu0 0.0
    %1399 = vmatpush1.msra.mxu0 0.0
    %1400 = vmatprep.subr.mxu0 0.0
    %1401 = vmatpush1.msra.mxu0 0.0
    %1402 = vmatprep.subr.mxu0 0.0
    %1403 = vmatpush1.msra.mxu0 0.0
    %1404 = vmatprep.subr.mxu0 0.0
    %1405 = vmatpush1.msra.mxu0 0.0
    %1406 = vmatprep.subr.mxu0 0.0
    %1407 = vmatpush1.msra.mxu0 0.0
    %1408 = vmatprep.subr.mxu0 0.0
    %1409 = vmatpush1.msra.mxu0 0.0
    %1410 = vmatprep.subr.mxu0 0.0
    %1411 = vmatpush1.msra.mxu0 0.0
    %1412 = vmatprep.subr.mxu0 0.0
    %1413 = vmatpush1.msra.mxu0 0.0
    %1414 = vmatprep.subr.mxu0 0.0
    %1415 = vmatpush1.msra.mxu0 0.0
    %1416 = vmatprep.subr.mxu0 0.0
    %1417 = vmatpush1.msra.mxu0 0.0
    %1418 = vmatprep.subr.mxu0 0.0
    %1419 = vmatpush1.msra.mxu0 0.0
    %1420 = vmatprep.subr.mxu0 0.0
    %1421 = vmatpush1.msra.mxu0 %v1387
    %1422 = vmatprep.subr.mxu0 0.0
    %1423 = vmatpush1.msra.mxu0 %v1386
    %1424 = vmatprep.subr.mxu0 0.0
    %1425 = vmatpush1.msra.mxu0 %v1385
    %1426 = vmatprep.subr.mxu0 0.0
    %1427 = vmatpush1.msra.mxu0 %v1384
    %1428 = vmatprep.subr.mxu0 0.0
    %1429 = vmatpush2.msra.mxu0 0.0
    %1430 = vmatprep.subr.mxu0 0.0
    %1431 = vmatpush2.msra.mxu0 0.0
    %1432 = vmatprep.subr.mxu0 0.0
    %1433 = vmatpush2.msra.mxu0 0.0
    %1434 = vmatprep.subr.mxu0 0.0
    %1435 = vmatpush2.msra.mxu0 0.0
    %1436 = vmatprep.subr.mxu0 0.0
    %1437 = vmatpush2.msra.mxu0 0.0
    %1438 = vmatprep.subr.mxu0 0.0
    %1439 = vmatpush2.msra.mxu0 0.0
    %1440 = vmatprep.subr.mxu0 0.0
    %1441 = vmatpush2.msra.mxu0 0.0
    %1442 = vmatprep.subr.mxu0 0.0
    %1443 = vmatpush2.msra.mxu0 0.0
    %1444 = vmatprep.subr.mxu0 0.0
    %1445 = vmatpush2.msra.mxu0 0.0
    %1446 = vmatprep.subr.mxu0 0.0
    %1447 = vmatpush2.msra.mxu0 0.0
    %1448 = vmatprep.subr.mxu0 0.0
    %1449 = vmatpush2.msra.mxu0 0.0
    %1450 = vmatprep.subr.mxu0 0.0
    %1451 = vmatpush2.msra.mxu0 0.0
    %1452 = vmatprep.subr.mxu0 0.0
    %1453 = vmatpush2.msra.mxu0 0.0
    %1454 = vmatprep.subr.mxu0 0.0
    %1455 = vmatpush2.msra.mxu0 0.0
    %1456 = vmatprep.subr.mxu0 0.0
    %1457 = vmatpush2.msra.mxu0 0.0
    %1458 = vmatprep.subr.mxu0 0.0
    %1459 = vmatpush2.msra.mxu0 0.0
    %1460 = vmatprep.mubr.f32.mxu0 0.0
    %1461 = vmatmul.mubr.f32.gmra.mxu0 %v1394
    %v1462 = vpop.f32.mrf.mxu0
    %v1463 = vadd.f32 0.0, %v1462
    %v1464 = vpop.f32.mrf.mxu0
    %1465 = vdwg.mxu0
    %v1466 = vadd.f32 %v1392, %v1463
    %v1467 = vld [vmem:[%s1382] sm:$0xf]
    %1468 = vmatprep.subr.mxu0 0.0
    %1469 = vmatpush1.msra.mxu0 0.0
    %1470 = vmatprep.subr.mxu0 0.0
    %1471 = vmatpush1.msra.mxu0 0.0
    %1472 = vmatprep.subr.mxu0 0.0
    %1473 = vmatpush1.msra.mxu0 0.0
    %1474 = vmatprep.subr.mxu0 0.0
    %1475 = vmatpush1.msra.mxu0 0.0
    %1476 = vmatprep.subr.mxu0 0.0
    %1477 = vmatpush1.msra.mxu0 0.0
    %1478 = vmatprep.subr.mxu0 0.0
    %1479 = vmatpush1.msra.mxu0 0.0
    %1480 = vmatprep.subr.mxu0 0.0
    %1481 = vmatpush1.msra.mxu0 0.0
    %1482 = vmatprep.subr.mxu0 0.0
    %1483 = vmatpush1.msra.mxu0 0.0
    %1484 = vmatprep.subr.mxu0 0.0
    %1485 = vmatpush1.msra.mxu0 0.0
    %1486 = vmatprep.subr.mxu0 0.0
    %1487 = vmatpush1.msra.mxu0 0.0
    %1488 = vmatprep.subr.mxu0 0.0
    %1489 = vmatpush1.msra.mxu0 0.0
    %1490 = vmatprep.subr.mxu0 0.0
    %1491 = vmatpush1.msra.mxu0 0.0
    %1492 = vmatprep.subr.mxu0 0.0
    %1493 = vmatpush1.msra.mxu0 %v1391
    %1494 = vmatprep.subr.mxu0 0.0
    %1495 = vmatpush1.msra.mxu0 %v1390
    %1496 = vmatprep.subr.mxu0 0.0
    %1497 = vmatpush1.msra.mxu0 %v1389
    %1498 = vmatprep.subr.mxu0 0.0
    %1499 = vmatpush1.msra.mxu0 %v1388
    %1500 = vmatprep.subr.mxu0 0.0
    %1501 = vmatpush2.msra.mxu0 0.0
    %1502 = vmatprep.subr.mxu0 0.0
    %1503 = vmatpush2.msra.mxu0 0.0
    %1504 = vmatprep.subr.mxu0 0.0
    %1505 = vmatpush2.msra.mxu0 0.0
    %1506 = vmatprep.subr.mxu0 0.0
    %1507 = vmatpush2.msra.mxu0 0.0
    %1508 = vmatprep.subr.mxu0 0.0
    %1509 = vmatpush2.msra.mxu0 0.0
    %1510 = vmatprep.subr.mxu0 0.0
    %1511 = vmatpush2.msra.mxu0 0.0
    %1512 = vmatprep.subr.mxu0 0.0
    %1513 = vmatpush2.msra.mxu0 0.0
    %1514 = vmatprep.subr.mxu0 0.0
    %1515 = vmatpush2.msra.mxu0 0.0
    %1516 = vmatprep.subr.mxu0 0.0
    %1517 = vmatpush2.msra.mxu0 0.0
    %1518 = vmatprep.subr.mxu0 0.0
    %1519 = vmatpush2.msra.mxu0 0.0
    %1520 = vmatprep.subr.mxu0 0.0
    %1521 = vmatpush2.msra.mxu0 0.0
    %1522 = vmatprep.subr.mxu0 0.0
    %1523 = vmatpush2.msra.mxu0 0.0
    %1524 = vmatprep.subr.mxu0 0.0
    %1525 = vmatpush2.msra.mxu0 0.0
    %1526 = vmatprep.subr.mxu0 0.0
    %1527 = vmatpush2.msra.mxu0 0.0
    %1528 = vmatprep.subr.mxu0 0.0
    %1529 = vmatpush2.msra.mxu0 0.0
    %1530 = vmatprep.subr.mxu0 0.0
    %1531 = vmatpush2.msra.mxu0 0.0
    %1532 = vmatprep.mubr.f32.mxu0 0.0
    %1533 = vmatmul.mubr.f32.gmra.mxu0 %v1394
    %v1534 = vpop.f32.mrf.mxu0
    %v1535 = vadd.f32 0.0, %v1534
    %v1536 = vpop.f32.mrf.mxu0
    %1537 = vdwg.mxu0
    %v1539 = vrot.slane %v1467, 2
    %v1541 = vadd.f32 %v1539, %v1535
    %v1542 = vxor.u32 %v1466, 2147483648
    %v1543 = vmul.f32 %v1542, 1.442695
    %v1544 = vpow.pop %v1543
    %v1545 = vadd.f32 %v1544, 1.0
    %v1546 = vrcp.pop %v1545
    %v1547 = vmul.f32 1.0, %v1546
    %v1548 = vtanh.pop %v1466
    %v1549 = vmul.f32 %v1547, 0.0
    %1551 = vrot.lane.b32.xlu0 %v1548, 64
    %v1552 = vpop.permute.xlu0 %1551
    %v1554 = vmul.f32 %v1547, %v1552
    %1556 = vrot.lane.b32.xlu0 %v1554, 32
    %v1557 = vpop.permute.xlu0 %1556
    %v1559 = vadd.f32 %v1549, %v1557
    %v1560 = vtanh.pop %v1559
    %1562 = vrot.lane.b32.xlu0 %v1560, 64
    %v1563 = vpop.permute.xlu0 %1562
    %v1565 = vmul.f32 %v1547, %v1563
    %vm1566 = vcmp.gt.s32.totalorder %v50, 0
    %v1567 = vsel %vm1566, 1, 0
    %1568 = vset.pattern.permute.xlu0 0
    %1569 = vperm.xlu0 %1568, %v1567
    %v1570 = vpop.permute.xlu0 %1569
    %vm1571 = vcmp.eq.s32.totalorder %v1570, 1
    %v1574 = vunpack.c.l.s4 1983009808
    %v1575 = vunpack.c.0.s8 %v1574
    %v1576 = vlaneseq
    %v1577 = vshrl.u32 %v1576, 7
    %v1578 = vsub.s32 %v1575, %v1577
    %v1579 = vrot.slane %v1565, %v1578
    %1580 = vrot.lane.b32.xlu0 %v1579, 32
    %v1581 = vpop.permute.xlu0 %1580
    %v1583 = vsel %vm1571, %v1581, 0.0
    %v1586 = vunpack.c.l.s4 1983009808
    %v1587 = vunpack.c.0.s8 %v1586
    %v1588 = vlaneseq
    %v1589 = vshrl.u32 %v1588, 7
    %v1590 = vsub.s32 %v1587, %v1589
    %v1591 = vrot.slane %v1559, %v1590
    %1592 = vrot.lane.b32.xlu0 %v1591, 96
    %v1593 = vpop.permute.xlu0 %1592
    %v1595 = vsel %vm1571, %v1593, 0.0
    %v1596 = vxor.u32 %v1541, 2147483648
    %v1597 = vmul.f32 %v1596, 1.442695
    %v1598 = vpow.pop %v1597
    %v1599 = vadd.f32 %v1598, 1.0
    %v1600 = vrcp.pop %v1599
    %v1601 = vmul.f32 1.0, %v1600
    %v1602 = vtanh.pop %v1541
    %v1603 = vmul.f32 %v1601, 0.0
    %1605 = vrot.lane.b32.xlu0 %v1602, 64
    %v1606 = vpop.permute.xlu0 %1605
    %v1608 = vmul.f32 %v1601, %v1606
    %1610 = vrot.lane.b32.xlu0 %v1608, 32
    %v1611 = vpop.permute.xlu0 %1610
    %v1613 = vadd.f32 %v1603, %v1611
    %v1614 = vtanh.pop %v1613
    %1616 = vrot.lane.b32.xlu0 %v1614, 64
    %v1617 = vpop.permute.xlu0 %1616
    %v1619 = vmul.f32 %v1601, %v1617
    %vm1620 = vcmp.gt.s32.totalorder %v50, 7
    %v1621 = vsel %vm1620, 1, 0
    %1622 = vset.pattern.permute.xlu0 0
    %1623 = vperm.xlu0 %1622, %v1621
    %v1624 = vpop.permute.xlu0 %1623
    %vm1625 = vcmp.eq.s32.totalorder %v1624, 1
    %v1628 = vunpack.c.l.s4 1983009808
    %v1629 = vunpack.c.0.s8 %v1628
    %v1630 = vlaneseq
    %v1631 = vshrl.u32 %v1630, 7
    %v1632 = vsub.s32 %v1629, %v1631
    %v1633 = vrot.slane %v1619, %v1632
    %1634 = vrot.lane.b32.xlu0 %v1633, 32
    %v1635 = vpop.permute.xlu0 %1634
    %v1637 = vsel %vm1625, %v1635, 0.0
    %v1640 = vunpack.c.l.s4 1983009808
    %v1641 = vunpack.c.0.s8 %v1640
    %v1642 = vlaneseq
    %v1643 = vshrl.u32 %v1642, 7
    %v1644 = vsub.s32 %v1641, %v1643
    %v1645 = vrot.slane %v1613, %v1644
    %1646 = vrot.lane.b32.xlu0 %v1645, 96
    %v1647 = vpop.permute.xlu0 %1646
    %v1649 = vsel %vm1625, %v1647, 0.0
    %vm1650 = vcmask 254976
    %1651 = vst.msk [vmem:[#allocation3] sm:$0x3] %vm1650, %v1583
    %s1652 = scalar_lea.vmem [#allocation4], 14
    %1653 = vst.msk [vmem:[%s1652] sm:$0x3] %vm1650, %v1637
    %v1654 = vld [vmem:[%s404] sm:$0xf]
    %v1656 = vsel %vm156, %v1583, 0
    %1658 = vmatprep.subr.mxu0 0.0
    %1659 = vmatpush1.msra.mxu0 0.0
    %1660 = vmatprep.subr.mxu0 0.0
    %1661 = vmatpush1.msra.mxu0 0.0
    %1662 = vmatprep.subr.mxu0 0.0
    %1663 = vmatpush1.msra.mxu0 0.0
    %1664 = vmatprep.subr.mxu0 0.0
    %1665 = vmatpush1.msra.mxu0 0.0
    %1666 = vmatprep.subr.mxu0 0.0
    %1667 = vmatpush1.msra.mxu0 0.0
    %1668 = vmatprep.subr.mxu0 0.0
    %1669 = vmatpush1.msra.mxu0 0.0
    %1670 = vmatprep.subr.mxu0 0.0
    %1671 = vmatpush1.msra.mxu0 0.0
    %1672 = vmatprep.subr.mxu0 0.0
    %1673 = vmatpush1.msra.mxu0 0.0
    %1674 = vmatprep.subr.mxu0 0.0
    %1675 = vmatpush1.msra.mxu0 0.0
    %1676 = vmatprep.subr.mxu0 0.0
    %1677 = vmatpush1.msra.mxu0 0.0
    %1678 = vmatprep.subr.mxu0 0.0
    %1679 = vmatpush1.msra.mxu0 0.0
    %1680 = vmatprep.subr.mxu0 0.0
    %1681 = vmatpush1.msra.mxu0 0.0
    %1682 = vmatprep.subr.mxu0 0.0
    %1683 = vmatpush1.msra.mxu0 %v1387
    %1684 = vmatprep.subr.mxu0 0.0
    %1685 = vmatpush1.msra.mxu0 %v1386
    %1686 = vmatprep.subr.mxu0 0.0
    %1687 = vmatpush1.msra.mxu0 %v1385
    %1688 = vmatprep.subr.mxu0 0.0
    %1689 = vmatpush1.msra.mxu0 %v1384
    %1690 = vmatprep.subr.mxu0 0.0
    %1691 = vmatpush2.msra.mxu0 0.0
    %1692 = vmatprep.subr.mxu0 0.0
    %1693 = vmatpush2.msra.mxu0 0.0
    %1694 = vmatprep.subr.mxu0 0.0
    %1695 = vmatpush2.msra.mxu0 0.0
    %1696 = vmatprep.subr.mxu0 0.0
    %1697 = vmatpush2.msra.mxu0 0.0
    %1698 = vmatprep.subr.mxu0 0.0
    %1699 = vmatpush2.msra.mxu0 0.0
    %1700 = vmatprep.subr.mxu0 0.0
    %1701 = vmatpush2.msra.mxu0 0.0
    %1702 = vmatprep.subr.mxu0 0.0
    %1703 = vmatpush2.msra.mxu0 0.0
    %1704 = vmatprep.subr.mxu0 0.0
    %1705 = vmatpush2.msra.mxu0 0.0
    %1706 = vmatprep.subr.mxu0 0.0
    %1707 = vmatpush2.msra.mxu0 0.0
    %1708 = vmatprep.subr.mxu0 0.0
    %1709 = vmatpush2.msra.mxu0 0.0
    %1710 = vmatprep.subr.mxu0 0.0
    %1711 = vmatpush2.msra.mxu0 0.0
    %1712 = vmatprep.subr.mxu0 0.0
    %1713 = vmatpush2.msra.mxu0 0.0
    %1714 = vmatprep.subr.mxu0 0.0
    %1715 = vmatpush2.msra.mxu0 0.0
    %1716 = vmatprep.subr.mxu0 0.0
    %1717 = vmatpush2.msra.mxu0 0.0
    %1718 = vmatprep.subr.mxu0 0.0
    %1719 = vmatpush2.msra.mxu0 0.0
    %1720 = vmatprep.subr.mxu0 0.0
    %1721 = vmatpush2.msra.mxu0 0.0
    %1722 = vmatprep.mubr.f32.mxu0 0.0
    %1723 = vmatmul.mubr.f32.gmra.mxu0 %v1656
    %v1724 = vpop.f32.mrf.mxu0
    %v1725 = vadd.f32 0.0, %v1724
    %v1726 = vpop.f32.mrf.mxu0
    %1727 = vdwg.mxu0
    %v1728 = vadd.f32 %v1654, %v1725
    %v1729 = vld [vmem:[%s1219] sm:$0xf]
    %v1731 = vsel %vm156, %v1637, 0
    %1733 = vmatprep.subr.mxu0 0.0
    %1734 = vmatpush1.msra.mxu0 0.0
    %1735 = vmatprep.subr.mxu0 0.0
    %1736 = vmatpush1.msra.mxu0 0.0
    %1737 = vmatprep.subr.mxu0 0.0
    %1738 = vmatpush1.msra.mxu0 0.0
    %1739 = vmatprep.subr.mxu0 0.0
    %1740 = vmatpush1.msra.mxu0 0.0
    %1741 = vmatprep.subr.mxu0 0.0
    %1742 = vmatpush1.msra.mxu0 0.0
    %1743 = vmatprep.subr.mxu0 0.0
    %1744 = vmatpush1.msra.mxu0 0.0
    %1745 = vmatprep.subr.mxu0 0.0
    %1746 = vmatpush1.msra.mxu0 0.0
    %1747 = vmatprep.subr.mxu0 0.0
    %1748 = vmatpush1.msra.mxu0 0.0
    %1749 = vmatprep.subr.mxu0 0.0
    %1750 = vmatpush1.msra.mxu0 0.0
    %1751 = vmatprep.subr.mxu0 0.0
    %1752 = vmatpush1.msra.mxu0 0.0
    %1753 = vmatprep.subr.mxu0 0.0
    %1754 = vmatpush1.msra.mxu0 0.0
    %1755 = vmatprep.subr.mxu0 0.0
    %1756 = vmatpush1.msra.mxu0 0.0
    %1757 = vmatprep.subr.mxu0 0.0
    %1758 = vmatpush1.msra.mxu0 %v1391
    %1759 = vmatprep.subr.mxu0 0.0
    %1760 = vmatpush1.msra.mxu0 %v1390
    %1761 = vmatprep.subr.mxu0 0.0
    %1762 = vmatpush1.msra.mxu0 %v1389
    %1763 = vmatprep.subr.mxu0 0.0
    %1764 = vmatpush1.msra.mxu0 %v1388
    %1765 = vmatprep.subr.mxu0 0.0
    %1766 = vmatpush2.msra.mxu0 0.0
    %1767 = vmatprep.subr.mxu0 0.0
    %1768 = vmatpush2.msra.mxu0 0.0
    %1769 = vmatprep.subr.mxu0 0.0
    %1770 = vmatpush2.msra.mxu0 0.0
    %1771 = vmatprep.subr.mxu0 0.0
    %1772 = vmatpush2.msra.mxu0 0.0
    %1773 = vmatprep.subr.mxu0 0.0
    %1774 = vmatpush2.msra.mxu0 0.0
    %1775 = vmatprep.subr.mxu0 0.0
    %1776 = vmatpush2.msra.mxu0 0.0
    %1777 = vmatprep.subr.mxu0 0.0
    %1778 = vmatpush2.msra.mxu0 0.0
    %1779 = vmatprep.subr.mxu0 0.0
    %1780 = vmatpush2.msra.mxu0 0.0
    %1781 = vmatprep.subr.mxu0 0.0
    %1782 = vmatpush2.msra.mxu0 0.0
    %1783 = vmatprep.subr.mxu0 0.0
    %1784 = vmatpush2.msra.mxu0 0.0
    %1785 = vmatprep.subr.mxu0 0.0
    %1786 = vmatpush2.msra.mxu0 0.0
    %1787 = vmatprep.subr.mxu0 0.0
    %1788 = vmatpush2.msra.mxu0 0.0
    %1789 = vmatprep.subr.mxu0 0.0
    %1790 = vmatpush2.msra.mxu0 0.0
    %1791 = vmatprep.subr.mxu0 0.0
    %1792 = vmatpush2.msra.mxu0 0.0
    %1793 = vmatprep.subr.mxu0 0.0
    %1794 = vmatpush2.msra.mxu0 0.0
    %1795 = vmatprep.subr.mxu0 0.0
    %1796 = vmatpush2.msra.mxu0 0.0
    %1797 = vmatprep.mubr.f32.mxu0 0.0
    %1798 = vmatmul.mubr.f32.gmra.mxu0 %v1731
    %v1799 = vpop.f32.mrf.mxu0
    %v1800 = vadd.f32 0.0, %v1799
    %v1801 = vpop.f32.mrf.mxu0
    %1802 = vdwg.mxu0
    %v1804 = vrot.slane %v1729, 2
    %v1806 = vadd.f32 %v1804, %v1800
    %v1807 = vxor.u32 %v1728, 2147483648
    %v1808 = vmul.f32 %v1807, 1.442695
    %v1809 = vpow.pop %v1808
    %v1810 = vadd.f32 %v1809, 1.0
    %v1811 = vrcp.pop %v1810
    %v1812 = vmul.f32 1.0, %v1811
    %v1813 = vtanh.pop %v1728
    %v1816 = vunpack.c.l.s4 1983009808
    %v1817 = vunpack.c.0.s8 %v1816
    %v1818 = vlaneseq
    %v1819 = vshrl.u32 %v1818, 7
    %v1820 = vsub.s32 %v1817, %v1819
    %v1821 = vrot.slane %v1595, %v1820
    %1822 = vrot.lane.b32.xlu0 %v1821, 32
    %v1823 = vpop.permute.xlu0 %1822
    %v1825 = vmul.f32 %v1812, %v1823
    %1827 = vrot.lane.b32.xlu0 %v1813, 64
    %v1828 = vpop.permute.xlu0 %1827
    %v1830 = vmul.f32 %v1812, %v1828
    %1832 = vrot.lane.b32.xlu0 %v1830, 32
    %v1833 = vpop.permute.xlu0 %1832
    %v1835 = vadd.f32 %v1825, %v1833
    %v1836 = vtanh.pop %v1835
    %1838 = vrot.lane.b32.xlu0 %v1836, 64
    %v1839 = vpop.permute.xlu0 %1838
    %v1841 = vmul.f32 %v1812, %v1839
    %vm1842 = vcmp.gt.s32.totalorder %v50, 1
    %v1843 = vsel %vm1842, 1, 0
    %1844 = vset.pattern.permute.xlu0 0
    %1845 = vperm.xlu0 %1844, %v1843
    %v1846 = vpop.permute.xlu0 %1845
    %vm1847 = vcmp.eq.s32.totalorder %v1846, 1
    %v1850 = vunpack.c.l.s4 1983009808
    %v1851 = vunpack.c.0.s8 %v1850
    %v1852 = vlaneseq
    %v1853 = vshrl.u32 %v1852, 7
    %v1854 = vsub.s32 %v1851, %v1853
    %v1855 = vrot.slane %v1841, %v1854
    %1856 = vrot.lane.b32.xlu0 %v1855, 32
    %v1857 = vpop.permute.xlu0 %1856
    %v1859 = vsel %vm1847, %v1857, %v1583
    %v1862 = vunpack.c.l.s4 1983009808
    %v1863 = vunpack.c.0.s8 %v1862
    %v1864 = vlaneseq
    %v1865 = vshrl.u32 %v1864, 7
    %v1866 = vsub.s32 %v1863, %v1865
    %v1867 = vrot.slane %v1835, %v1866
    %1868 = vrot.lane.b32.xlu0 %v1867, 96
    %v1869 = vpop.permute.xlu0 %1868
    %v1871 = vsel %vm1847, %v1869, %v1595
    %v1872 = vsel %vm1847, %v1857, 0.0
    %v1873 = vxor.u32 %v1806, 2147483648
    %v1874 = vmul.f32 %v1873, 1.442695
    %v1875 = vpow.pop %v1874
    %v1876 = vadd.f32 %v1875, 1.0
    %v1877 = vrcp.pop %v1876
    %v1878 = vmul.f32 1.0, %v1877
    %v1879 = vtanh.pop %v1806
    %v1882 = vunpack.c.l.s4 1983009808
    %v1883 = vunpack.c.0.s8 %v1882
    %v1884 = vlaneseq
    %v1885 = vshrl.u32 %v1884, 7
    %v1886 = vsub.s32 %v1883, %v1885
    %v1887 = vrot.slane %v1649, %v1886
    %1888 = vrot.lane.b32.xlu0 %v1887, 32
    %v1889 = vpop.permute.xlu0 %1888
    %v1891 = vmul.f32 %v1878, %v1889
    %1893 = vrot.lane.b32.xlu0 %v1879, 64
    %v1894 = vpop.permute.xlu0 %1893
    %v1896 = vmul.f32 %v1878, %v1894
    %1898 = vrot.lane.b32.xlu0 %v1896, 32
    %v1899 = vpop.permute.xlu0 %1898
    %v1901 = vadd.f32 %v1891, %v1899
    %v1902 = vtanh.pop %v1901
    %1904 = vrot.lane.b32.xlu0 %v1902, 64
    %v1905 = vpop.permute.xlu0 %1904
    %v1907 = vmul.f32 %v1878, %v1905
    %vm1908 = vcmp.gt.s32.totalorder %v50, 6
    %v1909 = vsel %vm1908, 1, 0
    %1910 = vset.pattern.permute.xlu0 0
    %1911 = vperm.xlu0 %1910, %v1909
    %v1912 = vpop.permute.xlu0 %1911
    %vm1913 = vcmp.eq.s32.totalorder %v1912, 1
    %v1916 = vunpack.c.l.s4 1983009808
    %v1917 = vunpack.c.0.s8 %v1916
    %v1918 = vlaneseq
    %v1919 = vshrl.u32 %v1918, 7
    %v1920 = vsub.s32 %v1917, %v1919
    %v1921 = vrot.slane %v1907, %v1920
    %1922 = vrot.lane.b32.xlu0 %v1921, 32
    %v1923 = vpop.permute.xlu0 %1922
    %v1925 = vsel %vm1913, %v1923, %v1637
    %v1928 = vunpack.c.l.s4 1983009808
    %v1929 = vunpack.c.0.s8 %v1928
    %v1930 = vlaneseq
    %v1931 = vshrl.u32 %v1930, 7
    %v1932 = vsub.s32 %v1929, %v1931
    %v1933 = vrot.slane %v1901, %v1932
    %1934 = vrot.lane.b32.xlu0 %v1933, 96
    %v1935 = vpop.permute.xlu0 %1934
    %v1937 = vsel %vm1913, %v1935, %v1649
    %v1938 = vsel %vm1913, %v1923, 0.0
    %s1939 = scalar_lea.vmem [#allocation3], 2
    %1940 = vst.msk [vmem:[%s1939] sm:$0x3] %vm1650, %v1872
    %s1941 = scalar_lea.vmem [#allocation4], 12
    %1942 = vst.msk [vmem:[%s1941] sm:$0x3] %vm1650, %v1938
    %v1943 = vld [vmem:[%s567] sm:$0xf]
    %v1945 = vsel %vm156, %v1859, 0
    %1947 = vmatprep.subr.mxu0 0.0
    %1948 = vmatpush1.msra.mxu0 0.0
    %1949 = vmatprep.subr.mxu0 0.0
    %1950 = vmatpush1.msra.mxu0 0.0
    %1951 = vmatprep.subr.mxu0 0.0
    %1952 = vmatpush1.msra.mxu0 0.0
    %1953 = vmatprep.subr.mxu0 0.0
    %1954 = vmatpush1.msra.mxu0 0.0
    %1955 = vmatprep.subr.mxu0 0.0
    %1956 = vmatpush1.msra.mxu0 0.0
    %1957 = vmatprep.subr.mxu0 0.0
    %1958 = vmatpush1.msra.mxu0 0.0
    %1959 = vmatprep.subr.mxu0 0.0
    %1960 = vmatpush1.msra.mxu0 0.0
    %1961 = vmatprep.subr.mxu0 0.0
    %1962 = vmatpush1.msra.mxu0 0.0
    %1963 = vmatprep.subr.mxu0 0.0
    %1964 = vmatpush1.msra.mxu0 0.0
    %1965 = vmatprep.subr.mxu0 0.0
    %1966 = vmatpush1.msra.mxu0 0.0
    %1967 = vmatprep.subr.mxu0 0.0
    %1968 = vmatpush1.msra.mxu0 0.0
    %1969 = vmatprep.subr.mxu0 0.0
    %1970 = vmatpush1.msra.mxu0 0.0
    %1971 = vmatprep.subr.mxu0 0.0
    %1972 = vmatpush1.msra.mxu0 %v1387
    %1973 = vmatprep.subr.mxu0 0.0
    %1974 = vmatpush1.msra.mxu0 %v1386
    %1975 = vmatprep.subr.mxu0 0.0
    %1976 = vmatpush1.msra.mxu0 %v1385
    %1977 = vmatprep.subr.mxu0 0.0
    %1978 = vmatpush1.msra.mxu0 %v1384
    %1979 = vmatprep.subr.mxu0 0.0
    %1980 = vmatpush2.msra.mxu0 0.0
    %1981 = vmatprep.subr.mxu0 0.0
    %1982 = vmatpush2.msra.mxu0 0.0
    %1983 = vmatprep.subr.mxu0 0.0
    %1984 = vmatpush2.msra.mxu0 0.0
    %1985 = vmatprep.subr.mxu0 0.0
    %1986 = vmatpush2.msra.mxu0 0.0
    %1987 = vmatprep.subr.mxu0 0.0
    %1988 = vmatpush2.msra.mxu0 0.0
    %1989 = vmatprep.subr.mxu0 0.0
    %1990 = vmatpush2.msra.mxu0 0.0
    %1991 = vmatprep.subr.mxu0 0.0
    %1992 = vmatpush2.msra.mxu0 0.0
    %1993 = vmatprep.subr.mxu0 0.0
    %1994 = vmatpush2.msra.mxu0 0.0
    %1995 = vmatprep.subr.mxu0 0.0
    %1996 = vmatpush2.msra.mxu0 0.0
    %1997 = vmatprep.subr.mxu0 0.0
    %1998 = vmatpush2.msra.mxu0 0.0
    %1999 = vmatprep.subr.mxu0 0.0
    %2000 = vmatpush2.msra.mxu0 0.0
    %2001 = vmatprep.subr.mxu0 0.0
    %2002 = vmatpush2.msra.mxu0 0.0
    %2003 = vmatprep.subr.mxu0 0.0
    %2004 = vmatpush2.msra.mxu0 0.0
    %2005 = vmatprep.subr.mxu0 0.0
    %2006 = vmatpush2.msra.mxu0 0.0
    %2007 = vmatprep.subr.mxu0 0.0
    %2008 = vmatpush2.msra.mxu0 0.0
    %2009 = vmatprep.subr.mxu0 0.0
    %2010 = vmatpush2.msra.mxu0 0.0
    %2011 = vmatprep.mubr.f32.mxu0 0.0
    %2012 = vmatmul.mubr.f32.gmra.mxu0 %v1945
    %v2013 = vpop.f32.mrf.mxu0
    %v2014 = vadd.f32 0.0, %v2013
    %v2015 = vpop.f32.mrf.mxu0
    %2016 = vdwg.mxu0
    %v2017 = vadd.f32 %v1943, %v2014
    %v2018 = vld [vmem:[%s1056] sm:$0xf]
    %v2020 = vsel %vm156, %v1925, 0
    %2022 = vmatprep.subr.mxu0 0.0
    %2023 = vmatpush1.msra.mxu0 0.0
    %2024 = vmatprep.subr.mxu0 0.0
    %2025 = vmatpush1.msra.mxu0 0.0
    %2026 = vmatprep.subr.mxu0 0.0
    %2027 = vmatpush1.msra.mxu0 0.0
    %2028 = vmatprep.subr.mxu0 0.0
    %2029 = vmatpush1.msra.mxu0 0.0
    %2030 = vmatprep.subr.mxu0 0.0
    %2031 = vmatpush1.msra.mxu0 0.0
    %2032 = vmatprep.subr.mxu0 0.0
    %2033 = vmatpush1.msra.mxu0 0.0
    %2034 = vmatprep.subr.mxu0 0.0
    %2035 = vmatpush1.msra.mxu0 0.0
    %2036 = vmatprep.subr.mxu0 0.0
    %2037 = vmatpush1.msra.mxu0 0.0
    %2038 = vmatprep.subr.mxu0 0.0
    %2039 = vmatpush1.msra.mxu0 0.0
    %2040 = vmatprep.subr.mxu0 0.0
    %2041 = vmatpush1.msra.mxu0 0.0
    %2042 = vmatprep.subr.mxu0 0.0
    %2043 = vmatpush1.msra.mxu0 0.0
    %2044 = vmatprep.subr.mxu0 0.0
    %2045 = vmatpush1.msra.mxu0 0.0
    %2046 = vmatprep.subr.mxu0 0.0
    %2047 = vmatpush1.msra.mxu0 %v1391
    %2048 = vmatprep.subr.mxu0 0.0
    %2049 = vmatpush1.msra.mxu0 %v1390
    %2050 = vmatprep.subr.mxu0 0.0
    %2051 = vmatpush1.msra.mxu0 %v1389
    %2052 = vmatprep.subr.mxu0 0.0
    %2053 = vmatpush1.msra.mxu0 %v1388
    %2054 = vmatprep.subr.mxu0 0.0
    %2055 = vmatpush2.msra.mxu0 0.0
    %2056 = vmatprep.subr.mxu0 0.0
    %2057 = vmatpush2.msra.mxu0 0.0
    %2058 = vmatprep.subr.mxu0 0.0
    %2059 = vmatpush2.msra.mxu0 0.0
    %2060 = vmatprep.subr.mxu0 0.0
    %2061 = vmatpush2.msra.mxu0 0.0
    %2062 = vmatprep.subr.mxu0 0.0
    %2063 = vmatpush2.msra.mxu0 0.0
    %2064 = vmatprep.subr.mxu0 0.0
    %2065 = vmatpush2.msra.mxu0 0.0
    %2066 = vmatprep.subr.mxu0 0.0
    %2067 = vmatpush2.msra.mxu0 0.0
    %2068 = vmatprep.subr.mxu0 0.0
    %2069 = vmatpush2.msra.mxu0 0.0
    %2070 = vmatprep.subr.mxu0 0.0
    %2071 = vmatpush2.msra.mxu0 0.0
    %2072 = vmatprep.subr.mxu0 0.0
    %2073 = vmatpush2.msra.mxu0 0.0
    %2074 = vmatprep.subr.mxu0 0.0
    %2075 = vmatpush2.msra.mxu0 0.0
    %2076 = vmatprep.subr.mxu0 0.0
    %2077 = vmatpush2.msra.mxu0 0.0
    %2078 = vmatprep.subr.mxu0 0.0
    %2079 = vmatpush2.msra.mxu0 0.0
    %2080 = vmatprep.subr.mxu0 0.0
    %2081 = vmatpush2.msra.mxu0 0.0
    %2082 = vmatprep.subr.mxu0 0.0
    %2083 = vmatpush2.msra.mxu0 0.0
    %2084 = vmatprep.subr.mxu0 0.0
    %2085 = vmatpush2.msra.mxu0 0.0
    %2086 = vmatprep.mubr.f32.mxu0 0.0
    %2087 = vmatmul.mubr.f32.gmra.mxu0 %v2020
    %v2088 = vpop.f32.mrf.mxu0
    %v2089 = vadd.f32 0.0, %v2088
    %v2090 = vpop.f32.mrf.mxu0
    %2091 = vdwg.mxu0
    %v2093 = vrot.slane %v2018, 2
    %v2095 = vadd.f32 %v2093, %v2089
    %v2096 = vxor.u32 %v2017, 2147483648
    %v2097 = vmul.f32 %v2096, 1.442695
    %v2098 = vpow.pop %v2097
    %v2099 = vadd.f32 %v2098, 1.0
    %v2100 = vrcp.pop %v2099
    %v2101 = vmul.f32 1.0, %v2100
    %v2102 = vtanh.pop %v2017
    %v2105 = vunpack.c.l.s4 1983009808
    %v2106 = vunpack.c.0.s8 %v2105
    %v2107 = vlaneseq
    %v2108 = vshrl.u32 %v2107, 7
    %v2109 = vsub.s32 %v2106, %v2108
    %v2110 = vrot.slane %v1871, %v2109
    %2111 = vrot.lane.b32.xlu0 %v2110, 32
    %v2112 = vpop.permute.xlu0 %2111
    %v2114 = vmul.f32 %v2101, %v2112
    %2116 = vrot.lane.b32.xlu0 %v2102, 64
    %v2117 = vpop.permute.xlu0 %2116
    %v2119 = vmul.f32 %v2101, %v2117
    %2121 = vrot.lane.b32.xlu0 %v2119, 32
    %v2122 = vpop.permute.xlu0 %2121
    %v2124 = vadd.f32 %v2114, %v2122
    %v2125 = vtanh.pop %v2124
    %2127 = vrot.lane.b32.xlu0 %v2125, 64
    %v2128 = vpop.permute.xlu0 %2127
    %v2130 = vmul.f32 %v2101, %v2128
    %vm2131 = vcmp.gt.s32.totalorder %v50, 2
    %v2132 = vsel %vm2131, 1, 0
    %2133 = vset.pattern.permute.xlu0 0
    %2134 = vperm.xlu0 %2133, %v2132
    %v2135 = vpop.permute.xlu0 %2134
    %vm2136 = vcmp.eq.s32.totalorder %v2135, 1
    %v2139 = vunpack.c.l.s4 1983009808
    %v2140 = vunpack.c.0.s8 %v2139
    %v2141 = vlaneseq
    %v2142 = vshrl.u32 %v2141, 7
    %v2143 = vsub.s32 %v2140, %v2142
    %v2144 = vrot.slane %v2130, %v2143
    %2145 = vrot.lane.b32.xlu0 %v2144, 32
    %v2146 = vpop.permute.xlu0 %2145
    %v2148 = vsel %vm2136, %v2146, %v1859
    %v2151 = vunpack.c.l.s4 1983009808
    %v2152 = vunpack.c.0.s8 %v2151
    %v2153 = vlaneseq
    %v2154 = vshrl.u32 %v2153, 7
    %v2155 = vsub.s32 %v2152, %v2154
    %v2156 = vrot.slane %v2124, %v2155
    %2157 = vrot.lane.b32.xlu0 %v2156, 96
    %v2158 = vpop.permute.xlu0 %2157
    %v2160 = vsel %vm2136, %v2158, %v1871
    %v2161 = vsel %vm2136, %v2146, 0.0
    %v2162 = vxor.u32 %v2095, 2147483648
    %v2163 = vmul.f32 %v2162, 1.442695
    %v2164 = vpow.pop %v2163
    %v2165 = vadd.f32 %v2164, 1.0
    %v2166 = vrcp.pop %v2165
    %v2167 = vmul.f32 1.0, %v2166
    %v2168 = vtanh.pop %v2095
    %v2171 = vunpack.c.l.s4 1983009808
    %v2172 = vunpack.c.0.s8 %v2171
    %v2173 = vlaneseq
    %v2174 = vshrl.u32 %v2173, 7
    %v2175 = vsub.s32 %v2172, %v2174
    %v2176 = vrot.slane %v1937, %v2175
    %2177 = vrot.lane.b32.xlu0 %v2176, 32
    %v2178 = vpop.permute.xlu0 %2177
    %v2180 = vmul.f32 %v2167, %v2178
    %2182 = vrot.lane.b32.xlu0 %v2168, 64
    %v2183 = vpop.permute.xlu0 %2182
    %v2185 = vmul.f32 %v2167, %v2183
    %2187 = vrot.lane.b32.xlu0 %v2185, 32
    %v2188 = vpop.permute.xlu0 %2187
    %v2190 = vadd.f32 %v2180, %v2188
    %v2191 = vtanh.pop %v2190
    %2193 = vrot.lane.b32.xlu0 %v2191, 64
    %v2194 = vpop.permute.xlu0 %2193
    %v2196 = vmul.f32 %v2167, %v2194
    %vm2197 = vcmp.gt.s32.totalorder %v50, 5
    %v2198 = vsel %vm2197, 1, 0
    %2199 = vset.pattern.permute.xlu0 0
    %2200 = vperm.xlu0 %2199, %v2198
    %v2201 = vpop.permute.xlu0 %2200
    %vm2202 = vcmp.eq.s32.totalorder %v2201, 1
    %v2205 = vunpack.c.l.s4 1983009808
    %v2206 = vunpack.c.0.s8 %v2205
    %v2207 = vlaneseq
    %v2208 = vshrl.u32 %v2207, 7
    %v2209 = vsub.s32 %v2206, %v2208
    %v2210 = vrot.slane %v2196, %v2209
    %2211 = vrot.lane.b32.xlu0 %v2210, 32
    %v2212 = vpop.permute.xlu0 %2211
    %v2214 = vsel %vm2202, %v2212, %v1925
    %v2217 = vunpack.c.l.s4 1983009808
    %v2218 = vunpack.c.0.s8 %v2217
    %v2219 = vlaneseq
    %v2220 = vshrl.u32 %v2219, 7
    %v2221 = vsub.s32 %v2218, %v2220
    %v2222 = vrot.slane %v2190, %v2221
    %2223 = vrot.lane.b32.xlu0 %v2222, 96
    %v2224 = vpop.permute.xlu0 %2223
    %v2226 = vsel %vm2202, %v2224, %v1937
    %v2227 = vsel %vm2202, %v2212, 0.0
    %s2228 = scalar_lea.vmem [#allocation3], 4
    %2229 = vst.msk [vmem:[%s2228] sm:$0x3] %vm1650, %v2161
    %s2230 = scalar_lea.vmem [#allocation4], 10
    %2231 = vst.msk [vmem:[%s2230] sm:$0x3] %vm1650, %v2227
    %v2232 = vld [vmem:[%s730] sm:$0xf]
    %v2234 = vsel %vm156, %v2148, 0
    %2236 = vmatprep.subr.mxu0 0.0
    %2237 = vmatpush1.msra.mxu0 0.0
    %2238 = vmatprep.subr.mxu0 0.0
    %2239 = vmatpush1.msra.mxu0 0.0
    %2240 = vmatprep.subr.mxu0 0.0
    %2241 = vmatpush1.msra.mxu0 0.0
    %2242 = vmatprep.subr.mxu0 0.0
    %2243 = vmatpush1.msra.mxu0 0.0
    %2244 = vmatprep.subr.mxu0 0.0
    %2245 = vmatpush1.msra.mxu0 0.0
    %2246 = vmatprep.subr.mxu0 0.0
    %2247 = vmatpush1.msra.mxu0 0.0
    %2248 = vmatprep.subr.mxu0 0.0
    %2249 = vmatpush1.msra.mxu0 0.0
    %2250 = vmatprep.subr.mxu0 0.0
    %2251 = vmatpush1.msra.mxu0 0.0
    %2252 = vmatprep.subr.mxu0 0.0
    %2253 = vmatpush1.msra.mxu0 0.0
    %2254 = vmatprep.subr.mxu0 0.0
    %2255 = vmatpush1.msra.mxu0 0.0
    %2256 = vmatprep.subr.mxu0 0.0
    %2257 = vmatpush1.msra.mxu0 0.0
    %2258 = vmatprep.subr.mxu0 0.0
    %2259 = vmatpush1.msra.mxu0 0.0
    %2260 = vmatprep.subr.mxu0 0.0
    %2261 = vmatpush1.msra.mxu0 %v1387
    %2262 = vmatprep.subr.mxu0 0.0
    %2263 = vmatpush1.msra.mxu0 %v1386
    %2264 = vmatprep.subr.mxu0 0.0
    %2265 = vmatpush1.msra.mxu0 %v1385
    %2266 = vmatprep.subr.mxu0 0.0
    %2267 = vmatpush1.msra.mxu0 %v1384
    %2268 = vmatprep.subr.mxu0 0.0
    %2269 = vmatpush2.msra.mxu0 0.0
    %2270 = vmatprep.subr.mxu0 0.0
    %2271 = vmatpush2.msra.mxu0 0.0
    %2272 = vmatprep.subr.mxu0 0.0
    %2273 = vmatpush2.msra.mxu0 0.0
    %2274 = vmatprep.subr.mxu0 0.0
    %2275 = vmatpush2.msra.mxu0 0.0
    %2276 = vmatprep.subr.mxu0 0.0
    %2277 = vmatpush2.msra.mxu0 0.0
    %2278 = vmatprep.subr.mxu0 0.0
    %2279 = vmatpush2.msra.mxu0 0.0
    %2280 = vmatprep.subr.mxu0 0.0
    %2281 = vmatpush2.msra.mxu0 0.0
    %2282 = vmatprep.subr.mxu0 0.0
    %2283 = vmatpush2.msra.mxu0 0.0
    %2284 = vmatprep.subr.mxu0 0.0
    %2285 = vmatpush2.msra.mxu0 0.0
    %2286 = vmatprep.subr.mxu0 0.0
    %2287 = vmatpush2.msra.mxu0 0.0
    %2288 = vmatprep.subr.mxu0 0.0
    %2289 = vmatpush2.msra.mxu0 0.0
    %2290 = vmatprep.subr.mxu0 0.0
    %2291 = vmatpush2.msra.mxu0 0.0
    %2292 = vmatprep.subr.mxu0 0.0
    %2293 = vmatpush2.msra.mxu0 0.0
    %2294 = vmatprep.subr.mxu0 0.0
    %2295 = vmatpush2.msra.mxu0 0.0
    %2296 = vmatprep.subr.mxu0 0.0
    %2297 = vmatpush2.msra.mxu0 0.0
    %2298 = vmatprep.subr.mxu0 0.0
    %2299 = vmatpush2.msra.mxu0 0.0
    %2300 = vmatprep.mubr.f32.mxu0 0.0
    %2301 = vmatmul.mubr.f32.gmra.mxu0 %v2234
    %v2302 = vpop.f32.mrf.mxu0
    %v2303 = vadd.f32 0.0, %v2302
    %v2304 = vpop.f32.mrf.mxu0
    %2305 = vdwg.mxu0
    %v2306 = vadd.f32 %v2232, %v2303
    %v2307 = vld [vmem:[%s893] sm:$0xf]
    %v2309 = vsel %vm156, %v2214, 0
    %2311 = vmatprep.subr.mxu0 0.0
    %2312 = vmatpush1.msra.mxu0 0.0
    %2313 = vmatprep.subr.mxu0 0.0
    %2314 = vmatpush1.msra.mxu0 0.0
    %2315 = vmatprep.subr.mxu0 0.0
    %2316 = vmatpush1.msra.mxu0 0.0
    %2317 = vmatprep.subr.mxu0 0.0
    %2318 = vmatpush1.msra.mxu0 0.0
    %2319 = vmatprep.subr.mxu0 0.0
    %2320 = vmatpush1.msra.mxu0 0.0
    %2321 = vmatprep.subr.mxu0 0.0
    %2322 = vmatpush1.msra.mxu0 0.0
    %2323 = vmatprep.subr.mxu0 0.0
    %2324 = vmatpush1.msra.mxu0 0.0
    %2325 = vmatprep.subr.mxu0 0.0
    %2326 = vmatpush1.msra.mxu0 0.0
    %2327 = vmatprep.subr.mxu0 0.0
    %2328 = vmatpush1.msra.mxu0 0.0
    %2329 = vmatprep.subr.mxu0 0.0
    %2330 = vmatpush1.msra.mxu0 0.0
    %2331 = vmatprep.subr.mxu0 0.0
    %2332 = vmatpush1.msra.mxu0 0.0
    %2333 = vmatprep.subr.mxu0 0.0
    %2334 = vmatpush1.msra.mxu0 0.0
    %2335 = vmatprep.subr.mxu0 0.0
    %2336 = vmatpush1.msra.mxu0 %v1391
    %2337 = vmatprep.subr.mxu0 0.0
    %2338 = vmatpush1.msra.mxu0 %v1390
    %2339 = vmatprep.subr.mxu0 0.0
    %2340 = vmatpush1.msra.mxu0 %v1389
    %2341 = vmatprep.subr.mxu0 0.0
    %2342 = vmatpush1.msra.mxu0 %v1388
    %2343 = vmatprep.subr.mxu0 0.0
    %2344 = vmatpush2.msra.mxu0 0.0
    %2345 = vmatprep.subr.mxu0 0.0
    %2346 = vmatpush2.msra.mxu0 0.0
    %2347 = vmatprep.subr.mxu0 0.0
    %2348 = vmatpush2.msra.mxu0 0.0
    %2349 = vmatprep.subr.mxu0 0.0
    %2350 = vmatpush2.msra.mxu0 0.0
    %2351 = vmatprep.subr.mxu0 0.0
    %2352 = vmatpush2.msra.mxu0 0.0
    %2353 = vmatprep.subr.mxu0 0.0
    %2354 = vmatpush2.msra.mxu0 0.0
    %2355 = vmatprep.subr.mxu0 0.0
    %2356 = vmatpush2.msra.mxu0 0.0
    %2357 = vmatprep.subr.mxu0 0.0
    %2358 = vmatpush2.msra.mxu0 0.0
    %2359 = vmatprep.subr.mxu0 0.0
    %2360 = vmatpush2.msra.mxu0 0.0
    %2361 = vmatprep.subr.mxu0 0.0
    %2362 = vmatpush2.msra.mxu0 0.0
    %2363 = vmatprep.subr.mxu0 0.0
    %2364 = vmatpush2.msra.mxu0 0.0
    %2365 = vmatprep.subr.mxu0 0.0
    %2366 = vmatpush2.msra.mxu0 0.0
    %2367 = vmatprep.subr.mxu0 0.0
    %2368 = vmatpush2.msra.mxu0 0.0
    %2369 = vmatprep.subr.mxu0 0.0
    %2370 = vmatpush2.msra.mxu0 0.0
    %2371 = vmatprep.subr.mxu0 0.0
    %2372 = vmatpush2.msra.mxu0 0.0
    %2373 = vmatprep.subr.mxu0 0.0
    %2374 = vmatpush2.msra.mxu0 0.0
    %2375 = vmatprep.mubr.f32.mxu0 0.0
    %2376 = vmatmul.mubr.f32.gmra.mxu0 %v2309
    %v2377 = vpop.f32.mrf.mxu0
    %v2378 = vadd.f32 0.0, %v2377
    %v2379 = vpop.f32.mrf.mxu0
    %2380 = vdwg.mxu0
    %v2382 = vrot.slane %v2307, 2
    %v2384 = vadd.f32 %v2382, %v2378
    %v2385 = vxor.u32 %v2306, 2147483648
    %v2386 = vmul.f32 %v2385, 1.442695
    %v2387 = vpow.pop %v2386
    %v2388 = vadd.f32 %v2387, 1.0
    %v2389 = vrcp.pop %v2388
    %v2390 = vmul.f32 1.0, %v2389
    %v2391 = vtanh.pop %v2306
    %v2394 = vunpack.c.l.s4 1983009808
    %v2395 = vunpack.c.0.s8 %v2394
    %v2396 = vlaneseq
    %v2397 = vshrl.u32 %v2396, 7
    %v2398 = vsub.s32 %v2395, %v2397
    %v2399 = vrot.slane %v2160, %v2398
    %2400 = vrot.lane.b32.xlu0 %v2399, 32
    %v2401 = vpop.permute.xlu0 %2400
    %v2403 = vmul.f32 %v2390, %v2401
    %2405 = vrot.lane.b32.xlu0 %v2391, 64
    %v2406 = vpop.permute.xlu0 %2405
    %v2408 = vmul.f32 %v2390, %v2406
    %2410 = vrot.lane.b32.xlu0 %v2408, 32
    %v2411 = vpop.permute.xlu0 %2410
    %v2413 = vadd.f32 %v2403, %v2411
    %v2414 = vtanh.pop %v2413
    %2416 = vrot.lane.b32.xlu0 %v2414, 64
    %v2417 = vpop.permute.xlu0 %2416
    %v2419 = vmul.f32 %v2390, %v2417
    %vm2420 = vcmp.gt.s32.totalorder %v50, 3
    %v2421 = vsel %vm2420, 1, 0
    %2422 = vset.pattern.permute.xlu0 0
    %2423 = vperm.xlu0 %2422, %v2421
    %v2424 = vpop.permute.xlu0 %2423
    %vm2425 = vcmp.eq.s32.totalorder %v2424, 1
    %v2428 = vunpack.c.l.s4 1983009808
    %v2429 = vunpack.c.0.s8 %v2428
    %v2430 = vlaneseq
    %v2431 = vshrl.u32 %v2430, 7
    %v2432 = vsub.s32 %v2429, %v2431
    %v2433 = vrot.slane %v2419, %v2432
    %2434 = vrot.lane.b32.xlu0 %v2433, 32
    %v2435 = vpop.permute.xlu0 %2434
    %v2437 = vsel %vm2425, %v2435, %v2148
    %v2440 = vunpack.c.l.s4 1983009808
    %v2441 = vunpack.c.0.s8 %v2440
    %v2442 = vlaneseq
    %v2443 = vshrl.u32 %v2442, 7
    %v2444 = vsub.s32 %v2441, %v2443
    %v2445 = vrot.slane %v2413, %v2444
    %2446 = vrot.lane.b32.xlu0 %v2445, 96
    %v2447 = vpop.permute.xlu0 %2446
    %v2449 = vsel %vm2425, %v2447, %v2160
    %v2450 = vsel %vm2425, %v2435, 0.0
    %v2451 = vxor.u32 %v2384, 2147483648
    %v2452 = vmul.f32 %v2451, 1.442695
    %v2453 = vpow.pop %v2452
    %v2454 = vadd.f32 %v2453, 1.0
    %v2455 = vrcp.pop %v2454
    %v2456 = vmul.f32 1.0, %v2455
    %v2457 = vtanh.pop %v2384
    %v2460 = vunpack.c.l.s4 1983009808
    %v2461 = vunpack.c.0.s8 %v2460
    %v2462 = vlaneseq
    %v2463 = vshrl.u32 %v2462, 7
    %v2464 = vsub.s32 %v2461, %v2463
    %v2465 = vrot.slane %v2226, %v2464
    %2466 = vrot.lane.b32.xlu0 %v2465, 32
    %v2467 = vpop.permute.xlu0 %2466
    %v2469 = vmul.f32 %v2456, %v2467
    %2471 = vrot.lane.b32.xlu0 %v2457, 64
    %v2472 = vpop.permute.xlu0 %2471
    %v2474 = vmul.f32 %v2456, %v2472
    %2476 = vrot.lane.b32.xlu0 %v2474, 32
    %v2477 = vpop.permute.xlu0 %2476
    %v2479 = vadd.f32 %v2469, %v2477
    %v2480 = vtanh.pop %v2479
    %2482 = vrot.lane.b32.xlu0 %v2480, 64
    %v2483 = vpop.permute.xlu0 %2482
    %v2485 = vmul.f32 %v2456, %v2483
    %vm2486 = vcmp.gt.s32.totalorder %v50, 4
    %v2487 = vsel %vm2486, 1, 0
    %2488 = vset.pattern.permute.xlu0 0
    %2489 = vperm.xlu0 %2488, %v2487
    %v2490 = vpop.permute.xlu0 %2489
    %vm2491 = vcmp.eq.s32.totalorder %v2490, 1
    %v2494 = vunpack.c.l.s4 1983009808
    %v2495 = vunpack.c.0.s8 %v2494
    %v2496 = vlaneseq
    %v2497 = vshrl.u32 %v2496, 7
    %v2498 = vsub.s32 %v2495, %v2497
    %v2499 = vrot.slane %v2485, %v2498
    %2500 = vrot.lane.b32.xlu0 %v2499, 32
    %v2501 = vpop.permute.xlu0 %2500
    %v2503 = vsel %vm2491, %v2501, %v2214
    %v2506 = vunpack.c.l.s4 1983009808
    %v2507 = vunpack.c.0.s8 %v2506
    %v2508 = vlaneseq
    %v2509 = vshrl.u32 %v2508, 7
    %v2510 = vsub.s32 %v2507, %v2509
    %v2511 = vrot.slane %v2479, %v2510
    %2512 = vrot.lane.b32.xlu0 %v2511, 96
    %v2513 = vpop.permute.xlu0 %2512
    %v2515 = vsel %vm2491, %v2513, %v2226
    %v2516 = vsel %vm2491, %v2501, 0.0
    %s2517 = scalar_lea.vmem [#allocation3], 6
    %2518 = vst.msk [vmem:[%s2517] sm:$0x3] %vm1650, %v2450
    %s2519 = scalar_lea.vmem [#allocation4], 8
    %2520 = vst.msk [vmem:[%s2519] sm:$0x3] %vm1650, %v2516
    %v2521 = vld [vmem:[%s893] sm:$0xf]
    %v2523 = vsel %vm156, %v2437, 0
    %2525 = vmatprep.subr.mxu0 0.0
    %2526 = vmatpush1.msra.mxu0 0.0
    %2527 = vmatprep.subr.mxu0 0.0
    %2528 = vmatpush1.msra.mxu0 0.0
    %2529 = vmatprep.subr.mxu0 0.0
    %2530 = vmatpush1.msra.mxu0 0.0
    %2531 = vmatprep.subr.mxu0 0.0
    %2532 = vmatpush1.msra.mxu0 0.0
    %2533 = vmatprep.subr.mxu0 0.0
    %2534 = vmatpush1.msra.mxu0 0.0
    %2535 = vmatprep.subr.mxu0 0.0
    %2536 = vmatpush1.msra.mxu0 0.0
    %2537 = vmatprep.subr.mxu0 0.0
    %2538 = vmatpush1.msra.mxu0 0.0
    %2539 = vmatprep.subr.mxu0 0.0
    %2540 = vmatpush1.msra.mxu0 0.0
    %2541 = vmatprep.subr.mxu0 0.0
    %2542 = vmatpush1.msra.mxu0 0.0
    %2543 = vmatprep.subr.mxu0 0.0
    %2544 = vmatpush1.msra.mxu0 0.0
    %2545 = vmatprep.subr.mxu0 0.0
    %2546 = vmatpush1.msra.mxu0 0.0
    %2547 = vmatprep.subr.mxu0 0.0
    %2548 = vmatpush1.msra.mxu0 0.0
    %2549 = vmatprep.subr.mxu0 0.0
    %2550 = vmatpush1.msra.mxu0 %v1387
    %2551 = vmatprep.subr.mxu0 0.0
    %2552 = vmatpush1.msra.mxu0 %v1386
    %2553 = vmatprep.subr.mxu0 0.0
    %2554 = vmatpush1.msra.mxu0 %v1385
    %2555 = vmatprep.subr.mxu0 0.0
    %2556 = vmatpush1.msra.mxu0 %v1384
    %2557 = vmatprep.subr.mxu0 0.0
    %2558 = vmatpush2.msra.mxu0 0.0
    %2559 = vmatprep.subr.mxu0 0.0
    %2560 = vmatpush2.msra.mxu0 0.0
    %2561 = vmatprep.subr.mxu0 0.0
    %2562 = vmatpush2.msra.mxu0 0.0
    %2563 = vmatprep.subr.mxu0 0.0
    %2564 = vmatpush2.msra.mxu0 0.0
    %2565 = vmatprep.subr.mxu0 0.0
    %2566 = vmatpush2.msra.mxu0 0.0
    %2567 = vmatprep.subr.mxu0 0.0
    %2568 = vmatpush2.msra.mxu0 0.0
    %2569 = vmatprep.subr.mxu0 0.0
    %2570 = vmatpush2.msra.mxu0 0.0
    %2571 = vmatprep.subr.mxu0 0.0
    %2572 = vmatpush2.msra.mxu0 0.0
    %2573 = vmatprep.subr.mxu0 0.0
    %2574 = vmatpush2.msra.mxu0 0.0
    %2575 = vmatprep.subr.mxu0 0.0
    %2576 = vmatpush2.msra.mxu0 0.0
    %2577 = vmatprep.subr.mxu0 0.0
    %2578 = vmatpush2.msra.mxu0 0.0
    %2579 = vmatprep.subr.mxu0 0.0
    %2580 = vmatpush2.msra.mxu0 0.0
    %2581 = vmatprep.subr.mxu0 0.0
    %2582 = vmatpush2.msra.mxu0 0.0
    %2583 = vmatprep.subr.mxu0 0.0
    %2584 = vmatpush2.msra.mxu0 0.0
    %2585 = vmatprep.subr.mxu0 0.0
    %2586 = vmatpush2.msra.mxu0 0.0
    %2587 = vmatprep.subr.mxu0 0.0
    %2588 = vmatpush2.msra.mxu0 0.0
    %2589 = vmatprep.mubr.f32.mxu0 0.0
    %2590 = vmatmul.mubr.f32.gmra.mxu0 %v2523
    %v2591 = vpop.f32.mrf.mxu0
    %v2592 = vadd.f32 0.0, %v2591
    %v2593 = vpop.f32.mrf.mxu0
    %2594 = vdwg.mxu0
    %v2595 = vadd.f32 %v2521, %v2592
    %v2596 = vld [vmem:[%s730] sm:$0xf]
    %v2598 = vsel %vm156, %v2503, 0
    %2600 = vmatprep.subr.mxu0 0.0
    %2601 = vmatpush1.msra.mxu0 0.0
    %2602 = vmatprep.subr.mxu0 0.0
    %2603 = vmatpush1.msra.mxu0 0.0
    %2604 = vmatprep.subr.mxu0 0.0
    %2605 = vmatpush1.msra.mxu0 0.0
    %2606 = vmatprep.subr.mxu0 0.0
    %2607 = vmatpush1.msra.mxu0 0.0
    %2608 = vmatprep.subr.mxu0 0.0
    %2609 = vmatpush1.msra.mxu0 0.0
    %2610 = vmatprep.subr.mxu0 0.0
    %2611 = vmatpush1.msra.mxu0 0.0
    %2612 = vmatprep.subr.mxu0 0.0
    %2613 = vmatpush1.msra.mxu0 0.0
    %2614 = vmatprep.subr.mxu0 0.0
    %2615 = vmatpush1.msra.mxu0 0.0
    %2616 = vmatprep.subr.mxu0 0.0
    %2617 = vmatpush1.msra.mxu0 0.0
    %2618 = vmatprep.subr.mxu0 0.0
    %2619 = vmatpush1.msra.mxu0 0.0
    %2620 = vmatprep.subr.mxu0 0.0
    %2621 = vmatpush1.msra.mxu0 0.0
    %2622 = vmatprep.subr.mxu0 0.0
    %2623 = vmatpush1.msra.mxu0 0.0
    %2624 = vmatprep.subr.mxu0 0.0
    %2625 = vmatpush1.msra.mxu0 %v1391
    %2626 = vmatprep.subr.mxu0 0.0
    %2627 = vmatpush1.msra.mxu0 %v1390
    %2628 = vmatprep.subr.mxu0 0.0
    %2629 = vmatpush1.msra.mxu0 %v1389
    %2630 = vmatprep.subr.mxu0 0.0
    %2631 = vmatpush1.msra.mxu0 %v1388
    %2632 = vmatprep.subr.mxu0 0.0
    %2633 = vmatpush2.msra.mxu0 0.0
    %2634 = vmatprep.subr.mxu0 0.0
    %2635 = vmatpush2.msra.mxu0 0.0
    %2636 = vmatprep.subr.mxu0 0.0
    %2637 = vmatpush2.msra.mxu0 0.0
    %2638 = vmatprep.subr.mxu0 0.0
    %2639 = vmatpush2.msra.mxu0 0.0
    %2640 = vmatprep.subr.mxu0 0.0
    %2641 = vmatpush2.msra.mxu0 0.0
    %2642 = vmatprep.subr.mxu0 0.0
    %2643 = vmatpush2.msra.mxu0 0.0
    %2644 = vmatprep.subr.mxu0 0.0
    %2645 = vmatpush2.msra.mxu0 0.0
    %2646 = vmatprep.subr.mxu0 0.0
    %2647 = vmatpush2.msra.mxu0 0.0
    %2648 = vmatprep.subr.mxu0 0.0
    %2649 = vmatpush2.msra.mxu0 0.0
    %2650 = vmatprep.subr.mxu0 0.0
    %2651 = vmatpush2.msra.mxu0 0.0
    %2652 = vmatprep.subr.mxu0 0.0
    %2653 = vmatpush2.msra.mxu0 0.0
    %2654 = vmatprep.subr.mxu0 0.0
    %2655 = vmatpush2.msra.mxu0 0.0
    %2656 = vmatprep.subr.mxu0 0.0
    %2657 = vmatpush2.msra.mxu0 0.0
    %2658 = vmatprep.subr.mxu0 0.0
    %2659 = vmatpush2.msra.mxu0 0.0
    %2660 = vmatprep.subr.mxu0 0.0
    %2661 = vmatpush2.msra.mxu0 0.0
    %2662 = vmatprep.subr.mxu0 0.0
    %2663 = vmatpush2.msra.mxu0 0.0
    %2664 = vmatprep.mubr.f32.mxu0 0.0
    %2665 = vmatmul.mubr.f32.gmra.mxu0 %v2598
    %v2666 = vpop.f32.mrf.mxu0
    %v2667 = vadd.f32 0.0, %v2666
    %v2668 = vpop.f32.mrf.mxu0
    %2669 = vdwg.mxu0
    %v2671 = vrot.slane %v2596, 2
    %v2673 = vadd.f32 %v2671, %v2667
    %v2674 = vxor.u32 %v2595, 2147483648
    %v2675 = vmul.f32 %v2674, 1.442695
    %v2676 = vpow.pop %v2675
    %v2677 = vadd.f32 %v2676, 1.0
    %v2678 = vrcp.pop %v2677
    %v2679 = vmul.f32 1.0, %v2678
    %v2680 = vtanh.pop %v2595
    %v2683 = vunpack.c.l.s4 1983009808
    %v2684 = vunpack.c.0.s8 %v2683
    %v2685 = vlaneseq
    %v2686 = vshrl.u32 %v2685, 7
    %v2687 = vsub.s32 %v2684, %v2686
    %v2688 = vrot.slane %v2449, %v2687
    %2689 = vrot.lane.b32.xlu0 %v2688, 32
    %v2690 = vpop.permute.xlu0 %2689
    %v2692 = vmul.f32 %v2679, %v2690
    %2694 = vrot.lane.b32.xlu0 %v2680, 64
    %v2695 = vpop.permute.xlu0 %2694
    %v2697 = vmul.f32 %v2679, %v2695
    %2699 = vrot.lane.b32.xlu0 %v2697, 32
    %v2700 = vpop.permute.xlu0 %2699
    %v2702 = vadd.f32 %v2692, %v2700
    %v2703 = vtanh.pop %v2702
    %2705 = vrot.lane.b32.xlu0 %v2703, 64
    %v2706 = vpop.permute.xlu0 %2705
    %v2708 = vmul.f32 %v2679, %v2706
    %v2711 = vunpack.c.l.s4 1983009808
    %v2712 = vunpack.c.0.s8 %v2711
    %v2713 = vlaneseq
    %v2714 = vshrl.u32 %v2713, 7
    %v2715 = vsub.s32 %v2712, %v2714
    %v2716 = vrot.slane %v2708, %v2715
    %2717 = vrot.lane.b32.xlu0 %v2716, 32
    %v2718 = vpop.permute.xlu0 %2717
    %v2720 = vsel %vm2491, %v2718, %v2437
    %v2723 = vunpack.c.l.s4 1983009808
    %v2724 = vunpack.c.0.s8 %v2723
    %v2725 = vlaneseq
    %v2726 = vshrl.u32 %v2725, 7
    %v2727 = vsub.s32 %v2724, %v2726
    %v2728 = vrot.slane %v2702, %v2727
    %2729 = vrot.lane.b32.xlu0 %v2728, 96
    %v2730 = vpop.permute.xlu0 %2729
    %v2732 = vsel %vm2491, %v2730, %v2449
    %v2733 = vsel %vm2491, %v2718, 0.0
    %v2734 = vxor.u32 %v2673, 2147483648
    %v2735 = vmul.f32 %v2734, 1.442695
    %v2736 = vpow.pop %v2735
    %v2737 = vadd.f32 %v2736, 1.0
    %v2738 = vrcp.pop %v2737
    %v2739 = vmul.f32 1.0, %v2738
    %v2740 = vtanh.pop %v2673
    %v2743 = vunpack.c.l.s4 1983009808
    %v2744 = vunpack.c.0.s8 %v2743
    %v2745 = vlaneseq
    %v2746 = vshrl.u32 %v2745, 7
    %v2747 = vsub.s32 %v2744, %v2746
    %v2748 = vrot.slane %v2515, %v2747
    %2749 = vrot.lane.b32.xlu0 %v2748, 32
    %v2750 = vpop.permute.xlu0 %2749
    %v2752 = vmul.f32 %v2739, %v2750
    %2754 = vrot.lane.b32.xlu0 %v2740, 64
    %v2755 = vpop.permute.xlu0 %2754
    %v2757 = vmul.f32 %v2739, %v2755
    %2759 = vrot.lane.b32.xlu0 %v2757, 32
    %v2760 = vpop.permute.xlu0 %2759
    %v2762 = vadd.f32 %v2752, %v2760
    %v2763 = vtanh.pop %v2762
    %2765 = vrot.lane.b32.xlu0 %v2763, 64
    %v2766 = vpop.permute.xlu0 %2765
    %v2768 = vmul.f32 %v2739, %v2766
    %v2771 = vunpack.c.l.s4 1983009808
    %v2772 = vunpack.c.0.s8 %v2771
    %v2773 = vlaneseq
    %v2774 = vshrl.u32 %v2773, 7
    %v2775 = vsub.s32 %v2772, %v2774
    %v2776 = vrot.slane %v2768, %v2775
    %2777 = vrot.lane.b32.xlu0 %v2776, 32
    %v2778 = vpop.permute.xlu0 %2777
    %v2780 = vsel %vm2425, %v2778, %v2503
    %v2783 = vunpack.c.l.s4 1983009808
    %v2784 = vunpack.c.0.s8 %v2783
    %v2785 = vlaneseq
    %v2786 = vshrl.u32 %v2785, 7
    %v2787 = vsub.s32 %v2784, %v2786
    %v2788 = vrot.slane %v2762, %v2787
    %2789 = vrot.lane.b32.xlu0 %v2788, 96
    %v2790 = vpop.permute.xlu0 %2789
    %v2792 = vsel %vm2425, %v2790, %v2515
    %v2793 = vsel %vm2425, %v2778, 0.0
    %s2794 = scalar_lea.vmem [#allocation3], 8
    %2795 = vst.msk [vmem:[%s2794] sm:$0x3] %vm1650, %v2733
    %s2796 = scalar_lea.vmem [#allocation4], 6
    %2797 = vst.msk [vmem:[%s2796] sm:$0x3] %vm1650, %v2793
    %v2798 = vld [vmem:[%s1056] sm:$0xf]
    %v2800 = vsel %vm156, %v2720, 0
    %2802 = vmatprep.subr.mxu0 0.0
    %2803 = vmatpush1.msra.mxu0 0.0
    %2804 = vmatprep.subr.mxu0 0.0
    %2805 = vmatpush1.msra.mxu0 0.0
    %2806 = vmatprep.subr.mxu0 0.0
    %2807 = vmatpush1.msra.mxu0 0.0
    %2808 = vmatprep.subr.mxu0 0.0
    %2809 = vmatpush1.msra.mxu0 0.0
    %2810 = vmatprep.subr.mxu0 0.0
    %2811 = vmatpush1.msra.mxu0 0.0
    %2812 = vmatprep.subr.mxu0 0.0
    %2813 = vmatpush1.msra.mxu0 0.0
    %2814 = vmatprep.subr.mxu0 0.0
    %2815 = vmatpush1.msra.mxu0 0.0
    %2816 = vmatprep.subr.mxu0 0.0
    %2817 = vmatpush1.msra.mxu0 0.0
    %2818 = vmatprep.subr.mxu0 0.0
    %2819 = vmatpush1.msra.mxu0 0.0
    %2820 = vmatprep.subr.mxu0 0.0
    %2821 = vmatpush1.msra.mxu0 0.0
    %2822 = vmatprep.subr.mxu0 0.0
    %2823 = vmatpush1.msra.mxu0 0.0
    %2824 = vmatprep.subr.mxu0 0.0
    %2825 = vmatpush1.msra.mxu0 0.0
    %2826 = vmatprep.subr.mxu0 0.0
    %2827 = vmatpush1.msra.mxu0 %v1387
    %2828 = vmatprep.subr.mxu0 0.0
    %2829 = vmatpush1.msra.mxu0 %v1386
    %2830 = vmatprep.subr.mxu0 0.0
    %2831 = vmatpush1.msra.mxu0 %v1385
    %2832 = vmatprep.subr.mxu0 0.0
    %2833 = vmatpush1.msra.mxu0 %v1384
    %2834 = vmatprep.subr.mxu0 0.0
    %2835 = vmatpush2.msra.mxu0 0.0
    %2836 = vmatprep.subr.mxu0 0.0
    %2837 = vmatpush2.msra.mxu0 0.0
    %2838 = vmatprep.subr.mxu0 0.0
    %2839 = vmatpush2.msra.mxu0 0.0
    %2840 = vmatprep.subr.mxu0 0.0
    %2841 = vmatpush2.msra.mxu0 0.0
    %2842 = vmatprep.subr.mxu0 0.0
    %2843 = vmatpush2.msra.mxu0 0.0
    %2844 = vmatprep.subr.mxu0 0.0
    %2845 = vmatpush2.msra.mxu0 0.0
    %2846 = vmatprep.subr.mxu0 0.0
    %2847 = vmatpush2.msra.mxu0 0.0
    %2848 = vmatprep.subr.mxu0 0.0
    %2849 = vmatpush2.msra.mxu0 0.0
    %2850 = vmatprep.subr.mxu0 0.0
    %2851 = vmatpush2.msra.mxu0 0.0
    %2852 = vmatprep.subr.mxu0 0.0
    %2853 = vmatpush2.msra.mxu0 0.0
    %2854 = vmatprep.subr.mxu0 0.0
    %2855 = vmatpush2.msra.mxu0 0.0
    %2856 = vmatprep.subr.mxu0 0.0
    %2857 = vmatpush2.msra.mxu0 0.0
    %2858 = vmatprep.subr.mxu0 0.0
    %2859 = vmatpush2.msra.mxu0 0.0
    %2860 = vmatprep.subr.mxu0 0.0
    %2861 = vmatpush2.msra.mxu0 0.0
    %2862 = vmatprep.subr.mxu0 0.0
    %2863 = vmatpush2.msra.mxu0 0.0
    %2864 = vmatprep.subr.mxu0 0.0
    %2865 = vmatpush2.msra.mxu0 0.0
    %2866 = vmatprep.mubr.f32.mxu0 0.0
    %2867 = vmatmul.mubr.f32.gmra.mxu0 %v2800
    %v2868 = vpop.f32.mrf.mxu0
    %v2869 = vadd.f32 0.0, %v2868
    %v2870 = vpop.f32.mrf.mxu0
    %2871 = vdwg.mxu0
    %v2872 = vadd.f32 %v2798, %v2869
    %v2873 = vld [vmem:[%s567] sm:$0xf]
    %v2875 = vsel %vm156, %v2780, 0
    %2877 = vmatprep.subr.mxu0 0.0
    %2878 = vmatpush1.msra.mxu0 0.0
    %2879 = vmatprep.subr.mxu0 0.0
    %2880 = vmatpush1.msra.mxu0 0.0
    %2881 = vmatprep.subr.mxu0 0.0
    %2882 = vmatpush1.msra.mxu0 0.0
    %2883 = vmatprep.subr.mxu0 0.0
    %2884 = vmatpush1.msra.mxu0 0.0
    %2885 = vmatprep.subr.mxu0 0.0
    %2886 = vmatpush1.msra.mxu0 0.0
    %2887 = vmatprep.subr.mxu0 0.0
    %2888 = vmatpush1.msra.mxu0 0.0
    %2889 = vmatprep.subr.mxu0 0.0
    %2890 = vmatpush1.msra.mxu0 0.0
    %2891 = vmatprep.subr.mxu0 0.0
    %2892 = vmatpush1.msra.mxu0 0.0
    %2893 = vmatprep.subr.mxu0 0.0
    %2894 = vmatpush1.msra.mxu0 0.0
    %2895 = vmatprep.subr.mxu0 0.0
    %2896 = vmatpush1.msra.mxu0 0.0
    %2897 = vmatprep.subr.mxu0 0.0
    %2898 = vmatpush1.msra.mxu0 0.0
    %2899 = vmatprep.subr.mxu0 0.0
    %2900 = vmatpush1.msra.mxu0 0.0
    %2901 = vmatprep.subr.mxu0 0.0
    %2902 = vmatpush1.msra.mxu0 %v1391
    %2903 = vmatprep.subr.mxu0 0.0
    %2904 = vmatpush1.msra.mxu0 %v1390
    %2905 = vmatprep.subr.mxu0 0.0
    %2906 = vmatpush1.msra.mxu0 %v1389
    %2907 = vmatprep.subr.mxu0 0.0
    %2908 = vmatpush1.msra.mxu0 %v1388
    %2909 = vmatprep.subr.mxu0 0.0
    %2910 = vmatpush2.msra.mxu0 0.0
    %2911 = vmatprep.subr.mxu0 0.0
    %2912 = vmatpush2.msra.mxu0 0.0
    %2913 = vmatprep.subr.mxu0 0.0
    %2914 = vmatpush2.msra.mxu0 0.0
    %2915 = vmatprep.subr.mxu0 0.0
    %2916 = vmatpush2.msra.mxu0 0.0
    %2917 = vmatprep.subr.mxu0 0.0
    %2918 = vmatpush2.msra.mxu0 0.0
    %2919 = vmatprep.subr.mxu0 0.0
    %2920 = vmatpush2.msra.mxu0 0.0
    %2921 = vmatprep.subr.mxu0 0.0
    %2922 = vmatpush2.msra.mxu0 0.0
    %2923 = vmatprep.subr.mxu0 0.0
    %2924 = vmatpush2.msra.mxu0 0.0
    %2925 = vmatprep.subr.mxu0 0.0
    %2926 = vmatpush2.msra.mxu0 0.0
    %2927 = vmatprep.subr.mxu0 0.0
    %2928 = vmatpush2.msra.mxu0 0.0
    %2929 = vmatprep.subr.mxu0 0.0
    %2930 = vmatpush2.msra.mxu0 0.0
    %2931 = vmatprep.subr.mxu0 0.0
    %2932 = vmatpush2.msra.mxu0 0.0
    %2933 = vmatprep.subr.mxu0 0.0
    %2934 = vmatpush2.msra.mxu0 0.0
    %2935 = vmatprep.subr.mxu0 0.0
    %2936 = vmatpush2.msra.mxu0 0.0
    %2937 = vmatprep.subr.mxu0 0.0
    %2938 = vmatpush2.msra.mxu0 0.0
    %2939 = vmatprep.subr.mxu0 0.0
    %2940 = vmatpush2.msra.mxu0 0.0
    %2941 = vmatprep.mubr.f32.mxu0 0.0
    %2942 = vmatmul.mubr.f32.gmra.mxu0 %v2875
    %v2943 = vpop.f32.mrf.mxu0
    %v2944 = vadd.f32 0.0, %v2943
    %v2945 = vpop.f32.mrf.mxu0
    %2946 = vdwg.mxu0
    %v2948 = vrot.slane %v2873, 2
    %v2950 = vadd.f32 %v2948, %v2944
    %v2951 = vxor.u32 %v2872, 2147483648
    %v2952 = vmul.f32 %v2951, 1.442695
    %v2953 = vpow.pop %v2952
    %v2954 = vadd.f32 %v2953, 1.0
    %v2955 = vrcp.pop %v2954
    %v2956 = vmul.f32 1.0, %v2955
    %v2957 = vtanh.pop %v2872
    %v2960 = vunpack.c.l.s4 1983009808
    %v2961 = vunpack.c.0.s8 %v2960
    %v2962 = vlaneseq
    %v2963 = vshrl.u32 %v2962, 7
    %v2964 = vsub.s32 %v2961, %v2963
    %v2965 = vrot.slane %v2732, %v2964
    %2966 = vrot.lane.b32.xlu0 %v2965, 32
    %v2967 = vpop.permute.xlu0 %2966
    %v2969 = vmul.f32 %v2956, %v2967
    %2971 = vrot.lane.b32.xlu0 %v2957, 64
    %v2972 = vpop.permute.xlu0 %2971
    %v2974 = vmul.f32 %v2956, %v2972
    %2976 = vrot.lane.b32.xlu0 %v2974, 32
    %v2977 = vpop.permute.xlu0 %2976
    %v2979 = vadd.f32 %v2969, %v2977
    %v2980 = vtanh.pop %v2979
    %2982 = vrot.lane.b32.xlu0 %v2980, 64
    %v2983 = vpop.permute.xlu0 %2982
    %v2985 = vmul.f32 %v2956, %v2983
    %v2988 = vunpack.c.l.s4 1983009808
    %v2989 = vunpack.c.0.s8 %v2988
    %v2990 = vlaneseq
    %v2991 = vshrl.u32 %v2990, 7
    %v2992 = vsub.s32 %v2989, %v2991
    %v2993 = vrot.slane %v2985, %v2992
    %2994 = vrot.lane.b32.xlu0 %v2993, 32
    %v2995 = vpop.permute.xlu0 %2994
    %v2997 = vsel %vm2202, %v2995, %v2720
    %v3000 = vunpack.c.l.s4 1983009808
    %v3001 = vunpack.c.0.s8 %v3000
    %v3002 = vlaneseq
    %v3003 = vshrl.u32 %v3002, 7
    %v3004 = vsub.s32 %v3001, %v3003
    %v3005 = vrot.slane %v2979, %v3004
    %3006 = vrot.lane.b32.xlu0 %v3005, 96
    %v3007 = vpop.permute.xlu0 %3006
    %v3009 = vsel %vm2202, %v3007, %v2732
    %v3010 = vsel %vm2202, %v2995, 0.0
    %v3011 = vxor.u32 %v2950, 2147483648
    %v3012 = vmul.f32 %v3011, 1.442695
    %v3013 = vpow.pop %v3012
    %v3014 = vadd.f32 %v3013, 1.0
    %v3015 = vrcp.pop %v3014
    %v3016 = vmul.f32 1.0, %v3015
    %v3017 = vtanh.pop %v2950
    %v3020 = vunpack.c.l.s4 1983009808
    %v3021 = vunpack.c.0.s8 %v3020
    %v3022 = vlaneseq
    %v3023 = vshrl.u32 %v3022, 7
    %v3024 = vsub.s32 %v3021, %v3023
    %v3025 = vrot.slane %v2792, %v3024
    %3026 = vrot.lane.b32.xlu0 %v3025, 32
    %v3027 = vpop.permute.xlu0 %3026
    %v3029 = vmul.f32 %v3016, %v3027
    %3031 = vrot.lane.b32.xlu0 %v3017, 64
    %v3032 = vpop.permute.xlu0 %3031
    %v3034 = vmul.f32 %v3016, %v3032
    %3036 = vrot.lane.b32.xlu0 %v3034, 32
    %v3037 = vpop.permute.xlu0 %3036
    %v3039 = vadd.f32 %v3029, %v3037
    %v3040 = vtanh.pop %v3039
    %3042 = vrot.lane.b32.xlu0 %v3040, 64
    %v3043 = vpop.permute.xlu0 %3042
    %v3045 = vmul.f32 %v3016, %v3043
    %v3048 = vunpack.c.l.s4 1983009808
    %v3049 = vunpack.c.0.s8 %v3048
    %v3050 = vlaneseq
    %v3051 = vshrl.u32 %v3050, 7
    %v3052 = vsub.s32 %v3049, %v3051
    %v3053 = vrot.slane %v3045, %v3052
    %3054 = vrot.lane.b32.xlu0 %v3053, 32
    %v3055 = vpop.permute.xlu0 %3054
    %v3057 = vsel %vm2136, %v3055, %v2780
    %v3060 = vunpack.c.l.s4 1983009808
    %v3061 = vunpack.c.0.s8 %v3060
    %v3062 = vlaneseq
    %v3063 = vshrl.u32 %v3062, 7
    %v3064 = vsub.s32 %v3061, %v3063
    %v3065 = vrot.slane %v3039, %v3064
    %3066 = vrot.lane.b32.xlu0 %v3065, 96
    %v3067 = vpop.permute.xlu0 %3066
    %v3069 = vsel %vm2136, %v3067, %v2792
    %v3070 = vsel %vm2136, %v3055, 0.0
    %s3071 = scalar_lea.vmem [#allocation3], 10
    %3072 = vst.msk [vmem:[%s3071] sm:$0x3] %vm1650, %v3010
    %s3073 = scalar_lea.vmem [#allocation4], 4
    %3074 = vst.msk [vmem:[%s3073] sm:$0x3] %vm1650, %v3070
    %v3075 = vld [vmem:[%s1219] sm:$0xf]
    %v3077 = vsel %vm156, %v2997, 0
    %3079 = vmatprep.subr.mxu0 0.0
    %3080 = vmatpush1.msra.mxu0 0.0
    %3081 = vmatprep.subr.mxu0 0.0
    %3082 = vmatpush1.msra.mxu0 0.0
    %3083 = vmatprep.subr.mxu0 0.0
    %3084 = vmatpush1.msra.mxu0 0.0
    %3085 = vmatprep.subr.mxu0 0.0
    %3086 = vmatpush1.msra.mxu0 0.0
    %3087 = vmatprep.subr.mxu0 0.0
    %3088 = vmatpush1.msra.mxu0 0.0
    %3089 = vmatprep.subr.mxu0 0.0
    %3090 = vmatpush1.msra.mxu0 0.0
    %3091 = vmatprep.subr.mxu0 0.0
    %3092 = vmatpush1.msra.mxu0 0.0
    %3093 = vmatprep.subr.mxu0 0.0
    %3094 = vmatpush1.msra.mxu0 0.0
    %3095 = vmatprep.subr.mxu0 0.0
    %3096 = vmatpush1.msra.mxu0 0.0
    %3097 = vmatprep.subr.mxu0 0.0
    %3098 = vmatpush1.msra.mxu0 0.0
    %3099 = vmatprep.subr.mxu0 0.0
    %3100 = vmatpush1.msra.mxu0 0.0
    %3101 = vmatprep.subr.mxu0 0.0
    %3102 = vmatpush1.msra.mxu0 0.0
    %3103 = vmatprep.subr.mxu0 0.0
    %3104 = vmatpush1.msra.mxu0 %v1387
    %3105 = vmatprep.subr.mxu0 0.0
    %3106 = vmatpush1.msra.mxu0 %v1386
    %3107 = vmatprep.subr.mxu0 0.0
    %3108 = vmatpush1.msra.mxu0 %v1385
    %3109 = vmatprep.subr.mxu0 0.0
    %3110 = vmatpush1.msra.mxu0 %v1384
    %3111 = vmatprep.subr.mxu0 0.0
    %3112 = vmatpush2.msra.mxu0 0.0
    %3113 = vmatprep.subr.mxu0 0.0
    %3114 = vmatpush2.msra.mxu0 0.0
    %3115 = vmatprep.subr.mxu0 0.0
    %3116 = vmatpush2.msra.mxu0 0.0
    %3117 = vmatprep.subr.mxu0 0.0
    %3118 = vmatpush2.msra.mxu0 0.0
    %3119 = vmatprep.subr.mxu0 0.0
    %3120 = vmatpush2.msra.mxu0 0.0
    %3121 = vmatprep.subr.mxu0 0.0
    %3122 = vmatpush2.msra.mxu0 0.0
    %3123 = vmatprep.subr.mxu0 0.0
    %3124 = vmatpush2.msra.mxu0 0.0
    %3125 = vmatprep.subr.mxu0 0.0
    %3126 = vmatpush2.msra.mxu0 0.0
    %3127 = vmatprep.subr.mxu0 0.0
    %3128 = vmatpush2.msra.mxu0 0.0
    %3129 = vmatprep.subr.mxu0 0.0
    %3130 = vmatpush2.msra.mxu0 0.0
    %3131 = vmatprep.subr.mxu0 0.0
    %3132 = vmatpush2.msra.mxu0 0.0
    %3133 = vmatprep.subr.mxu0 0.0
    %3134 = vmatpush2.msra.mxu0 0.0
    %3135 = vmatprep.subr.mxu0 0.0
    %3136 = vmatpush2.msra.mxu0 0.0
    %3137 = vmatprep.subr.mxu0 0.0
    %3138 = vmatpush2.msra.mxu0 0.0
    %3139 = vmatprep.subr.mxu0 0.0
    %3140 = vmatpush2.msra.mxu0 0.0
    %3141 = vmatprep.subr.mxu0 0.0
    %3142 = vmatpush2.msra.mxu0 0.0
    %3143 = vmatprep.mubr.f32.mxu0 0.0
    %3144 = vmatmul.mubr.f32.gmra.mxu0 %v3077
    %v3145 = vpop.f32.mrf.mxu0
    %v3146 = vadd.f32 0.0, %v3145
    %v3147 = vpop.f32.mrf.mxu0
    %3148 = vdwg.mxu0
    %v3149 = vadd.f32 %v3075, %v3146
    %v3150 = vld [vmem:[%s404] sm:$0xf]
    %v3152 = vsel %vm156, %v3057, 0
    %3154 = vmatprep.subr.mxu0 0.0
    %3155 = vmatpush1.msra.mxu0 0.0
    %3156 = vmatprep.subr.mxu0 0.0
    %3157 = vmatpush1.msra.mxu0 0.0
    %3158 = vmatprep.subr.mxu0 0.0
    %3159 = vmatpush1.msra.mxu0 0.0
    %3160 = vmatprep.subr.mxu0 0.0
    %3161 = vmatpush1.msra.mxu0 0.0
    %3162 = vmatprep.subr.mxu0 0.0
    %3163 = vmatpush1.msra.mxu0 0.0
    %3164 = vmatprep.subr.mxu0 0.0
    %3165 = vmatpush1.msra.mxu0 0.0
    %3166 = vmatprep.subr.mxu0 0.0
    %3167 = vmatpush1.msra.mxu0 0.0
    %3168 = vmatprep.subr.mxu0 0.0
    %3169 = vmatpush1.msra.mxu0 0.0
    %3170 = vmatprep.subr.mxu0 0.0
    %3171 = vmatpush1.msra.mxu0 0.0
    %3172 = vmatprep.subr.mxu0 0.0
    %3173 = vmatpush1.msra.mxu0 0.0
    %3174 = vmatprep.subr.mxu0 0.0
    %3175 = vmatpush1.msra.mxu0 0.0
    %3176 = vmatprep.subr.mxu0 0.0
    %3177 = vmatpush1.msra.mxu0 0.0
    %3178 = vmatprep.subr.mxu0 0.0
    %3179 = vmatpush1.msra.mxu0 %v1391
    %3180 = vmatprep.subr.mxu0 0.0
    %3181 = vmatpush1.msra.mxu0 %v1390
    %3182 = vmatprep.subr.mxu0 0.0
    %3183 = vmatpush1.msra.mxu0 %v1389
    %3184 = vmatprep.subr.mxu0 0.0
    %3185 = vmatpush1.msra.mxu0 %v1388
    %3186 = vmatprep.subr.mxu0 0.0
    %3187 = vmatpush2.msra.mxu0 0.0
    %3188 = vmatprep.subr.mxu0 0.0
    %3189 = vmatpush2.msra.mxu0 0.0
    %3190 = vmatprep.subr.mxu0 0.0
    %3191 = vmatpush2.msra.mxu0 0.0
    %3192 = vmatprep.subr.mxu0 0.0
    %3193 = vmatpush2.msra.mxu0 0.0
    %3194 = vmatprep.subr.mxu0 0.0
    %3195 = vmatpush2.msra.mxu0 0.0
    %3196 = vmatprep.subr.mxu0 0.0
    %3197 = vmatpush2.msra.mxu0 0.0
    %3198 = vmatprep.subr.mxu0 0.0
    %3199 = vmatpush2.msra.mxu0 0.0
    %3200 = vmatprep.subr.mxu0 0.0
    %3201 = vmatpush2.msra.mxu0 0.0
    %3202 = vmatprep.subr.mxu0 0.0
    %3203 = vmatpush2.msra.mxu0 0.0
    %3204 = vmatprep.subr.mxu0 0.0
    %3205 = vmatpush2.msra.mxu0 0.0
    %3206 = vmatprep.subr.mxu0 0.0
    %3207 = vmatpush2.msra.mxu0 0.0
    %3208 = vmatprep.subr.mxu0 0.0
    %3209 = vmatpush2.msra.mxu0 0.0
    %3210 = vmatprep.subr.mxu0 0.0
    %3211 = vmatpush2.msra.mxu0 0.0
    %3212 = vmatprep.subr.mxu0 0.0
    %3213 = vmatpush2.msra.mxu0 0.0
    %3214 = vmatprep.subr.mxu0 0.0
    %3215 = vmatpush2.msra.mxu0 0.0
    %3216 = vmatprep.subr.mxu0 0.0
    %3217 = vmatpush2.msra.mxu0 0.0
    %3218 = vmatprep.mubr.f32.mxu0 0.0
    %3219 = vmatmul.mubr.f32.gmra.mxu0 %v3152
    %v3220 = vpop.f32.mrf.mxu0
    %v3221 = vadd.f32 0.0, %v3220
    %v3222 = vpop.f32.mrf.mxu0
    %3223 = vdwg.mxu0
    %v3225 = vrot.slane %v3150, 2
    %v3227 = vadd.f32 %v3225, %v3221
    %v3228 = vxor.u32 %v3149, 2147483648
    %v3229 = vmul.f32 %v3228, 1.442695
    %v3230 = vpow.pop %v3229
    %v3231 = vadd.f32 %v3230, 1.0
    %v3232 = vrcp.pop %v3231
    %v3233 = vmul.f32 1.0, %v3232
    %v3234 = vtanh.pop %v3149
    %v3237 = vunpack.c.l.s4 1983009808
    %v3238 = vunpack.c.0.s8 %v3237
    %v3239 = vlaneseq
    %v3240 = vshrl.u32 %v3239, 7
    %v3241 = vsub.s32 %v3238, %v3240
    %v3242 = vrot.slane %v3009, %v3241
    %3243 = vrot.lane.b32.xlu0 %v3242, 32
    %v3244 = vpop.permute.xlu0 %3243
    %v3246 = vmul.f32 %v3233, %v3244
    %3248 = vrot.lane.b32.xlu0 %v3234, 64
    %v3249 = vpop.permute.xlu0 %3248
    %v3251 = vmul.f32 %v3233, %v3249
    %3253 = vrot.lane.b32.xlu0 %v3251, 32
    %v3254 = vpop.permute.xlu0 %3253
    %v3256 = vadd.f32 %v3246, %v3254
    %v3257 = vtanh.pop %v3256
    %3259 = vrot.lane.b32.xlu0 %v3257, 64
    %v3260 = vpop.permute.xlu0 %3259
    %v3262 = vmul.f32 %v3233, %v3260
    %v3265 = vunpack.c.l.s4 1983009808
    %v3266 = vunpack.c.0.s8 %v3265
    %v3267 = vlaneseq
    %v3268 = vshrl.u32 %v3267, 7
    %v3269 = vsub.s32 %v3266, %v3268
    %v3270 = vrot.slane %v3262, %v3269
    %3271 = vrot.lane.b32.xlu0 %v3270, 32
    %v3272 = vpop.permute.xlu0 %3271
    %v3274 = vsel %vm1913, %v3272, %v2997
    %v3277 = vunpack.c.l.s4 1983009808
    %v3278 = vunpack.c.0.s8 %v3277
    %v3279 = vlaneseq
    %v3280 = vshrl.u32 %v3279, 7
    %v3281 = vsub.s32 %v3278, %v3280
    %v3282 = vrot.slane %v3256, %v3281
    %3283 = vrot.lane.b32.xlu0 %v3282, 96
    %v3284 = vpop.permute.xlu0 %3283
    %v3286 = vsel %vm1913, %v3284, %v3009
    %v3287 = vsel %vm1913, %v3272, 0.0
    %v3288 = vxor.u32 %v3227, 2147483648
    %v3289 = vmul.f32 %v3288, 1.442695
    %v3290 = vpow.pop %v3289
    %v3291 = vadd.f32 %v3290, 1.0
    %v3292 = vrcp.pop %v3291
    %v3293 = vmul.f32 1.0, %v3292
    %v3294 = vtanh.pop %v3227
    %v3297 = vunpack.c.l.s4 1983009808
    %v3298 = vunpack.c.0.s8 %v3297
    %v3299 = vlaneseq
    %v3300 = vshrl.u32 %v3299, 7
    %v3301 = vsub.s32 %v3298, %v3300
    %v3302 = vrot.slane %v3069, %v3301
    %3303 = vrot.lane.b32.xlu0 %v3302, 32
    %v3304 = vpop.permute.xlu0 %3303
    %v3306 = vmul.f32 %v3293, %v3304
    %3308 = vrot.lane.b32.xlu0 %v3294, 64
    %v3309 = vpop.permute.xlu0 %3308
    %v3311 = vmul.f32 %v3293, %v3309
    %3313 = vrot.lane.b32.xlu0 %v3311, 32
    %v3314 = vpop.permute.xlu0 %3313
    %v3316 = vadd.f32 %v3306, %v3314
    %v3317 = vtanh.pop %v3316
    %3319 = vrot.lane.b32.xlu0 %v3317, 64
    %v3320 = vpop.permute.xlu0 %3319
    %v3322 = vmul.f32 %v3293, %v3320
    %v3325 = vunpack.c.l.s4 1983009808
    %v3326 = vunpack.c.0.s8 %v3325
    %v3327 = vlaneseq
    %v3328 = vshrl.u32 %v3327, 7
    %v3329 = vsub.s32 %v3326, %v3328
    %v3330 = vrot.slane %v3322, %v3329
    %3331 = vrot.lane.b32.xlu0 %v3330, 32
    %v3332 = vpop.permute.xlu0 %3331
    %v3334 = vsel %vm1847, %v3332, %v3057
    %v3337 = vunpack.c.l.s4 1983009808
    %v3338 = vunpack.c.0.s8 %v3337
    %v3339 = vlaneseq
    %v3340 = vshrl.u32 %v3339, 7
    %v3341 = vsub.s32 %v3338, %v3340
    %v3342 = vrot.slane %v3316, %v3341
    %3343 = vrot.lane.b32.xlu0 %v3342, 96
    %v3344 = vpop.permute.xlu0 %3343
    %v3346 = vsel %vm1847, %v3344, %v3069
    %v3347 = vsel %vm1847, %v3332, 0.0
    %s3348 = scalar_lea.vmem [#allocation3], 12
    %3349 = vst.msk [vmem:[%s3348] sm:$0x3] %vm1650, %v3287
    %s3350 = scalar_lea.vmem [#allocation4], 2
    %3351 = vst.msk [vmem:[%s3350] sm:$0x3] %vm1650, %v3347
    %v3352 = vld [vmem:[%s1382] sm:$0xf]
    %v3354 = vsel %vm156, %v3274, 0
    %3356 = vmatprep.subr.mxu0 0.0
    %3357 = vmatpush1.msra.mxu0 0.0
    %3358 = vmatprep.subr.mxu0 0.0
    %3359 = vmatpush1.msra.mxu0 0.0
    %3360 = vmatprep.subr.mxu0 0.0
    %3361 = vmatpush1.msra.mxu0 0.0
    %3362 = vmatprep.subr.mxu0 0.0
    %3363 = vmatpush1.msra.mxu0 0.0
    %3364 = vmatprep.subr.mxu0 0.0
    %3365 = vmatpush1.msra.mxu0 0.0
    %3366 = vmatprep.subr.mxu0 0.0
    %3367 = vmatpush1.msra.mxu0 0.0
    %3368 = vmatprep.subr.mxu0 0.0
    %3369 = vmatpush1.msra.mxu0 0.0
    %3370 = vmatprep.subr.mxu0 0.0
    %3371 = vmatpush1.msra.mxu0 0.0
    %3372 = vmatprep.subr.mxu0 0.0
    %3373 = vmatpush1.msra.mxu0 0.0
    %3374 = vmatprep.subr.mxu0 0.0
    %3375 = vmatpush1.msra.mxu0 0.0
    %3376 = vmatprep.subr.mxu0 0.0
    %3377 = vmatpush1.msra.mxu0 0.0
    %3378 = vmatprep.subr.mxu0 0.0
    %3379 = vmatpush1.msra.mxu0 0.0
    %3380 = vmatprep.subr.mxu0 0.0
    %3381 = vmatpush1.msra.mxu0 %v1387
    %3382 = vmatprep.subr.mxu0 0.0
    %3383 = vmatpush1.msra.mxu0 %v1386
    %3384 = vmatprep.subr.mxu0 0.0
    %3385 = vmatpush1.msra.mxu0 %v1385
    %3386 = vmatprep.subr.mxu0 0.0
    %3387 = vmatpush1.msra.mxu0 %v1384
    %3388 = vmatprep.subr.mxu0 0.0
    %3389 = vmatpush2.msra.mxu0 0.0
    %3390 = vmatprep.subr.mxu0 0.0
    %3391 = vmatpush2.msra.mxu0 0.0
    %3392 = vmatprep.subr.mxu0 0.0
    %3393 = vmatpush2.msra.mxu0 0.0
    %3394 = vmatprep.subr.mxu0 0.0
    %3395 = vmatpush2.msra.mxu0 0.0
    %3396 = vmatprep.subr.mxu0 0.0
    %3397 = vmatpush2.msra.mxu0 0.0
    %3398 = vmatprep.subr.mxu0 0.0
    %3399 = vmatpush2.msra.mxu0 0.0
    %3400 = vmatprep.subr.mxu0 0.0
    %3401 = vmatpush2.msra.mxu0 0.0
    %3402 = vmatprep.subr.mxu0 0.0
    %3403 = vmatpush2.msra.mxu0 0.0
    %3404 = vmatprep.subr.mxu0 0.0
    %3405 = vmatpush2.msra.mxu0 0.0
    %3406 = vmatprep.subr.mxu0 0.0
    %3407 = vmatpush2.msra.mxu0 0.0
    %3408 = vmatprep.subr.mxu0 0.0
    %3409 = vmatpush2.msra.mxu0 0.0
    %3410 = vmatprep.subr.mxu0 0.0
    %3411 = vmatpush2.msra.mxu0 0.0
    %3412 = vmatprep.subr.mxu0 0.0
    %3413 = vmatpush2.msra.mxu0 0.0
    %3414 = vmatprep.subr.mxu0 0.0
    %3415 = vmatpush2.msra.mxu0 0.0
    %3416 = vmatprep.subr.mxu0 0.0
    %3417 = vmatpush2.msra.mxu0 0.0
    %3418 = vmatprep.subr.mxu0 0.0
    %3419 = vmatpush2.msra.mxu0 0.0
    %3420 = vmatprep.mubr.f32.mxu0 0.0
    %3421 = vmatmul.mubr.f32.gmra.mxu0 %v3354
    %v3422 = vpop.f32.mrf.mxu0
    %v3423 = vadd.f32 0.0, %v3422
    %v3424 = vpop.f32.mrf.mxu0
    %3425 = vdwg.mxu0
    %v3426 = vadd.f32 %v3352, %v3423
    %v3427 = vld [vmem:[#allocation2] sm:$0xf]
    %v3429 = vsel %vm156, %v3334, 0
    %3431 = vmatprep.subr.mxu0 0.0
    %3432 = vmatpush1.msra.mxu0 0.0
    %3433 = vmatprep.subr.mxu0 0.0
    %3434 = vmatpush1.msra.mxu0 0.0
    %3435 = vmatprep.subr.mxu0 0.0
    %3436 = vmatpush1.msra.mxu0 0.0
    %3437 = vmatprep.subr.mxu0 0.0
    %3438 = vmatpush1.msra.mxu0 0.0
    %3439 = vmatprep.subr.mxu0 0.0
    %3440 = vmatpush1.msra.mxu0 0.0
    %3441 = vmatprep.subr.mxu0 0.0
    %3442 = vmatpush1.msra.mxu0 0.0
    %3443 = vmatprep.subr.mxu0 0.0
    %3444 = vmatpush1.msra.mxu0 0.0
    %3445 = vmatprep.subr.mxu0 0.0
    %3446 = vmatpush1.msra.mxu0 0.0
    %3447 = vmatprep.subr.mxu0 0.0
    %3448 = vmatpush1.msra.mxu0 0.0
    %3449 = vmatprep.subr.mxu0 0.0
    %3450 = vmatpush1.msra.mxu0 0.0
    %3451 = vmatprep.subr.mxu0 0.0
    %3452 = vmatpush1.msra.mxu0 0.0
    %3453 = vmatprep.subr.mxu0 0.0
    %3454 = vmatpush1.msra.mxu0 0.0
    %3455 = vmatprep.subr.mxu0 0.0
    %3456 = vmatpush1.msra.mxu0 %v1391
    %3457 = vmatprep.subr.mxu0 0.0
    %3458 = vmatpush1.msra.mxu0 %v1390
    %3459 = vmatprep.subr.mxu0 0.0
    %3460 = vmatpush1.msra.mxu0 %v1389
    %3461 = vmatprep.subr.mxu0 0.0
    %3462 = vmatpush1.msra.mxu0 %v1388
    %3463 = vmatprep.subr.mxu0 0.0
    %3464 = vmatpush2.msra.mxu0 0.0
    %3465 = vmatprep.subr.mxu0 0.0
    %3466 = vmatpush2.msra.mxu0 0.0
    %3467 = vmatprep.subr.mxu0 0.0
    %3468 = vmatpush2.msra.mxu0 0.0
    %3469 = vmatprep.subr.mxu0 0.0
    %3470 = vmatpush2.msra.mxu0 0.0
    %3471 = vmatprep.subr.mxu0 0.0
    %3472 = vmatpush2.msra.mxu0 0.0
    %3473 = vmatprep.subr.mxu0 0.0
    %3474 = vmatpush2.msra.mxu0 0.0
    %3475 = vmatprep.subr.mxu0 0.0
    %3476 = vmatpush2.msra.mxu0 0.0
    %3477 = vmatprep.subr.mxu0 0.0
    %3478 = vmatpush2.msra.mxu0 0.0
    %3479 = vmatprep.subr.mxu0 0.0
    %3480 = vmatpush2.msra.mxu0 0.0
    %3481 = vmatprep.subr.mxu0 0.0
    %3482 = vmatpush2.msra.mxu0 0.0
    %3483 = vmatprep.subr.mxu0 0.0
    %3484 = vmatpush2.msra.mxu0 0.0
    %3485 = vmatprep.subr.mxu0 0.0
    %3486 = vmatpush2.msra.mxu0 0.0
    %3487 = vmatprep.subr.mxu0 0.0
    %3488 = vmatpush2.msra.mxu0 0.0
    %3489 = vmatprep.subr.mxu0 0.0
    %3490 = vmatpush2.msra.mxu0 0.0
    %3491 = vmatprep.subr.mxu0 0.0
    %3492 = vmatpush2.msra.mxu0 0.0
    %3493 = vmatprep.subr.mxu0 0.0
    %3494 = vmatpush2.msra.mxu0 0.0
    %3495 = vmatprep.mubr.f32.mxu0 0.0
    %3496 = vmatmul.mubr.f32.gmra.mxu0 %v3429
    %v3497 = vpop.f32.mrf.mxu0
    %v3498 = vadd.f32 0.0, %v3497
    %v3499 = vpop.f32.mrf.mxu0
    %3500 = vdwg.mxu0
    %v3502 = vrot.slane %v3427, 2
    %v3504 = vadd.f32 %v3502, %v3498
    %v3505 = vxor.u32 %v3426, 2147483648
    %v3506 = vmul.f32 %v3505, 1.442695
    %v3507 = vpow.pop %v3506
    %v3508 = vadd.f32 %v3507, 1.0
    %v3509 = vrcp.pop %v3508
    %v3510 = vmul.f32 1.0, %v3509
    %v3511 = vtanh.pop %v3426
    %v3514 = vunpack.c.l.s4 1983009808
    %v3515 = vunpack.c.0.s8 %v3514
    %v3516 = vlaneseq
    %v3517 = vshrl.u32 %v3516, 7
    %v3518 = vsub.s32 %v3515, %v3517
    %v3519 = vrot.slane %v3286, %v3518
    %3520 = vrot.lane.b32.xlu0 %v3519, 32
    %v3521 = vpop.permute.xlu0 %3520
    %v3523 = vmul.f32 %v3510, %v3521
    %3525 = vrot.lane.b32.xlu0 %v3511, 64
    %v3526 = vpop.permute.xlu0 %3525
    %v3528 = vmul.f32 %v3510, %v3526
    %3530 = vrot.lane.b32.xlu0 %v3528, 32
    %v3531 = vpop.permute.xlu0 %3530
    %v3533 = vadd.f32 %v3523, %v3531
    %v3534 = vtanh.pop %v3533
    %3536 = vrot.lane.b32.xlu0 %v3534, 64
    %v3537 = vpop.permute.xlu0 %3536
    %v3539 = vmul.f32 %v3510, %v3537
    %v3542 = vunpack.c.l.s4 1983009808
    %v3543 = vunpack.c.0.s8 %v3542
    %v3544 = vlaneseq
    %v3545 = vshrl.u32 %v3544, 7
    %v3546 = vsub.s32 %v3543, %v3545
    %v3547 = vrot.slane %v3539, %v3546
    %3548 = vrot.lane.b32.xlu0 %v3547, 32
    %v3549 = vpop.permute.xlu0 %3548
    %v3551 = vsel %vm1625, %v3549, %v3274
    %v3554 = vunpack.c.l.s4 1983009808
    %v3555 = vunpack.c.0.s8 %v3554
    %v3556 = vlaneseq
    %v3557 = vshrl.u32 %v3556, 7
    %v3558 = vsub.s32 %v3555, %v3557
    %v3559 = vrot.slane %v3533, %v3558
    %3560 = vrot.lane.b32.xlu0 %v3559, 96
    %v3561 = vpop.permute.xlu0 %3560
    %v3563 = vsel %vm1625, %v3561, %v3286
    %v3564 = vsel %vm1625, %v3549, 0.0
    %v3565 = vxor.u32 %v3504, 2147483648
    %v3566 = vmul.f32 %v3565, 1.442695
    %v3567 = vpow.pop %v3566
    %v3568 = vadd.f32 %v3567, 1.0
    %v3569 = vrcp.pop %v3568
    %v3570 = vmul.f32 1.0, %v3569
    %v3571 = vtanh.pop %v3504
    %v3574 = vunpack.c.l.s4 1983009808
    %v3575 = vunpack.c.0.s8 %v3574
    %v3576 = vlaneseq
    %v3577 = vshrl.u32 %v3576, 7
    %v3578 = vsub.s32 %v3575, %v3577
    %v3579 = vrot.slane %v3346, %v3578
    %3580 = vrot.lane.b32.xlu0 %v3579, 32
    %v3581 = vpop.permute.xlu0 %3580
    %v3583 = vmul.f32 %v3570, %v3581
    %3585 = vrot.lane.b32.xlu0 %v3571, 64
    %v3586 = vpop.permute.xlu0 %3585
    %v3588 = vmul.f32 %v3570, %v3586
    %3590 = vrot.lane.b32.xlu0 %v3588, 32
    %v3591 = vpop.permute.xlu0 %3590
    %v3593 = vadd.f32 %v3583, %v3591
    %v3594 = vtanh.pop %v3593
    %3596 = vrot.lane.b32.xlu0 %v3594, 64
    %v3597 = vpop.permute.xlu0 %3596
    %v3599 = vmul.f32 %v3570, %v3597
    %v3602 = vunpack.c.l.s4 1983009808
    %v3603 = vunpack.c.0.s8 %v3602
    %v3604 = vlaneseq
    %v3605 = vshrl.u32 %v3604, 7
    %v3606 = vsub.s32 %v3603, %v3605
    %v3607 = vrot.slane %v3599, %v3606
    %3608 = vrot.lane.b32.xlu0 %v3607, 32
    %v3609 = vpop.permute.xlu0 %3608
    %v3611 = vsel %vm1571, %v3609, %v3334
    %v3614 = vunpack.c.l.s4 1983009808
    %v3615 = vunpack.c.0.s8 %v3614
    %v3616 = vlaneseq
    %v3617 = vshrl.u32 %v3616, 7
    %v3618 = vsub.s32 %v3615, %v3617
    %v3619 = vrot.slane %v3593, %v3618
    %3620 = vrot.lane.b32.xlu0 %v3619, 96
    %v3621 = vpop.permute.xlu0 %3620
    %v3623 = vsel %vm1571, %v3621, %v3346
    %v3624 = vsel %vm1571, %v3609, 0.0
    %s3625 = scalar_lea.vmem [#allocation3], 14
    %3626 = vst.msk [vmem:[%s3625] sm:$0x3] %vm1650, %v3564
    %3627 = vst.msk [vmem:[#allocation4] sm:$0x3] %vm1650, %v3624
    %v3628 = vld [vmem:[%s8] sm:$0xff]
    %v3629 = vld [vmem:[%s8 + $0x8] sm:$0xff]
    %v3630 = vld [vmem:[%s8 + $0x10] sm:$0xff]
    %v3631 = vld [vmem:[%s8 + $0x18] sm:$0xff]
    %v3632 = vld [vmem:[%s8 + $0x20] sm:$0xff]
    %v3633 = vld [vmem:[%s8 + $0x28] sm:$0xff]
    %v3634 = vld [vmem:[%s8 + $0x30] sm:$0xff]
    %v3635 = vld [vmem:[%s8 + $0x38] sm:$0xff]
    %v3636 = vld [vmem:[%s8 + $0x40] sm:$0xff]
    %v3637 = vld [vmem:[%s8 + $0x48] sm:$0xff]
    %v3638 = vld [vmem:[%s8 + $0x50] sm:$0xff]
    %v3639 = vld [vmem:[%s8 + $0x58] sm:$0xff]
    %v3640 = vld [vmem:[%s8 + $0x60] sm:$0xff]
    %v3641 = vld [vmem:[%s8 + $0x68] sm:$0xff]
    %v3642 = vld [vmem:[%s8 + $0x70] sm:$0xff]
    %v3643 = vld [vmem:[%s8 + $0x78] sm:$0xff]
    %v3644 = vld [vmem:[%s9] sm:$0x3]
    %v3645 = vld [vmem:[#allocation3] sm:$0x3]
    %v3646 = vld [vmem:[#allocation4] sm:$0x3]
    %3648 = vrot.lane.b32.xlu0 %v3646, 32
    %v3649 = vpop.permute.xlu0 %3648
    %v3651 = vsel %vm156, %v3645, %v3649
    %v3653 = vlaneseq
    %v3654 = vshrl.u32 %v3653, 7
    %v3655 = vsub.s32 0, %v3654
    %v3656 = vrot.slane %v3644, %v3655
    %v3657 = vlaneseq
    %v3658 = vshrl.u32 %v3657, 7
    %v3659 = vsub.s32 1, %v3658
    %v3660 = vrot.slane %v3644, %v3659
    %vm3663 = vcmask 523264
    %v3665 = vsel %vm3663, %v3651, 0
    %3667 = vmatprep.subr.mxu0 0.0
    %3668 = vmatpush1.msra.mxu0 0.0
    %3669 = vmatprep.subr.mxu0 0.0
    %3670 = vmatpush1.msra.mxu0 0.0
    %3671 = vmatprep.subr.mxu0 0.0
    %3672 = vmatpush1.msra.mxu0 0.0
    %3673 = vmatprep.subr.mxu0 0.0
    %3674 = vmatpush1.msra.mxu0 0.0
    %3675 = vmatprep.subr.mxu0 0.0
    %3676 = vmatpush1.msra.mxu0 0.0
    %3677 = vmatprep.subr.mxu0 0.0
    %3678 = vmatpush1.msra.mxu0 0.0
    %3679 = vmatprep.subr.mxu0 0.0
    %3680 = vmatpush1.msra.mxu0 0.0
    %3681 = vmatprep.subr.mxu0 0.0
    %3682 = vmatpush1.msra.mxu0 0.0
    %3683 = vmatprep.subr.mxu0 %v3643
    %3684 = vmatpush1.msra.mxu0 %v3642
    %3685 = vmatprep.subr.mxu0 %v3641
    %3686 = vmatpush1.msra.mxu0 %v3640
    %3687 = vmatprep.subr.mxu0 %v3639
    %3688 = vmatpush1.msra.mxu0 %v3638
    %3689 = vmatprep.subr.mxu0 %v3637
    %3690 = vmatpush1.msra.mxu0 %v3636
    %3691 = vmatprep.subr.mxu0 %v3635
    %3692 = vmatpush1.msra.mxu0 %v3634
    %3693 = vmatprep.subr.mxu0 %v3633
    %3694 = vmatpush1.msra.mxu0 %v3632
    %3695 = vmatprep.subr.mxu0 %v3631
    %3696 = vmatpush1.msra.mxu0 %v3630
    %3697 = vmatprep.subr.mxu0 %v3629
    %3698 = vmatpush1.msra.mxu0 %v3628
    %3699 = vmatprep.subr.mxu0 0.0
    %3700 = vmatpush2.msra.mxu0 0.0
    %3701 = vmatprep.subr.mxu0 0.0
    %3702 = vmatpush2.msra.mxu0 0.0
    %3703 = vmatprep.subr.mxu0 0.0
    %3704 = vmatpush2.msra.mxu0 0.0
    %3705 = vmatprep.subr.mxu0 0.0
    %3706 = vmatpush2.msra.mxu0 0.0
    %3707 = vmatprep.subr.mxu0 0.0
    %3708 = vmatpush2.msra.mxu0 0.0
    %3709 = vmatprep.subr.mxu0 0.0
    %3710 = vmatpush2.msra.mxu0 0.0
    %3711 = vmatprep.subr.mxu0 0.0
    %3712 = vmatpush2.msra.mxu0 0.0
    %3713 = vmatprep.subr.mxu0 0.0
    %3714 = vmatpush2.msra.mxu0 0.0
    %3715 = vmatprep.subr.mxu0 0.0
    %3716 = vmatpush2.msra.mxu0 0.0
    %3717 = vmatprep.subr.mxu0 0.0
    %3718 = vmatpush2.msra.mxu0 0.0
    %3719 = vmatprep.subr.mxu0 0.0
    %3720 = vmatpush2.msra.mxu0 0.0
    %3721 = vmatprep.subr.mxu0 0.0
    %3722 = vmatpush2.msra.mxu0 0.0
    %3723 = vmatprep.subr.mxu0 0.0
    %3724 = vmatpush2.msra.mxu0 0.0
    %3725 = vmatprep.subr.mxu0 0.0
    %3726 = vmatpush2.msra.mxu0 0.0
    %3727 = vmatprep.subr.mxu0 0.0
    %3728 = vmatpush2.msra.mxu0 0.0
    %3729 = vmatprep.subr.mxu0 0.0
    %3730 = vmatpush2.msra.mxu0 0.0
    %3731 = vmatprep.mubr.f32.mxu0 0.0
    %3732 = vmatmul.mubr.f32.gmra.mxu0 %v3665
    %v3733 = vpop.f32.mrf.mxu0
    %v3734 = vadd.f32 %v3656, %v3733
    %v3735 = vpop.f32.mrf.mxu0
    %v3736 = vadd.f32 %v3660, %v3735
    %3737 = vdwg.mxu0
    %v3740 = vcombine.low %v3734, %v3736
    %v3742 = vunpack.c.l.s4 1983009808
    %v3743 = vunpack.c.0.s8 %v3742
    %v3744 = vlaneseq
    %v3745 = vshrl.u32 %v3744, 7
    %v3746 = vsub.s32 %v3743, %v3745
    %v3747 = vrot.slane %v3740, %v3746
    %3749 = vst [vmem:[#allocation2] sm:$0xf] %v3747
    %v3750 = vld [vmem:[%s1939] sm:$0x3]
    %v3751 = vld [vmem:[%s3350] sm:$0x3]
    %3753 = vrot.lane.b32.xlu0 %v3751, 32
    %v3754 = vpop.permute.xlu0 %3753
    %v3756 = vsel %vm156, %v3750, %v3754
    %v3758 = vsel %vm3663, %v3756, 0
    %3760 = vmatprep.subr.mxu0 0.0
    %3761 = vmatpush1.msra.mxu0 0.0
    %3762 = vmatprep.subr.mxu0 0.0
    %3763 = vmatpush1.msra.mxu0 0.0
    %3764 = vmatprep.subr.mxu0 0.0
    %3765 = vmatpush1.msra.mxu0 0.0
    %3766 = vmatprep.subr.mxu0 0.0
    %3767 = vmatpush1.msra.mxu0 0.0
    %3768 = vmatprep.subr.mxu0 0.0
    %3769 = vmatpush1.msra.mxu0 0.0
    %3770 = vmatprep.subr.mxu0 0.0
    %3771 = vmatpush1.msra.mxu0 0.0
    %3772 = vmatprep.subr.mxu0 0.0
    %3773 = vmatpush1.msra.mxu0 0.0
    %3774 = vmatprep.subr.mxu0 0.0
    %3775 = vmatpush1.msra.mxu0 0.0
    %3776 = vmatprep.subr.mxu0 %v3643
    %3777 = vmatpush1.msra.mxu0 %v3642
    %3778 = vmatprep.subr.mxu0 %v3641
    %3779 = vmatpush1.msra.mxu0 %v3640
    %3780 = vmatprep.subr.mxu0 %v3639
    %3781 = vmatpush1.msra.mxu0 %v3638
    %3782 = vmatprep.subr.mxu0 %v3637
    %3783 = vmatpush1.msra.mxu0 %v3636
    %3784 = vmatprep.subr.mxu0 %v3635
    %3785 = vmatpush1.msra.mxu0 %v3634
    %3786 = vmatprep.subr.mxu0 %v3633
    %3787 = vmatpush1.msra.mxu0 %v3632
    %3788 = vmatprep.subr.mxu0 %v3631
    %3789 = vmatpush1.msra.mxu0 %v3630
    %3790 = vmatprep.subr.mxu0 %v3629
    %3791 = vmatpush1.msra.mxu0 %v3628
    %3792 = vmatprep.subr.mxu0 0.0
    %3793 = vmatpush2.msra.mxu0 0.0
    %3794 = vmatprep.subr.mxu0 0.0
    %3795 = vmatpush2.msra.mxu0 0.0
    %3796 = vmatprep.subr.mxu0 0.0
    %3797 = vmatpush2.msra.mxu0 0.0
    %3798 = vmatprep.subr.mxu0 0.0
    %3799 = vmatpush2.msra.mxu0 0.0
    %3800 = vmatprep.subr.mxu0 0.0
    %3801 = vmatpush2.msra.mxu0 0.0
    %3802 = vmatprep.subr.mxu0 0.0
    %3803 = vmatpush2.msra.mxu0 0.0
    %3804 = vmatprep.subr.mxu0 0.0
    %3805 = vmatpush2.msra.mxu0 0.0
    %3806 = vmatprep.subr.mxu0 0.0
    %3807 = vmatpush2.msra.mxu0 0.0
    %3808 = vmatprep.subr.mxu0 0.0
    %3809 = vmatpush2.msra.mxu0 0.0
    %3810 = vmatprep.subr.mxu0 0.0
    %3811 = vmatpush2.msra.mxu0 0.0
    %3812 = vmatprep.subr.mxu0 0.0
    %3813 = vmatpush2.msra.mxu0 0.0
    %3814 = vmatprep.subr.mxu0 0.0
    %3815 = vmatpush2.msra.mxu0 0.0
    %3816 = vmatprep.subr.mxu0 0.0
    %3817 = vmatpush2.msra.mxu0 0.0
    %3818 = vmatprep.subr.mxu0 0.0
    %3819 = vmatpush2.msra.mxu0 0.0
    %3820 = vmatprep.subr.mxu0 0.0
    %3821 = vmatpush2.msra.mxu0 0.0
    %3822 = vmatprep.subr.mxu0 0.0
    %3823 = vmatpush2.msra.mxu0 0.0
    %3824 = vmatprep.mubr.f32.mxu0 0.0
    %3825 = vmatmul.mubr.f32.gmra.mxu0 %v3758
    %v3826 = vpop.f32.mrf.mxu0
    %v3827 = vadd.f32 %v3656, %v3826
    %v3828 = vpop.f32.mrf.mxu0
    %v3829 = vadd.f32 %v3660, %v3828
    %3830 = vdwg.mxu0
    %v3833 = vcombine.low %v3827, %v3829
    %v3835 = vunpack.c.l.s4 1983009808
    %v3836 = vunpack.c.0.s8 %v3835
    %v3837 = vlaneseq
    %v3838 = vshrl.u32 %v3837, 7
    %v3839 = vsub.s32 %v3836, %v3838
    %v3840 = vrot.slane %v3833, %v3839
    %3842 = vst [vmem:[%s404] sm:$0xf] %v3840
    %v3843 = vld [vmem:[%s2228] sm:$0x3]
    %v3844 = vld [vmem:[%s3073] sm:$0x3]
    %3846 = vrot.lane.b32.xlu0 %v3844, 32
    %v3847 = vpop.permute.xlu0 %3846
    %v3849 = vsel %vm156, %v3843, %v3847
    %v3851 = vsel %vm3663, %v3849, 0
    %3853 = vmatprep.subr.mxu0 0.0
    %3854 = vmatpush1.msra.mxu0 0.0
    %3855 = vmatprep.subr.mxu0 0.0
    %3856 = vmatpush1.msra.mxu0 0.0
    %3857 = vmatprep.subr.mxu0 0.0
    %3858 = vmatpush1.msra.mxu0 0.0
    %3859 = vmatprep.subr.mxu0 0.0
    %3860 = vmatpush1.msra.mxu0 0.0
    %3861 = vmatprep.subr.mxu0 0.0
    %3862 = vmatpush1.msra.mxu0 0.0
    %3863 = vmatprep.subr.mxu0 0.0
    %3864 = vmatpush1.msra.mxu0 0.0
    %3865 = vmatprep.subr.mxu0 0.0
    %3866 = vmatpush1.msra.mxu0 0.0
    %3867 = vmatprep.subr.mxu0 0.0
    %3868 = vmatpush1.msra.mxu0 0.0
    %3869 = vmatprep.subr.mxu0 %v3643
    %3870 = vmatpush1.msra.mxu0 %v3642
    %3871 = vmatprep.subr.mxu0 %v3641
    %3872 = vmatpush1.msra.mxu0 %v3640
    %3873 = vmatprep.subr.mxu0 %v3639
    %3874 = vmatpush1.msra.mxu0 %v3638
    %3875 = vmatprep.subr.mxu0 %v3637
    %3876 = vmatpush1.msra.mxu0 %v3636
    %3877 = vmatprep.subr.mxu0 %v3635
    %3878 = vmatpush1.msra.mxu0 %v3634
    %3879 = vmatprep.subr.mxu0 %v3633
    %3880 = vmatpush1.msra.mxu0 %v3632
    %3881 = vmatprep.subr.mxu0 %v3631
    %3882 = vmatpush1.msra.mxu0 %v3630
    %3883 = vmatprep.subr.mxu0 %v3629
    %3884 = vmatpush1.msra.mxu0 %v3628
    %3885 = vmatprep.subr.mxu0 0.0
    %3886 = vmatpush2.msra.mxu0 0.0
    %3887 = vmatprep.subr.mxu0 0.0
    %3888 = vmatpush2.msra.mxu0 0.0
    %3889 = vmatprep.subr.mxu0 0.0
    %3890 = vmatpush2.msra.mxu0 0.0
    %3891 = vmatprep.subr.mxu0 0.0
    %3892 = vmatpush2.msra.mxu0 0.0
    %3893 = vmatprep.subr.mxu0 0.0
    %3894 = vmatpush2.msra.mxu0 0.0
    %3895 = vmatprep.subr.mxu0 0.0
    %3896 = vmatpush2.msra.mxu0 0.0
    %3897 = vmatprep.subr.mxu0 0.0
    %3898 = vmatpush2.msra.mxu0 0.0
    %3899 = vmatprep.subr.mxu0 0.0
    %3900 = vmatpush2.msra.mxu0 0.0
    %3901 = vmatprep.subr.mxu0 0.0
    %3902 = vmatpush2.msra.mxu0 0.0
    %3903 = vmatprep.subr.mxu0 0.0
    %3904 = vmatpush2.msra.mxu0 0.0
    %3905 = vmatprep.subr.mxu0 0.0
    %3906 = vmatpush2.msra.mxu0 0.0
    %3907 = vmatprep.subr.mxu0 0.0
    %3908 = vmatpush2.msra.mxu0 0.0
    %3909 = vmatprep.subr.mxu0 0.0
    %3910 = vmatpush2.msra.mxu0 0.0
    %3911 = vmatprep.subr.mxu0 0.0
    %3912 = vmatpush2.msra.mxu0 0.0
    %3913 = vmatprep.subr.mxu0 0.0
    %3914 = vmatpush2.msra.mxu0 0.0
    %3915 = vmatprep.subr.mxu0 0.0
    %3916 = vmatpush2.msra.mxu0 0.0
    %3917 = vmatprep.mubr.f32.mxu0 0.0
    %3918 = vmatmul.mubr.f32.gmra.mxu0 %v3851
    %v3919 = vpop.f32.mrf.mxu0
    %v3920 = vadd.f32 %v3656, %v3919
    %v3921 = vpop.f32.mrf.mxu0
    %v3922 = vadd.f32 %v3660, %v3921
    %3923 = vdwg.mxu0
    %v3926 = vcombine.low %v3920, %v3922
    %v3928 = vunpack.c.l.s4 1983009808
    %v3929 = vunpack.c.0.s8 %v3928
    %v3930 = vlaneseq
    %v3931 = vshrl.u32 %v3930, 7
    %v3932 = vsub.s32 %v3929, %v3931
    %v3933 = vrot.slane %v3926, %v3932
    %3935 = vst [vmem:[%s567] sm:$0xf] %v3933
    %v3936 = vld [vmem:[%s2517] sm:$0x3]
    %v3937 = vld [vmem:[%s2796] sm:$0x3]
    %3939 = vrot.lane.b32.xlu0 %v3937, 32
    %v3940 = vpop.permute.xlu0 %3939
    %v3942 = vsel %vm156, %v3936, %v3940
    %v3944 = vsel %vm3663, %v3942, 0
    %3946 = vmatprep.subr.mxu0 0.0
    %3947 = vmatpush1.msra.mxu0 0.0
    %3948 = vmatprep.subr.mxu0 0.0
    %3949 = vmatpush1.msra.mxu0 0.0
    %3950 = vmatprep.subr.mxu0 0.0
    %3951 = vmatpush1.msra.mxu0 0.0
    %3952 = vmatprep.subr.mxu0 0.0
    %3953 = vmatpush1.msra.mxu0 0.0
    %3954 = vmatprep.subr.mxu0 0.0
    %3955 = vmatpush1.msra.mxu0 0.0
    %3956 = vmatprep.subr.mxu0 0.0
    %3957 = vmatpush1.msra.mxu0 0.0
    %3958 = vmatprep.subr.mxu0 0.0
    %3959 = vmatpush1.msra.mxu0 0.0
    %3960 = vmatprep.subr.mxu0 0.0
    %3961 = vmatpush1.msra.mxu0 0.0
    %3962 = vmatprep.subr.mxu0 %v3643
    %3963 = vmatpush1.msra.mxu0 %v3642
    %3964 = vmatprep.subr.mxu0 %v3641
    %3965 = vmatpush1.msra.mxu0 %v3640
    %3966 = vmatprep.subr.mxu0 %v3639
    %3967 = vmatpush1.msra.mxu0 %v3638
    %3968 = vmatprep.subr.mxu0 %v3637
    %3969 = vmatpush1.msra.mxu0 %v3636
    %3970 = vmatprep.subr.mxu0 %v3635
    %3971 = vmatpush1.msra.mxu0 %v3634
    %3972 = vmatprep.subr.mxu0 %v3633
    %3973 = vmatpush1.msra.mxu0 %v3632
    %3974 = vmatprep.subr.mxu0 %v3631
    %3975 = vmatpush1.msra.mxu0 %v3630
    %3976 = vmatprep.subr.mxu0 %v3629
    %3977 = vmatpush1.msra.mxu0 %v3628
    %3978 = vmatprep.subr.mxu0 0.0
    %3979 = vmatpush2.msra.mxu0 0.0
    %3980 = vmatprep.subr.mxu0 0.0
    %3981 = vmatpush2.msra.mxu0 0.0
    %3982 = vmatprep.subr.mxu0 0.0
    %3983 = vmatpush2.msra.mxu0 0.0
    %3984 = vmatprep.subr.mxu0 0.0
    %3985 = vmatpush2.msra.mxu0 0.0
    %3986 = vmatprep.subr.mxu0 0.0
    %3987 = vmatpush2.msra.mxu0 0.0
    %3988 = vmatprep.subr.mxu0 0.0
    %3989 = vmatpush2.msra.mxu0 0.0
    %3990 = vmatprep.subr.mxu0 0.0
    %3991 = vmatpush2.msra.mxu0 0.0
    %3992 = vmatprep.subr.mxu0 0.0
    %3993 = vmatpush2.msra.mxu0 0.0
    %3994 = vmatprep.subr.mxu0 0.0
    %3995 = vmatpush2.msra.mxu0 0.0
    %3996 = vmatprep.subr.mxu0 0.0
    %3997 = vmatpush2.msra.mxu0 0.0
    %3998 = vmatprep.subr.mxu0 0.0
    %3999 = vmatpush2.msra.mxu0 0.0
    %4000 = vmatprep.subr.mxu0 0.0
    %4001 = vmatpush2.msra.mxu0 0.0
    %4002 = vmatprep.subr.mxu0 0.0
    %4003 = vmatpush2.msra.mxu0 0.0
    %4004 = vmatprep.subr.mxu0 0.0
    %4005 = vmatpush2.msra.mxu0 0.0
    %4006 = vmatprep.subr.mxu0 0.0
    %4007 = vmatpush2.msra.mxu0 0.0
    %4008 = vmatprep.subr.mxu0 0.0
    %4009 = vmatpush2.msra.mxu0 0.0
    %4010 = vmatprep.mubr.f32.mxu0 0.0
    %4011 = vmatmul.mubr.f32.gmra.mxu0 %v3944
    %v4012 = vpop.f32.mrf.mxu0
    %v4013 = vadd.f32 %v3656, %v4012
    %v4014 = vpop.f32.mrf.mxu0
    %v4015 = vadd.f32 %v3660, %v4014
    %4016 = vdwg.mxu0
    %v4019 = vcombine.low %v4013, %v4015
    %v4021 = vunpack.c.l.s4 1983009808
    %v4022 = vunpack.c.0.s8 %v4021
    %v4023 = vlaneseq
    %v4024 = vshrl.u32 %v4023, 7
    %v4025 = vsub.s32 %v4022, %v4024
    %v4026 = vrot.slane %v4019, %v4025
    %4028 = vst [vmem:[%s730] sm:$0xf] %v4026
    %v4029 = vld [vmem:[%s2794] sm:$0x3]
    %v4030 = vld [vmem:[%s2519] sm:$0x3]
    %4032 = vrot.lane.b32.xlu0 %v4030, 32
    %v4033 = vpop.permute.xlu0 %4032
    %v4035 = vsel %vm156, %v4029, %v4033
    %v4037 = vsel %vm3663, %v4035, 0
    %4039 = vmatprep.subr.mxu0 0.0
    %4040 = vmatpush1.msra.mxu0 0.0
    %4041 = vmatprep.subr.mxu0 0.0
    %4042 = vmatpush1.msra.mxu0 0.0
    %4043 = vmatprep.subr.mxu0 0.0
    %4044 = vmatpush1.msra.mxu0 0.0
    %4045 = vmatprep.subr.mxu0 0.0
    %4046 = vmatpush1.msra.mxu0 0.0
    %4047 = vmatprep.subr.mxu0 0.0
    %4048 = vmatpush1.msra.mxu0 0.0
    %4049 = vmatprep.subr.mxu0 0.0
    %4050 = vmatpush1.msra.mxu0 0.0
    %4051 = vmatprep.subr.mxu0 0.0
    %4052 = vmatpush1.msra.mxu0 0.0
    %4053 = vmatprep.subr.mxu0 0.0
    %4054 = vmatpush1.msra.mxu0 0.0
    %4055 = vmatprep.subr.mxu0 %v3643
    %4056 = vmatpush1.msra.mxu0 %v3642
    %4057 = vmatprep.subr.mxu0 %v3641
    %4058 = vmatpush1.msra.mxu0 %v3640
    %4059 = vmatprep.subr.mxu0 %v3639
    %4060 = vmatpush1.msra.mxu0 %v3638
    %4061 = vmatprep.subr.mxu0 %v3637
    %4062 = vmatpush1.msra.mxu0 %v3636
    %4063 = vmatprep.subr.mxu0 %v3635
    %4064 = vmatpush1.msra.mxu0 %v3634
    %4065 = vmatprep.subr.mxu0 %v3633
    %4066 = vmatpush1.msra.mxu0 %v3632
    %4067 = vmatprep.subr.mxu0 %v3631
    %4068 = vmatpush1.msra.mxu0 %v3630
    %4069 = vmatprep.subr.mxu0 %v3629
    %4070 = vmatpush1.msra.mxu0 %v3628
    %4071 = vmatprep.subr.mxu0 0.0
    %4072 = vmatpush2.msra.mxu0 0.0
    %4073 = vmatprep.subr.mxu0 0.0
    %4074 = vmatpush2.msra.mxu0 0.0
    %4075 = vmatprep.subr.mxu0 0.0
    %4076 = vmatpush2.msra.mxu0 0.0
    %4077 = vmatprep.subr.mxu0 0.0
    %4078 = vmatpush2.msra.mxu0 0.0
    %4079 = vmatprep.subr.mxu0 0.0
    %4080 = vmatpush2.msra.mxu0 0.0
    %4081 = vmatprep.subr.mxu0 0.0
    %4082 = vmatpush2.msra.mxu0 0.0
    %4083 = vmatprep.subr.mxu0 0.0
    %4084 = vmatpush2.msra.mxu0 0.0
    %4085 = vmatprep.subr.mxu0 0.0
    %4086 = vmatpush2.msra.mxu0 0.0
    %4087 = vmatprep.subr.mxu0 0.0
    %4088 = vmatpush2.msra.mxu0 0.0
    %4089 = vmatprep.subr.mxu0 0.0
    %4090 = vmatpush2.msra.mxu0 0.0
    %4091 = vmatprep.subr.mxu0 0.0
    %4092 = vmatpush2.msra.mxu0 0.0
    %4093 = vmatprep.subr.mxu0 0.0
    %4094 = vmatpush2.msra.mxu0 0.0
    %4095 = vmatprep.subr.mxu0 0.0
    %4096 = vmatpush2.msra.mxu0 0.0
    %4097 = vmatprep.subr.mxu0 0.0
    %4098 = vmatpush2.msra.mxu0 0.0
    %4099 = vmatprep.subr.mxu0 0.0
    %4100 = vmatpush2.msra.mxu0 0.0
    %4101 = vmatprep.subr.mxu0 0.0
    %4102 = vmatpush2.msra.mxu0 0.0
    %4103 = vmatprep.mubr.f32.mxu0 0.0
    %4104 = vmatmul.mubr.f32.gmra.mxu0 %v4037
    %v4105 = vpop.f32.mrf.mxu0
    %v4106 = vadd.f32 %v3656, %v4105
    %v4107 = vpop.f32.mrf.mxu0
    %v4108 = vadd.f32 %v3660, %v4107
    %4109 = vdwg.mxu0
    %v4112 = vcombine.low %v4106, %v4108
    %v4114 = vunpack.c.l.s4 1983009808
    %v4115 = vunpack.c.0.s8 %v4114
    %v4116 = vlaneseq
    %v4117 = vshrl.u32 %v4116, 7
    %v4118 = vsub.s32 %v4115, %v4117
    %v4119 = vrot.slane %v4112, %v4118
    %4121 = vst [vmem:[%s893] sm:$0xf] %v4119
    %v4122 = vld [vmem:[%s3071] sm:$0x3]
    %v4123 = vld [vmem:[%s2230] sm:$0x3]
    %4125 = vrot.lane.b32.xlu0 %v4123, 32
    %v4126 = vpop.permute.xlu0 %4125
    %v4128 = vsel %vm156, %v4122, %v4126
    %v4130 = vsel %vm3663, %v4128, 0
    %4132 = vmatprep.subr.mxu0 0.0
    %4133 = vmatpush1.msra.mxu0 0.0
    %4134 = vmatprep.subr.mxu0 0.0
    %4135 = vmatpush1.msra.mxu0 0.0
    %4136 = vmatprep.subr.mxu0 0.0
    %4137 = vmatpush1.msra.mxu0 0.0
    %4138 = vmatprep.subr.mxu0 0.0
    %4139 = vmatpush1.msra.mxu0 0.0
    %4140 = vmatprep.subr.mxu0 0.0
    %4141 = vmatpush1.msra.mxu0 0.0
    %4142 = vmatprep.subr.mxu0 0.0
    %4143 = vmatpush1.msra.mxu0 0.0
    %4144 = vmatprep.subr.mxu0 0.0
    %4145 = vmatpush1.msra.mxu0 0.0
    %4146 = vmatprep.subr.mxu0 0.0
    %4147 = vmatpush1.msra.mxu0 0.0
    %4148 = vmatprep.subr.mxu0 %v3643
    %4149 = vmatpush1.msra.mxu0 %v3642
    %4150 = vmatprep.subr.mxu0 %v3641
    %4151 = vmatpush1.msra.mxu0 %v3640
    %4152 = vmatprep.subr.mxu0 %v3639
    %4153 = vmatpush1.msra.mxu0 %v3638
    %4154 = vmatprep.subr.mxu0 %v3637
    %4155 = vmatpush1.msra.mxu0 %v3636
    %4156 = vmatprep.subr.mxu0 %v3635
    %4157 = vmatpush1.msra.mxu0 %v3634
    %4158 = vmatprep.subr.mxu0 %v3633
    %4159 = vmatpush1.msra.mxu0 %v3632
    %4160 = vmatprep.subr.mxu0 %v3631
    %4161 = vmatpush1.msra.mxu0 %v3630
    %4162 = vmatprep.subr.mxu0 %v3629
    %4163 = vmatpush1.msra.mxu0 %v3628
    %4164 = vmatprep.subr.mxu0 0.0
    %4165 = vmatpush2.msra.mxu0 0.0
    %4166 = vmatprep.subr.mxu0 0.0
    %4167 = vmatpush2.msra.mxu0 0.0
    %4168 = vmatprep.subr.mxu0 0.0
    %4169 = vmatpush2.msra.mxu0 0.0
    %4170 = vmatprep.subr.mxu0 0.0
    %4171 = vmatpush2.msra.mxu0 0.0
    %4172 = vmatprep.subr.mxu0 0.0
    %4173 = vmatpush2.msra.mxu0 0.0
    %4174 = vmatprep.subr.mxu0 0.0
    %4175 = vmatpush2.msra.mxu0 0.0
    %4176 = vmatprep.subr.mxu0 0.0
    %4177 = vmatpush2.msra.mxu0 0.0
    %4178 = vmatprep.subr.mxu0 0.0
    %4179 = vmatpush2.msra.mxu0 0.0
    %4180 = vmatprep.subr.mxu0 0.0
    %4181 = vmatpush2.msra.mxu0 0.0
    %4182 = vmatprep.subr.mxu0 0.0
    %4183 = vmatpush2.msra.mxu0 0.0
    %4184 = vmatprep.subr.mxu0 0.0
    %4185 = vmatpush2.msra.mxu0 0.0
    %4186 = vmatprep.subr.mxu0 0.0
    %4187 = vmatpush2.msra.mxu0 0.0
    %4188 = vmatprep.subr.mxu0 0.0
    %4189 = vmatpush2.msra.mxu0 0.0
    %4190 = vmatprep.subr.mxu0 0.0
    %4191 = vmatpush2.msra.mxu0 0.0
    %4192 = vmatprep.subr.mxu0 0.0
    %4193 = vmatpush2.msra.mxu0 0.0
    %4194 = vmatprep.subr.mxu0 0.0
    %4195 = vmatpush2.msra.mxu0 0.0
    %4196 = vmatprep.mubr.f32.mxu0 0.0
    %4197 = vmatmul.mubr.f32.gmra.mxu0 %v4130
    %v4198 = vpop.f32.mrf.mxu0
    %v4199 = vadd.f32 %v3656, %v4198
    %v4200 = vpop.f32.mrf.mxu0
    %v4201 = vadd.f32 %v3660, %v4200
    %4202 = vdwg.mxu0
    %v4205 = vcombine.low %v4199, %v4201
    %v4207 = vunpack.c.l.s4 1983009808
    %v4208 = vunpack.c.0.s8 %v4207
    %v4209 = vlaneseq
    %v4210 = vshrl.u32 %v4209, 7
    %v4211 = vsub.s32 %v4208, %v4210
    %v4212 = vrot.slane %v4205, %v4211
    %4214 = vst [vmem:[%s1056] sm:$0xf] %v4212
    %v4215 = vld [vmem:[%s3348] sm:$0x3]
    %v4216 = vld [vmem:[%s1941] sm:$0x3]
    %4218 = vrot.lane.b32.xlu0 %v4216, 32
    %v4219 = vpop.permute.xlu0 %4218
    %v4221 = vsel %vm156, %v4215, %v4219
    %v4223 = vsel %vm3663, %v4221, 0
    %4225 = vmatprep.subr.mxu0 0.0
    %4226 = vmatpush1.msra.mxu0 0.0
    %4227 = vmatprep.subr.mxu0 0.0
    %4228 = vmatpush1.msra.mxu0 0.0
    %4229 = vmatprep.subr.mxu0 0.0
    %4230 = vmatpush1.msra.mxu0 0.0
    %4231 = vmatprep.subr.mxu0 0.0
    %4232 = vmatpush1.msra.mxu0 0.0
    %4233 = vmatprep.subr.mxu0 0.0
    %4234 = vmatpush1.msra.mxu0 0.0
    %4235 = vmatprep.subr.mxu0 0.0
    %4236 = vmatpush1.msra.mxu0 0.0
    %4237 = vmatprep.subr.mxu0 0.0
    %4238 = vmatpush1.msra.mxu0 0.0
    %4239 = vmatprep.subr.mxu0 0.0
    %4240 = vmatpush1.msra.mxu0 0.0
    %4241 = vmatprep.subr.mxu0 %v3643
    %4242 = vmatpush1.msra.mxu0 %v3642
    %4243 = vmatprep.subr.mxu0 %v3641
    %4244 = vmatpush1.msra.mxu0 %v3640
    %4245 = vmatprep.subr.mxu0 %v3639
    %4246 = vmatpush1.msra.mxu0 %v3638
    %4247 = vmatprep.subr.mxu0 %v3637
    %4248 = vmatpush1.msra.mxu0 %v3636
    %4249 = vmatprep.subr.mxu0 %v3635
    %4250 = vmatpush1.msra.mxu0 %v3634
    %4251 = vmatprep.subr.mxu0 %v3633
    %4252 = vmatpush1.msra.mxu0 %v3632
    %4253 = vmatprep.subr.mxu0 %v3631
    %4254 = vmatpush1.msra.mxu0 %v3630
    %4255 = vmatprep.subr.mxu0 %v3629
    %4256 = vmatpush1.msra.mxu0 %v3628
    %4257 = vmatprep.subr.mxu0 0.0
    %4258 = vmatpush2.msra.mxu0 0.0
    %4259 = vmatprep.subr.mxu0 0.0
    %4260 = vmatpush2.msra.mxu0 0.0
    %4261 = vmatprep.subr.mxu0 0.0
    %4262 = vmatpush2.msra.mxu0 0.0
    %4263 = vmatprep.subr.mxu0 0.0
    %4264 = vmatpush2.msra.mxu0 0.0
    %4265 = vmatprep.subr.mxu0 0.0
    %4266 = vmatpush2.msra.mxu0 0.0
    %4267 = vmatprep.subr.mxu0 0.0
    %4268 = vmatpush2.msra.mxu0 0.0
    %4269 = vmatprep.subr.mxu0 0.0
    %4270 = vmatpush2.msra.mxu0 0.0
    %4271 = vmatprep.subr.mxu0 0.0
    %4272 = vmatpush2.msra.mxu0 0.0
    %4273 = vmatprep.subr.mxu0 0.0
    %4274 = vmatpush2.msra.mxu0 0.0
    %4275 = vmatprep.subr.mxu0 0.0
    %4276 = vmatpush2.msra.mxu0 0.0
    %4277 = vmatprep.subr.mxu0 0.0
    %4278 = vmatpush2.msra.mxu0 0.0
    %4279 = vmatprep.subr.mxu0 0.0
    %4280 = vmatpush2.msra.mxu0 0.0
    %4281 = vmatprep.subr.mxu0 0.0
    %4282 = vmatpush2.msra.mxu0 0.0
    %4283 = vmatprep.subr.mxu0 0.0
    %4284 = vmatpush2.msra.mxu0 0.0
    %4285 = vmatprep.subr.mxu0 0.0
    %4286 = vmatpush2.msra.mxu0 0.0
    %4287 = vmatprep.subr.mxu0 0.0
    %4288 = vmatpush2.msra.mxu0 0.0
    %4289 = vmatprep.mubr.f32.mxu0 0.0
    %4290 = vmatmul.mubr.f32.gmra.mxu0 %v4223
    %v4291 = vpop.f32.mrf.mxu0
    %v4292 = vadd.f32 %v3656, %v4291
    %v4293 = vpop.f32.mrf.mxu0
    %v4294 = vadd.f32 %v3660, %v4293
    %4295 = vdwg.mxu0
    %v4298 = vcombine.low %v4292, %v4294
    %v4300 = vunpack.c.l.s4 1983009808
    %v4301 = vunpack.c.0.s8 %v4300
    %v4302 = vlaneseq
    %v4303 = vshrl.u32 %v4302, 7
    %v4304 = vsub.s32 %v4301, %v4303
    %v4305 = vrot.slane %v4298, %v4304
    %4307 = vst [vmem:[%s1219] sm:$0xf] %v4305
    %v4308 = vld [vmem:[%s3625] sm:$0x3]
    %v4309 = vld [vmem:[%s1652] sm:$0x3]
    %4311 = vrot.lane.b32.xlu0 %v4309, 32
    %v4312 = vpop.permute.xlu0 %4311
    %v4314 = vsel %vm156, %v4308, %v4312
    %v4316 = vsel %vm3663, %v4314, 0
    %4318 = vmatprep.subr.mxu0 0.0
    %4319 = vmatpush1.msra.mxu0 0.0
    %4320 = vmatprep.subr.mxu0 0.0
    %4321 = vmatpush1.msra.mxu0 0.0
    %4322 = vmatprep.subr.mxu0 0.0
    %4323 = vmatpush1.msra.mxu0 0.0
    %4324 = vmatprep.subr.mxu0 0.0
    %4325 = vmatpush1.msra.mxu0 0.0
    %4326 = vmatprep.subr.mxu0 0.0
    %4327 = vmatpush1.msra.mxu0 0.0
    %4328 = vmatprep.subr.mxu0 0.0
    %4329 = vmatpush1.msra.mxu0 0.0
    %4330 = vmatprep.subr.mxu0 0.0
    %4331 = vmatpush1.msra.mxu0 0.0
    %4332 = vmatprep.subr.mxu0 0.0
    %4333 = vmatpush1.msra.mxu0 0.0
    %4334 = vmatprep.subr.mxu0 %v3643
    %4335 = vmatpush1.msra.mxu0 %v3642
    %4336 = vmatprep.subr.mxu0 %v3641
    %4337 = vmatpush1.msra.mxu0 %v3640
    %4338 = vmatprep.subr.mxu0 %v3639
    %4339 = vmatpush1.msra.mxu0 %v3638
    %4340 = vmatprep.subr.mxu0 %v3637
    %4341 = vmatpush1.msra.mxu0 %v3636
    %4342 = vmatprep.subr.mxu0 %v3635
    %4343 = vmatpush1.msra.mxu0 %v3634
    %4344 = vmatprep.subr.mxu0 %v3633
    %4345 = vmatpush1.msra.mxu0 %v3632
    %4346 = vmatprep.subr.mxu0 %v3631
    %4347 = vmatpush1.msra.mxu0 %v3630
    %4348 = vmatprep.subr.mxu0 %v3629
    %4349 = vmatpush1.msra.mxu0 %v3628
    %4350 = vmatprep.subr.mxu0 0.0
    %4351 = vmatpush2.msra.mxu0 0.0
    %4352 = vmatprep.subr.mxu0 0.0
    %4353 = vmatpush2.msra.mxu0 0.0
    %4354 = vmatprep.subr.mxu0 0.0
    %4355 = vmatpush2.msra.mxu0 0.0
    %4356 = vmatprep.subr.mxu0 0.0
    %4357 = vmatpush2.msra.mxu0 0.0
    %4358 = vmatprep.subr.mxu0 0.0
    %4359 = vmatpush2.msra.mxu0 0.0
    %4360 = vmatprep.subr.mxu0 0.0
    %4361 = vmatpush2.msra.mxu0 0.0
    %4362 = vmatprep.subr.mxu0 0.0
    %4363 = vmatpush2.msra.mxu0 0.0
    %4364 = vmatprep.subr.mxu0 0.0
    %4365 = vmatpush2.msra.mxu0 0.0
    %4366 = vmatprep.subr.mxu0 0.0
    %4367 = vmatpush2.msra.mxu0 0.0
    %4368 = vmatprep.subr.mxu0 0.0
    %4369 = vmatpush2.msra.mxu0 0.0
    %4370 = vmatprep.subr.mxu0 0.0
    %4371 = vmatpush2.msra.mxu0 0.0
    %4372 = vmatprep.subr.mxu0 0.0
    %4373 = vmatpush2.msra.mxu0 0.0
    %4374 = vmatprep.subr.mxu0 0.0
    %4375 = vmatpush2.msra.mxu0 0.0
    %4376 = vmatprep.subr.mxu0 0.0
    %4377 = vmatpush2.msra.mxu0 0.0
    %4378 = vmatprep.subr.mxu0 0.0
    %4379 = vmatpush2.msra.mxu0 0.0
    %4380 = vmatprep.subr.mxu0 0.0
    %4381 = vmatpush2.msra.mxu0 0.0
    %4382 = vmatprep.mubr.f32.mxu0 0.0
    %4383 = vmatmul.mubr.f32.gmra.mxu0 %v4316
    %v4384 = vpop.f32.mrf.mxu0
    %v4385 = vadd.f32 %v3656, %v4384
    %v4386 = vpop.f32.mrf.mxu0
    %v4387 = vadd.f32 %v3660, %v4386
    %4388 = vdwg.mxu0
    %v4391 = vcombine.low %v4385, %v4387
    %v4393 = vunpack.c.l.s4 1983009808
    %v4394 = vunpack.c.0.s8 %v4393
    %v4395 = vlaneseq
    %v4396 = vshrl.u32 %v4395, 7
    %v4397 = vsub.s32 %v4394, %v4396
    %v4398 = vrot.slane %v4391, %v4397
    %4400 = vst [vmem:[%s1382] sm:$0xf] %v4398
    %v4401 = vld [vmem:[%s10] sm:$0xff]
    %v4402 = vld [vmem:[%s10 + $0x8] sm:$0xff]
    %v4403 = vld [vmem:[%s10 + $0x10] sm:$0xff]
    %v4404 = vld [vmem:[%s10 + $0x18] sm:$0xff]
    %v4405 = vld [vmem:[%s11] sm:$0xff]
    %v4406 = vld [vmem:[%s11 + $0x8] sm:$0xff]
    %v4407 = vld [vmem:[%s11 + $0x10] sm:$0xff]
    %v4408 = vld [vmem:[%s11 + $0x18] sm:$0xff]
    %v4409 = vld [vmem:[#allocation2] sm:$0xf]
    %4410 = vmatprep.subr.mxu0 0.0
    %4411 = vmatpush1.msra.mxu0 0.0
    %4412 = vmatprep.subr.mxu0 0.0
    %4413 = vmatpush1.msra.mxu0 0.0
    %4414 = vmatprep.subr.mxu0 0.0
    %4415 = vmatpush1.msra.mxu0 0.0
    %4416 = vmatprep.subr.mxu0 0.0
    %4417 = vmatpush1.msra.mxu0 0.0
    %4418 = vmatprep.subr.mxu0 0.0
    %4419 = vmatpush1.msra.mxu0 0.0
    %4420 = vmatprep.subr.mxu0 0.0
    %4421 = vmatpush1.msra.mxu0 0.0
    %4422 = vmatprep.subr.mxu0 0.0
    %4423 = vmatpush1.msra.mxu0 0.0
    %4424 = vmatprep.subr.mxu0 0.0
    %4425 = vmatpush1.msra.mxu0 0.0
    %4426 = vmatprep.subr.mxu0 0.0
    %4427 = vmatpush1.msra.mxu0 0.0
    %4428 = vmatprep.subr.mxu0 0.0
    %4429 = vmatpush1.msra.mxu0 0.0
    %4430 = vmatprep.subr.mxu0 0.0
    %4431 = vmatpush1.msra.mxu0 0.0
    %4432 = vmatprep.subr.mxu0 0.0
    %4433 = vmatpush1.msra.mxu0 0.0
    %4434 = vmatprep.subr.mxu0 0.0
    %4435 = vmatpush1.msra.mxu0 %v4404
    %4436 = vmatprep.subr.mxu0 0.0
    %4437 = vmatpush1.msra.mxu0 %v4403
    %4438 = vmatprep.subr.mxu0 0.0
    %4439 = vmatpush1.msra.mxu0 %v4402
    %4440 = vmatprep.subr.mxu0 0.0
    %4441 = vmatpush1.msra.mxu0 %v4401
    %4442 = vmatprep.subr.mxu0 0.0
    %4443 = vmatpush2.msra.mxu0 0.0
    %4444 = vmatprep.subr.mxu0 0.0
    %4445 = vmatpush2.msra.mxu0 0.0
    %4446 = vmatprep.subr.mxu0 0.0
    %4447 = vmatpush2.msra.mxu0 0.0
    %4448 = vmatprep.subr.mxu0 0.0
    %4449 = vmatpush2.msra.mxu0 0.0
    %4450 = vmatprep.subr.mxu0 0.0
    %4451 = vmatpush2.msra.mxu0 0.0
    %4452 = vmatprep.subr.mxu0 0.0
    %4453 = vmatpush2.msra.mxu0 0.0
    %4454 = vmatprep.subr.mxu0 0.0
    %4455 = vmatpush2.msra.mxu0 0.0
    %4456 = vmatprep.subr.mxu0 0.0
    %4457 = vmatpush2.msra.mxu0 0.0
    %4458 = vmatprep.subr.mxu0 0.0
    %4459 = vmatpush2.msra.mxu0 0.0
    %4460 = vmatprep.subr.mxu0 0.0
    %4461 = vmatpush2.msra.mxu0 0.0
    %4462 = vmatprep.subr.mxu0 0.0
    %4463 = vmatpush2.msra.mxu0 0.0
    %4464 = vmatprep.subr.mxu0 0.0
    %4465 = vmatpush2.msra.mxu0 0.0
    %4466 = vmatprep.subr.mxu0 0.0
    %4467 = vmatpush2.msra.mxu0 0.0
    %4468 = vmatprep.subr.mxu0 0.0
    %4469 = vmatpush2.msra.mxu0 0.0
    %4470 = vmatprep.subr.mxu0 0.0
    %4471 = vmatpush2.msra.mxu0 0.0
    %4472 = vmatprep.subr.mxu0 0.0
    %4473 = vmatpush2.msra.mxu0 0.0
    %4474 = vmatprep.mubr.f32.mxu0 0.0
    %4475 = vmatmul.mubr.f32.gmra.mxu0 %v1394
    %v4476 = vpop.f32.mrf.mxu0
    %v4477 = vadd.f32 0.0, %v4476
    %v4478 = vpop.f32.mrf.mxu0
    %4479 = vdwg.mxu0
    %v4480 = vadd.f32 %v4409, %v4477
    %v4481 = vld [vmem:[%s1382] sm:$0xf]
    %4482 = vmatprep.subr.mxu0 0.0
    %4483 = vmatpush1.msra.mxu0 0.0
    %4484 = vmatprep.subr.mxu0 0.0
    %4485 = vmatpush1.msra.mxu0 0.0
    %4486 = vmatprep.subr.mxu0 0.0
    %4487 = vmatpush1.msra.mxu0 0.0
    %4488 = vmatprep.subr.mxu0 0.0
    %4489 = vmatpush1.msra.mxu0 0.0
    %4490 = vmatprep.subr.mxu0 0.0
    %4491 = vmatpush1.msra.mxu0 0.0
    %4492 = vmatprep.subr.mxu0 0.0
    %4493 = vmatpush1.msra.mxu0 0.0
    %4494 = vmatprep.subr.mxu0 0.0
    %4495 = vmatpush1.msra.mxu0 0.0
    %4496 = vmatprep.subr.mxu0 0.0
    %4497 = vmatpush1.msra.mxu0 0.0
    %4498 = vmatprep.subr.mxu0 0.0
    %4499 = vmatpush1.msra.mxu0 0.0
    %4500 = vmatprep.subr.mxu0 0.0
    %4501 = vmatpush1.msra.mxu0 0.0
    %4502 = vmatprep.subr.mxu0 0.0
    %4503 = vmatpush1.msra.mxu0 0.0
    %4504 = vmatprep.subr.mxu0 0.0
    %4505 = vmatpush1.msra.mxu0 0.0
    %4506 = vmatprep.subr.mxu0 0.0
    %4507 = vmatpush1.msra.mxu0 %v4408
    %4508 = vmatprep.subr.mxu0 0.0
    %4509 = vmatpush1.msra.mxu0 %v4407
    %4510 = vmatprep.subr.mxu0 0.0
    %4511 = vmatpush1.msra.mxu0 %v4406
    %4512 = vmatprep.subr.mxu0 0.0
    %4513 = vmatpush1.msra.mxu0 %v4405
    %4514 = vmatprep.subr.mxu0 0.0
    %4515 = vmatpush2.msra.mxu0 0.0
    %4516 = vmatprep.subr.mxu0 0.0
    %4517 = vmatpush2.msra.mxu0 0.0
    %4518 = vmatprep.subr.mxu0 0.0
    %4519 = vmatpush2.msra.mxu0 0.0
    %4520 = vmatprep.subr.mxu0 0.0
    %4521 = vmatpush2.msra.mxu0 0.0
    %4522 = vmatprep.subr.mxu0 0.0
    %4523 = vmatpush2.msra.mxu0 0.0
    %4524 = vmatprep.subr.mxu0 0.0
    %4525 = vmatpush2.msra.mxu0 0.0
    %4526 = vmatprep.subr.mxu0 0.0
    %4527 = vmatpush2.msra.mxu0 0.0
    %4528 = vmatprep.subr.mxu0 0.0
    %4529 = vmatpush2.msra.mxu0 0.0
    %4530 = vmatprep.subr.mxu0 0.0
    %4531 = vmatpush2.msra.mxu0 0.0
    %4532 = vmatprep.subr.mxu0 0.0
    %4533 = vmatpush2.msra.mxu0 0.0
    %4534 = vmatprep.subr.mxu0 0.0
    %4535 = vmatpush2.msra.mxu0 0.0
    %4536 = vmatprep.subr.mxu0 0.0
    %4537 = vmatpush2.msra.mxu0 0.0
    %4538 = vmatprep.subr.mxu0 0.0
    %4539 = vmatpush2.msra.mxu0 0.0
    %4540 = vmatprep.subr.mxu0 0.0
    %4541 = vmatpush2.msra.mxu0 0.0
    %4542 = vmatprep.subr.mxu0 0.0
    %4543 = vmatpush2.msra.mxu0 0.0
    %4544 = vmatprep.subr.mxu0 0.0
    %4545 = vmatpush2.msra.mxu0 0.0
    %4546 = vmatprep.mubr.f32.mxu0 0.0
    %4547 = vmatmul.mubr.f32.gmra.mxu0 %v1394
    %v4548 = vpop.f32.mrf.mxu0
    %v4549 = vadd.f32 0.0, %v4548
    %v4550 = vpop.f32.mrf.mxu0
    %4551 = vdwg.mxu0
    %v4553 = vrot.slane %v4481, 2
    %v4555 = vadd.f32 %v4553, %v4549
    %v4556 = vxor.u32 %v4480, 2147483648
    %v4557 = vmul.f32 %v4556, 1.442695
    %v4558 = vpow.pop %v4557
    %v4559 = vadd.f32 %v4558, 1.0
    %v4560 = vrcp.pop %v4559
    %v4561 = vmul.f32 1.0, %v4560
    %v4562 = vtanh.pop %v4480
    %v4563 = vmul.f32 %v4561, 0.0
    %4565 = vrot.lane.b32.xlu0 %v4562, 64
    %v4566 = vpop.permute.xlu0 %4565
    %v4568 = vmul.f32 %v4561, %v4566
    %4570 = vrot.lane.b32.xlu0 %v4568, 32
    %v4571 = vpop.permute.xlu0 %4570
    %v4573 = vadd.f32 %v4563, %v4571
    %v4574 = vtanh.pop %v4573
    %4576 = vrot.lane.b32.xlu0 %v4574, 64
    %v4577 = vpop.permute.xlu0 %4576
    %v4579 = vmul.f32 %v4561, %v4577
    %v4582 = vunpack.c.l.s4 1983009808
    %v4583 = vunpack.c.0.s8 %v4582
    %v4584 = vlaneseq
    %v4585 = vshrl.u32 %v4584, 7
    %v4586 = vsub.s32 %v4583, %v4585
    %v4587 = vrot.slane %v4579, %v4586
    %4588 = vrot.lane.b32.xlu0 %v4587, 32
    %v4589 = vpop.permute.xlu0 %4588
    %v4591 = vsel %vm1571, %v4589, 0.0
    %v4594 = vunpack.c.l.s4 1983009808
    %v4595 = vunpack.c.0.s8 %v4594
    %v4596 = vlaneseq
    %v4597 = vshrl.u32 %v4596, 7
    %v4598 = vsub.s32 %v4595, %v4597
    %v4599 = vrot.slane %v4573, %v4598
    %4600 = vrot.lane.b32.xlu0 %v4599, 96
    %v4601 = vpop.permute.xlu0 %4600
    %v4603 = vsel %vm1571, %v4601, 0.0
    %v4604 = vxor.u32 %v4555, 2147483648
    %v4605 = vmul.f32 %v4604, 1.442695
    %v4606 = vpow.pop %v4605
    %v4607 = vadd.f32 %v4606, 1.0
    %v4608 = vrcp.pop %v4607
    %v4609 = vmul.f32 1.0, %v4608
    %v4610 = vtanh.pop %v4555
    %v4611 = vmul.f32 %v4609, 0.0
    %4613 = vrot.lane.b32.xlu0 %v4610, 64
    %v4614 = vpop.permute.xlu0 %4613
    %v4616 = vmul.f32 %v4609, %v4614
    %4618 = vrot.lane.b32.xlu0 %v4616, 32
    %v4619 = vpop.permute.xlu0 %4618
    %v4621 = vadd.f32 %v4611, %v4619
    %v4622 = vtanh.pop %v4621
    %4624 = vrot.lane.b32.xlu0 %v4622, 64
    %v4625 = vpop.permute.xlu0 %4624
    %v4627 = vmul.f32 %v4609, %v4625
    %v4630 = vunpack.c.l.s4 1983009808
    %v4631 = vunpack.c.0.s8 %v4630
    %v4632 = vlaneseq
    %v4633 = vshrl.u32 %v4632, 7
    %v4634 = vsub.s32 %v4631, %v4633
    %v4635 = vrot.slane %v4627, %v4634
    %4636 = vrot.lane.b32.xlu0 %v4635, 32
    %v4637 = vpop.permute.xlu0 %4636
    %v4639 = vsel %vm1625, %v4637, 0.0
    %v4642 = vunpack.c.l.s4 1983009808
    %v4643 = vunpack.c.0.s8 %v4642
    %v4644 = vlaneseq
    %v4645 = vshrl.u32 %v4644, 7
    %v4646 = vsub.s32 %v4643, %v4645
    %v4647 = vrot.slane %v4621, %v4646
    %4648 = vrot.lane.b32.xlu0 %v4647, 96
    %v4649 = vpop.permute.xlu0 %4648
    %v4651 = vsel %vm1625, %v4649, 0.0
    %4652 = vst.msk [vmem:[#allocation3] sm:$0x3] %vm1650, %v4591
    %4653 = vst.msk [vmem:[%s1652] sm:$0x3] %vm1650, %v4639
    %v4654 = vld [vmem:[%s404] sm:$0xf]
    %v4656 = vsel %vm156, %v4591, 0
    %4658 = vmatprep.subr.mxu0 0.0
    %4659 = vmatpush1.msra.mxu0 0.0
    %4660 = vmatprep.subr.mxu0 0.0
    %4661 = vmatpush1.msra.mxu0 0.0
    %4662 = vmatprep.subr.mxu0 0.0
    %4663 = vmatpush1.msra.mxu0 0.0
    %4664 = vmatprep.subr.mxu0 0.0
    %4665 = vmatpush1.msra.mxu0 0.0
    %4666 = vmatprep.subr.mxu0 0.0
    %4667 = vmatpush1.msra.mxu0 0.0
    %4668 = vmatprep.subr.mxu0 0.0
    %4669 = vmatpush1.msra.mxu0 0.0
    %4670 = vmatprep.subr.mxu0 0.0
    %4671 = vmatpush1.msra.mxu0 0.0
    %4672 = vmatprep.subr.mxu0 0.0
    %4673 = vmatpush1.msra.mxu0 0.0
    %4674 = vmatprep.subr.mxu0 0.0
    %4675 = vmatpush1.msra.mxu0 0.0
    %4676 = vmatprep.subr.mxu0 0.0
    %4677 = vmatpush1.msra.mxu0 0.0
    %4678 = vmatprep.subr.mxu0 0.0
    %4679 = vmatpush1.msra.mxu0 0.0
    %4680 = vmatprep.subr.mxu0 0.0
    %4681 = vmatpush1.msra.mxu0 0.0
    %4682 = vmatprep.subr.mxu0 0.0
    %4683 = vmatpush1.msra.mxu0 %v4404
    %4684 = vmatprep.subr.mxu0 0.0
    %4685 = vmatpush1.msra.mxu0 %v4403
    %4686 = vmatprep.subr.mxu0 0.0
    %4687 = vmatpush1.msra.mxu0 %v4402
    %4688 = vmatprep.subr.mxu0 0.0
    %4689 = vmatpush1.msra.mxu0 %v4401
    %4690 = vmatprep.subr.mxu0 0.0
    %4691 = vmatpush2.msra.mxu0 0.0
    %4692 = vmatprep.subr.mxu0 0.0
    %4693 = vmatpush2.msra.mxu0 0.0
    %4694 = vmatprep.subr.mxu0 0.0
    %4695 = vmatpush2.msra.mxu0 0.0
    %4696 = vmatprep.subr.mxu0 0.0
    %4697 = vmatpush2.msra.mxu0 0.0
    %4698 = vmatprep.subr.mxu0 0.0
    %4699 = vmatpush2.msra.mxu0 0.0
    %4700 = vmatprep.subr.mxu0 0.0
    %4701 = vmatpush2.msra.mxu0 0.0
    %4702 = vmatprep.subr.mxu0 0.0
    %4703 = vmatpush2.msra.mxu0 0.0
    %4704 = vmatprep.subr.mxu0 0.0
    %4705 = vmatpush2.msra.mxu0 0.0
    %4706 = vmatprep.subr.mxu0 0.0
    %4707 = vmatpush2.msra.mxu0 0.0
    %4708 = vmatprep.subr.mxu0 0.0
    %4709 = vmatpush2.msra.mxu0 0.0
    %4710 = vmatprep.subr.mxu0 0.0
    %4711 = vmatpush2.msra.mxu0 0.0
    %4712 = vmatprep.subr.mxu0 0.0
    %4713 = vmatpush2.msra.mxu0 0.0
    %4714 = vmatprep.subr.mxu0 0.0
    %4715 = vmatpush2.msra.mxu0 0.0
    %4716 = vmatprep.subr.mxu0 0.0
    %4717 = vmatpush2.msra.mxu0 0.0
    %4718 = vmatprep.subr.mxu0 0.0
    %4719 = vmatpush2.msra.mxu0 0.0
    %4720 = vmatprep.subr.mxu0 0.0
    %4721 = vmatpush2.msra.mxu0 0.0
    %4722 = vmatprep.mubr.f32.mxu0 0.0
    %4723 = vmatmul.mubr.f32.gmra.mxu0 %v4656
    %v4724 = vpop.f32.mrf.mxu0
    %v4725 = vadd.f32 0.0, %v4724
    %v4726 = vpop.f32.mrf.mxu0
    %4727 = vdwg.mxu0
    %v4728 = vadd.f32 %v4654, %v4725
    %v4729 = vld [vmem:[%s1219] sm:$0xf]
    %v4731 = vsel %vm156, %v4639, 0
    %4733 = vmatprep.subr.mxu0 0.0
    %4734 = vmatpush1.msra.mxu0 0.0
    %4735 = vmatprep.subr.mxu0 0.0
    %4736 = vmatpush1.msra.mxu0 0.0
    %4737 = vmatprep.subr.mxu0 0.0
    %4738 = vmatpush1.msra.mxu0 0.0
    %4739 = vmatprep.subr.mxu0 0.0
    %4740 = vmatpush1.msra.mxu0 0.0
    %4741 = vmatprep.subr.mxu0 0.0
    %4742 = vmatpush1.msra.mxu0 0.0
    %4743 = vmatprep.subr.mxu0 0.0
    %4744 = vmatpush1.msra.mxu0 0.0
    %4745 = vmatprep.subr.mxu0 0.0
    %4746 = vmatpush1.msra.mxu0 0.0
    %4747 = vmatprep.subr.mxu0 0.0
    %4748 = vmatpush1.msra.mxu0 0.0
    %4749 = vmatprep.subr.mxu0 0.0
    %4750 = vmatpush1.msra.mxu0 0.0
    %4751 = vmatprep.subr.mxu0 0.0
    %4752 = vmatpush1.msra.mxu0 0.0
    %4753 = vmatprep.subr.mxu0 0.0
    %4754 = vmatpush1.msra.mxu0 0.0
    %4755 = vmatprep.subr.mxu0 0.0
    %4756 = vmatpush1.msra.mxu0 0.0
    %4757 = vmatprep.subr.mxu0 0.0
    %4758 = vmatpush1.msra.mxu0 %v4408
    %4759 = vmatprep.subr.mxu0 0.0
    %4760 = vmatpush1.msra.mxu0 %v4407
    %4761 = vmatprep.subr.mxu0 0.0
    %4762 = vmatpush1.msra.mxu0 %v4406
    %4763 = vmatprep.subr.mxu0 0.0
    %4764 = vmatpush1.msra.mxu0 %v4405
    %4765 = vmatprep.subr.mxu0 0.0
    %4766 = vmatpush2.msra.mxu0 0.0
    %4767 = vmatprep.subr.mxu0 0.0
    %4768 = vmatpush2.msra.mxu0 0.0
    %4769 = vmatprep.subr.mxu0 0.0
    %4770 = vmatpush2.msra.mxu0 0.0
    %4771 = vmatprep.subr.mxu0 0.0
    %4772 = vmatpush2.msra.mxu0 0.0
    %4773 = vmatprep.subr.mxu0 0.0
    %4774 = vmatpush2.msra.mxu0 0.0
    %4775 = vmatprep.subr.mxu0 0.0
    %4776 = vmatpush2.msra.mxu0 0.0
    %4777 = vmatprep.subr.mxu0 0.0
    %4778 = vmatpush2.msra.mxu0 0.0
    %4779 = vmatprep.subr.mxu0 0.0
    %4780 = vmatpush2.msra.mxu0 0.0
    %4781 = vmatprep.subr.mxu0 0.0
    %4782 = vmatpush2.msra.mxu0 0.0
    %4783 = vmatprep.subr.mxu0 0.0
    %4784 = vmatpush2.msra.mxu0 0.0
    %4785 = vmatprep.subr.mxu0 0.0
    %4786 = vmatpush2.msra.mxu0 0.0
    %4787 = vmatprep.subr.mxu0 0.0
    %4788 = vmatpush2.msra.mxu0 0.0
    %4789 = vmatprep.subr.mxu0 0.0
    %4790 = vmatpush2.msra.mxu0 0.0
    %4791 = vmatprep.subr.mxu0 0.0
    %4792 = vmatpush2.msra.mxu0 0.0
    %4793 = vmatprep.subr.mxu0 0.0
    %4794 = vmatpush2.msra.mxu0 0.0
    %4795 = vmatprep.subr.mxu0 0.0
    %4796 = vmatpush2.msra.mxu0 0.0
    %4797 = vmatprep.mubr.f32.mxu0 0.0
    %4798 = vmatmul.mubr.f32.gmra.mxu0 %v4731
    %v4799 = vpop.f32.mrf.mxu0
    %v4800 = vadd.f32 0.0, %v4799
    %v4801 = vpop.f32.mrf.mxu0
    %4802 = vdwg.mxu0
    %v4804 = vrot.slane %v4729, 2
    %v4806 = vadd.f32 %v4804, %v4800
    %v4807 = vxor.u32 %v4728, 2147483648
    %v4808 = vmul.f32 %v4807, 1.442695
    %v4809 = vpow.pop %v4808
    %v4810 = vadd.f32 %v4809, 1.0
    %v4811 = vrcp.pop %v4810
    %v4812 = vmul.f32 1.0, %v4811
    %v4813 = vtanh.pop %v4728
    %v4816 = vunpack.c.l.s4 1983009808
    %v4817 = vunpack.c.0.s8 %v4816
    %v4818 = vlaneseq
    %v4819 = vshrl.u32 %v4818, 7
    %v4820 = vsub.s32 %v4817, %v4819
    %v4821 = vrot.slane %v4603, %v4820
    %4822 = vrot.lane.b32.xlu0 %v4821, 32
    %v4823 = vpop.permute.xlu0 %4822
    %v4825 = vmul.f32 %v4812, %v4823
    %4827 = vrot.lane.b32.xlu0 %v4813, 64
    %v4828 = vpop.permute.xlu0 %4827
    %v4830 = vmul.f32 %v4812, %v4828
    %4832 = vrot.lane.b32.xlu0 %v4830, 32
    %v4833 = vpop.permute.xlu0 %4832
    %v4835 = vadd.f32 %v4825, %v4833
    %v4836 = vtanh.pop %v4835
    %4838 = vrot.lane.b32.xlu0 %v4836, 64
    %v4839 = vpop.permute.xlu0 %4838
    %v4841 = vmul.f32 %v4812, %v4839
    %v4844 = vunpack.c.l.s4 1983009808
    %v4845 = vunpack.c.0.s8 %v4844
    %v4846 = vlaneseq
    %v4847 = vshrl.u32 %v4846, 7
    %v4848 = vsub.s32 %v4845, %v4847
    %v4849 = vrot.slane %v4841, %v4848
    %4850 = vrot.lane.b32.xlu0 %v4849, 32
    %v4851 = vpop.permute.xlu0 %4850
    %v4853 = vsel %vm1847, %v4851, %v4591
    %v4856 = vunpack.c.l.s4 1983009808
    %v4857 = vunpack.c.0.s8 %v4856
    %v4858 = vlaneseq
    %v4859 = vshrl.u32 %v4858, 7
    %v4860 = vsub.s32 %v4857, %v4859
    %v4861 = vrot.slane %v4835, %v4860
    %4862 = vrot.lane.b32.xlu0 %v4861, 96
    %v4863 = vpop.permute.xlu0 %4862
    %v4865 = vsel %vm1847, %v4863, %v4603
    %v4866 = vsel %vm1847, %v4851, 0.0
    %v4867 = vxor.u32 %v4806, 2147483648
    %v4868 = vmul.f32 %v4867, 1.442695
    %v4869 = vpow.pop %v4868
    %v4870 = vadd.f32 %v4869, 1.0
    %v4871 = vrcp.pop %v4870
    %v4872 = vmul.f32 1.0, %v4871
    %v4873 = vtanh.pop %v4806
    %v4876 = vunpack.c.l.s4 1983009808
    %v4877 = vunpack.c.0.s8 %v4876
    %v4878 = vlaneseq
    %v4879 = vshrl.u32 %v4878, 7
    %v4880 = vsub.s32 %v4877, %v4879
    %v4881 = vrot.slane %v4651, %v4880
    %4882 = vrot.lane.b32.xlu0 %v4881, 32
    %v4883 = vpop.permute.xlu0 %4882
    %v4885 = vmul.f32 %v4872, %v4883
    %4887 = vrot.lane.b32.xlu0 %v4873, 64
    %v4888 = vpop.permute.xlu0 %4887
    %v4890 = vmul.f32 %v4872, %v4888
    %4892 = vrot.lane.b32.xlu0 %v4890, 32
    %v4893 = vpop.permute.xlu0 %4892
    %v4895 = vadd.f32 %v4885, %v4893
    %v4896 = vtanh.pop %v4895
    %4898 = vrot.lane.b32.xlu0 %v4896, 64
    %v4899 = vpop.permute.xlu0 %4898
    %v4901 = vmul.f32 %v4872, %v4899
    %v4904 = vunpack.c.l.s4 1983009808
    %v4905 = vunpack.c.0.s8 %v4904
    %v4906 = vlaneseq
    %v4907 = vshrl.u32 %v4906, 7
    %v4908 = vsub.s32 %v4905, %v4907
    %v4909 = vrot.slane %v4901, %v4908
    %4910 = vrot.lane.b32.xlu0 %v4909, 32
    %v4911 = vpop.permute.xlu0 %4910
    %v4913 = vsel %vm1913, %v4911, %v4639
    %v4916 = vunpack.c.l.s4 1983009808
    %v4917 = vunpack.c.0.s8 %v4916
    %v4918 = vlaneseq
    %v4919 = vshrl.u32 %v4918, 7
    %v4920 = vsub.s32 %v4917, %v4919
    %v4921 = vrot.slane %v4895, %v4920
    %4922 = vrot.lane.b32.xlu0 %v4921, 96
    %v4923 = vpop.permute.xlu0 %4922
    %v4925 = vsel %vm1913, %v4923, %v4651
    %v4926 = vsel %vm1913, %v4911, 0.0
    %4927 = vst.msk [vmem:[%s1939] sm:$0x3] %vm1650, %v4866
    %4928 = vst.msk [vmem:[%s1941] sm:$0x3] %vm1650, %v4926
    %v4929 = vld [vmem:[%s567] sm:$0xf]
    %v4931 = vsel %vm156, %v4853, 0
    %4933 = vmatprep.subr.mxu0 0.0
    %4934 = vmatpush1.msra.mxu0 0.0
    %4935 = vmatprep.subr.mxu0 0.0
    %4936 = vmatpush1.msra.mxu0 0.0
    %4937 = vmatprep.subr.mxu0 0.0
    %4938 = vmatpush1.msra.mxu0 0.0
    %4939 = vmatprep.subr.mxu0 0.0
    %4940 = vmatpush1.msra.mxu0 0.0
    %4941 = vmatprep.subr.mxu0 0.0
    %4942 = vmatpush1.msra.mxu0 0.0
    %4943 = vmatprep.subr.mxu0 0.0
    %4944 = vmatpush1.msra.mxu0 0.0
    %4945 = vmatprep.subr.mxu0 0.0
    %4946 = vmatpush1.msra.mxu0 0.0
    %4947 = vmatprep.subr.mxu0 0.0
    %4948 = vmatpush1.msra.mxu0 0.0
    %4949 = vmatprep.subr.mxu0 0.0
    %4950 = vmatpush1.msra.mxu0 0.0
    %4951 = vmatprep.subr.mxu0 0.0
    %4952 = vmatpush1.msra.mxu0 0.0
    %4953 = vmatprep.subr.mxu0 0.0
    %4954 = vmatpush1.msra.mxu0 0.0
    %4955 = vmatprep.subr.mxu0 0.0
    %4956 = vmatpush1.msra.mxu0 0.0
    %4957 = vmatprep.subr.mxu0 0.0
    %4958 = vmatpush1.msra.mxu0 %v4404
    %4959 = vmatprep.subr.mxu0 0.0
    %4960 = vmatpush1.msra.mxu0 %v4403
    %4961 = vmatprep.subr.mxu0 0.0
    %4962 = vmatpush1.msra.mxu0 %v4402
    %4963 = vmatprep.subr.mxu0 0.0
    %4964 = vmatpush1.msra.mxu0 %v4401
    %4965 = vmatprep.subr.mxu0 0.0
    %4966 = vmatpush2.msra.mxu0 0.0
    %4967 = vmatprep.subr.mxu0 0.0
    %4968 = vmatpush2.msra.mxu0 0.0
    %4969 = vmatprep.subr.mxu0 0.0
    %4970 = vmatpush2.msra.mxu0 0.0
    %4971 = vmatprep.subr.mxu0 0.0
    %4972 = vmatpush2.msra.mxu0 0.0
    %4973 = vmatprep.subr.mxu0 0.0
    %4974 = vmatpush2.msra.mxu0 0.0
    %4975 = vmatprep.subr.mxu0 0.0
    %4976 = vmatpush2.msra.mxu0 0.0
    %4977 = vmatprep.subr.mxu0 0.0
    %4978 = vmatpush2.msra.mxu0 0.0
    %4979 = vmatprep.subr.mxu0 0.0
    %4980 = vmatpush2.msra.mxu0 0.0
    %4981 = vmatprep.subr.mxu0 0.0
    %4982 = vmatpush2.msra.mxu0 0.0
    %4983 = vmatprep.subr.mxu0 0.0
    %4984 = vmatpush2.msra.mxu0 0.0
    %4985 = vmatprep.subr.mxu0 0.0
    %4986 = vmatpush2.msra.mxu0 0.0
    %4987 = vmatprep.subr.mxu0 0.0
    %4988 = vmatpush2.msra.mxu0 0.0
    %4989 = vmatprep.subr.mxu0 0.0
    %4990 = vmatpush2.msra.mxu0 0.0
    %4991 = vmatprep.subr.mxu0 0.0
    %4992 = vmatpush2.msra.mxu0 0.0
    %4993 = vmatprep.subr.mxu0 0.0
    %4994 = vmatpush2.msra.mxu0 0.0
    %4995 = vmatprep.subr.mxu0 0.0
    %4996 = vmatpush2.msra.mxu0 0.0
    %4997 = vmatprep.mubr.f32.mxu0 0.0
    %4998 = vmatmul.mubr.f32.gmra.mxu0 %v4931
    %v4999 = vpop.f32.mrf.mxu0
    %v5000 = vadd.f32 0.0, %v4999
    %v5001 = vpop.f32.mrf.mxu0
    %5002 = vdwg.mxu0
    %v5003 = vadd.f32 %v4929, %v5000
    %v5004 = vld [vmem:[%s1056] sm:$0xf]
    %v5006 = vsel %vm156, %v4913, 0
    %5008 = vmatprep.subr.mxu0 0.0
    %5009 = vmatpush1.msra.mxu0 0.0
    %5010 = vmatprep.subr.mxu0 0.0
    %5011 = vmatpush1.msra.mxu0 0.0
    %5012 = vmatprep.subr.mxu0 0.0
    %5013 = vmatpush1.msra.mxu0 0.0
    %5014 = vmatprep.subr.mxu0 0.0
    %5015 = vmatpush1.msra.mxu0 0.0
    %5016 = vmatprep.subr.mxu0 0.0
    %5017 = vmatpush1.msra.mxu0 0.0
    %5018 = vmatprep.subr.mxu0 0.0
    %5019 = vmatpush1.msra.mxu0 0.0
    %5020 = vmatprep.subr.mxu0 0.0
    %5021 = vmatpush1.msra.mxu0 0.0
    %5022 = vmatprep.subr.mxu0 0.0
    %5023 = vmatpush1.msra.mxu0 0.0
    %5024 = vmatprep.subr.mxu0 0.0
    %5025 = vmatpush1.msra.mxu0 0.0
    %5026 = vmatprep.subr.mxu0 0.0
    %5027 = vmatpush1.msra.mxu0 0.0
    %5028 = vmatprep.subr.mxu0 0.0
    %5029 = vmatpush1.msra.mxu0 0.0
    %5030 = vmatprep.subr.mxu0 0.0
    %5031 = vmatpush1.msra.mxu0 0.0
    %5032 = vmatprep.subr.mxu0 0.0
    %5033 = vmatpush1.msra.mxu0 %v4408
    %5034 = vmatprep.subr.mxu0 0.0
    %5035 = vmatpush1.msra.mxu0 %v4407
    %5036 = vmatprep.subr.mxu0 0.0
    %5037 = vmatpush1.msra.mxu0 %v4406
    %5038 = vmatprep.subr.mxu0 0.0
    %5039 = vmatpush1.msra.mxu0 %v4405
    %5040 = vmatprep.subr.mxu0 0.0
    %5041 = vmatpush2.msra.mxu0 0.0
    %5042 = vmatprep.subr.mxu0 0.0
    %5043 = vmatpush2.msra.mxu0 0.0
    %5044 = vmatprep.subr.mxu0 0.0
    %5045 = vmatpush2.msra.mxu0 0.0
    %5046 = vmatprep.subr.mxu0 0.0
    %5047 = vmatpush2.msra.mxu0 0.0
    %5048 = vmatprep.subr.mxu0 0.0
    %5049 = vmatpush2.msra.mxu0 0.0
    %5050 = vmatprep.subr.mxu0 0.0
    %5051 = vmatpush2.msra.mxu0 0.0
    %5052 = vmatprep.subr.mxu0 0.0
    %5053 = vmatpush2.msra.mxu0 0.0
    %5054 = vmatprep.subr.mxu0 0.0
    %5055 = vmatpush2.msra.mxu0 0.0
    %5056 = vmatprep.subr.mxu0 0.0
    %5057 = vmatpush2.msra.mxu0 0.0
    %5058 = vmatprep.subr.mxu0 0.0
    %5059 = vmatpush2.msra.mxu0 0.0
    %5060 = vmatprep.subr.mxu0 0.0
    %5061 = vmatpush2.msra.mxu0 0.0
    %5062 = vmatprep.subr.mxu0 0.0
    %5063 = vmatpush2.msra.mxu0 0.0
    %5064 = vmatprep.subr.mxu0 0.0
    %5065 = vmatpush2.msra.mxu0 0.0
    %5066 = vmatprep.subr.mxu0 0.0
    %5067 = vmatpush2.msra.mxu0 0.0
    %5068 = vmatprep.subr.mxu0 0.0
    %5069 = vmatpush2.msra.mxu0 0.0
    %5070 = vmatprep.subr.mxu0 0.0
    %5071 = vmatpush2.msra.mxu0 0.0
    %5072 = vmatprep.mubr.f32.mxu0 0.0
    %5073 = vmatmul.mubr.f32.gmra.mxu0 %v5006
    %v5074 = vpop.f32.mrf.mxu0
    %v5075 = vadd.f32 0.0, %v5074
    %v5076 = vpop.f32.mrf.mxu0
    %5077 = vdwg.mxu0
    %v5079 = vrot.slane %v5004, 2
    %v5081 = vadd.f32 %v5079, %v5075
    %v5082 = vxor.u32 %v5003, 2147483648
    %v5083 = vmul.f32 %v5082, 1.442695
    %v5084 = vpow.pop %v5083
    %v5085 = vadd.f32 %v5084, 1.0
    %v5086 = vrcp.pop %v5085
    %v5087 = vmul.f32 1.0, %v5086
    %v5088 = vtanh.pop %v5003
    %v5091 = vunpack.c.l.s4 1983009808
    %v5092 = vunpack.c.0.s8 %v5091
    %v5093 = vlaneseq
    %v5094 = vshrl.u32 %v5093, 7
    %v5095 = vsub.s32 %v5092, %v5094
    %v5096 = vrot.slane %v4865, %v5095
    %5097 = vrot.lane.b32.xlu0 %v5096, 32
    %v5098 = vpop.permute.xlu0 %5097
    %v5100 = vmul.f32 %v5087, %v5098
    %5102 = vrot.lane.b32.xlu0 %v5088, 64
    %v5103 = vpop.permute.xlu0 %5102
    %v5105 = vmul.f32 %v5087, %v5103
    %5107 = vrot.lane.b32.xlu0 %v5105, 32
    %v5108 = vpop.permute.xlu0 %5107
    %v5110 = vadd.f32 %v5100, %v5108
    %v5111 = vtanh.pop %v5110
    %5113 = vrot.lane.b32.xlu0 %v5111, 64
    %v5114 = vpop.permute.xlu0 %5113
    %v5116 = vmul.f32 %v5087, %v5114
    %v5119 = vunpack.c.l.s4 1983009808
    %v5120 = vunpack.c.0.s8 %v5119
    %v5121 = vlaneseq
    %v5122 = vshrl.u32 %v5121, 7
    %v5123 = vsub.s32 %v5120, %v5122
    %v5124 = vrot.slane %v5116, %v5123
    %5125 = vrot.lane.b32.xlu0 %v5124, 32
    %v5126 = vpop.permute.xlu0 %5125
    %v5128 = vsel %vm2136, %v5126, %v4853
    %v5131 = vunpack.c.l.s4 1983009808
    %v5132 = vunpack.c.0.s8 %v5131
    %v5133 = vlaneseq
    %v5134 = vshrl.u32 %v5133, 7
    %v5135 = vsub.s32 %v5132, %v5134
    %v5136 = vrot.slane %v5110, %v5135
    %5137 = vrot.lane.b32.xlu0 %v5136, 96
    %v5138 = vpop.permute.xlu0 %5137
    %v5140 = vsel %vm2136, %v5138, %v4865
    %v5141 = vsel %vm2136, %v5126, 0.0
    %v5142 = vxor.u32 %v5081, 2147483648
    %v5143 = vmul.f32 %v5142, 1.442695
    %v5144 = vpow.pop %v5143
    %v5145 = vadd.f32 %v5144, 1.0
    %v5146 = vrcp.pop %v5145
    %v5147 = vmul.f32 1.0, %v5146
    %v5148 = vtanh.pop %v5081
    %v5151 = vunpack.c.l.s4 1983009808
    %v5152 = vunpack.c.0.s8 %v5151
    %v5153 = vlaneseq
    %v5154 = vshrl.u32 %v5153, 7
    %v5155 = vsub.s32 %v5152, %v5154
    %v5156 = vrot.slane %v4925, %v5155
    %5157 = vrot.lane.b32.xlu0 %v5156, 32
    %v5158 = vpop.permute.xlu0 %5157
    %v5160 = vmul.f32 %v5147, %v5158
    %5162 = vrot.lane.b32.xlu0 %v5148, 64
    %v5163 = vpop.permute.xlu0 %5162
    %v5165 = vmul.f32 %v5147, %v5163
    %5167 = vrot.lane.b32.xlu0 %v5165, 32
    %v5168 = vpop.permute.xlu0 %5167
    %v5170 = vadd.f32 %v5160, %v5168
    %v5171 = vtanh.pop %v5170
    %5173 = vrot.lane.b32.xlu0 %v5171, 64
    %v5174 = vpop.permute.xlu0 %5173
    %v5176 = vmul.f32 %v5147, %v5174
    %v5179 = vunpack.c.l.s4 1983009808
    %v5180 = vunpack.c.0.s8 %v5179
    %v5181 = vlaneseq
    %v5182 = vshrl.u32 %v5181, 7
    %v5183 = vsub.s32 %v5180, %v5182
    %v5184 = vrot.slane %v5176, %v5183
    %5185 = vrot.lane.b32.xlu0 %v5184, 32
    %v5186 = vpop.permute.xlu0 %5185
    %v5188 = vsel %vm2202, %v5186, %v4913
    %v5191 = vunpack.c.l.s4 1983009808
    %v5192 = vunpack.c.0.s8 %v5191
    %v5193 = vlaneseq
    %v5194 = vshrl.u32 %v5193, 7
    %v5195 = vsub.s32 %v5192, %v5194
    %v5196 = vrot.slane %v5170, %v5195
    %5197 = vrot.lane.b32.xlu0 %v5196, 96
    %v5198 = vpop.permute.xlu0 %5197
    %v5200 = vsel %vm2202, %v5198, %v4925
    %v5201 = vsel %vm2202, %v5186, 0.0
    %5202 = vst.msk [vmem:[%s2228] sm:$0x3] %vm1650, %v5141
    %5203 = vst.msk [vmem:[%s2230] sm:$0x3] %vm1650, %v5201
    %v5204 = vld [vmem:[%s730] sm:$0xf]
    %v5206 = vsel %vm156, %v5128, 0
    %5208 = vmatprep.subr.mxu0 0.0
    %5209 = vmatpush1.msra.mxu0 0.0
    %5210 = vmatprep.subr.mxu0 0.0
    %5211 = vmatpush1.msra.mxu0 0.0
    %5212 = vmatprep.subr.mxu0 0.0
    %5213 = vmatpush1.msra.mxu0 0.0
    %5214 = vmatprep.subr.mxu0 0.0
    %5215 = vmatpush1.msra.mxu0 0.0
    %5216 = vmatprep.subr.mxu0 0.0
    %5217 = vmatpush1.msra.mxu0 0.0
    %5218 = vmatprep.subr.mxu0 0.0
    %5219 = vmatpush1.msra.mxu0 0.0
    %5220 = vmatprep.subr.mxu0 0.0
    %5221 = vmatpush1.msra.mxu0 0.0
    %5222 = vmatprep.subr.mxu0 0.0
    %5223 = vmatpush1.msra.mxu0 0.0
    %5224 = vmatprep.subr.mxu0 0.0
    %5225 = vmatpush1.msra.mxu0 0.0
    %5226 = vmatprep.subr.mxu0 0.0
    %5227 = vmatpush1.msra.mxu0 0.0
    %5228 = vmatprep.subr.mxu0 0.0
    %5229 = vmatpush1.msra.mxu0 0.0
    %5230 = vmatprep.subr.mxu0 0.0
    %5231 = vmatpush1.msra.mxu0 0.0
    %5232 = vmatprep.subr.mxu0 0.0
    %5233 = vmatpush1.msra.mxu0 %v4404
    %5234 = vmatprep.subr.mxu0 0.0
    %5235 = vmatpush1.msra.mxu0 %v4403
    %5236 = vmatprep.subr.mxu0 0.0
    %5237 = vmatpush1.msra.mxu0 %v4402
    %5238 = vmatprep.subr.mxu0 0.0
    %5239 = vmatpush1.msra.mxu0 %v4401
    %5240 = vmatprep.subr.mxu0 0.0
    %5241 = vmatpush2.msra.mxu0 0.0
    %5242 = vmatprep.subr.mxu0 0.0
    %5243 = vmatpush2.msra.mxu0 0.0
    %5244 = vmatprep.subr.mxu0 0.0
    %5245 = vmatpush2.msra.mxu0 0.0
    %5246 = vmatprep.subr.mxu0 0.0
    %5247 = vmatpush2.msra.mxu0 0.0
    %5248 = vmatprep.subr.mxu0 0.0
    %5249 = vmatpush2.msra.mxu0 0.0
    %5250 = vmatprep.subr.mxu0 0.0
    %5251 = vmatpush2.msra.mxu0 0.0
    %5252 = vmatprep.subr.mxu0 0.0
    %5253 = vmatpush2.msra.mxu0 0.0
    %5254 = vmatprep.subr.mxu0 0.0
    %5255 = vmatpush2.msra.mxu0 0.0
    %5256 = vmatprep.subr.mxu0 0.0
    %5257 = vmatpush2.msra.mxu0 0.0
    %5258 = vmatprep.subr.mxu0 0.0
    %5259 = vmatpush2.msra.mxu0 0.0
    %5260 = vmatprep.subr.mxu0 0.0
    %5261 = vmatpush2.msra.mxu0 0.0
    %5262 = vmatprep.subr.mxu0 0.0
    %5263 = vmatpush2.msra.mxu0 0.0
    %5264 = vmatprep.subr.mxu0 0.0
    %5265 = vmatpush2.msra.mxu0 0.0
    %5266 = vmatprep.subr.mxu0 0.0
    %5267 = vmatpush2.msra.mxu0 0.0
    %5268 = vmatprep.subr.mxu0 0.0
    %5269 = vmatpush2.msra.mxu0 0.0
    %5270 = vmatprep.subr.mxu0 0.0
    %5271 = vmatpush2.msra.mxu0 0.0
    %5272 = vmatprep.mubr.f32.mxu0 0.0
    %5273 = vmatmul.mubr.f32.gmra.mxu0 %v5206
    %v5274 = vpop.f32.mrf.mxu0
    %v5275 = vadd.f32 0.0, %v5274
    %v5276 = vpop.f32.mrf.mxu0
    %5277 = vdwg.mxu0
    %v5278 = vadd.f32 %v5204, %v5275
    %v5279 = vld [vmem:[%s893] sm:$0xf]
    %v5281 = vsel %vm156, %v5188, 0
    %5283 = vmatprep.subr.mxu0 0.0
    %5284 = vmatpush1.msra.mxu0 0.0
    %5285 = vmatprep.subr.mxu0 0.0
    %5286 = vmatpush1.msra.mxu0 0.0
    %5287 = vmatprep.subr.mxu0 0.0
    %5288 = vmatpush1.msra.mxu0 0.0
    %5289 = vmatprep.subr.mxu0 0.0
    %5290 = vmatpush1.msra.mxu0 0.0
    %5291 = vmatprep.subr.mxu0 0.0
    %5292 = vmatpush1.msra.mxu0 0.0
    %5293 = vmatprep.subr.mxu0 0.0
    %5294 = vmatpush1.msra.mxu0 0.0
    %5295 = vmatprep.subr.mxu0 0.0
    %5296 = vmatpush1.msra.mxu0 0.0
    %5297 = vmatprep.subr.mxu0 0.0
    %5298 = vmatpush1.msra.mxu0 0.0
    %5299 = vmatprep.subr.mxu0 0.0
    %5300 = vmatpush1.msra.mxu0 0.0
    %5301 = vmatprep.subr.mxu0 0.0
    %5302 = vmatpush1.msra.mxu0 0.0
    %5303 = vmatprep.subr.mxu0 0.0
    %5304 = vmatpush1.msra.mxu0 0.0
    %5305 = vmatprep.subr.mxu0 0.0
    %5306 = vmatpush1.msra.mxu0 0.0
    %5307 = vmatprep.subr.mxu0 0.0
    %5308 = vmatpush1.msra.mxu0 %v4408
    %5309 = vmatprep.subr.mxu0 0.0
    %5310 = vmatpush1.msra.mxu0 %v4407
    %5311 = vmatprep.subr.mxu0 0.0
    %5312 = vmatpush1.msra.mxu0 %v4406
    %5313 = vmatprep.subr.mxu0 0.0
    %5314 = vmatpush1.msra.mxu0 %v4405
    %5315 = vmatprep.subr.mxu0 0.0
    %5316 = vmatpush2.msra.mxu0 0.0
    %5317 = vmatprep.subr.mxu0 0.0
    %5318 = vmatpush2.msra.mxu0 0.0
    %5319 = vmatprep.subr.mxu0 0.0
    %5320 = vmatpush2.msra.mxu0 0.0
    %5321 = vmatprep.subr.mxu0 0.0
    %5322 = vmatpush2.msra.mxu0 0.0
    %5323 = vmatprep.subr.mxu0 0.0
    %5324 = vmatpush2.msra.mxu0 0.0
    %5325 = vmatprep.subr.mxu0 0.0
    %5326 = vmatpush2.msra.mxu0 0.0
    %5327 = vmatprep.subr.mxu0 0.0
    %5328 = vmatpush2.msra.mxu0 0.0
    %5329 = vmatprep.subr.mxu0 0.0
    %5330 = vmatpush2.msra.mxu0 0.0
    %5331 = vmatprep.subr.mxu0 0.0
    %5332 = vmatpush2.msra.mxu0 0.0
    %5333 = vmatprep.subr.mxu0 0.0
    %5334 = vmatpush2.msra.mxu0 0.0
    %5335 = vmatprep.subr.mxu0 0.0
    %5336 = vmatpush2.msra.mxu0 0.0
    %5337 = vmatprep.subr.mxu0 0.0
    %5338 = vmatpush2.msra.mxu0 0.0
    %5339 = vmatprep.subr.mxu0 0.0
    %5340 = vmatpush2.msra.mxu0 0.0
    %5341 = vmatprep.subr.mxu0 0.0
    %5342 = vmatpush2.msra.mxu0 0.0
    %5343 = vmatprep.subr.mxu0 0.0
    %5344 = vmatpush2.msra.mxu0 0.0
    %5345 = vmatprep.subr.mxu0 0.0
    %5346 = vmatpush2.msra.mxu0 0.0
    %5347 = vmatprep.mubr.f32.mxu0 0.0
    %5348 = vmatmul.mubr.f32.gmra.mxu0 %v5281
    %v5349 = vpop.f32.mrf.mxu0
    %v5350 = vadd.f32 0.0, %v5349
    %v5351 = vpop.f32.mrf.mxu0
    %5352 = vdwg.mxu0
    %v5354 = vrot.slane %v5279, 2
    %v5356 = vadd.f32 %v5354, %v5350
    %v5357 = vxor.u32 %v5278, 2147483648
    %v5358 = vmul.f32 %v5357, 1.442695
    %v5359 = vpow.pop %v5358
    %v5360 = vadd.f32 %v5359, 1.0
    %v5361 = vrcp.pop %v5360
    %v5362 = vmul.f32 1.0, %v5361
    %v5363 = vtanh.pop %v5278
    %v5366 = vunpack.c.l.s4 1983009808
    %v5367 = vunpack.c.0.s8 %v5366
    %v5368 = vlaneseq
    %v5369 = vshrl.u32 %v5368, 7
    %v5370 = vsub.s32 %v5367, %v5369
    %v5371 = vrot.slane %v5140, %v5370
    %5372 = vrot.lane.b32.xlu0 %v5371, 32
    %v5373 = vpop.permute.xlu0 %5372
    %v5375 = vmul.f32 %v5362, %v5373
    %5377 = vrot.lane.b32.xlu0 %v5363, 64
    %v5378 = vpop.permute.xlu0 %5377
    %v5380 = vmul.f32 %v5362, %v5378
    %5382 = vrot.lane.b32.xlu0 %v5380, 32
    %v5383 = vpop.permute.xlu0 %5382
    %v5385 = vadd.f32 %v5375, %v5383
    %v5386 = vtanh.pop %v5385
    %5388 = vrot.lane.b32.xlu0 %v5386, 64
    %v5389 = vpop.permute.xlu0 %5388
    %v5391 = vmul.f32 %v5362, %v5389
    %v5394 = vunpack.c.l.s4 1983009808
    %v5395 = vunpack.c.0.s8 %v5394
    %v5396 = vlaneseq
    %v5397 = vshrl.u32 %v5396, 7
    %v5398 = vsub.s32 %v5395, %v5397
    %v5399 = vrot.slane %v5391, %v5398
    %5400 = vrot.lane.b32.xlu0 %v5399, 32
    %v5401 = vpop.permute.xlu0 %5400
    %v5403 = vsel %vm2425, %v5401, %v5128
    %v5406 = vunpack.c.l.s4 1983009808
    %v5407 = vunpack.c.0.s8 %v5406
    %v5408 = vlaneseq
    %v5409 = vshrl.u32 %v5408, 7
    %v5410 = vsub.s32 %v5407, %v5409
    %v5411 = vrot.slane %v5385, %v5410
    %5412 = vrot.lane.b32.xlu0 %v5411, 96
    %v5413 = vpop.permute.xlu0 %5412
    %v5415 = vsel %vm2425, %v5413, %v5140
    %v5416 = vsel %vm2425, %v5401, 0.0
    %v5417 = vxor.u32 %v5356, 2147483648
    %v5418 = vmul.f32 %v5417, 1.442695
    %v5419 = vpow.pop %v5418
    %v5420 = vadd.f32 %v5419, 1.0
    %v5421 = vrcp.pop %v5420
    %v5422 = vmul.f32 1.0, %v5421
    %v5423 = vtanh.pop %v5356
    %v5426 = vunpack.c.l.s4 1983009808
    %v5427 = vunpack.c.0.s8 %v5426
    %v5428 = vlaneseq
    %v5429 = vshrl.u32 %v5428, 7
    %v5430 = vsub.s32 %v5427, %v5429
    %v5431 = vrot.slane %v5200, %v5430
    %5432 = vrot.lane.b32.xlu0 %v5431, 32
    %v5433 = vpop.permute.xlu0 %5432
    %v5435 = vmul.f32 %v5422, %v5433
    %5437 = vrot.lane.b32.xlu0 %v5423, 64
    %v5438 = vpop.permute.xlu0 %5437
    %v5440 = vmul.f32 %v5422, %v5438
    %5442 = vrot.lane.b32.xlu0 %v5440, 32
    %v5443 = vpop.permute.xlu0 %5442
    %v5445 = vadd.f32 %v5435, %v5443
    %v5446 = vtanh.pop %v5445
    %5448 = vrot.lane.b32.xlu0 %v5446, 64
    %v5449 = vpop.permute.xlu0 %5448
    %v5451 = vmul.f32 %v5422, %v5449
    %v5454 = vunpack.c.l.s4 1983009808
    %v5455 = vunpack.c.0.s8 %v5454
    %v5456 = vlaneseq
    %v5457 = vshrl.u32 %v5456, 7
    %v5458 = vsub.s32 %v5455, %v5457
    %v5459 = vrot.slane %v5451, %v5458
    %5460 = vrot.lane.b32.xlu0 %v5459, 32
    %v5461 = vpop.permute.xlu0 %5460
    %v5463 = vsel %vm2491, %v5461, %v5188
    %v5466 = vunpack.c.l.s4 1983009808
    %v5467 = vunpack.c.0.s8 %v5466
    %v5468 = vlaneseq
    %v5469 = vshrl.u32 %v5468, 7
    %v5470 = vsub.s32 %v5467, %v5469
    %v5471 = vrot.slane %v5445, %v5470
    %5472 = vrot.lane.b32.xlu0 %v5471, 96
    %v5473 = vpop.permute.xlu0 %5472
    %v5475 = vsel %vm2491, %v5473, %v5200
    %v5476 = vsel %vm2491, %v5461, 0.0
    %5477 = vst.msk [vmem:[%s2517] sm:$0x3] %vm1650, %v5416
    %5478 = vst.msk [vmem:[%s2519] sm:$0x3] %vm1650, %v5476
    %v5479 = vld [vmem:[%s893] sm:$0xf]
    %v5481 = vsel %vm156, %v5403, 0
    %5483 = vmatprep.subr.mxu0 0.0
    %5484 = vmatpush1.msra.mxu0 0.0
    %5485 = vmatprep.subr.mxu0 0.0
    %5486 = vmatpush1.msra.mxu0 0.0
    %5487 = vmatprep.subr.mxu0 0.0
    %5488 = vmatpush1.msra.mxu0 0.0
    %5489 = vmatprep.subr.mxu0 0.0
    %5490 = vmatpush1.msra.mxu0 0.0
    %5491 = vmatprep.subr.mxu0 0.0
    %5492 = vmatpush1.msra.mxu0 0.0
    %5493 = vmatprep.subr.mxu0 0.0
    %5494 = vmatpush1.msra.mxu0 0.0
    %5495 = vmatprep.subr.mxu0 0.0
    %5496 = vmatpush1.msra.mxu0 0.0
    %5497 = vmatprep.subr.mxu0 0.0
    %5498 = vmatpush1.msra.mxu0 0.0
    %5499 = vmatprep.subr.mxu0 0.0
    %5500 = vmatpush1.msra.mxu0 0.0
    %5501 = vmatprep.subr.mxu0 0.0
    %5502 = vmatpush1.msra.mxu0 0.0
    %5503 = vmatprep.subr.mxu0 0.0
    %5504 = vmatpush1.msra.mxu0 0.0
    %5505 = vmatprep.subr.mxu0 0.0
    %5506 = vmatpush1.msra.mxu0 0.0
    %5507 = vmatprep.subr.mxu0 0.0
    %5508 = vmatpush1.msra.mxu0 %v4404
    %5509 = vmatprep.subr.mxu0 0.0
    %5510 = vmatpush1.msra.mxu0 %v4403
    %5511 = vmatprep.subr.mxu0 0.0
    %5512 = vmatpush1.msra.mxu0 %v4402
    %5513 = vmatprep.subr.mxu0 0.0
    %5514 = vmatpush1.msra.mxu0 %v4401
    %5515 = vmatprep.subr.mxu0 0.0
    %5516 = vmatpush2.msra.mxu0 0.0
    %5517 = vmatprep.subr.mxu0 0.0
    %5518 = vmatpush2.msra.mxu0 0.0
    %5519 = vmatprep.subr.mxu0 0.0
    %5520 = vmatpush2.msra.mxu0 0.0
    %5521 = vmatprep.subr.mxu0 0.0
    %5522 = vmatpush2.msra.mxu0 0.0
    %5523 = vmatprep.subr.mxu0 0.0
    %5524 = vmatpush2.msra.mxu0 0.0
    %5525 = vmatprep.subr.mxu0 0.0
    %5526 = vmatpush2.msra.mxu0 0.0
    %5527 = vmatprep.subr.mxu0 0.0
    %5528 = vmatpush2.msra.mxu0 0.0
    %5529 = vmatprep.subr.mxu0 0.0
    %5530 = vmatpush2.msra.mxu0 0.0
    %5531 = vmatprep.subr.mxu0 0.0
    %5532 = vmatpush2.msra.mxu0 0.0
    %5533 = vmatprep.subr.mxu0 0.0
    %5534 = vmatpush2.msra.mxu0 0.0
    %5535 = vmatprep.subr.mxu0 0.0
    %5536 = vmatpush2.msra.mxu0 0.0
    %5537 = vmatprep.subr.mxu0 0.0
    %5538 = vmatpush2.msra.mxu0 0.0
    %5539 = vmatprep.subr.mxu0 0.0
    %5540 = vmatpush2.msra.mxu0 0.0
    %5541 = vmatprep.subr.mxu0 0.0
    %5542 = vmatpush2.msra.mxu0 0.0
    %5543 = vmatprep.subr.mxu0 0.0
    %5544 = vmatpush2.msra.mxu0 0.0
    %5545 = vmatprep.subr.mxu0 0.0
    %5546 = vmatpush2.msra.mxu0 0.0
    %5547 = vmatprep.mubr.f32.mxu0 0.0
    %5548 = vmatmul.mubr.f32.gmra.mxu0 %v5481
    %v5549 = vpop.f32.mrf.mxu0
    %v5550 = vadd.f32 0.0, %v5549
    %v5551 = vpop.f32.mrf.mxu0
    %5552 = vdwg.mxu0
    %v5553 = vadd.f32 %v5479, %v5550
    %v5554 = vld [vmem:[%s730] sm:$0xf]
    %v5556 = vsel %vm156, %v5463, 0
    %5558 = vmatprep.subr.mxu0 0.0
    %5559 = vmatpush1.msra.mxu0 0.0
    %5560 = vmatprep.subr.mxu0 0.0
    %5561 = vmatpush1.msra.mxu0 0.0
    %5562 = vmatprep.subr.mxu0 0.0
    %5563 = vmatpush1.msra.mxu0 0.0
    %5564 = vmatprep.subr.mxu0 0.0
    %5565 = vmatpush1.msra.mxu0 0.0
    %5566 = vmatprep.subr.mxu0 0.0
    %5567 = vmatpush1.msra.mxu0 0.0
    %5568 = vmatprep.subr.mxu0 0.0
    %5569 = vmatpush1.msra.mxu0 0.0
    %5570 = vmatprep.subr.mxu0 0.0
    %5571 = vmatpush1.msra.mxu0 0.0
    %5572 = vmatprep.subr.mxu0 0.0
    %5573 = vmatpush1.msra.mxu0 0.0
    %5574 = vmatprep.subr.mxu0 0.0
    %5575 = vmatpush1.msra.mxu0 0.0
    %5576 = vmatprep.subr.mxu0 0.0
    %5577 = vmatpush1.msra.mxu0 0.0
    %5578 = vmatprep.subr.mxu0 0.0
    %5579 = vmatpush1.msra.mxu0 0.0
    %5580 = vmatprep.subr.mxu0 0.0
    %5581 = vmatpush1.msra.mxu0 0.0
    %5582 = vmatprep.subr.mxu0 0.0
    %5583 = vmatpush1.msra.mxu0 %v4408
    %5584 = vmatprep.subr.mxu0 0.0
    %5585 = vmatpush1.msra.mxu0 %v4407
    %5586 = vmatprep.subr.mxu0 0.0
    %5587 = vmatpush1.msra.mxu0 %v4406
    %5588 = vmatprep.subr.mxu0 0.0
    %5589 = vmatpush1.msra.mxu0 %v4405
    %5590 = vmatprep.subr.mxu0 0.0
    %5591 = vmatpush2.msra.mxu0 0.0
    %5592 = vmatprep.subr.mxu0 0.0
    %5593 = vmatpush2.msra.mxu0 0.0
    %5594 = vmatprep.subr.mxu0 0.0
    %5595 = vmatpush2.msra.mxu0 0.0
    %5596 = vmatprep.subr.mxu0 0.0
    %5597 = vmatpush2.msra.mxu0 0.0
    %5598 = vmatprep.subr.mxu0 0.0
    %5599 = vmatpush2.msra.mxu0 0.0
    %5600 = vmatprep.subr.mxu0 0.0
    %5601 = vmatpush2.msra.mxu0 0.0
    %5602 = vmatprep.subr.mxu0 0.0
    %5603 = vmatpush2.msra.mxu0 0.0
    %5604 = vmatprep.subr.mxu0 0.0
    %5605 = vmatpush2.msra.mxu0 0.0
    %5606 = vmatprep.subr.mxu0 0.0
    %5607 = vmatpush2.msra.mxu0 0.0
    %5608 = vmatprep.subr.mxu0 0.0
    %5609 = vmatpush2.msra.mxu0 0.0
    %5610 = vmatprep.subr.mxu0 0.0
    %5611 = vmatpush2.msra.mxu0 0.0
    %5612 = vmatprep.subr.mxu0 0.0
    %5613 = vmatpush2.msra.mxu0 0.0
    %5614 = vmatprep.subr.mxu0 0.0
    %5615 = vmatpush2.msra.mxu0 0.0
    %5616 = vmatprep.subr.mxu0 0.0
    %5617 = vmatpush2.msra.mxu0 0.0
    %5618 = vmatprep.subr.mxu0 0.0
    %5619 = vmatpush2.msra.mxu0 0.0
    %5620 = vmatprep.subr.mxu0 0.0
    %5621 = vmatpush2.msra.mxu0 0.0
    %5622 = vmatprep.mubr.f32.mxu0 0.0
    %5623 = vmatmul.mubr.f32.gmra.mxu0 %v5556
    %v5624 = vpop.f32.mrf.mxu0
    %v5625 = vadd.f32 0.0, %v5624
    %v5626 = vpop.f32.mrf.mxu0
    %5627 = vdwg.mxu0
    %v5629 = vrot.slane %v5554, 2
    %v5631 = vadd.f32 %v5629, %v5625
    %v5632 = vxor.u32 %v5553, 2147483648
    %v5633 = vmul.f32 %v5632, 1.442695
    %v5634 = vpow.pop %v5633
    %v5635 = vadd.f32 %v5634, 1.0
    %v5636 = vrcp.pop %v5635
    %v5637 = vmul.f32 1.0, %v5636
    %v5638 = vtanh.pop %v5553
    %v5641 = vunpack.c.l.s4 1983009808
    %v5642 = vunpack.c.0.s8 %v5641
    %v5643 = vlaneseq
    %v5644 = vshrl.u32 %v5643, 7
    %v5645 = vsub.s32 %v5642, %v5644
    %v5646 = vrot.slane %v5415, %v5645
    %5647 = vrot.lane.b32.xlu0 %v5646, 32
    %v5648 = vpop.permute.xlu0 %5647
    %v5650 = vmul.f32 %v5637, %v5648
    %5652 = vrot.lane.b32.xlu0 %v5638, 64
    %v5653 = vpop.permute.xlu0 %5652
    %v5655 = vmul.f32 %v5637, %v5653
    %5657 = vrot.lane.b32.xlu0 %v5655, 32
    %v5658 = vpop.permute.xlu0 %5657
    %v5660 = vadd.f32 %v5650, %v5658
    %v5661 = vtanh.pop %v5660
    %5663 = vrot.lane.b32.xlu0 %v5661, 64
    %v5664 = vpop.permute.xlu0 %5663
    %v5666 = vmul.f32 %v5637, %v5664
    %v5669 = vunpack.c.l.s4 1983009808
    %v5670 = vunpack.c.0.s8 %v5669
    %v5671 = vlaneseq
    %v5672 = vshrl.u32 %v5671, 7
    %v5673 = vsub.s32 %v5670, %v5672
    %v5674 = vrot.slane %v5666, %v5673
    %5675 = vrot.lane.b32.xlu0 %v5674, 32
    %v5676 = vpop.permute.xlu0 %5675
    %v5678 = vsel %vm2491, %v5676, %v5403
    %v5681 = vunpack.c.l.s4 1983009808
    %v5682 = vunpack.c.0.s8 %v5681
    %v5683 = vlaneseq
    %v5684 = vshrl.u32 %v5683, 7
    %v5685 = vsub.s32 %v5682, %v5684
    %v5686 = vrot.slane %v5660, %v5685
    %5687 = vrot.lane.b32.xlu0 %v5686, 96
    %v5688 = vpop.permute.xlu0 %5687
    %v5690 = vsel %vm2491, %v5688, %v5415
    %v5691 = vsel %vm2491, %v5676, 0.0
    %v5692 = vxor.u32 %v5631, 2147483648
    %v5693 = vmul.f32 %v5692, 1.442695
    %v5694 = vpow.pop %v5693
    %v5695 = vadd.f32 %v5694, 1.0
    %v5696 = vrcp.pop %v5695
    %v5697 = vmul.f32 1.0, %v5696
    %v5698 = vtanh.pop %v5631
    %v5701 = vunpack.c.l.s4 1983009808
    %v5702 = vunpack.c.0.s8 %v5701
    %v5703 = vlaneseq
    %v5704 = vshrl.u32 %v5703, 7
    %v5705 = vsub.s32 %v5702, %v5704
    %v5706 = vrot.slane %v5475, %v5705
    %5707 = vrot.lane.b32.xlu0 %v5706, 32
    %v5708 = vpop.permute.xlu0 %5707
    %v5710 = vmul.f32 %v5697, %v5708
    %5712 = vrot.lane.b32.xlu0 %v5698, 64
    %v5713 = vpop.permute.xlu0 %5712
    %v5715 = vmul.f32 %v5697, %v5713
    %5717 = vrot.lane.b32.xlu0 %v5715, 32
    %v5718 = vpop.permute.xlu0 %5717
    %v5720 = vadd.f32 %v5710, %v5718
    %v5721 = vtanh.pop %v5720
    %5723 = vrot.lane.b32.xlu0 %v5721, 64
    %v5724 = vpop.permute.xlu0 %5723
    %v5726 = vmul.f32 %v5697, %v5724
    %v5729 = vunpack.c.l.s4 1983009808
    %v5730 = vunpack.c.0.s8 %v5729
    %v5731 = vlaneseq
    %v5732 = vshrl.u32 %v5731, 7
    %v5733 = vsub.s32 %v5730, %v5732
    %v5734 = vrot.slane %v5726, %v5733
    %5735 = vrot.lane.b32.xlu0 %v5734, 32
    %v5736 = vpop.permute.xlu0 %5735
    %v5738 = vsel %vm2425, %v5736, %v5463
    %v5741 = vunpack.c.l.s4 1983009808
    %v5742 = vunpack.c.0.s8 %v5741
    %v5743 = vlaneseq
    %v5744 = vshrl.u32 %v5743, 7
    %v5745 = vsub.s32 %v5742, %v5744
    %v5746 = vrot.slane %v5720, %v5745
    %5747 = vrot.lane.b32.xlu0 %v5746, 96
    %v5748 = vpop.permute.xlu0 %5747
    %v5750 = vsel %vm2425, %v5748, %v5475
    %v5751 = vsel %vm2425, %v5736, 0.0
    %5752 = vst.msk [vmem:[%s2794] sm:$0x3] %vm1650, %v5691
    %5753 = vst.msk [vmem:[%s2796] sm:$0x3] %vm1650, %v5751
    %v5754 = vld [vmem:[%s1056] sm:$0xf]
    %v5756 = vsel %vm156, %v5678, 0
    %5758 = vmatprep.subr.mxu0 0.0
    %5759 = vmatpush1.msra.mxu0 0.0
    %5760 = vmatprep.subr.mxu0 0.0
    %5761 = vmatpush1.msra.mxu0 0.0
    %5762 = vmatprep.subr.mxu0 0.0
    %5763 = vmatpush1.msra.mxu0 0.0
    %5764 = vmatprep.subr.mxu0 0.0
    %5765 = vmatpush1.msra.mxu0 0.0
    %5766 = vmatprep.subr.mxu0 0.0
    %5767 = vmatpush1.msra.mxu0 0.0
    %5768 = vmatprep.subr.mxu0 0.0
    %5769 = vmatpush1.msra.mxu0 0.0
    %5770 = vmatprep.subr.mxu0 0.0
    %5771 = vmatpush1.msra.mxu0 0.0
    %5772 = vmatprep.subr.mxu0 0.0
    %5773 = vmatpush1.msra.mxu0 0.0
    %5774 = vmatprep.subr.mxu0 0.0
    %5775 = vmatpush1.msra.mxu0 0.0
    %5776 = vmatprep.subr.mxu0 0.0
    %5777 = vmatpush1.msra.mxu0 0.0
    %5778 = vmatprep.subr.mxu0 0.0
    %5779 = vmatpush1.msra.mxu0 0.0
    %5780 = vmatprep.subr.mxu0 0.0
    %5781 = vmatpush1.msra.mxu0 0.0
    %5782 = vmatprep.subr.mxu0 0.0
    %5783 = vmatpush1.msra.mxu0 %v4404
    %5784 = vmatprep.subr.mxu0 0.0
    %5785 = vmatpush1.msra.mxu0 %v4403
    %5786 = vmatprep.subr.mxu0 0.0
    %5787 = vmatpush1.msra.mxu0 %v4402
    %5788 = vmatprep.subr.mxu0 0.0
    %5789 = vmatpush1.msra.mxu0 %v4401
    %5790 = vmatprep.subr.mxu0 0.0
    %5791 = vmatpush2.msra.mxu0 0.0
    %5792 = vmatprep.subr.mxu0 0.0
    %5793 = vmatpush2.msra.mxu0 0.0
    %5794 = vmatprep.subr.mxu0 0.0
    %5795 = vmatpush2.msra.mxu0 0.0
    %5796 = vmatprep.subr.mxu0 0.0
    %5797 = vmatpush2.msra.mxu0 0.0
    %5798 = vmatprep.subr.mxu0 0.0
    %5799 = vmatpush2.msra.mxu0 0.0
    %5800 = vmatprep.subr.mxu0 0.0
    %5801 = vmatpush2.msra.mxu0 0.0
    %5802 = vmatprep.subr.mxu0 0.0
    %5803 = vmatpush2.msra.mxu0 0.0
    %5804 = vmatprep.subr.mxu0 0.0
    %5805 = vmatpush2.msra.mxu0 0.0
    %5806 = vmatprep.subr.mxu0 0.0
    %5807 = vmatpush2.msra.mxu0 0.0
    %5808 = vmatprep.subr.mxu0 0.0
    %5809 = vmatpush2.msra.mxu0 0.0
    %5810 = vmatprep.subr.mxu0 0.0
    %5811 = vmatpush2.msra.mxu0 0.0
    %5812 = vmatprep.subr.mxu0 0.0
    %5813 = vmatpush2.msra.mxu0 0.0
    %5814 = vmatprep.subr.mxu0 0.0
    %5815 = vmatpush2.msra.mxu0 0.0
    %5816 = vmatprep.subr.mxu0 0.0
    %5817 = vmatpush2.msra.mxu0 0.0
    %5818 = vmatprep.subr.mxu0 0.0
    %5819 = vmatpush2.msra.mxu0 0.0
    %5820 = vmatprep.subr.mxu0 0.0
    %5821 = vmatpush2.msra.mxu0 0.0
    %5822 = vmatprep.mubr.f32.mxu0 0.0
    %5823 = vmatmul.mubr.f32.gmra.mxu0 %v5756
    %v5824 = vpop.f32.mrf.mxu0
    %v5825 = vadd.f32 0.0, %v5824
    %v5826 = vpop.f32.mrf.mxu0
    %5827 = vdwg.mxu0
    %v5828 = vadd.f32 %v5754, %v5825
    %v5829 = vld [vmem:[%s567] sm:$0xf]
    %v5831 = vsel %vm156, %v5738, 0
    %5833 = vmatprep.subr.mxu0 0.0
    %5834 = vmatpush1.msra.mxu0 0.0
    %5835 = vmatprep.subr.mxu0 0.0
    %5836 = vmatpush1.msra.mxu0 0.0
    %5837 = vmatprep.subr.mxu0 0.0
    %5838 = vmatpush1.msra.mxu0 0.0
    %5839 = vmatprep.subr.mxu0 0.0
    %5840 = vmatpush1.msra.mxu0 0.0
    %5841 = vmatprep.subr.mxu0 0.0
    %5842 = vmatpush1.msra.mxu0 0.0
    %5843 = vmatprep.subr.mxu0 0.0
    %5844 = vmatpush1.msra.mxu0 0.0
    %5845 = vmatprep.subr.mxu0 0.0
    %5846 = vmatpush1.msra.mxu0 0.0
    %5847 = vmatprep.subr.mxu0 0.0
    %5848 = vmatpush1.msra.mxu0 0.0
    %5849 = vmatprep.subr.mxu0 0.0
    %5850 = vmatpush1.msra.mxu0 0.0
    %5851 = vmatprep.subr.mxu0 0.0
    %5852 = vmatpush1.msra.mxu0 0.0
    %5853 = vmatprep.subr.mxu0 0.0
    %5854 = vmatpush1.msra.mxu0 0.0
    %5855 = vmatprep.subr.mxu0 0.0
    %5856 = vmatpush1.msra.mxu0 0.0
    %5857 = vmatprep.subr.mxu0 0.0
    %5858 = vmatpush1.msra.mxu0 %v4408
    %5859 = vmatprep.subr.mxu0 0.0
    %5860 = vmatpush1.msra.mxu0 %v4407
    %5861 = vmatprep.subr.mxu0 0.0
    %5862 = vmatpush1.msra.mxu0 %v4406
    %5863 = vmatprep.subr.mxu0 0.0
    %5864 = vmatpush1.msra.mxu0 %v4405
    %5865 = vmatprep.subr.mxu0 0.0
    %5866 = vmatpush2.msra.mxu0 0.0
    %5867 = vmatprep.subr.mxu0 0.0
    %5868 = vmatpush2.msra.mxu0 0.0
    %5869 = vmatprep.subr.mxu0 0.0
    %5870 = vmatpush2.msra.mxu0 0.0
    %5871 = vmatprep.subr.mxu0 0.0
    %5872 = vmatpush2.msra.mxu0 0.0
    %5873 = vmatprep.subr.mxu0 0.0
    %5874 = vmatpush2.msra.mxu0 0.0
    %5875 = vmatprep.subr.mxu0 0.0
    %5876 = vmatpush2.msra.mxu0 0.0
    %5877 = vmatprep.subr.mxu0 0.0
    %5878 = vmatpush2.msra.mxu0 0.0
    %5879 = vmatprep.subr.mxu0 0.0
    %5880 = vmatpush2.msra.mxu0 0.0
    %5881 = vmatprep.subr.mxu0 0.0
    %5882 = vmatpush2.msra.mxu0 0.0
    %5883 = vmatprep.subr.mxu0 0.0
    %5884 = vmatpush2.msra.mxu0 0.0
    %5885 = vmatprep.subr.mxu0 0.0
    %5886 = vmatpush2.msra.mxu0 0.0
    %5887 = vmatprep.subr.mxu0 0.0
    %5888 = vmatpush2.msra.mxu0 0.0
    %5889 = vmatprep.subr.mxu0 0.0
    %5890 = vmatpush2.msra.mxu0 0.0
    %5891 = vmatprep.subr.mxu0 0.0
    %5892 = vmatpush2.msra.mxu0 0.0
    %5893 = vmatprep.subr.mxu0 0.0
    %5894 = vmatpush2.msra.mxu0 0.0
    %5895 = vmatprep.subr.mxu0 0.0
    %5896 = vmatpush2.msra.mxu0 0.0
    %5897 = vmatprep.mubr.f32.mxu0 0.0
    %5898 = vmatmul.mubr.f32.gmra.mxu0 %v5831
    %v5899 = vpop.f32.mrf.mxu0
    %v5900 = vadd.f32 0.0, %v5899
    %v5901 = vpop.f32.mrf.mxu0
    %5902 = vdwg.mxu0
    %v5904 = vrot.slane %v5829, 2
    %v5906 = vadd.f32 %v5904, %v5900
    %v5907 = vxor.u32 %v5828, 2147483648
    %v5908 = vmul.f32 %v5907, 1.442695
    %v5909 = vpow.pop %v5908
    %v5910 = vadd.f32 %v5909, 1.0
    %v5911 = vrcp.pop %v5910
    %v5912 = vmul.f32 1.0, %v5911
    %v5913 = vtanh.pop %v5828
    %v5916 = vunpack.c.l.s4 1983009808
    %v5917 = vunpack.c.0.s8 %v5916
    %v5918 = vlaneseq
    %v5919 = vshrl.u32 %v5918, 7
    %v5920 = vsub.s32 %v5917, %v5919
    %v5921 = vrot.slane %v5690, %v5920
    %5922 = vrot.lane.b32.xlu0 %v5921, 32
    %v5923 = vpop.permute.xlu0 %5922
    %v5925 = vmul.f32 %v5912, %v5923
    %5927 = vrot.lane.b32.xlu0 %v5913, 64
    %v5928 = vpop.permute.xlu0 %5927
    %v5930 = vmul.f32 %v5912, %v5928
    %5932 = vrot.lane.b32.xlu0 %v5930, 32
    %v5933 = vpop.permute.xlu0 %5932
    %v5935 = vadd.f32 %v5925, %v5933
    %v5936 = vtanh.pop %v5935
    %5938 = vrot.lane.b32.xlu0 %v5936, 64
    %v5939 = vpop.permute.xlu0 %5938
    %v5941 = vmul.f32 %v5912, %v5939
    %v5944 = vunpack.c.l.s4 1983009808
    %v5945 = vunpack.c.0.s8 %v5944
    %v5946 = vlaneseq
    %v5947 = vshrl.u32 %v5946, 7
    %v5948 = vsub.s32 %v5945, %v5947
    %v5949 = vrot.slane %v5941, %v5948
    %5950 = vrot.lane.b32.xlu0 %v5949, 32
    %v5951 = vpop.permute.xlu0 %5950
    %v5953 = vsel %vm2202, %v5951, %v5678
    %v5956 = vunpack.c.l.s4 1983009808
    %v5957 = vunpack.c.0.s8 %v5956
    %v5958 = vlaneseq
    %v5959 = vshrl.u32 %v5958, 7
    %v5960 = vsub.s32 %v5957, %v5959
    %v5961 = vrot.slane %v5935, %v5960
    %5962 = vrot.lane.b32.xlu0 %v5961, 96
    %v5963 = vpop.permute.xlu0 %5962
    %v5965 = vsel %vm2202, %v5963, %v5690
    %v5966 = vsel %vm2202, %v5951, 0.0
    %v5967 = vxor.u32 %v5906, 2147483648
    %v5968 = vmul.f32 %v5967, 1.442695
    %v5969 = vpow.pop %v5968
    %v5970 = vadd.f32 %v5969, 1.0
    %v5971 = vrcp.pop %v5970
    %v5972 = vmul.f32 1.0, %v5971
    %v5973 = vtanh.pop %v5906
    %v5976 = vunpack.c.l.s4 1983009808
    %v5977 = vunpack.c.0.s8 %v5976
    %v5978 = vlaneseq
    %v5979 = vshrl.u32 %v5978, 7
    %v5980 = vsub.s32 %v5977, %v5979
    %v5981 = vrot.slane %v5750, %v5980
    %5982 = vrot.lane.b32.xlu0 %v5981, 32
    %v5983 = vpop.permute.xlu0 %5982
    %v5985 = vmul.f32 %v5972, %v5983
    %5987 = vrot.lane.b32.xlu0 %v5973, 64
    %v5988 = vpop.permute.xlu0 %5987
    %v5990 = vmul.f32 %v5972, %v5988
    %5992 = vrot.lane.b32.xlu0 %v5990, 32
    %v5993 = vpop.permute.xlu0 %5992
    %v5995 = vadd.f32 %v5985, %v5993
    %v5996 = vtanh.pop %v5995
    %5998 = vrot.lane.b32.xlu0 %v5996, 64
    %v5999 = vpop.permute.xlu0 %5998
    %v6001 = vmul.f32 %v5972, %v5999
    %v6004 = vunpack.c.l.s4 1983009808
    %v6005 = vunpack.c.0.s8 %v6004
    %v6006 = vlaneseq
    %v6007 = vshrl.u32 %v6006, 7
    %v6008 = vsub.s32 %v6005, %v6007
    %v6009 = vrot.slane %v6001, %v6008
    %6010 = vrot.lane.b32.xlu0 %v6009, 32
    %v6011 = vpop.permute.xlu0 %6010
    %v6013 = vsel %vm2136, %v6011, %v5738
    %v6016 = vunpack.c.l.s4 1983009808
    %v6017 = vunpack.c.0.s8 %v6016
    %v6018 = vlaneseq
    %v6019 = vshrl.u32 %v6018, 7
    %v6020 = vsub.s32 %v6017, %v6019
    %v6021 = vrot.slane %v5995, %v6020
    %6022 = vrot.lane.b32.xlu0 %v6021, 96
    %v6023 = vpop.permute.xlu0 %6022
    %v6025 = vsel %vm2136, %v6023, %v5750
    %v6026 = vsel %vm2136, %v6011, 0.0
    %6027 = vst.msk [vmem:[%s3071] sm:$0x3] %vm1650, %v5966
    %6028 = vst.msk [vmem:[%s3073] sm:$0x3] %vm1650, %v6026
    %v6029 = vld [vmem:[%s1219] sm:$0xf]
    %v6031 = vsel %vm156, %v5953, 0
    %6033 = vmatprep.subr.mxu0 0.0
    %6034 = vmatpush1.msra.mxu0 0.0
    %6035 = vmatprep.subr.mxu0 0.0
    %6036 = vmatpush1.msra.mxu0 0.0
    %6037 = vmatprep.subr.mxu0 0.0
    %6038 = vmatpush1.msra.mxu0 0.0
    %6039 = vmatprep.subr.mxu0 0.0
    %6040 = vmatpush1.msra.mxu0 0.0
    %6041 = vmatprep.subr.mxu0 0.0
    %6042 = vmatpush1.msra.mxu0 0.0
    %6043 = vmatprep.subr.mxu0 0.0
    %6044 = vmatpush1.msra.mxu0 0.0
    %6045 = vmatprep.subr.mxu0 0.0
    %6046 = vmatpush1.msra.mxu0 0.0
    %6047 = vmatprep.subr.mxu0 0.0
    %6048 = vmatpush1.msra.mxu0 0.0
    %6049 = vmatprep.subr.mxu0 0.0
    %6050 = vmatpush1.msra.mxu0 0.0
    %6051 = vmatprep.subr.mxu0 0.0
    %6052 = vmatpush1.msra.mxu0 0.0
    %6053 = vmatprep.subr.mxu0 0.0
    %6054 = vmatpush1.msra.mxu0 0.0
    %6055 = vmatprep.subr.mxu0 0.0
    %6056 = vmatpush1.msra.mxu0 0.0
    %6057 = vmatprep.subr.mxu0 0.0
    %6058 = vmatpush1.msra.mxu0 %v4404
    %6059 = vmatprep.subr.mxu0 0.0
    %6060 = vmatpush1.msra.mxu0 %v4403
    %6061 = vmatprep.subr.mxu0 0.0
    %6062 = vmatpush1.msra.mxu0 %v4402
    %6063 = vmatprep.subr.mxu0 0.0
    %6064 = vmatpush1.msra.mxu0 %v4401
    %6065 = vmatprep.subr.mxu0 0.0
    %6066 = vmatpush2.msra.mxu0 0.0
    %6067 = vmatprep.subr.mxu0 0.0
    %6068 = vmatpush2.msra.mxu0 0.0
    %6069 = vmatprep.subr.mxu0 0.0
    %6070 = vmatpush2.msra.mxu0 0.0
    %6071 = vmatprep.subr.mxu0 0.0
    %6072 = vmatpush2.msra.mxu0 0.0
    %6073 = vmatprep.subr.mxu0 0.0
    %6074 = vmatpush2.msra.mxu0 0.0
    %6075 = vmatprep.subr.mxu0 0.0
    %6076 = vmatpush2.msra.mxu0 0.0
    %6077 = vmatprep.subr.mxu0 0.0
    %6078 = vmatpush2.msra.mxu0 0.0
    %6079 = vmatprep.subr.mxu0 0.0
    %6080 = vmatpush2.msra.mxu0 0.0
    %6081 = vmatprep.subr.mxu0 0.0
    %6082 = vmatpush2.msra.mxu0 0.0
    %6083 = vmatprep.subr.mxu0 0.0
    %6084 = vmatpush2.msra.mxu0 0.0
    %6085 = vmatprep.subr.mxu0 0.0
    %6086 = vmatpush2.msra.mxu0 0.0
    %6087 = vmatprep.subr.mxu0 0.0
    %6088 = vmatpush2.msra.mxu0 0.0
    %6089 = vmatprep.subr.mxu0 0.0
    %6090 = vmatpush2.msra.mxu0 0.0
    %6091 = vmatprep.subr.mxu0 0.0
    %6092 = vmatpush2.msra.mxu0 0.0
    %6093 = vmatprep.subr.mxu0 0.0
    %6094 = vmatpush2.msra.mxu0 0.0
    %6095 = vmatprep.subr.mxu0 0.0
    %6096 = vmatpush2.msra.mxu0 0.0
    %6097 = vmatprep.mubr.f32.mxu0 0.0
    %6098 = vmatmul.mubr.f32.gmra.mxu0 %v6031
    %v6099 = vpop.f32.mrf.mxu0
    %v6100 = vadd.f32 0.0, %v6099
    %v6101 = vpop.f32.mrf.mxu0
    %6102 = vdwg.mxu0
    %v6103 = vadd.f32 %v6029, %v6100
    %v6104 = vld [vmem:[%s404] sm:$0xf]
    %v6106 = vsel %vm156, %v6013, 0
    %6108 = vmatprep.subr.mxu0 0.0
    %6109 = vmatpush1.msra.mxu0 0.0
    %6110 = vmatprep.subr.mxu0 0.0
    %6111 = vmatpush1.msra.mxu0 0.0
    %6112 = vmatprep.subr.mxu0 0.0
    %6113 = vmatpush1.msra.mxu0 0.0
    %6114 = vmatprep.subr.mxu0 0.0
    %6115 = vmatpush1.msra.mxu0 0.0
    %6116 = vmatprep.subr.mxu0 0.0
    %6117 = vmatpush1.msra.mxu0 0.0
    %6118 = vmatprep.subr.mxu0 0.0
    %6119 = vmatpush1.msra.mxu0 0.0
    %6120 = vmatprep.subr.mxu0 0.0
    %6121 = vmatpush1.msra.mxu0 0.0
    %6122 = vmatprep.subr.mxu0 0.0
    %6123 = vmatpush1.msra.mxu0 0.0
    %6124 = vmatprep.subr.mxu0 0.0
    %6125 = vmatpush1.msra.mxu0 0.0
    %6126 = vmatprep.subr.mxu0 0.0
    %6127 = vmatpush1.msra.mxu0 0.0
    %6128 = vmatprep.subr.mxu0 0.0
    %6129 = vmatpush1.msra.mxu0 0.0
    %6130 = vmatprep.subr.mxu0 0.0
    %6131 = vmatpush1.msra.mxu0 0.0
    %6132 = vmatprep.subr.mxu0 0.0
    %6133 = vmatpush1.msra.mxu0 %v4408
    %6134 = vmatprep.subr.mxu0 0.0
    %6135 = vmatpush1.msra.mxu0 %v4407
    %6136 = vmatprep.subr.mxu0 0.0
    %6137 = vmatpush1.msra.mxu0 %v4406
    %6138 = vmatprep.subr.mxu0 0.0
    %6139 = vmatpush1.msra.mxu0 %v4405
    %6140 = vmatprep.subr.mxu0 0.0
    %6141 = vmatpush2.msra.mxu0 0.0
    %6142 = vmatprep.subr.mxu0 0.0
    %6143 = vmatpush2.msra.mxu0 0.0
    %6144 = vmatprep.subr.mxu0 0.0
    %6145 = vmatpush2.msra.mxu0 0.0
    %6146 = vmatprep.subr.mxu0 0.0
    %6147 = vmatpush2.msra.mxu0 0.0
    %6148 = vmatprep.subr.mxu0 0.0
    %6149 = vmatpush2.msra.mxu0 0.0
    %6150 = vmatprep.subr.mxu0 0.0
    %6151 = vmatpush2.msra.mxu0 0.0
    %6152 = vmatprep.subr.mxu0 0.0
    %6153 = vmatpush2.msra.mxu0 0.0
    %6154 = vmatprep.subr.mxu0 0.0
    %6155 = vmatpush2.msra.mxu0 0.0
    %6156 = vmatprep.subr.mxu0 0.0
    %6157 = vmatpush2.msra.mxu0 0.0
    %6158 = vmatprep.subr.mxu0 0.0
    %6159 = vmatpush2.msra.mxu0 0.0
    %6160 = vmatprep.subr.mxu0 0.0
    %6161 = vmatpush2.msra.mxu0 0.0
    %6162 = vmatprep.subr.mxu0 0.0
    %6163 = vmatpush2.msra.mxu0 0.0
    %6164 = vmatprep.subr.mxu0 0.0
    %6165 = vmatpush2.msra.mxu0 0.0
    %6166 = vmatprep.subr.mxu0 0.0
    %6167 = vmatpush2.msra.mxu0 0.0
    %6168 = vmatprep.subr.mxu0 0.0
    %6169 = vmatpush2.msra.mxu0 0.0
    %6170 = vmatprep.subr.mxu0 0.0
    %6171 = vmatpush2.msra.mxu0 0.0
    %6172 = vmatprep.mubr.f32.mxu0 0.0
    %6173 = vmatmul.mubr.f32.gmra.mxu0 %v6106
    %v6174 = vpop.f32.mrf.mxu0
    %v6175 = vadd.f32 0.0, %v6174
    %v6176 = vpop.f32.mrf.mxu0
    %6177 = vdwg.mxu0
    %v6179 = vrot.slane %v6104, 2
    %v6181 = vadd.f32 %v6179, %v6175
    %v6182 = vxor.u32 %v6103, 2147483648
    %v6183 = vmul.f32 %v6182, 1.442695
    %v6184 = vpow.pop %v6183
    %v6185 = vadd.f32 %v6184, 1.0
    %v6186 = vrcp.pop %v6185
    %v6187 = vmul.f32 1.0, %v6186
    %v6188 = vtanh.pop %v6103
    %v6191 = vunpack.c.l.s4 1983009808
    %v6192 = vunpack.c.0.s8 %v6191
    %v6193 = vlaneseq
    %v6194 = vshrl.u32 %v6193, 7
    %v6195 = vsub.s32 %v6192, %v6194
    %v6196 = vrot.slane %v5965, %v6195
    %6197 = vrot.lane.b32.xlu0 %v6196, 32
    %v6198 = vpop.permute.xlu0 %6197
    %v6200 = vmul.f32 %v6187, %v6198
    %6202 = vrot.lane.b32.xlu0 %v6188, 64
    %v6203 = vpop.permute.xlu0 %6202
    %v6205 = vmul.f32 %v6187, %v6203
    %6207 = vrot.lane.b32.xlu0 %v6205, 32
    %v6208 = vpop.permute.xlu0 %6207
    %v6210 = vadd.f32 %v6200, %v6208
    %v6211 = vtanh.pop %v6210
    %6213 = vrot.lane.b32.xlu0 %v6211, 64
    %v6214 = vpop.permute.xlu0 %6213
    %v6216 = vmul.f32 %v6187, %v6214
    %v6219 = vunpack.c.l.s4 1983009808
    %v6220 = vunpack.c.0.s8 %v6219
    %v6221 = vlaneseq
    %v6222 = vshrl.u32 %v6221, 7
    %v6223 = vsub.s32 %v6220, %v6222
    %v6224 = vrot.slane %v6216, %v6223
    %6225 = vrot.lane.b32.xlu0 %v6224, 32
    %v6226 = vpop.permute.xlu0 %6225
    %v6228 = vsel %vm1913, %v6226, %v5953
    %v6231 = vunpack.c.l.s4 1983009808
    %v6232 = vunpack.c.0.s8 %v6231
    %v6233 = vlaneseq
    %v6234 = vshrl.u32 %v6233, 7
    %v6235 = vsub.s32 %v6232, %v6234
    %v6236 = vrot.slane %v6210, %v6235
    %6237 = vrot.lane.b32.xlu0 %v6236, 96
    %v6238 = vpop.permute.xlu0 %6237
    %v6240 = vsel %vm1913, %v6238, %v5965
    %v6241 = vsel %vm1913, %v6226, 0.0
    %v6242 = vxor.u32 %v6181, 2147483648
    %v6243 = vmul.f32 %v6242, 1.442695
    %v6244 = vpow.pop %v6243
    %v6245 = vadd.f32 %v6244, 1.0
    %v6246 = vrcp.pop %v6245
    %v6247 = vmul.f32 1.0, %v6246
    %v6248 = vtanh.pop %v6181
    %v6251 = vunpack.c.l.s4 1983009808
    %v6252 = vunpack.c.0.s8 %v6251
    %v6253 = vlaneseq
    %v6254 = vshrl.u32 %v6253, 7
    %v6255 = vsub.s32 %v6252, %v6254
    %v6256 = vrot.slane %v6025, %v6255
    %6257 = vrot.lane.b32.xlu0 %v6256, 32
    %v6258 = vpop.permute.xlu0 %6257
    %v6260 = vmul.f32 %v6247, %v6258
    %6262 = vrot.lane.b32.xlu0 %v6248, 64
    %v6263 = vpop.permute.xlu0 %6262
    %v6265 = vmul.f32 %v6247, %v6263
    %6267 = vrot.lane.b32.xlu0 %v6265, 32
    %v6268 = vpop.permute.xlu0 %6267
    %v6270 = vadd.f32 %v6260, %v6268
    %v6271 = vtanh.pop %v6270
    %6273 = vrot.lane.b32.xlu0 %v6271, 64
    %v6274 = vpop.permute.xlu0 %6273
    %v6276 = vmul.f32 %v6247, %v6274
    %v6279 = vunpack.c.l.s4 1983009808
    %v6280 = vunpack.c.0.s8 %v6279
    %v6281 = vlaneseq
    %v6282 = vshrl.u32 %v6281, 7
    %v6283 = vsub.s32 %v6280, %v6282
    %v6284 = vrot.slane %v6276, %v6283
    %6285 = vrot.lane.b32.xlu0 %v6284, 32
    %v6286 = vpop.permute.xlu0 %6285
    %v6288 = vsel %vm1847, %v6286, %v6013
    %v6291 = vunpack.c.l.s4 1983009808
    %v6292 = vunpack.c.0.s8 %v6291
    %v6293 = vlaneseq
    %v6294 = vshrl.u32 %v6293, 7
    %v6295 = vsub.s32 %v6292, %v6294
    %v6296 = vrot.slane %v6270, %v6295
    %6297 = vrot.lane.b32.xlu0 %v6296, 96
    %v6298 = vpop.permute.xlu0 %6297
    %v6300 = vsel %vm1847, %v6298, %v6025
    %v6301 = vsel %vm1847, %v6286, 0.0
    %6302 = vst.msk [vmem:[%s3348] sm:$0x3] %vm1650, %v6241
    %6303 = vst.msk [vmem:[%s3350] sm:$0x3] %vm1650, %v6301
    %v6304 = vld [vmem:[%s1382] sm:$0xf]
    %v6306 = vsel %vm156, %v6228, 0
    %6308 = vmatprep.subr.mxu0 0.0
    %6309 = vmatpush1.msra.mxu0 0.0
    %6310 = vmatprep.subr.mxu0 0.0
    %6311 = vmatpush1.msra.mxu0 0.0
    %6312 = vmatprep.subr.mxu0 0.0
    %6313 = vmatpush1.msra.mxu0 0.0
    %6314 = vmatprep.subr.mxu0 0.0
    %6315 = vmatpush1.msra.mxu0 0.0
    %6316 = vmatprep.subr.mxu0 0.0
    %6317 = vmatpush1.msra.mxu0 0.0
    %6318 = vmatprep.subr.mxu0 0.0
    %6319 = vmatpush1.msra.mxu0 0.0
    %6320 = vmatprep.subr.mxu0 0.0
    %6321 = vmatpush1.msra.mxu0 0.0
    %6322 = vmatprep.subr.mxu0 0.0
    %6323 = vmatpush1.msra.mxu0 0.0
    %6324 = vmatprep.subr.mxu0 0.0
    %6325 = vmatpush1.msra.mxu0 0.0
    %6326 = vmatprep.subr.mxu0 0.0
    %6327 = vmatpush1.msra.mxu0 0.0
    %6328 = vmatprep.subr.mxu0 0.0
    %6329 = vmatpush1.msra.mxu0 0.0
    %6330 = vmatprep.subr.mxu0 0.0
    %6331 = vmatpush1.msra.mxu0 0.0
    %6332 = vmatprep.subr.mxu0 0.0
    %6333 = vmatpush1.msra.mxu0 %v4404
    %6334 = vmatprep.subr.mxu0 0.0
    %6335 = vmatpush1.msra.mxu0 %v4403
    %6336 = vmatprep.subr.mxu0 0.0
    %6337 = vmatpush1.msra.mxu0 %v4402
    %6338 = vmatprep.subr.mxu0 0.0
    %6339 = vmatpush1.msra.mxu0 %v4401
    %6340 = vmatprep.subr.mxu0 0.0
    %6341 = vmatpush2.msra.mxu0 0.0
    %6342 = vmatprep.subr.mxu0 0.0
    %6343 = vmatpush2.msra.mxu0 0.0
    %6344 = vmatprep.subr.mxu0 0.0
    %6345 = vmatpush2.msra.mxu0 0.0
    %6346 = vmatprep.subr.mxu0 0.0
    %6347 = vmatpush2.msra.mxu0 0.0
    %6348 = vmatprep.subr.mxu0 0.0
    %6349 = vmatpush2.msra.mxu0 0.0
    %6350 = vmatprep.subr.mxu0 0.0
    %6351 = vmatpush2.msra.mxu0 0.0
    %6352 = vmatprep.subr.mxu0 0.0
    %6353 = vmatpush2.msra.mxu0 0.0
    %6354 = vmatprep.subr.mxu0 0.0
    %6355 = vmatpush2.msra.mxu0 0.0
    %6356 = vmatprep.subr.mxu0 0.0
    %6357 = vmatpush2.msra.mxu0 0.0
    %6358 = vmatprep.subr.mxu0 0.0
    %6359 = vmatpush2.msra.mxu0 0.0
    %6360 = vmatprep.subr.mxu0 0.0
    %6361 = vmatpush2.msra.mxu0 0.0
    %6362 = vmatprep.subr.mxu0 0.0
    %6363 = vmatpush2.msra.mxu0 0.0
    %6364 = vmatprep.subr.mxu0 0.0
    %6365 = vmatpush2.msra.mxu0 0.0
    %6366 = vmatprep.subr.mxu0 0.0
    %6367 = vmatpush2.msra.mxu0 0.0
    %6368 = vmatprep.subr.mxu0 0.0
    %6369 = vmatpush2.msra.mxu0 0.0
    %6370 = vmatprep.subr.mxu0 0.0
    %6371 = vmatpush2.msra.mxu0 0.0
    %6372 = vmatprep.mubr.f32.mxu0 0.0
    %6373 = vmatmul.mubr.f32.gmra.mxu0 %v6306
    %v6374 = vpop.f32.mrf.mxu0
    %v6375 = vadd.f32 0.0, %v6374
    %v6376 = vpop.f32.mrf.mxu0
    %6377 = vdwg.mxu0
    %v6378 = vadd.f32 %v6304, %v6375
    %v6379 = vld [vmem:[#allocation2] sm:$0xf]
    %v6381 = vsel %vm156, %v6288, 0
    %6383 = vmatprep.subr.mxu0 0.0
    %6384 = vmatpush1.msra.mxu0 0.0
    %6385 = vmatprep.subr.mxu0 0.0
    %6386 = vmatpush1.msra.mxu0 0.0
    %6387 = vmatprep.subr.mxu0 0.0
    %6388 = vmatpush1.msra.mxu0 0.0
    %6389 = vmatprep.subr.mxu0 0.0
    %6390 = vmatpush1.msra.mxu0 0.0
    %6391 = vmatprep.subr.mxu0 0.0
    %6392 = vmatpush1.msra.mxu0 0.0
    %6393 = vmatprep.subr.mxu0 0.0
    %6394 = vmatpush1.msra.mxu0 0.0
    %6395 = vmatprep.subr.mxu0 0.0
    %6396 = vmatpush1.msra.mxu0 0.0
    %6397 = vmatprep.subr.mxu0 0.0
    %6398 = vmatpush1.msra.mxu0 0.0
    %6399 = vmatprep.subr.mxu0 0.0
    %6400 = vmatpush1.msra.mxu0 0.0
    %6401 = vmatprep.subr.mxu0 0.0
    %6402 = vmatpush1.msra.mxu0 0.0
    %6403 = vmatprep.subr.mxu0 0.0
    %6404 = vmatpush1.msra.mxu0 0.0
    %6405 = vmatprep.subr.mxu0 0.0
    %6406 = vmatpush1.msra.mxu0 0.0
    %6407 = vmatprep.subr.mxu0 0.0
    %6408 = vmatpush1.msra.mxu0 %v4408
    %6409 = vmatprep.subr.mxu0 0.0
    %6410 = vmatpush1.msra.mxu0 %v4407
    %6411 = vmatprep.subr.mxu0 0.0
    %6412 = vmatpush1.msra.mxu0 %v4406
    %6413 = vmatprep.subr.mxu0 0.0
    %6414 = vmatpush1.msra.mxu0 %v4405
    %6415 = vmatprep.subr.mxu0 0.0
    %6416 = vmatpush2.msra.mxu0 0.0
    %6417 = vmatprep.subr.mxu0 0.0
    %6418 = vmatpush2.msra.mxu0 0.0
    %6419 = vmatprep.subr.mxu0 0.0
    %6420 = vmatpush2.msra.mxu0 0.0
    %6421 = vmatprep.subr.mxu0 0.0
    %6422 = vmatpush2.msra.mxu0 0.0
    %6423 = vmatprep.subr.mxu0 0.0
    %6424 = vmatpush2.msra.mxu0 0.0
    %6425 = vmatprep.subr.mxu0 0.0
    %6426 = vmatpush2.msra.mxu0 0.0
    %6427 = vmatprep.subr.mxu0 0.0
    %6428 = vmatpush2.msra.mxu0 0.0
    %6429 = vmatprep.subr.mxu0 0.0
    %6430 = vmatpush2.msra.mxu0 0.0
    %6431 = vmatprep.subr.mxu0 0.0
    %6432 = vmatpush2.msra.mxu0 0.0
    %6433 = vmatprep.subr.mxu0 0.0
    %6434 = vmatpush2.msra.mxu0 0.0
    %6435 = vmatprep.subr.mxu0 0.0
    %6436 = vmatpush2.msra.mxu0 0.0
    %6437 = vmatprep.subr.mxu0 0.0
    %6438 = vmatpush2.msra.mxu0 0.0
    %6439 = vmatprep.subr.mxu0 0.0
    %6440 = vmatpush2.msra.mxu0 0.0
    %6441 = vmatprep.subr.mxu0 0.0
    %6442 = vmatpush2.msra.mxu0 0.0
    %6443 = vmatprep.subr.mxu0 0.0
    %6444 = vmatpush2.msra.mxu0 0.0
    %6445 = vmatprep.subr.mxu0 0.0
    %6446 = vmatpush2.msra.mxu0 0.0
    %6447 = vmatprep.mubr.f32.mxu0 0.0
    %6448 = vmatmul.mubr.f32.gmra.mxu0 %v6381
    %v6449 = vpop.f32.mrf.mxu0
    %v6450 = vadd.f32 0.0, %v6449
    %v6451 = vpop.f32.mrf.mxu0
    %6452 = vdwg.mxu0
    %v6454 = vrot.slane %v6379, 2
    %v6456 = vadd.f32 %v6454, %v6450
    %v6457 = vxor.u32 %v6378, 2147483648
    %v6458 = vmul.f32 %v6457, 1.442695
    %v6459 = vpow.pop %v6458
    %v6460 = vadd.f32 %v6459, 1.0
    %v6461 = vrcp.pop %v6460
    %v6462 = vmul.f32 1.0, %v6461
    %v6463 = vtanh.pop %v6378
    %v6466 = vunpack.c.l.s4 1983009808
    %v6467 = vunpack.c.0.s8 %v6466
    %v6468 = vlaneseq
    %v6469 = vshrl.u32 %v6468, 7
    %v6470 = vsub.s32 %v6467, %v6469
    %v6471 = vrot.slane %v6240, %v6470
    %6472 = vrot.lane.b32.xlu0 %v6471, 32
    %v6473 = vpop.permute.xlu0 %6472
    %v6475 = vmul.f32 %v6462, %v6473
    %6477 = vrot.lane.b32.xlu0 %v6463, 64
    %v6478 = vpop.permute.xlu0 %6477
    %v6480 = vmul.f32 %v6462, %v6478
    %6482 = vrot.lane.b32.xlu0 %v6480, 32
    %v6483 = vpop.permute.xlu0 %6482
    %v6485 = vadd.f32 %v6475, %v6483
    %v6486 = vtanh.pop %v6485
    %6488 = vrot.lane.b32.xlu0 %v6486, 64
    %v6489 = vpop.permute.xlu0 %6488
    %v6491 = vmul.f32 %v6462, %v6489
    %v6494 = vunpack.c.l.s4 1983009808
    %v6495 = vunpack.c.0.s8 %v6494
    %v6496 = vlaneseq
    %v6497 = vshrl.u32 %v6496, 7
    %v6498 = vsub.s32 %v6495, %v6497
    %v6499 = vrot.slane %v6491, %v6498
    %6500 = vrot.lane.b32.xlu0 %v6499, 32
    %v6501 = vpop.permute.xlu0 %6500
    %v6503 = vsel %vm1625, %v6501, 0.0
    %v6504 = vxor.u32 %v6456, 2147483648
    %v6505 = vmul.f32 %v6504, 1.442695
    %v6506 = vpow.pop %v6505
    %v6507 = vadd.f32 %v6506, 1.0
    %v6508 = vrcp.pop %v6507
    %v6509 = vmul.f32 1.0, %v6508
    %v6510 = vtanh.pop %v6456
    %v6513 = vunpack.c.l.s4 1983009808
    %v6514 = vunpack.c.0.s8 %v6513
    %v6515 = vlaneseq
    %v6516 = vshrl.u32 %v6515, 7
    %v6517 = vsub.s32 %v6514, %v6516
    %v6518 = vrot.slane %v6300, %v6517
    %6519 = vrot.lane.b32.xlu0 %v6518, 32
    %v6520 = vpop.permute.xlu0 %6519
    %v6522 = vmul.f32 %v6509, %v6520
    %6524 = vrot.lane.b32.xlu0 %v6510, 64
    %v6525 = vpop.permute.xlu0 %6524
    %v6527 = vmul.f32 %v6509, %v6525
    %6529 = vrot.lane.b32.xlu0 %v6527, 32
    %v6530 = vpop.permute.xlu0 %6529
    %v6532 = vadd.f32 %v6522, %v6530
    %v6533 = vtanh.pop %v6532
    %6535 = vrot.lane.b32.xlu0 %v6533, 64
    %v6536 = vpop.permute.xlu0 %6535
    %v6538 = vmul.f32 %v6509, %v6536
    %v6541 = vunpack.c.l.s4 1983009808
    %v6542 = vunpack.c.0.s8 %v6541
    %v6543 = vlaneseq
    %v6544 = vshrl.u32 %v6543, 7
    %v6545 = vsub.s32 %v6542, %v6544
    %v6546 = vrot.slane %v6538, %v6545
    %6547 = vrot.lane.b32.xlu0 %v6546, 32
    %v6548 = vpop.permute.xlu0 %6547
    %v6550 = vsel %vm1571, %v6548, 0.0
    %6551 = vst.msk [vmem:[%s3625] sm:$0x3] %vm1650, %v6503
    %6552 = vst.msk [vmem:[#allocation4] sm:$0x3] %vm1650, %v6550
    %v6553 = vld [vmem:[#allocation3] sm:$0x3]
    %v6554 = vld [vmem:[#allocation4] sm:$0x3]
    %6556 = vrot.lane.b32.xlu0 %v6554, 32
    %v6557 = vpop.permute.xlu0 %6556
    %v6559 = vsel %vm156, %v6553, %v6557
    %vm6560 = vcmask 517120
    %6561 = vst.msk [vmem:[#allocation5] sm:$0x3] %vm6560, %v6559
    %v6562 = vld [vmem:[%s1939] sm:$0x3]
    %v6563 = vld [vmem:[%s3350] sm:$0x3]
    %6565 = vrot.lane.b32.xlu0 %v6563, 32
    %v6566 = vpop.permute.xlu0 %6565
    %v6568 = vsel %vm156, %v6562, %v6566
    %s6569 = scalar_lea.vmem [#allocation5], 2
    %6570 = vst.msk [vmem:[%s6569] sm:$0x3] %vm6560, %v6568
    %v6571 = vld [vmem:[%s2228] sm:$0x3]
    %v6572 = vld [vmem:[%s3073] sm:$0x3]
    %6574 = vrot.lane.b32.xlu0 %v6572, 32
    %v6575 = vpop.permute.xlu0 %6574
    %v6577 = vsel %vm156, %v6571, %v6575
    %s6578 = scalar_lea.vmem [#allocation5], 4
    %6579 = vst.msk [vmem:[%s6578] sm:$0x3] %vm6560, %v6577
    %v6580 = vld [vmem:[%s2517] sm:$0x3]
    %v6581 = vld [vmem:[%s2796] sm:$0x3]
    %6583 = vrot.lane.b32.xlu0 %v6581, 32
    %v6584 = vpop.permute.xlu0 %6583
    %v6586 = vsel %vm156, %v6580, %v6584
    %s6587 = scalar_lea.vmem [#allocation5], 6
    %6588 = vst.msk [vmem:[%s6587] sm:$0x3] %vm6560, %v6586
    %v6589 = vld [vmem:[%s2794] sm:$0x3]
    %v6590 = vld [vmem:[%s2519] sm:$0x3]
    %6592 = vrot.lane.b32.xlu0 %v6590, 32
    %v6593 = vpop.permute.xlu0 %6592
    %v6595 = vsel %vm156, %v6589, %v6593
    %s6596 = scalar_lea.vmem [#allocation5], 8
    %6597 = vst.msk [vmem:[%s6596] sm:$0x3] %vm6560, %v6595
    %v6598 = vld [vmem:[%s3071] sm:$0x3]
    %v6599 = vld [vmem:[%s2230] sm:$0x3]
    %6601 = vrot.lane.b32.xlu0 %v6599, 32
    %v6602 = vpop.permute.xlu0 %6601
    %v6604 = vsel %vm156, %v6598, %v6602
    %s6605 = scalar_lea.vmem [#allocation5], 10
    %6606 = vst.msk [vmem:[%s6605] sm:$0x3] %vm6560, %v6604
    %v6607 = vld [vmem:[%s3348] sm:$0x3]
    %v6608 = vld [vmem:[%s1941] sm:$0x3]
    %6610 = vrot.lane.b32.xlu0 %v6608, 32
    %v6611 = vpop.permute.xlu0 %6610
    %v6613 = vsel %vm156, %v6607, %v6611
    %s6614 = scalar_lea.vmem [#allocation5], 12
    %6615 = vst.msk [vmem:[%s6614] sm:$0x3] %vm6560, %v6613
    %v6616 = vld [vmem:[%s3625] sm:$0x3]
    %v6617 = vld [vmem:[%s1652] sm:$0x3]
    %6619 = vrot.lane.b32.xlu0 %v6617, 32
    %v6620 = vpop.permute.xlu0 %6619
    %v6622 = vsel %vm156, %v6616, %v6620
    %s6623 = scalar_lea.vmem [#allocation5], 14
    %6624 = vst.msk [vmem:[%s6623] sm:$0x3] %vm6560, %v6622
    %6626 = vrot.lane.b32.xlu0 %v3611, 32
    %v6627 = vpop.permute.xlu0 %6626
    %v6629 = vsel %vm156, %v3551, %v6627
    %6631 = vrot.lane.b32.xlu0 %v3623, 32
    %v6632 = vpop.permute.xlu0 %6631
    %v6634 = vsel %vm156, %v3563, %v6632
    %v6636 = vrot.slane %v6634, 6
    %vm6638 = vcmask 1041408
    %v6639 = vsel %vm6638, %v6629, %v6636
    %v6640 = vld [vmem:[%s12] sm:$0xff]
    %v6641 = vld [vmem:[%s12 + $0x8] sm:$0xff]
    %v6642 = vld [vmem:[%s12 + $0x10] sm:$0xff]
    %v6643 = vld [vmem:[%s12 + $0x18] sm:$0xff]
    %v6644 = vld [vmem:[%s12 + $0x20] sm:$0xff]
    %v6645 = vld [vmem:[%s12 + $0x28] sm:$0xff]
    %v6646 = vld [vmem:[%s12 + $0x30] sm:$0xff]
    %v6647 = vld [vmem:[%s12 + $0x38] sm:$0xff]
    %v6648 = vld [vmem:[%s13] sm:$0x1]
    %v6650 = vlaneseq
    %v6651 = vshrl.u32 %v6650, 7
    %v6652 = vsub.s32 0, %v6651
    %v6653 = vrot.slane %v6648, %v6652
    %v6656 = vsel %vm3663, %v6639, 0
    %6658 = vmatprep.subr.mxu0 0.0
    %6659 = vmatpush1.msra.mxu0 0.0
    %6660 = vmatprep.subr.mxu0 0.0
    %6661 = vmatpush1.msra.mxu0 0.0
    %6662 = vmatprep.subr.mxu0 0.0
    %6663 = vmatpush1.msra.mxu0 0.0
    %6664 = vmatprep.subr.mxu0 0.0
    %6665 = vmatpush1.msra.mxu0 0.0
    %6666 = vmatprep.subr.mxu0 0.0
    %6667 = vmatpush1.msra.mxu0 0.0
    %6668 = vmatprep.subr.mxu0 0.0
    %6669 = vmatpush1.msra.mxu0 0.0
    %6670 = vmatprep.subr.mxu0 0.0
    %6671 = vmatpush1.msra.mxu0 0.0
    %6672 = vmatprep.subr.mxu0 0.0
    %6673 = vmatpush1.msra.mxu0 0.0
    %6674 = vmatprep.subr.mxu0 0.0
    %6675 = vmatpush1.msra.mxu0 %v6647
    %6676 = vmatprep.subr.mxu0 0.0
    %6677 = vmatpush1.msra.mxu0 %v6646
    %6678 = vmatprep.subr.mxu0 0.0
    %6679 = vmatpush1.msra.mxu0 %v6645
    %6680 = vmatprep.subr.mxu0 0.0
    %6681 = vmatpush1.msra.mxu0 %v6644
    %6682 = vmatprep.subr.mxu0 0.0
    %6683 = vmatpush1.msra.mxu0 %v6643
    %6684 = vmatprep.subr.mxu0 0.0
    %6685 = vmatpush1.msra.mxu0 %v6642
    %6686 = vmatprep.subr.mxu0 0.0
    %6687 = vmatpush1.msra.mxu0 %v6641
    %6688 = vmatprep.subr.mxu0 0.0
    %6689 = vmatpush1.msra.mxu0 %v6640
    %6690 = vmatprep.subr.mxu0 0.0
    %6691 = vmatpush2.msra.mxu0 0.0
    %6692 = vmatprep.subr.mxu0 0.0
    %6693 = vmatpush2.msra.mxu0 0.0
    %6694 = vmatprep.subr.mxu0 0.0
    %6695 = vmatpush2.msra.mxu0 0.0
    %6696 = vmatprep.subr.mxu0 0.0
    %6697 = vmatpush2.msra.mxu0 0.0
    %6698 = vmatprep.subr.mxu0 0.0
    %6699 = vmatpush2.msra.mxu0 0.0
    %6700 = vmatprep.subr.mxu0 0.0
    %6701 = vmatpush2.msra.mxu0 0.0
    %6702 = vmatprep.subr.mxu0 0.0
    %6703 = vmatpush2.msra.mxu0 0.0
    %6704 = vmatprep.subr.mxu0 0.0
    %6705 = vmatpush2.msra.mxu0 0.0
    %6706 = vmatprep.subr.mxu0 0.0
    %6707 = vmatpush2.msra.mxu0 0.0
    %6708 = vmatprep.subr.mxu0 0.0
    %6709 = vmatpush2.msra.mxu0 0.0
    %6710 = vmatprep.subr.mxu0 0.0
    %6711 = vmatpush2.msra.mxu0 0.0
    %6712 = vmatprep.subr.mxu0 0.0
    %6713 = vmatpush2.msra.mxu0 0.0
    %6714 = vmatprep.subr.mxu0 0.0
    %6715 = vmatpush2.msra.mxu0 0.0
    %6716 = vmatprep.subr.mxu0 0.0
    %6717 = vmatpush2.msra.mxu0 0.0
    %6718 = vmatprep.subr.mxu0 0.0
    %6719 = vmatpush2.msra.mxu0 0.0
    %6720 = vmatprep.subr.mxu0 0.0
    %6721 = vmatpush2.msra.mxu0 0.0
    %6722 = vmatprep.mubr.f32.mxu0 0.0
    %6723 = vmatmul.mubr.f32.gmra.mxu0 %v6656
    %v6724 = vpop.f32.mrf.mxu0
    %v6725 = vadd.f32 %v6653, %v6724
    %v6726 = vpop.f32.mrf.mxu0
    %6727 = vdwg.mxu0
    %v6728 = vtanh.pop %v6725
    %vm6729 = vcmask 257024
    %6730 = vst.msk [vmem:[%s15] sm:$0xf] %vm6729, %v6728
    // Predicated region
    $region58: #{encoder_rnn_forward.1} parent=1 // pred_check
      _
    $region59: #{encoder_rnn_forward.1} parent=1 // pred_check_branch
      %6732 = sbr.rel (0) target = $region61
    $region60: #{encoder_rnn_forward.1} parent=1 // pred_region
      %s6734 = ssub.s32 256, 256
      %6735 = vsyncadd [#allocation6], %s6734
      %s6736 = sshll.u32 [#allocation5], 4
      %s6737 = int_to_ptr.vmem [resolvable:$true] %s6736
      %6742 = dma.vmem_to_hbm [thread:$0]  %s6737, 256, %s14, [#allocation6], 32, 32, 2
    $region61: #{encoder_rnn_forward.1} parent=1 // pred_fallthru
      _
    // Predicated region
    $region62: #{encoder_rnn_forward.1} parent=1 // pred_check
      _
    $region63: #{encoder_rnn_forward.1} parent=1 // pred_check_branch
      %6744 = sbr.rel (0) target = $region65
    $region64: #{encoder_rnn_forward.1} parent=1 // pred_region
      _
    $region65: #{encoder_rnn_forward.1} parent=1 // pred_fallthru
      _
    // Predicated region
    $region66: #{encoder_rnn_forward.1} parent=1 // pred_check
      _
    $region67: #{encoder_rnn_forward.1} parent=1 // pred_check_branch
      %6746 = sbr.rel (0) target = $region69
    $region68: #{encoder_rnn_forward.1} parent=1 // pred_region
      %6747 = dma.done [#allocation6], 256
    $region69: #{encoder_rnn_forward.1} parent=1 // pred_fallthru
      _
    // Predicated region
    $region70: #{encoder_rnn_forward.1} parent=1 // pred_check
      _
    $region71: #{encoder_rnn_forward.1} parent=1 // pred_check_branch
      %6749 = sbr.rel (0) target = $region73
    $region72: #{encoder_rnn_forward.1} parent=1 // pred_region
      _
    $region73: #{encoder_rnn_forward.1} parent=1 // pred_fallthru
      _
    %6750 = vsyncpa [#allocation6], 1

</llo_original>
